<compile_context>
chip_gen: v7x
topology: tpu7x:2x2x1
jax: 0.10.0
libtpu: 0.0.40
codegen_flags: <defaults>
</compile_context>

<pallas_src>
import functools

import jax
import jax.numpy as jnp
from jax.experimental import pallas as pl
from jax.experimental.pallas import tpu as pltpu

NUM_CLASSES = 10      # config.NUM_CLASSES
EMBED_DIM = 50
NZ = 3
BN_EPS = 1e-5

_LANE = 128
_SUBLANE = 8
CIN_PAD = ((NZ + EMBED_DIM + _SUBLANE - 1) // _SUBLANE) * _SUBLANE   # 53 -> 56


def _round_up(x, m):
    return (x + m - 1) // m * m


# --------------------------------------------------------------------------
# Pallas kernel: (phase-blocked) matmul with fully fused epilogue
# --------------------------------------------------------------------------
def _fused_matmul_kernel(a_ref, w_ref, aux_ref, o_ref, *,
                         mp, epilogue, n_phases, n_valid):
    """One grid step = one 'phase'.

    a_ref   : (mp, K)        bf16, VMEM-resident across phases (same block index)
    w_ref   : (1, K, Np)     bf16, per-phase weight matrix
    aux_ref : (8, Np)        f32, row0=bias, row1=gamma, row2=beta
    o_ref   : (n_phases*mp, Np) f32, VMEM-resident; phase p owns rows [p*mp, (p+1)*mp)
    """
    p = pl.program_id(0)
    y = jnp.dot(a_ref[...], w_ref[0], preferred_element_type=jnp.float32)
    row0 = pl.multiple_of(p * mp, _SUBLANE)

    if epilogue == "bn_relu":
        # Conv bias is mathematically cancelled by the BN mean subtraction -> skipped
        # (one less (1, Np) DMA + full-tile add per BN layer).
        o_ref[pl.ds(row0, mp), :] = y

        @pl.when(p == n_phases - 1)
        def _():
            # Training-mode batch statistics over all phases / rows (two-pass var).
            yall = o_ref[...]
            inv_n = 1.0 / n_valid
            mean = jnp.sum(yall, axis=0, keepdims=True) * inv_n
            d = yall - mean
            var = jnp.sum(d * d, axis=0, keepdims=True) * inv_n
            yn = d * jax.lax.rsqrt(var + BN_EPS)
            gamma = aux_ref[1:2, :]
            beta = aux_ref[2:3, :]
            o_ref[...] = jnp.maximum(yn * gamma + beta, 0.0)
    else:
        y = y + aux_ref[0:1, :]
        if epilogue == "relu":
            y = jnp.maximum(y, 0.0)
        elif epilogue == "tanh":
            y = jnp.tanh(y)
        o_ref[pl.ds(row0, mp), :] = y


def matmul_fused(a, w, aux, *, epilogue="none"):
    """(M, K) @ (P, K, Np) with a fused epilogue; the P 'phase' matrices are applied
    as P grid steps that reuse the VMEM-resident patch block.  Returns (P*M, Np) f32
    where row p*M + r is phase p, patch-row r.

    K and Np must be multiples of 128 and M a multiple of 8 (guaranteed by
    prepare_params / the Generator shapes)."""
    M, K = a.shape
    P, Kw, Np = w.shape
    assert K == Kw and K % _LANE == 0 and Np % _LANE == 0, (a.shape, w.shape)
    assert M % _SUBLANE == 0, M
    assert aux.shape == (8, Np), aux.shape

    kernel = functools.partial(_fused_matmul_kernel, mp=M, epilogue=epilogue,
                               n_phases=P, n_valid=P * M)
    return pl.pallas_call(
        kernel,
        out_shape=jax.ShapeDtypeStruct((P * M, Np), jnp.float32),
        grid_spec=pltpu.PrefetchScalarGridSpec(
            num_scalar_prefetch=0,
            grid=(P,),
            in_specs=[
                pl.BlockSpec((M, K), lambda p: (0, 0)),          # patches (resident)
                pl.BlockSpec((1, K, Np), lambda p: (p, 0, 0)),   # per-phase weight
                pl.BlockSpec((8, Np), lambda p: (0, 0)),         # bias/gamma/beta
            ],
            out_specs=pl.BlockSpec((P * M, Np), lambda p: (0, 0)),  # resident output
        ),
        compiler_params=pltpu.CompilerParams(
            dimension_semantics=("arbitrary",),
            vmem_limit_bytes=32 * 1024 * 1024),
    )(a, w, aux)


# --------------------------------------------------------------------------
# Conv / ConvTranspose layers built on the fused matmul
# --------------------------------------------------------------------------
def _im2col(x, k, stride, pad):
    """x: (B,H,W,C) -> (B,Ho,Wo,k*k*C), feature order = (ki, kj, c)."""
    # TODO(synk): move this window extraction into the Pallas kernel (phase-split
    # input + contiguous in-kernel slices) to also drop the conv-layer patch traffic.
    if pad:
        x = jnp.pad(x, ((0, 0), (pad, pad), (pad, pad), (0, 0)))
    B, Hp, Wp, C = x.shape
    Ho = (Hp - k) // stride + 1
    Wo = (Wp - k) // stride + 1
    cols = []
    for i in range(k):
        for j in range(k):
            cols.append(x[:, i:i + (Ho - 1) * stride + 1:stride,
                          j:j + (Wo - 1) * stride + 1:stride, :])
    patches = jnp.stack(cols, axis=-2)            # (B,Ho,Wo,k*k,C)
    return patches.reshape(B, Ho, Wo, k * k * C)


def _conv_block(x, w, aux, *, k, stride, pad, epilogue, cout):
    patches = _im2col(x, k, stride, pad)
    B, Ho, Wo, KK = patches.shape
    a = patches.reshape(B * Ho * Wo, KK).astype(jnp.bfloat16)
    kp = w.shape[1]
    if kp != KK:
        a = jnp.pad(a, ((0, 0), (0, kp - KK)))
    out = matmul_fused(a, w, aux, epilogue=epilogue)
    return out[:, :cout].reshape(B, Ho, Wo, cout)


def _deconv_block(x, w_phase, aux, *, epilogue, cout):
    """ConvTranspose2d(k=4, s=2, p=1) via the 2x2 sub-pixel decomposition.

    Each of the 4 output phases is a stride-1 conv whose taps live inside the 3x3
    window of the *undilated* input, so K = 9*Cin (vs 16*Cin zero-dilated) and the
    dilation scatter disappears.  The 4 phases are grid steps of one pallas_call."""
    B, H, W, C = x.shape
    patches = _im2col(x, 3, 1, 1)                       # (B, H, W, 9*C)
    a = patches.reshape(B * H * W, 9 * C).astype(jnp.bfloat16)
    kp = w_phase.shape[1]
    if kp != 9 * C:
        a = jnp.pad(a, ((0, 0), (0, kp - 9 * C)))
    out = matmul_fused(a, w_phase, aux, epilogue=epilogue)   # (4*B*H*W, Np)
    out = out[:, :cout].reshape(2, 2, B, H, W, cout)         # (pi, pj, b, i, j, c)
    out = jnp.transpose(out, (2, 3, 0, 4, 1, 5)).reshape(B, 2 * H, 2 * W, cout)
    return out


# --------------------------------------------------------------------------
# Parameters: PyTorch layout -> padded, bf16, matmul-ready layout (done once)
# --------------------------------------------------------------------------
def _aux_pack(bias, gamma, beta, n):
    """Pack bias/gamma/beta into one (8, n) f32 operand (rows 0/1/2)."""
    a = jnp.zeros((8, n), jnp.float32)
    if bias is not None:
        a = a.at[0, :bias.shape[0]].set(bias.astype(jnp.float32))
    if gamma is not None:
        a = a.at[1, :gamma.shape[0]].set(gamma.astype(jnp.float32))
    if beta is not None:
        a = a.at[2, :beta.shape[0]].set(beta.astype(jnp.float32))
    return a


def _conv_weight_to_mat(w, cin_pad, n_pad):
    """PyTorch Conv2d weight (Cout, Cin, kh, kw) -> (1, kh*kw*cin_pad, n_pad) bf16."""
    cout, cin, kh, kw = w.shape
    w_p = jnp.zeros((cout, cin_pad, kh, kw), jnp.float32).at[:, :cin].set(w)
    w_mat = jnp.transpose(w_p, (2, 3, 1, 0)).reshape(kh * kw * cin_pad, cout)
    w_mat = jnp.zeros((kh * kw * cin_pad, n_pad), jnp.float32).at[:, :cout].set(w_mat)
    return w_mat[None].astype(jnp.bfloat16)


def _deconv_phase_weights(w, n_pad):
    """PyTorch ConvTranspose2d(4,2,1) weight (Cin, Cout, 4, 4) -> (4, Kp, n_pad) bf16
    sub-pixel matrices (feature order (r, s, ci) over the 3x3 input window).

    Derivation (per axis, with the already-flipped correlation kernel Wf):
      out[2m]   = x[m-1]*Wf[0] + x[m]*Wf[2]
      out[2m+1] = x[m]  *Wf[1] + x[m+1]*Wf[3]
    so window row r in {0,1,2} (= input row m-1+r) maps to Wf tap {0,2} (even phase)
    or {1,3} (odd phase); zero padding of 1 reproduces the boundary zeros exactly."""
    cin, cout, kh, kw = w.shape
    k_pad = _round_up(9 * cin, _LANE)
    wf = jnp.transpose(w[:, :, ::-1, ::-1], (1, 0, 2, 3)).astype(jnp.float32)  # (Cout,Cin,4,4)
    tap = {0: ((0, 0), (1, 2)), 1: ((1, 1), (2, 3))}      # phase -> ((window_idx, wf_tap), ...)
    mats = []
    for pi in range(2):
        for pj in range(2):
            w3 = jnp.zeros((3, 3, cin, cout), jnp.float32)
            for r, th in tap[pi]:
                for s, tw in tap[pj]:
                    w3 = w3.at[r, s].set(jnp.transpose(wf[:, :, th, tw], (1, 0)))
            m = w3.reshape(9 * cin, cout)
            m = jnp.pad(m, ((0, k_pad - 9 * cin), (0, n_pad - cout)))
            mats.append(m)
    return jnp.stack(mats).astype(jnp.bfloat16)           # (4, Kp, n_pad)


def init_params(key):
    ks = jax.random.split(key, 24)

    def w_init(k, shape):
        return 0.05 * jax.random.normal(k, shape, jnp.float32)

    def b_init(k, n):
        return 0.05 * jax.random.normal(k, (n,), jnp.float32)

    p = {
        "emb": w_init(ks[0], (NUM_CLASSES, EMBED_DIM)),
        "w1": w_init(ks[1], (64, NZ + EMBED_DIM, 4, 4)), "b1": b_init(ks[7], 64),
        "w2": w_init(ks[2], (128, 64, 4, 4)), "b2": b_init(ks[8], 128),
        "g2": 1.0 + 0.1 * jax.random.normal(ks[9], (128,)), "be2": 0.1 * jax.random.normal(ks[10], (128,)),
        "w3": w_init(ks[3], (256, 128, 4, 4)), "b3": b_init(ks[11], 256),
        "g3": 1.0 + 0.1 * jax.random.normal(ks[12], (256,)), "be3": 0.1 * jax.random.normal(ks[13], (256,)),
        "w4": w_init(ks[4], (256, 128, 4, 4)), "b4": b_init(ks[14], 128),   # ConvT
        "g4": 1.0 + 0.1 * jax.random.normal(ks[16], (128,)), "be4": 0.1 * jax.random.normal(ks[17], (128,)),
        "w5": w_init(ks[5], (128, 64, 4, 4)), "b5": b_init(ks[15], 64),     # ConvT
        "g5": 1.0 + 0.1 * jax.random.normal(ks[18], (64,)), "be5": 0.1 * jax.random.normal(ks[19], (64,)),
        "w6": w_init(ks[6], (64, 3, 4, 4)), "b6": b_init(ks[20], 3),        # ConvT
    }
    return p


def prepare_params(p):
    """One-time layout conversion (flatten / flip / pad / bf16) outside the jit hot path."""
    q = {"emb": p["emb"].astype(jnp.float32)}
    q["w1"] = _conv_weight_to_mat(p["w1"], CIN_PAD, 128)
    q["aux1"] = _aux_pack(p["b1"], None, None, 128)
    q["w2"] = _conv_weight_to_mat(p["w2"], 64, 128)
    q["aux2"] = _aux_pack(None, p["g2"], p["be2"], 128)     # bias cancelled by BN
    q["w3"] = _conv_weight_to_mat(p["w3"], 128, 256)
    q["aux3"] = _aux_pack(None, p["g3"], p["be3"], 256)
    q["w4"] = _deconv_phase_weights(p["w4"], 128)
    q["aux4"] = _aux_pack(None, p["g4"], p["be4"], 128)
    q["w5"] = _deconv_phase_weights(p["w5"], 128)
    q["aux5"] = _aux_pack(None, p["g5"], p["be5"], 128)
    q["w6"] = _deconv_phase_weights(p["w6"], 128)
    q["aux6"] = _aux_pack(p["b6"], None, None, 128)
    return q


# --------------------------------------------------------------------------
# Generator forward (6 fused Pallas kernels)
# --------------------------------------------------------------------------
def generator_forward(prep, x_nchw, labels):
    B, C, H, W = x_nchw.shape
    emb = prep["emb"][labels]                                      # (B, 50) gather (glue)
    x = jnp.transpose(x_nchw, (0, 2, 3, 1)).astype(jnp.float32)    # NCHW -> NHWC
    emb_map = jnp.broadcast_to(emb[:, None, None, :], (B, H, W, EMBED_DIM))
    pad_c = CIN_PAD - (C + EMBED_DIM)
    x = jnp.concatenate([x, emb_map,
                         jnp.zeros((B, H, W, pad_c), jnp.float32)], axis=-1)

    x = _conv_block(x, prep["w1"], prep["aux1"],
                    k=4, stride=2, pad=1, epilogue="relu", cout=64)
    x = _conv_block(x, prep["w2"], prep["aux2"],
                    k=4, stride=2, pad=1, epilogue="bn_relu", cout=128)
    x = _conv_block(x, prep["w3"], prep["aux3"],
                    k=4, stride=2, pad=1, epilogue="bn_relu", cout=256)
    x = _deconv_block(x, prep["w4"], prep["aux4"], epilogue="bn_relu", cout=128)
    x = _deconv_block(x, prep["w5"], prep["aux5"], epilogue="bn_relu", cout=64)
    x = _deconv_block(x, prep["w6"], prep["aux6"], epilogue="tanh", cout=3)
    return jnp.transpose(x, (0, 3, 1, 2))                          # NHWC -> NCHW


# --------------------------------------------------------------------------
# Pure-JAX reference (lax.conv) used only as a correctness check.
# mm_dtype=bfloat16 matches the kernel's MXU input precision exactly (f32 accum).
# --------------------------------------------------------------------------
def reference_forward(params, x_nchw, labels, mm_dtype=jnp.float32):
    emb = params["emb"][labels]
    B, C, H, W = x_nchw.shape
    x = jnp.concatenate(
        [x_nchw, jnp.broadcast_to(emb[:, :, None, None], (B, EMBED_DIM, H, W))],
        axis=1)

    def conv(x, w, b, s, p):
        y = jax.lax.conv_general_dilated(
            x.astype(mm_dtype), w.astype(mm_dtype), (s, s), [(p, p), (p, p)],
            dimension_numbers=("NCHW", "OIHW", "NCHW"),
            preferred_element_type=jnp.float32)
        return y + b[None, :, None, None]

    def convT(x, w, b, s, p):
        k = w.shape[-1]
        w_conv = jnp.transpose(w[:, :, ::-1, ::-1], (1, 0, 2, 3))
        y = jax.lax.conv_general_dilated(
            x.astype(mm_dtype), w_conv.astype(mm_dtype), (1, 1),
            [(k - 1 - p, k - 1 - p)] * 2, lhs_dilation=(s, s),
            dimension_numbers=("NCHW", "OIHW", "NCHW"),
            preferred_element_type=jnp.float32)
        return y + b[None, :, None, None]

    def bn_relu(x, g, be):
        mean = x.mean(axis=(0, 2, 3), keepdims=True)
        var = ((x - mean) ** 2).mean(axis=(0, 2, 3), keepdims=True)
        y = (x - mean) * jax.lax.rsqrt(var + BN_EPS) * g[None, :, None, None] \
            + be[None, :, None, None]
        return jnp.maximum(y, 0.0)

    x = jnp.maximum(conv(x, params["w1"], params["b1"], 2, 1), 0.0)
    x = bn_relu(conv(x, params["w2"], params["b2"], 2, 1), params["g2"], params["be2"])
    x = bn_relu(conv(x, params["w3"], params["b3"], 2, 1), params["g3"], params["be3"])
    x = bn_relu(convT(x, params["w4"], params["b4"], 2, 1), params["g4"], params["be4"])
    x = bn_relu(convT(x, params["w5"], params["b5"], 2, 1), params["g5"], params["be5"])
    x = jnp.tanh(convT(x, params["w6"], params["b6"], 2, 1))
    return x


if __name__ == "__main__":
    key = jax.random.PRNGKey(0)
    k_param, k_x, k_lbl = jax.random.split(key, 3)
    params = init_params(k_param)
    prep = prepare_params(params)          # one-time weight layout prep, outside jit

    B, H, W = 2, 16, 16
    x = jax.random.normal(k_x, (B, NZ, H, W), jnp.float32)   # NCHW, like PyTorch
    labels = jax.random.randint(k_lbl, (B,), 0, NUM_CLASSES)

    fwd = jax.jit(generator_forward)
    out = jax.block_until_ready(fwd(prep, x, labels))

    assert out.shape == (B, 3, H, W), out.shape
    assert bool(jnp.all(jnp.isfinite(out)))

    # Algebra check against a reference that uses the same (bf16-input, f32-accum)
    # matmul precision as the kernel: tight tolerance.
    ref_bf16 = jax.block_until_ready(
        reference_forward(params, x, labels, mm_dtype=jnp.bfloat16))
    err_bf16 = float(jnp.max(jnp.abs(out - ref_bf16)))
    assert err_bf16 < 5e-3, f"mismatch vs precision-matched reference: {err_bf16}"

    # Fidelity check against the pure-f32 module semantics (bf16 MXU inputs ->
    # looser bound; BatchNorm over a tiny batch amplifies rounding slightly).
    ref_f32 = jax.block_until_ready(
        reference_forward(params, x, labels, mm_dtype=jnp.float32))
    err_f32 = float(jnp.max(jnp.abs(out - ref_f32)))
    assert err_f32 < 0.35, f"mismatch vs f32 reference: {err_f32}"

    print("KERNEL_OK")
</pallas_src>

<mosaic_0001>
module attributes {stable_mosaic.version = 11 : i64} {
  func.func @_fused_matmul_kernel(%arg0: i32, %arg1: memref<128x896xbf16, #tpu.memory_space<vmem>>, %arg2: memref<1x896x128xbf16, #tpu.memory_space<vmem>>, %arg3: memref<8x128xf32, #tpu.memory_space<vmem>>, %arg4: memref<128x128xf32, #tpu.memory_space<vmem>>) attributes {dimension_semantics = [#tpu.dimension_semantics<arbitrary>], iteration_bounds = array<i64: 1>, scalar_prefetch = 0 : i64, scratch_operands = 0 : i64, tpu.core_type = #tpu.core_type<tc>, window_params = [{pipeline_mode = #tpu.pipeline_mode<synchronous>, transform_indices = @transform_0, window_bounds = array<i64: 128, 896>}, {transform_indices = @transform_1, window_bounds = array<i64: 1, 896, 128>}, {pipeline_mode = #tpu.pipeline_mode<synchronous>, transform_indices = @transform_2, window_bounds = array<i64: 8, 128>}, {pipeline_mode = #tpu.pipeline_mode<synchronous>, transform_indices = @transform_3, window_bounds = array<i64: 128, 128>}]} {
    %c0 = arith.constant 0 : index
    %c0_0 = arith.constant 0 : index
    %0 = vector.load %arg1[%c0, %c0_0] : memref<128x896xbf16, #tpu.memory_space<vmem>>, vector<128x896xbf16>
    %c0_1 = arith.constant 0 : index
    %c0_2 = arith.constant 0 : index
    %c0_3 = arith.constant 0 : index
    %1 = vector.load %arg2[%c0_1, %c0_2, %c0_3] : memref<1x896x128xbf16, #tpu.memory_space<vmem>>, vector<1x896x128xbf16>
    %2 = vector.shape_cast %1 : vector<1x896x128xbf16> to vector<896x128xbf16>
    %cst = arith.constant dense<0.000000e+00> : vector<128x128xf32>
    %3 = tpu.matmul %0, %2, %cst {dimension_numbers = #tpu.dot_dimension_numbers<[1], [0], [0], [1], [0, 0, 1, 1], [], []>} : vector<128x896xbf16>, vector<896x128xbf16>, vector<128x128xf32> -> vector<128x128xf32>
    %c128_i32 = arith.constant 128 : i32
    %4 = arith.muli %arg0, %c128_i32 : i32
    %5 = tpu.assume_multiple %4, 8 : i32
    %c0_4 = arith.constant 0 : index
    %c0_5 = arith.constant 0 : index
    %6 = vector.load %arg3[%c0_4, %c0_5] : memref<8x128xf32, #tpu.memory_space<vmem>>, vector<1x128xf32>
    %7 = vector.broadcast %6 : vector<1x128xf32> to vector<128x128xf32>
    %8 = arith.addf %3, %7 : vector<128x128xf32>
    %cst_6 = arith.constant 0.000000e+00 : f32
    %9 = vector.broadcast %cst_6 : f32 to vector<128x128xf32>
    %10 = arith.maximumf %8, %9 : vector<128x128xf32>
    %11 = arith.index_cast %5 : i32 to index
    %c0_7 = arith.constant 0 : index
    %12 = vector.load %arg4[%11, %c0_7] : memref<128x128xf32, #tpu.memory_space<vmem>>, vector<128x128xf32>
    tpu.vector_store %arg4[%11, %c0_7], %10 {strides = array<i32>} : memref<128x128xf32, #tpu.memory_space<vmem>>, vector<128x128xf32>,
    return
  }
  func.func @transform_0(%arg0: i32) -> (i32, i32) {
    %c0_i32 = arith.constant 0 : i32
    %c0_i32_0 = arith.constant 0 : i32
    %c0_i32_1 = arith.constant 0 : i32
    return %c0_i32, %c0_i32_0 : i32, i32
  }
  func.func @transform_1(%arg0: i32) -> (i32, i32, i32) {
    %c0_i32 = arith.constant 0 : i32
    %c0_i32_0 = arith.constant 0 : i32
    %c0_i32_1 = arith.constant 0 : i32
    return %arg0, %c0_i32, %c0_i32_0 : i32, i32, i32
  }
  func.func @transform_2(%arg0: i32) -> (i32, i32) {
    %c0_i32 = arith.constant 0 : i32
    %c0_i32_0 = arith.constant 0 : i32
    %c0_i32_1 = arith.constant 0 : i32
    return %c0_i32, %c0_i32_0 : i32, i32
  }
  func.func @transform_3(%arg0: i32) -> (i32, i32) {
    %c0_i32 = arith.constant 0 : i32
    %c0_i32_0 = arith.constant 0 : i32
    %c0_i32_1 = arith.constant 0 : i32
    return %c0_i32, %c0_i32_0 : i32, i32
  }
}

module attributes {stable_mosaic.version = 11 : i64} {
  func.func @_fused_matmul_kernel(%arg0: i32, %arg1: memref<32x1024xbf16, #tpu.memory_space<vmem>>, %arg2: memref<1x1024x128xbf16, #tpu.memory_space<vmem>>, %arg3: memref<8x128xf32, #tpu.memory_space<vmem>>, %arg4: memref<32x128xf32, #tpu.memory_space<vmem>>) attributes {dimension_semantics = [#tpu.dimension_semantics<arbitrary>], iteration_bounds = array<i64: 1>, scalar_prefetch = 0 : i64, scratch_operands = 0 : i64, tpu.core_type = #tpu.core_type<tc>, window_params = [{pipeline_mode = #tpu.pipeline_mode<synchronous>, transform_indices = @transform_0, window_bounds = array<i64: 32, 1024>}, {transform_indices = @transform_1, window_bounds = array<i64: 1, 1024, 128>}, {pipeline_mode = #tpu.pipeline_mode<synchronous>, transform_indices = @transform_2, window_bounds = array<i64: 8, 128>}, {pipeline_mode = #tpu.pipeline_mode<synchronous>, transform_indices = @transform_3, window_bounds = array<i64: 32, 128>}]} {
    %c0 = arith.constant 0 : index
    %c0_0 = arith.constant 0 : index
    %0 = vector.load %arg1[%c0, %c0_0] : memref<32x1024xbf16, #tpu.memory_space<vmem>>, vector<32x1024xbf16>
    %c0_1 = arith.constant 0 : index
    %c0_2 = arith.constant 0 : index
    %c0_3 = arith.constant 0 : index
    %1 = vector.load %arg2[%c0_1, %c0_2, %c0_3] : memref<1x1024x128xbf16, #tpu.memory_space<vmem>>, vector<1x1024x128xbf16>
    %2 = vector.shape_cast %1 : vector<1x1024x128xbf16> to vector<1024x128xbf16>
    %cst = arith.constant dense<0.000000e+00> : vector<32x128xf32>
    %3 = tpu.matmul %0, %2, %cst {dimension_numbers = #tpu.dot_dimension_numbers<[1], [0], [0], [1], [0, 0, 1, 1], [], []>} : vector<32x1024xbf16>, vector<1024x128xbf16>, vector<32x128xf32> -> vector<32x128xf32>
    %c32_i32 = arith.constant 32 : i32
    %4 = arith.muli %arg0, %c32_i32 : i32
    %5 = tpu.assume_multiple %4, 8 : i32
    %6 = arith.index_cast %5 : i32 to index
    %c0_4 = arith.constant 0 : index
    %7 = vector.load %arg4[%6, %c0_4] : memref<32x128xf32, #tpu.memory_space<vmem>>, vector<32x128xf32>
    tpu.vector_store %arg4[%6, %c0_4], %3 {strides = array<i32>} : memref<32x128xf32, #tpu.memory_space<vmem>>, vector<32x128xf32>,
    %c0_i32 = arith.constant 0 : i32
    %8 = arith.cmpi eq, %arg0, %c0_i32 : i32
    %9 = arith.extui %8 : i1 to i32
    %c0_i32_5 = arith.constant 0 : i32
    %10 = arith.cmpi ne, %9, %c0_i32_5 : i32
    scf.if %10 {
      %c0_6 = arith.constant 0 : index
      %c0_7 = arith.constant 0 : index
      %11 = vector.load %arg4[%c0_6, %c0_7] : memref<32x128xf32, #tpu.memory_space<vmem>>, vector<32x128xf32>
      %cst_8 = arith.constant dense<0.000000e+00> : vector<128xf32>
      %12 = vector.multi_reduction <add>, %11, %cst_8 [0] : vector<32x128xf32> to vector<128xf32>
      %13 = vector.shape_cast %12 : vector<128xf32> to vector<1x128xf32>
      %cst_9 = arith.constant 3.125000e-02 : f32
      %14 = vector.broadcast %cst_9 : f32 to vector<1x128xf32>
      %15 = arith.mulf %13, %14 : vector<1x128xf32>
      %16 = vector.broadcast %15 : vector<1x128xf32> to vector<32x128xf32>
      %17 = arith.subf %11, %16 : vector<32x128xf32>
      %18 = arith.mulf %17, %17 : vector<32x128xf32>
      %cst_10 = arith.constant dense<0.000000e+00> : vector<128xf32>
      %19 = vector.multi_reduction <add>, %18, %cst_10 [0] : vector<32x128xf32> to vector<128xf32>
      %20 = vector.shape_cast %19 : vector<128xf32> to vector<1x128xf32>
      %cst_11 = arith.constant 3.125000e-02 : f32
      %21 = vector.broadcast %cst_11 : f32 to vector<1x128xf32>
      %22 = arith.mulf %20, %21 : vector<1x128xf32>
      %cst_12 = arith.constant 9.99999974E-6 : f32
      %23 = vector.broadcast %cst_12 : f32 to vector<1x128xf32>
      %24 = arith.addf %22, %23 : vector<1x128xf32>
      %25 = math.rsqrt %24 : vector<1x128xf32>
      %26 = vector.broadcast %25 : vector<1x128xf32> to vector<32x128xf32>
      %27 = arith.mulf %17, %26 : vector<32x128xf32>
      %c1 = arith.constant 1 : index
      %c0_13 = arith.constant 0 : index
      %28 = vector.load %arg3[%c1, %c0_13] : memref<8x128xf32, #tpu.memory_space<vmem>>, vector<1x128xf32>
      %c2 = arith.constant 2 : index
      %c0_14 = arith.constant 0 : index
      %29 = vector.load %arg3[%c2, %c0_14] : memref<8x128xf32, #tpu.memory_space<vmem>>, vector<1x128xf32>
      %30 = vector.broadcast %28 : vector<1x128xf32> to vector<32x128xf32>
      %31 = arith.mulf %27, %30 : vector<32x128xf32>
      %32 = vector.broadcast %29 : vector<1x128xf32> to vector<32x128xf32>
      %33 = arith.addf %31, %32 : vector<32x128xf32>
      %cst_15 = arith.constant 0.000000e+00 : f32
      %34 = vector.broadcast %cst_15 : f32 to vector<32x128xf32>
      %35 = arith.maximumf %33, %34 : vector<32x128xf32>
      %c0_16 = arith.constant 0 : index
      %c0_17 = arith.constant 0 : index
      %36 = vector.load %arg4[%c0_16, %c0_17] : memref<32x128xf32, #tpu.memory_space<vmem>>, vector<32x128xf32>
      tpu.vector_store %arg4[%c0_16, %c0_17], %35 {strides = array<i32>} : memref<32x128xf32, #tpu.memory_space<vmem>>, vector<32x128xf32>,
    } else {
    }
    return
  }
  func.func @transform_0(%arg0: i32) -> (i32, i32) {
    %c0_i32 = arith.constant 0 : i32
    %c0_i32_0 = arith.constant 0 : i32
    %c0_i32_1 = arith.constant 0 : i32
    return %c0_i32, %c0_i32_0 : i32, i32
  }
  func.func @transform_1(%arg0: i32) -> (i32, i32, i32) {
    %c0_i32 = arith.constant 0 : i32
    %c0_i32_0 = arith.constant 0 : i32
    %c0_i32_1 = arith.constant 0 : i32
    return %arg0, %c0_i32, %c0_i32_0 : i32, i32, i32
  }
  func.func @transform_2(%arg0: i32) -> (i32, i32) {
    %c0_i32 = arith.constant 0 : i32
    %c0_i32_0 = arith.constant 0 : i32
    %c0_i32_1 = arith.constant 0 : i32
    return %c0_i32, %c0_i32_0 : i32, i32
  }
  func.func @transform_3(%arg0: i32) -> (i32, i32) {
    %c0_i32 = arith.constant 0 : i32
    %c0_i32_0 = arith.constant 0 : i32
    %c0_i32_1 = arith.constant 0 : i32
    return %c0_i32, %c0_i32_0 : i32, i32
  }
}

module attributes {stable_mosaic.version = 11 : i64} {
  func.func @_fused_matmul_kernel(%arg0: i32, %arg1: memref<8x2048xbf16, #tpu.memory_space<vmem>>, %arg2: memref<1x2048x256xbf16, #tpu.memory_space<vmem>>, %arg3: memref<8x256xf32, #tpu.memory_space<vmem>>, %arg4: memref<8x256xf32, #tpu.memory_space<vmem>>) attributes {dimension_semantics = [#tpu.dimension_semantics<arbitrary>], iteration_bounds = array<i64: 1>, scalar_prefetch = 0 : i64, scratch_operands = 0 : i64, tpu.core_type = #tpu.core_type<tc>, window_params = [{pipeline_mode = #tpu.pipeline_mode<synchronous>, transform_indices = @transform_0, window_bounds = array<i64: 8, 2048>}, {transform_indices = @transform_1, window_bounds = array<i64: 1, 2048, 256>}, {pipeline_mode = #tpu.pipeline_mode<synchronous>, transform_indices = @transform_2, window_bounds = array<i64: 8, 256>}, {pipeline_mode = #tpu.pipeline_mode<synchronous>, transform_indices = @transform_3, window_bounds = array<i64: 8, 256>}]} {
    %c0 = arith.constant 0 : index
    %c0_0 = arith.constant 0 : index
    %0 = vector.load %arg1[%c0, %c0_0] : memref<8x2048xbf16, #tpu.memory_space<vmem>>, vector<8x2048xbf16>
    %c0_1 = arith.constant 0 : index
    %c0_2 = arith.constant 0 : index
    %c0_3 = arith.constant 0 : index
    %1 = vector.load %arg2[%c0_1, %c0_2, %c0_3] : memref<1x2048x256xbf16, #tpu.memory_space<vmem>>, vector<1x2048x256xbf16>
    %2 = vector.shape_cast %1 : vector<1x2048x256xbf16> to vector<2048x256xbf16>
    %cst = arith.constant dense<0.000000e+00> : vector<8x256xf32>
    %3 = tpu.matmul %0, %2, %cst {dimension_numbers = #tpu.dot_dimension_numbers<[1], [0], [0], [1], [0, 0, 1, 1], [], []>} : vector<8x2048xbf16>, vector<2048x256xbf16>, vector<8x256xf32> -> vector<8x256xf32>
    %c8_i32 = arith.constant 8 : i32
    %4 = arith.muli %arg0, %c8_i32 : i32
    %5 = tpu.assume_multiple %4, 8 : i32
    %6 = arith.index_cast %5 : i32 to index
    %c0_4 = arith.constant 0 : index
    %7 = vector.load %arg4[%6, %c0_4] : memref<8x256xf32, #tpu.memory_space<vmem>>, vector<8x256xf32>
    tpu.vector_store %arg4[%6, %c0_4], %3 {strides = array<i32>} : memref<8x256xf32, #tpu.memory_space<vmem>>, vector<8x256xf32>,
    %c0_i32 = arith.constant 0 : i32
    %8 = arith.cmpi eq, %arg0, %c0_i32 : i32
    %9 = arith.extui %8 : i1 to i32
    %c0_i32_5 = arith.constant 0 : i32
    %10 = arith.cmpi ne, %9, %c0_i32_5 : i32
    scf.if %10 {
      %c0_6 = arith.constant 0 : index
      %c0_7 = arith.constant 0 : index
      %11 = vector.load %arg4[%c0_6, %c0_7] : memref<8x256xf32, #tpu.memory_space<vmem>>, vector<8x256xf32>
      %cst_8 = arith.constant dense<0.000000e+00> : vector<256xf32>
      %12 = vector.multi_reduction <add>, %11, %cst_8 [0] : vector<8x256xf32> to vector<256xf32>
      %13 = vector.shape_cast %12 : vector<256xf32> to vector<1x256xf32>
      %cst_9 = arith.constant 1.250000e-01 : f32
      %14 = vector.broadcast %cst_9 : f32 to vector<1x256xf32>
      %15 = arith.mulf %13, %14 : vector<1x256xf32>
      %16 = vector.broadcast %15 : vector<1x256xf32> to vector<8x256xf32>
      %17 = arith.subf %11, %16 : vector<8x256xf32>
      %18 = arith.mulf %17, %17 : vector<8x256xf32>
      %cst_10 = arith.constant dense<0.000000e+00> : vector<256xf32>
      %19 = vector.multi_reduction <add>, %18, %cst_10 [0] : vector<8x256xf32> to vector<256xf32>
      %20 = vector.shape_cast %19 : vector<256xf32> to vector<1x256xf32>
      %cst_11 = arith.constant 1.250000e-01 : f32
      %21 = vector.broadcast %cst_11 : f32 to vector<1x256xf32>
      %22 = arith.mulf %20, %21 : vector<1x256xf32>
      %cst_12 = arith.constant 9.99999974E-6 : f32
      %23 = vector.broadcast %cst_12 : f32 to vector<1x256xf32>
      %24 = arith.addf %22, %23 : vector<1x256xf32>
      %25 = math.rsqrt %24 : vector<1x256xf32>
      %26 = vector.broadcast %25 : vector<1x256xf32> to vector<8x256xf32>
      %27 = arith.mulf %17, %26 : vector<8x256xf32>
      %c1 = arith.constant 1 : index
      %c0_13 = arith.constant 0 : index
      %28 = vector.load %arg3[%c1, %c0_13] : memref<8x256xf32, #tpu.memory_space<vmem>>, vector<1x256xf32>
      %c2 = arith.constant 2 : index
      %c0_14 = arith.constant 0 : index
      %29 = vector.load %arg3[%c2, %c0_14] : memref<8x256xf32, #tpu.memory_space<vmem>>, vector<1x256xf32>
      %30 = vector.broadcast %28 : vector<1x256xf32> to vector<8x256xf32>
      %31 = arith.mulf %27, %30 : vector<8x256xf32>
      %32 = vector.broadcast %29 : vector<1x256xf32> to vector<8x256xf32>
      %33 = arith.addf %31, %32 : vector<8x256xf32>
      %cst_15 = arith.constant 0.000000e+00 : f32
      %34 = vector.broadcast %cst_15 : f32 to vector<8x256xf32>
      %35 = arith.maximumf %33, %34 : vector<8x256xf32>
      %c0_16 = arith.constant 0 : index
      %c0_17 = arith.constant 0 : index
      %36 = vector.load %arg4[%c0_16, %c0_17] : memref<8x256xf32, #tpu.memory_space<vmem>>, vector<8x256xf32>
      tpu.vector_store %arg4[%c0_16, %c0_17], %35 {strides = array<i32>} : memref<8x256xf32, #tpu.memory_space<vmem>>, vector<8x256xf32>,
    } else {
    }
    return
  }
  func.func @transform_0(%arg0: i32) -> (i32, i32) {
    %c0_i32 = arith.constant 0 : i32
    %c0_i32_0 = arith.constant 0 : i32
    %c0_i32_1 = arith.constant 0 : i32
    return %c0_i32, %c0_i32_0 : i32, i32
  }
  func.func @transform_1(%arg0: i32) -> (i32, i32, i32) {
    %c0_i32 = arith.constant 0 : i32
    %c0_i32_0 = arith.constant 0 : i32
    %c0_i32_1 = arith.constant 0 : i32
    return %arg0, %c0_i32, %c0_i32_0 : i32, i32, i32
  }
  func.func @transform_2(%arg0: i32) -> (i32, i32) {
    %c0_i32 = arith.constant 0 : i32
    %c0_i32_0 = arith.constant 0 : i32
    %c0_i32_1 = arith.constant 0 : i32
    return %c0_i32, %c0_i32_0 : i32, i32
  }
  func.func @transform_3(%arg0: i32) -> (i32, i32) {
    %c0_i32 = arith.constant 0 : i32
    %c0_i32_0 = arith.constant 0 : i32
    %c0_i32_1 = arith.constant 0 : i32
    return %c0_i32, %c0_i32_0 : i32, i32
  }
}

module attributes {stable_mosaic.version = 11 : i64} {
  func.func @_fused_matmul_kernel(%arg0: i32, %arg1: memref<8x2304xbf16, #tpu.memory_space<vmem>>, %arg2: memref<1x2304x128xbf16, #tpu.memory_space<vmem>>, %arg3: memref<8x128xf32, #tpu.memory_space<vmem>>, %arg4: memref<32x128xf32, #tpu.memory_space<vmem>>) attributes {dimension_semantics = [#tpu.dimension_semantics<arbitrary>], iteration_bounds = array<i64: 4>, scalar_prefetch = 0 : i64, scratch_operands = 0 : i64, tpu.core_type = #tpu.core_type<tc>, window_params = [{pipeline_mode = #tpu.pipeline_mode<synchronous>, transform_indices = @transform_0, window_bounds = array<i64: 8, 2304>}, {transform_indices = @transform_1, window_bounds = array<i64: 1, 2304, 128>}, {pipeline_mode = #tpu.pipeline_mode<synchronous>, transform_indices = @transform_2, window_bounds = array<i64: 8, 128>}, {pipeline_mode = #tpu.pipeline_mode<synchronous>, transform_indices = @transform_3, window_bounds = array<i64: 32, 128>}]} {
    %c0 = arith.constant 0 : index
    %c0_0 = arith.constant 0 : index
    %0 = vector.load %arg1[%c0, %c0_0] : memref<8x2304xbf16, #tpu.memory_space<vmem>>, vector<8x2304xbf16>
    %c0_1 = arith.constant 0 : index
    %c0_2 = arith.constant 0 : index
    %c0_3 = arith.constant 0 : index
    %1 = vector.load %arg2[%c0_1, %c0_2, %c0_3] : memref<1x2304x128xbf16, #tpu.memory_space<vmem>>, vector<1x2304x128xbf16>
    %2 = vector.shape_cast %1 : vector<1x2304x128xbf16> to vector<2304x128xbf16>
    %cst = arith.constant dense<0.000000e+00> : vector<8x128xf32>
    %3 = tpu.matmul %0, %2, %cst {dimension_numbers = #tpu.dot_dimension_numbers<[1], [0], [0], [1], [0, 0, 1, 1], [], []>} : vector<8x2304xbf16>, vector<2304x128xbf16>, vector<8x128xf32> -> vector<8x128xf32>
    %c8_i32 = arith.constant 8 : i32
    %4 = arith.muli %arg0, %c8_i32 : i32
    %5 = tpu.assume_multiple %4, 8 : i32
    %6 = arith.index_cast %5 : i32 to index
    %c0_4 = arith.constant 0 : index
    %7 = vector.load %arg4[%6, %c0_4] : memref<32x128xf32, #tpu.memory_space<vmem>>, vector<8x128xf32>
    tpu.vector_store %arg4[%6, %c0_4], %3 {strides = array<i32>} : memref<32x128xf32, #tpu.memory_space<vmem>>, vector<8x128xf32>,
    %c3_i32 = arith.constant 3 : i32
    %8 = arith.cmpi eq, %arg0, %c3_i32 : i32
    %9 = arith.extui %8 : i1 to i32
    %c0_i32 = arith.constant 0 : i32
    %10 = arith.cmpi ne, %9, %c0_i32 : i32
    scf.if %10 {
      %c0_5 = arith.constant 0 : index
      %c0_6 = arith.constant 0 : index
      %11 = vector.load %arg4[%c0_5, %c0_6] : memref<32x128xf32, #tpu.memory_space<vmem>>, vector<32x128xf32>
      %cst_7 = arith.constant dense<0.000000e+00> : vector<128xf32>
      %12 = vector.multi_reduction <add>, %11, %cst_7 [0] : vector<32x128xf32> to vector<128xf32>
      %13 = vector.shape_cast %12 : vector<128xf32> to vector<1x128xf32>
      %cst_8 = arith.constant 3.125000e-02 : f32
      %14 = vector.broadcast %cst_8 : f32 to vector<1x128xf32>
      %15 = arith.mulf %13, %14 : vector<1x128xf32>
      %16 = vector.broadcast %15 : vector<1x128xf32> to vector<32x128xf32>
      %17 = arith.subf %11, %16 : vector<32x128xf32>
      %18 = arith.mulf %17, %17 : vector<32x128xf32>
      %cst_9 = arith.constant dense<0.000000e+00> : vector<128xf32>
      %19 = vector.multi_reduction <add>, %18, %cst_9 [0] : vector<32x128xf32> to vector<128xf32>
      %20 = vector.shape_cast %19 : vector<128xf32> to vector<1x128xf32>
      %cst_10 = arith.constant 3.125000e-02 : f32
      %21 = vector.broadcast %cst_10 : f32 to vector<1x128xf32>
      %22 = arith.mulf %20, %21 : vector<1x128xf32>
      %cst_11 = arith.constant 9.99999974E-6 : f32
      %23 = vector.broadcast %cst_11 : f32 to vector<1x128xf32>
      %24 = arith.addf %22, %23 : vector<1x128xf32>
      %25 = math.rsqrt %24 : vector<1x128xf32>
      %26 = vector.broadcast %25 : vector<1x128xf32> to vector<32x128xf32>
      %27 = arith.mulf %17, %26 : vector<32x128xf32>
      %c1 = arith.constant 1 : index
      %c0_12 = arith.constant 0 : index
      %28 = vector.load %arg3[%c1, %c0_12] : memref<8x128xf32, #tpu.memory_space<vmem>>, vector<1x128xf32>
      %c2 = arith.constant 2 : index
      %c0_13 = arith.constant 0 : index
      %29 = vector.load %arg3[%c2, %c0_13] : memref<8x128xf32, #tpu.memory_space<vmem>>, vector<1x128xf32>
      %30 = vector.broadcast %28 : vector<1x128xf32> to vector<32x128xf32>
      %31 = arith.mulf %27, %30 : vector<32x128xf32>
      %32 = vector.broadcast %29 : vector<1x128xf32> to vector<32x128xf32>
      %33 = arith.addf %31, %32 : vector<32x128xf32>
      %cst_14 = arith.constant 0.000000e+00 : f32
      %34 = vector.broadcast %cst_14 : f32 to vector<32x128xf32>
      %35 = arith.maximumf %33, %34 : vector<32x128xf32>
      %c0_15 = arith.constant 0 : index
      %c0_16 = arith.constant 0 : index
      %36 = vector.load %arg4[%c0_15, %c0_16] : memref<32x128xf32, #tpu.memory_space<vmem>>, vector<32x128xf32>
      tpu.vector_store %arg4[%c0_15, %c0_16], %35 {strides = array<i32>} : memref<32x128xf32, #tpu.memory_space<vmem>>, vector<32x128xf32>,
    } else {
    }
    return
  }
  func.func @transform_0(%arg0: i32) -> (i32, i32) {
    %c0_i32 = arith.constant 0 : i32
    %c0_i32_0 = arith.constant 0 : i32
    %c0_i32_1 = arith.constant 0 : i32
    return %c0_i32, %c0_i32_0 : i32, i32
  }
  func.func @transform_1(%arg0: i32) -> (i32, i32, i32) {
    %c0_i32 = arith.constant 0 : i32
    %c0_i32_0 = arith.constant 0 : i32
    %c0_i32_1 = arith.constant 0 : i32
    return %arg0, %c0_i32, %c0_i32_0 : i32, i32, i32
  }
  func.func @transform_2(%arg0: i32) -> (i32, i32) {
    %c0_i32 = arith.constant 0 : i32
    %c0_i32_0 = arith.constant 0 : i32
    %c0_i32_1 = arith.constant 0 : i32
    return %c0_i32, %c0_i32_0 : i32, i32
  }
  func.func @transform_3(%arg0: i32) -> (i32, i32) {
    %c0_i32 = arith.constant 0 : i32
    %c0_i32_0 = arith.constant 0 : i32
    %c0_i32_1 = arith.constant 0 : i32
    return %c0_i32, %c0_i32_0 : i32, i32
  }
}

module attributes {stable_mosaic.version = 11 : i64} {
  func.func @_fused_matmul_kernel(%arg0: i32, %arg1: memref<32x1152xbf16, #tpu.memory_space<vmem>>, %arg2: memref<1x1152x128xbf16, #tpu.memory_space<vmem>>, %arg3: memref<8x128xf32, #tpu.memory_space<vmem>>, %arg4: memref<128x128xf32, #tpu.memory_space<vmem>>) attributes {dimension_semantics = [#tpu.dimension_semantics<arbitrary>], iteration_bounds = array<i64: 4>, scalar_prefetch = 0 : i64, scratch_operands = 0 : i64, tpu.core_type = #tpu.core_type<tc>, window_params = [{pipeline_mode = #tpu.pipeline_mode<synchronous>, transform_indices = @transform_0, window_bounds = array<i64: 32, 1152>}, {transform_indices = @transform_1, window_bounds = array<i64: 1, 1152, 128>}, {pipeline_mode = #tpu.pipeline_mode<synchronous>, transform_indices = @transform_2, window_bounds = array<i64: 8, 128>}, {pipeline_mode = #tpu.pipeline_mode<synchronous>, transform_indices = @transform_3, window_bounds = array<i64: 128, 128>}]} {
    %c0 = arith.constant 0 : index
    %c0_0 = arith.constant 0 : index
    %0 = vector.load %arg1[%c0, %c0_0] : memref<32x1152xbf16, #tpu.memory_space<vmem>>, vector<32x1152xbf16>
    %c0_1 = arith.constant 0 : index
    %c0_2 = arith.constant 0 : index
    %c0_3 = arith.constant 0 : index
    %1 = vector.load %arg2[%c0_1, %c0_2, %c0_3] : memref<1x1152x128xbf16, #tpu.memory_space<vmem>>, vector<1x1152x128xbf16>
    %2 = vector.shape_cast %1 : vector<1x1152x128xbf16> to vector<1152x128xbf16>
    %cst = arith.constant dense<0.000000e+00> : vector<32x128xf32>
    %3 = tpu.matmul %0, %2, %cst {dimension_numbers = #tpu.dot_dimension_numbers<[1], [0], [0], [1], [0, 0, 1, 1], [], []>} : vector<32x1152xbf16>, vector<1152x128xbf16>, vector<32x128xf32> -> vector<32x128xf32>
    %c32_i32 = arith.constant 32 : i32
    %4 = arith.muli %arg0, %c32_i32 : i32
    %5 = tpu.assume_multiple %4, 8 : i32
    %6 = arith.index_cast %5 : i32 to index
    %c0_4 = arith.constant 0 : index
    %7 = vector.load %arg4[%6, %c0_4] : memref<128x128xf32, #tpu.memory_space<vmem>>, vector<32x128xf32>
    tpu.vector_store %arg4[%6, %c0_4], %3 {strides = array<i32>} : memref<128x128xf32, #tpu.memory_space<vmem>>, vector<32x128xf32>,
    %c3_i32 = arith.constant 3 : i32
    %8 = arith.cmpi eq, %arg0, %c3_i32 : i32
    %9 = arith.extui %8 : i1 to i32
    %c0_i32 = arith.constant 0 : i32
    %10 = arith.cmpi ne, %9, %c0_i32 : i32
    scf.if %10 {
      %c0_5 = arith.constant 0 : index
      %c0_6 = arith.constant 0 : index
      %11 = vector.load %arg4[%c0_5, %c0_6] : memref<128x128xf32, #tpu.memory_space<vmem>>, vector<128x128xf32>
      %cst_7 = arith.constant dense<0.000000e+00> : vector<128xf32>
      %12 = vector.multi_reduction <add>, %11, %cst_7 [0] : vector<128x128xf32> to vector<128xf32>
      %13 = vector.shape_cast %12 : vector<128xf32> to vector<1x128xf32>
      %cst_8 = arith.constant 7.812500e-03 : f32
      %14 = vector.broadcast %cst_8 : f32 to vector<1x128xf32>
      %15 = arith.mulf %13, %14 : vector<1x128xf32>
      %16 = vector.broadcast %15 : vector<1x128xf32> to vector<128x128xf32>
      %17 = arith.subf %11, %16 : vector<128x128xf32>
      %18 = arith.mulf %17, %17 : vector<128x128xf32>
      %cst_9 = arith.constant dense<0.000000e+00> : vector<128xf32>
      %19 = vector.multi_reduction <add>, %18, %cst_9 [0] : vector<128x128xf32> to vector<128xf32>
      %20 = vector.shape_cast %19 : vector<128xf32> to vector<1x128xf32>
      %cst_10 = arith.constant 7.812500e-03 : f32
      %21 = vector.broadcast %cst_10 : f32 to vector<1x128xf32>
      %22 = arith.mulf %20, %21 : vector<1x128xf32>
      %cst_11 = arith.constant 9.99999974E-6 : f32
      %23 = vector.broadcast %cst_11 : f32 to vector<1x128xf32>
      %24 = arith.addf %22, %23 : vector<1x128xf32>
      %25 = math.rsqrt %24 : vector<1x128xf32>
      %26 = vector.broadcast %25 : vector<1x128xf32> to vector<128x128xf32>
      %27 = arith.mulf %17, %26 : vector<128x128xf32>
      %c1 = arith.constant 1 : index
      %c0_12 = arith.constant 0 : index
      %28 = vector.load %arg3[%c1, %c0_12] : memref<8x128xf32, #tpu.memory_space<vmem>>, vector<1x128xf32>
      %c2 = arith.constant 2 : index
      %c0_13 = arith.constant 0 : index
      %29 = vector.load %arg3[%c2, %c0_13] : memref<8x128xf32, #tpu.memory_space<vmem>>, vector<1x128xf32>
      %30 = vector.broadcast %28 : vector<1x128xf32> to vector<128x128xf32>
      %31 = arith.mulf %27, %30 : vector<128x128xf32>
      %32 = vector.broadcast %29 : vector<1x128xf32> to vector<128x128xf32>
      %33 = arith.addf %31, %32 : vector<128x128xf32>
      %cst_14 = arith.constant 0.000000e+00 : f32
      %34 = vector.broadcast %cst_14 : f32 to vector<128x128xf32>
      %35 = arith.maximumf %33, %34 : vector<128x128xf32>
      %c0_15 = arith.constant 0 : index
      %c0_16 = arith.constant 0 : index
      %36 = vector.load %arg4[%c0_15, %c0_16] : memref<128x128xf32, #tpu.memory_space<vmem>>, vector<128x128xf32>
      tpu.vector_store %arg4[%c0_15, %c0_16], %35 {strides = array<i32>} : memref<128x128xf32, #tpu.memory_space<vmem>>, vector<128x128xf32>,
    } else {
    }
    return
  }
  func.func @transform_0(%arg0: i32) -> (i32, i32) {
    %c0_i32 = arith.constant 0 : i32
    %c0_i32_0 = arith.constant 0 : i32
    %c0_i32_1 = arith.constant 0 : i32
    return %c0_i32, %c0_i32_0 : i32, i32
  }
  func.func @transform_1(%arg0: i32) -> (i32, i32, i32) {
    %c0_i32 = arith.constant 0 : i32
    %c0_i32_0 = arith.constant 0 : i32
    %c0_i32_1 = arith.constant 0 : i32
    return %arg0, %c0_i32, %c0_i32_0 : i32, i32, i32
  }
  func.func @transform_2(%arg0: i32) -> (i32, i32) {
    %c0_i32 = arith.constant 0 : i32
    %c0_i32_0 = arith.constant 0 : i32
    %c0_i32_1 = arith.constant 0 : i32
    return %c0_i32, %c0_i32_0 : i32, i32
  }
  func.func @transform_3(%arg0: i32) -> (i32, i32) {
    %c0_i32 = arith.constant 0 : i32
    %c0_i32_0 = arith.constant 0 : i32
    %c0_i32_1 = arith.constant 0 : i32
    return %c0_i32, %c0_i32_0 : i32, i32
  }
}

module attributes {stable_mosaic.version = 11 : i64} {
  func.func @_fused_matmul_kernel(%arg0: i32, %arg1: memref<128x640xbf16, #tpu.memory_space<vmem>>, %arg2: memref<1x640x128xbf16, #tpu.memory_space<vmem>>, %arg3: memref<8x128xf32, #tpu.memory_space<vmem>>, %arg4: memref<512x128xf32, #tpu.memory_space<vmem>>) attributes {dimension_semantics = [#tpu.dimension_semantics<arbitrary>], iteration_bounds = array<i64: 4>, scalar_prefetch = 0 : i64, scratch_operands = 0 : i64, tpu.core_type = #tpu.core_type<tc>, window_params = [{pipeline_mode = #tpu.pipeline_mode<synchronous>, transform_indices = @transform_0, window_bounds = array<i64: 128, 640>}, {transform_indices = @transform_1, window_bounds = array<i64: 1, 640, 128>}, {pipeline_mode = #tpu.pipeline_mode<synchronous>, transform_indices = @transform_2, window_bounds = array<i64: 8, 128>}, {pipeline_mode = #tpu.pipeline_mode<synchronous>, transform_indices = @transform_3, window_bounds = array<i64: 512, 128>}]} {
    %c0 = arith.constant 0 : index
    %c0_0 = arith.constant 0 : index
    %0 = vector.load %arg1[%c0, %c0_0] : memref<128x640xbf16, #tpu.memory_space<vmem>>, vector<128x640xbf16>
    %c0_1 = arith.constant 0 : index
    %c0_2 = arith.constant 0 : index
    %c0_3 = arith.constant 0 : index
    %1 = vector.load %arg2[%c0_1, %c0_2, %c0_3] : memref<1x640x128xbf16, #tpu.memory_space<vmem>>, vector<1x640x128xbf16>
    %2 = vector.shape_cast %1 : vector<1x640x128xbf16> to vector<640x128xbf16>
    %cst = arith.constant dense<0.000000e+00> : vector<128x128xf32>
    %3 = tpu.matmul %0, %2, %cst {dimension_numbers = #tpu.dot_dimension_numbers<[1], [0], [0], [1], [0, 0, 1, 1], [], []>} : vector<128x640xbf16>, vector<640x128xbf16>, vector<128x128xf32> -> vector<128x128xf32>
    %c128_i32 = arith.constant 128 : i32
    %4 = arith.muli %arg0, %c128_i32 : i32
    %5 = tpu.assume_multiple %4, 8 : i32
    %c0_4 = arith.constant 0 : index
    %c0_5 = arith.constant 0 : index
    %6 = vector.load %arg3[%c0_4, %c0_5] : memref<8x128xf32, #tpu.memory_space<vmem>>, vector<1x128xf32>
    %7 = vector.broadcast %6 : vector<1x128xf32> to vector<128x128xf32>
    %8 = arith.addf %3, %7 : vector<128x128xf32>
    %9 = math.tanh %8 : vector<128x128xf32>
    %10 = arith.index_cast %5 : i32 to index
    %c0_6 = arith.constant 0 : index
    %11 = vector.load %arg4[%10, %c0_6] : memref<512x128xf32, #tpu.memory_space<vmem>>, vector<128x128xf32>
    tpu.vector_store %arg4[%10, %c0_6], %9 {strides = array<i32>} : memref<512x128xf32, #tpu.memory_space<vmem>>, vector<128x128xf32>,
    return
  }
  func.func @transform_0(%arg0: i32) -> (i32, i32) {
    %c0_i32 = arith.constant 0 : i32
    %c0_i32_0 = arith.constant 0 : i32
    %c0_i32_1 = arith.constant 0 : i32
    return %c0_i32, %c0_i32_0 : i32, i32
  }
  func.func @transform_1(%arg0: i32) -> (i32, i32, i32) {
    %c0_i32 = arith.constant 0 : i32
    %c0_i32_0 = arith.constant 0 : i32
    %c0_i32_1 = arith.constant 0 : i32
    return %arg0, %c0_i32, %c0_i32_0 : i32, i32, i32
  }
  func.func @transform_2(%arg0: i32) -> (i32, i32) {
    %c0_i32 = arith.constant 0 : i32
    %c0_i32_0 = arith.constant 0 : i32
    %c0_i32_1 = arith.constant 0 : i32
    return %c0_i32, %c0_i32_0 : i32, i32
  }
  func.func @transform_3(%arg0: i32) -> (i32, i32) {
    %c0_i32 = arith.constant 0 : i32
    %c0_i32_0 = arith.constant 0 : i32
    %c0_i32_1 = arith.constant 0 : i32
    return %c0_i32, %c0_i32_0 : i32, i32
  }
}

</mosaic_0001>

<llo_original>
// kernel: generator_forward.6
$region0: #{generator_forward.6}
  #allocation0 [shape = 'u32[]', space=smem, size = 0x4, offset = 0x4, fixed_abs, tag = 'smem constant byte address 0x4 - core index']
  #allocation1 [shape = 'u32[144,128]{1,0:T(1,128)}', space=vmem, size = 0x12000, scoped, tag = 'internal scratch']
  %s0 = inlined_call_operand.vmem [shape: bf16[128,896], index: 0, kind: input, shape index: {}]
  %s1 = inlined_call_operand.vmem [shape: bf16[1,896,128], index: 1, kind: input, shape index: {}]
  %s2 = inlined_call_operand.vmem [shape: f32[8,128], index: 2, kind: input, shape index: {}]
  %s3 = inlined_call_operand.vmem [shape: f32[128,128], index: 3, kind: output, shape index: {}]
  %s4 = sld [smem:[#allocation0]]
  $region22: #{generator_forward.6} parent=0
    _
  %s6 = ssub.s32 1, %s4
  %s7 = scalar_select 0, %s6, %s4
  // Predicated region
  $region2: #{generator_forward.6} parent=0 // pred_check
    _
  $region3: #{generator_forward.6} parent=0 // pred_check_branch
    %9 = sbr.rel (0) target = $region5
  $region4: #{generator_forward.6} parent=0 // pred_region
    _
  $region5: #{generator_forward.6} parent=0 // pred_fallthru
    _
  // Predicated region
  $region6: #{generator_forward.6} parent=0 // pred_check
    _
  $region7: #{generator_forward.6} parent=0 // pred_check_branch
    %11 = sbr.rel (0) target = $region9
  $region8: #{generator_forward.6} parent=0 // pred_region
    _
  $region9: #{generator_forward.6} parent=0 // pred_fallthru
    _
  // Predicated region
  $region10: #{generator_forward.6} parent=0 // pred_check
    _
  $region11: #{generator_forward.6} parent=0 // pred_check_branch
    %13 = sbr.rel (0) target = $region13
  $region12: #{generator_forward.6} parent=0 // pred_region
    _
  $region13: #{generator_forward.6} parent=0 // pred_fallthru
    _
  %v15 = vld [vmem:[%s0] sm:$0xff]
  %v16 = vld [vmem:[%s0 + $0x8] sm:$0xff]
  %v17 = vld [vmem:[%s0 + $0x10] sm:$0xff]
  %v18 = vld [vmem:[%s0 + $0x18] sm:$0xf]
  %v19 = vld [vmem:[%s0 + $0x1c] sm:$0xff]
  %v20 = vld [vmem:[%s0 + $0x24] sm:$0xff]
  %v21 = vld [vmem:[%s0 + $0x2c] sm:$0xff]
  %v22 = vld [vmem:[%s0 + $0x34] sm:$0xf]
  %v23 = vld [vmem:[%s0 + $0x38] sm:$0xff]
  %v24 = vld [vmem:[%s0 + $0x40] sm:$0xff]
  %v25 = vld [vmem:[%s0 + $0x48] sm:$0xff]
  %v26 = vld [vmem:[%s0 + $0x50] sm:$0xf]
  %v27 = vld [vmem:[%s0 + $0x54] sm:$0xff]
  %v28 = vld [vmem:[%s0 + $0x5c] sm:$0xff]
  %v29 = vld [vmem:[%s0 + $0x64] sm:$0xff]
  %v30 = vld [vmem:[%s0 + $0x6c] sm:$0xf]
  %v31 = vld [vmem:[%s0 + $0x70] sm:$0xff]
  %v32 = vld [vmem:[%s0 + $0x78] sm:$0xff]
  %v33 = vld [vmem:[%s0 + $0x80] sm:$0xff]
  %v34 = vld [vmem:[%s0 + $0x88] sm:$0xf]
  %v35 = vld [vmem:[%s0 + $0x8c] sm:$0xff]
  %v36 = vld [vmem:[%s0 + $0x94] sm:$0xff]
  %v37 = vld [vmem:[%s0 + $0x9c] sm:$0xff]
  %v38 = vld [vmem:[%s0 + $0xa4] sm:$0xf]
  %v39 = vld [vmem:[%s0 + $0xa8] sm:$0xff]
  %v40 = vld [vmem:[%s0 + $0xb0] sm:$0xff]
  %v41 = vld [vmem:[%s0 + $0xb8] sm:$0xff]
  %v42 = vld [vmem:[%s0 + $0xc0] sm:$0xf]
  %v43 = vld [vmem:[%s0 + $0xc4] sm:$0xff]
  %v44 = vld [vmem:[%s0 + $0xcc] sm:$0xff]
  %v45 = vld [vmem:[%s0 + $0xd4] sm:$0xff]
  %v46 = vld [vmem:[%s0 + $0xdc] sm:$0xf]
  %v47 = vld [vmem:[%s0 + $0xe0] sm:$0xff]
  %v48 = vld [vmem:[%s0 + $0xe8] sm:$0xff]
  %v49 = vld [vmem:[%s0 + $0xf0] sm:$0xff]
  %v50 = vld [vmem:[%s0 + $0xf8] sm:$0xf]
  %v51 = vld [vmem:[%s0 + $0xfc] sm:$0xff]
  %v52 = vld [vmem:[%s0 + $0x104] sm:$0xff]
  %v53 = vld [vmem:[%s0 + $0x10c] sm:$0xff]
  %v54 = vld [vmem:[%s0 + $0x114] sm:$0xf]
  %v55 = vld [vmem:[%s0 + $0x118] sm:$0xff]
  %v56 = vld [vmem:[%s0 + $0x120] sm:$0xff]
  %v57 = vld [vmem:[%s0 + $0x128] sm:$0xff]
  %v58 = vld [vmem:[%s0 + $0x130] sm:$0xf]
  %v59 = vld [vmem:[%s0 + $0x134] sm:$0xff]
  %v60 = vld [vmem:[%s0 + $0x13c] sm:$0xff]
  %v61 = vld [vmem:[%s0 + $0x144] sm:$0xff]
  %v62 = vld [vmem:[%s0 + $0x14c] sm:$0xf]
  %v63 = vld [vmem:[%s0 + $0x150] sm:$0xff]
  %v64 = vld [vmem:[%s0 + $0x158] sm:$0xff]
  %v65 = vld [vmem:[%s0 + $0x160] sm:$0xff]
  %v66 = vld [vmem:[%s0 + $0x168] sm:$0xf]
  %v67 = vld [vmem:[%s0 + $0x16c] sm:$0xff]
  %v68 = vld [vmem:[%s0 + $0x174] sm:$0xff]
  %v69 = vld [vmem:[%s0 + $0x17c] sm:$0xff]
  %v70 = vld [vmem:[%s0 + $0x184] sm:$0xf]
  %v71 = vld [vmem:[%s0 + $0x188] sm:$0xff]
  %v72 = vld [vmem:[%s0 + $0x190] sm:$0xff]
  %v73 = vld [vmem:[%s0 + $0x198] sm:$0xff]
  %v74 = vld [vmem:[%s0 + $0x1a0] sm:$0xf]
  %v75 = vld [vmem:[%s0 + $0x1a4] sm:$0xff]
  %v76 = vld [vmem:[%s0 + $0x1ac] sm:$0xff]
  %v77 = vld [vmem:[%s0 + $0x1b4] sm:$0xff]
  %v78 = vld [vmem:[%s0 + $0x1bc] sm:$0xf]
  %v79 = vld [vmem:[%s1] sm:$0xf]
  %v80 = vld [vmem:[%s1 + $0x4] sm:$0xf]
  %v81 = vld [vmem:[%s1 + $0x8] sm:$0xf]
  %v82 = vld [vmem:[%s1 + $0xc] sm:$0xf]
  %v83 = vld [vmem:[%s1 + $0x10] sm:$0xf]
  %v84 = vld [vmem:[%s1 + $0x14] sm:$0xf]
  %v85 = vld [vmem:[%s1 + $0x18] sm:$0xf]
  %v86 = vld [vmem:[%s1 + $0x1c] sm:$0xf]
  %v87 = vld [vmem:[%s1 + $0x20] sm:$0xf]
  %v88 = vld [vmem:[%s1 + $0x24] sm:$0xf]
  %v89 = vld [vmem:[%s1 + $0x28] sm:$0xf]
  %v90 = vld [vmem:[%s1 + $0x2c] sm:$0xf]
  %v91 = vld [vmem:[%s1 + $0x30] sm:$0xf]
  %v92 = vld [vmem:[%s1 + $0x34] sm:$0xf]
  %v93 = vld [vmem:[%s1 + $0x38] sm:$0xf]
  %v94 = vld [vmem:[%s1 + $0x3c] sm:$0xf]
  %v95 = vld [vmem:[%s1 + $0x40] sm:$0xf]
  %v96 = vld [vmem:[%s1 + $0x44] sm:$0xf]
  %v97 = vld [vmem:[%s1 + $0x48] sm:$0xf]
  %v98 = vld [vmem:[%s1 + $0x4c] sm:$0xf]
  %v99 = vld [vmem:[%s1 + $0x50] sm:$0xf]
  %v100 = vld [vmem:[%s1 + $0x54] sm:$0xf]
  %v101 = vld [vmem:[%s1 + $0x58] sm:$0xf]
  %v102 = vld [vmem:[%s1 + $0x5c] sm:$0xf]
  %v103 = vld [vmem:[%s1 + $0x60] sm:$0xf]
  %v104 = vld [vmem:[%s1 + $0x64] sm:$0xf]
  %v105 = vld [vmem:[%s1 + $0x68] sm:$0xf]
  %v106 = vld [vmem:[%s1 + $0x6c] sm:$0xf]
  %v107 = vld [vmem:[%s1 + $0x70] sm:$0xf]
  %v108 = vld [vmem:[%s1 + $0x74] sm:$0xf]
  %v109 = vld [vmem:[%s1 + $0x78] sm:$0xf]
  %v110 = vld [vmem:[%s1 + $0x7c] sm:$0xf]
  %v111 = vld [vmem:[%s1 + $0x80] sm:$0xf]
  %v112 = vld [vmem:[%s1 + $0x84] sm:$0xf]
  %v113 = vld [vmem:[%s1 + $0x88] sm:$0xf]
  %v114 = vld [vmem:[%s1 + $0x8c] sm:$0xf]
  %v115 = vld [vmem:[%s1 + $0x90] sm:$0xf]
  %v116 = vld [vmem:[%s1 + $0x94] sm:$0xf]
  %v117 = vld [vmem:[%s1 + $0x98] sm:$0xf]
  %v118 = vld [vmem:[%s1 + $0x9c] sm:$0xf]
  %v119 = vld [vmem:[%s1 + $0xa0] sm:$0xf]
  %v120 = vld [vmem:[%s1 + $0xa4] sm:$0xf]
  %v121 = vld [vmem:[%s1 + $0xa8] sm:$0xf]
  %v122 = vld [vmem:[%s1 + $0xac] sm:$0xf]
  %v123 = vld [vmem:[%s1 + $0xb0] sm:$0xf]
  %v124 = vld [vmem:[%s1 + $0xb4] sm:$0xf]
  %v125 = vld [vmem:[%s1 + $0xb8] sm:$0xf]
  %v126 = vld [vmem:[%s1 + $0xbc] sm:$0xf]
  %v127 = vld [vmem:[%s1 + $0xc0] sm:$0xf]
  %v128 = vld [vmem:[%s1 + $0xc4] sm:$0xf]
  %v129 = vld [vmem:[%s1 + $0xc8] sm:$0xf]
  %v130 = vld [vmem:[%s1 + $0xcc] sm:$0xf]
  %v131 = vld [vmem:[%s1 + $0xd0] sm:$0xf]
  %v132 = vld [vmem:[%s1 + $0xd4] sm:$0xf]
  %v133 = vld [vmem:[%s1 + $0xd8] sm:$0xf]
  %v134 = vld [vmem:[%s1 + $0xdc] sm:$0xf]
  %v135 = vld [vmem:[%s1 + $0xe0] sm:$0xf]
  %v136 = vld [vmem:[%s1 + $0xe4] sm:$0xf]
  %v137 = vld [vmem:[%s1 + $0xe8] sm:$0xf]
  %v138 = vld [vmem:[%s1 + $0xec] sm:$0xf]
  %v139 = vld [vmem:[%s1 + $0xf0] sm:$0xf]
  %v140 = vld [vmem:[%s1 + $0xf4] sm:$0xf]
  %v141 = vld [vmem:[%s1 + $0xf8] sm:$0xf]
  %v142 = vld [vmem:[%s1 + $0xfc] sm:$0xf]
  %v143 = vld [vmem:[%s1 + $0x100] sm:$0xf]
  %v144 = vld [vmem:[%s1 + $0x104] sm:$0xf]
  %v145 = vld [vmem:[%s1 + $0x108] sm:$0xf]
  %v146 = vld [vmem:[%s1 + $0x10c] sm:$0xf]
  %v147 = vld [vmem:[%s1 + $0x110] sm:$0xf]
  %v148 = vld [vmem:[%s1 + $0x114] sm:$0xf]
  %v149 = vld [vmem:[%s1 + $0x118] sm:$0xf]
  %v150 = vld [vmem:[%s1 + $0x11c] sm:$0xf]
  %v151 = vld [vmem:[%s1 + $0x120] sm:$0xf]
  %v152 = vld [vmem:[%s1 + $0x124] sm:$0xf]
  %v153 = vld [vmem:[%s1 + $0x128] sm:$0xf]
  %v154 = vld [vmem:[%s1 + $0x12c] sm:$0xf]
  %v155 = vld [vmem:[%s1 + $0x130] sm:$0xf]
  %v156 = vld [vmem:[%s1 + $0x134] sm:$0xf]
  %v157 = vld [vmem:[%s1 + $0x138] sm:$0xf]
  %v158 = vld [vmem:[%s1 + $0x13c] sm:$0xf]
  %v159 = vld [vmem:[%s1 + $0x140] sm:$0xf]
  %v160 = vld [vmem:[%s1 + $0x144] sm:$0xf]
  %v161 = vld [vmem:[%s1 + $0x148] sm:$0xf]
  %v162 = vld [vmem:[%s1 + $0x14c] sm:$0xf]
  %v163 = vld [vmem:[%s1 + $0x150] sm:$0xf]
  %v164 = vld [vmem:[%s1 + $0x154] sm:$0xf]
  %v165 = vld [vmem:[%s1 + $0x158] sm:$0xf]
  %v166 = vld [vmem:[%s1 + $0x15c] sm:$0xf]
  %v167 = vld [vmem:[%s1 + $0x160] sm:$0xf]
  %v168 = vld [vmem:[%s1 + $0x164] sm:$0xf]
  %v169 = vld [vmem:[%s1 + $0x168] sm:$0xf]
  %v170 = vld [vmem:[%s1 + $0x16c] sm:$0xf]
  %v171 = vld [vmem:[%s1 + $0x170] sm:$0xf]
  %v172 = vld [vmem:[%s1 + $0x174] sm:$0xf]
  %v173 = vld [vmem:[%s1 + $0x178] sm:$0xf]
  %v174 = vld [vmem:[%s1 + $0x17c] sm:$0xf]
  %v175 = vld [vmem:[%s1 + $0x180] sm:$0xf]
  %v176 = vld [vmem:[%s1 + $0x184] sm:$0xf]
  %v177 = vld [vmem:[%s1 + $0x188] sm:$0xf]
  %v178 = vld [vmem:[%s1 + $0x18c] sm:$0xf]
  %v179 = vld [vmem:[%s1 + $0x190] sm:$0xf]
  %v180 = vld [vmem:[%s1 + $0x194] sm:$0xf]
  %v181 = vld [vmem:[%s1 + $0x198] sm:$0xf]
  %v182 = vld [vmem:[%s1 + $0x19c] sm:$0xf]
  %v183 = vld [vmem:[%s1 + $0x1a0] sm:$0xf]
  %v184 = vld [vmem:[%s1 + $0x1a4] sm:$0xf]
  %v185 = vld [vmem:[%s1 + $0x1a8] sm:$0xf]
  %v186 = vld [vmem:[%s1 + $0x1ac] sm:$0xf]
  %v187 = vld [vmem:[%s1 + $0x1b0] sm:$0xf]
  %v188 = vld [vmem:[%s1 + $0x1b4] sm:$0xf]
  %v189 = vld [vmem:[%s1 + $0x1b8] sm:$0xf]
  %v190 = vld [vmem:[%s1 + $0x1bc] sm:$0xf]
  %s191 = smul.u32 0, 128
  %v192 = vld [vmem:[%s2] sm:$0x1]
  %v193 = vlaneseq
  %v194 = vshrl.u32 %v193, 7
  %v195 = vsub.s32 0, %v194
  %v196 = vrot.slane %v192, %v195
  %v261 = vunpack.c.l.b16 %v15
  %v262 = vunpack.c.h.b16 %v15
  %v263 = vunpack.c.l.b16 %v16
  %v264 = vunpack.c.h.b16 %v16
  %v265 = vunpack.c.l.b16 %v17
  %v266 = vunpack.c.h.b16 %v17
  %v267 = vunpack.c.l.b16 %v18
  %v268 = vunpack.c.l.b16 %v19
  %v269 = vunpack.c.h.b16 %v19
  %v270 = vunpack.c.l.b16 %v20
  %v271 = vunpack.c.h.b16 %v20
  %v272 = vunpack.c.l.b16 %v21
  %v273 = vunpack.c.h.b16 %v21
  %v274 = vunpack.c.l.b16 %v22
  %v275 = vunpack.c.l.b16 %v23
  %v276 = vunpack.c.h.b16 %v23
  %v277 = vunpack.c.l.b16 %v24
  %v278 = vunpack.c.h.b16 %v24
  %v279 = vunpack.c.l.b16 %v25
  %v280 = vunpack.c.h.b16 %v25
  %v281 = vunpack.c.l.b16 %v26
  %v282 = vunpack.c.l.b16 %v27
  %v283 = vunpack.c.h.b16 %v27
  %v284 = vunpack.c.l.b16 %v28
  %v285 = vunpack.c.h.b16 %v28
  %v286 = vunpack.c.l.b16 %v29
  %v287 = vunpack.c.h.b16 %v29
  %v288 = vunpack.c.l.b16 %v30
  %v289 = vunpack.c.l.b16 %v31
  %v290 = vunpack.c.h.b16 %v31
  %v291 = vunpack.c.l.b16 %v32
  %v292 = vunpack.c.h.b16 %v32
  %v293 = vunpack.c.l.b16 %v33
  %v294 = vunpack.c.h.b16 %v33
  %v295 = vunpack.c.l.b16 %v34
  %v296 = vunpack.c.l.b16 %v35
  %v297 = vunpack.c.h.b16 %v35
  %v298 = vunpack.c.l.b16 %v36
  %v299 = vunpack.c.h.b16 %v36
  %v300 = vunpack.c.l.b16 %v37
  %v301 = vunpack.c.h.b16 %v37
  %v302 = vunpack.c.l.b16 %v38
  %v303 = vunpack.c.l.b16 %v39
  %v304 = vunpack.c.h.b16 %v39
  %v305 = vunpack.c.l.b16 %v40
  %v306 = vunpack.c.h.b16 %v40
  %v307 = vunpack.c.l.b16 %v41
  %v308 = vunpack.c.h.b16 %v41
  %v309 = vunpack.c.l.b16 %v42
  %v310 = vunpack.c.l.b16 %v43
  %v311 = vunpack.c.h.b16 %v43
  %v312 = vunpack.c.l.b16 %v44
  %v313 = vunpack.c.h.b16 %v44
  %v314 = vunpack.c.l.b16 %v45
  %v315 = vunpack.c.h.b16 %v45
  %v316 = vunpack.c.l.b16 %v46
  %v317 = vunpack.c.l.b16 %v47
  %v318 = vunpack.c.h.b16 %v47
  %v319 = vunpack.c.l.b16 %v48
  %v320 = vunpack.c.h.b16 %v48
  %v321 = vunpack.c.l.b16 %v49
  %v322 = vunpack.c.h.b16 %v49
  %v323 = vunpack.c.l.b16 %v50
  %v324 = vunpack.c.l.b16 %v51
  %v325 = vunpack.c.h.b16 %v51
  %v326 = vunpack.c.l.b16 %v52
  %v327 = vunpack.c.h.b16 %v52
  %v328 = vunpack.c.l.b16 %v53
  %v329 = vunpack.c.h.b16 %v53
  %v330 = vunpack.c.l.b16 %v54
  %v331 = vunpack.c.l.b16 %v55
  %v332 = vunpack.c.h.b16 %v55
  %v333 = vunpack.c.l.b16 %v56
  %v334 = vunpack.c.h.b16 %v56
  %v335 = vunpack.c.l.b16 %v57
  %v336 = vunpack.c.h.b16 %v57
  %v337 = vunpack.c.l.b16 %v58
  %v338 = vunpack.c.l.b16 %v59
  %v339 = vunpack.c.h.b16 %v59
  %v340 = vunpack.c.l.b16 %v60
  %v341 = vunpack.c.h.b16 %v60
  %v342 = vunpack.c.l.b16 %v61
  %v343 = vunpack.c.h.b16 %v61
  %v344 = vunpack.c.l.b16 %v62
  %v345 = vunpack.c.l.b16 %v63
  %v346 = vunpack.c.h.b16 %v63
  %v347 = vunpack.c.l.b16 %v64
  %v348 = vunpack.c.h.b16 %v64
  %v349 = vunpack.c.l.b16 %v65
  %v350 = vunpack.c.h.b16 %v65
  %v351 = vunpack.c.l.b16 %v66
  %v352 = vunpack.c.l.b16 %v67
  %v353 = vunpack.c.h.b16 %v67
  %v354 = vunpack.c.l.b16 %v68
  %v355 = vunpack.c.h.b16 %v68
  %v356 = vunpack.c.l.b16 %v69
  %v357 = vunpack.c.h.b16 %v69
  %v358 = vunpack.c.l.b16 %v70
  %v359 = vunpack.c.l.b16 %v71
  %v360 = vunpack.c.h.b16 %v71
  %v361 = vunpack.c.l.b16 %v72
  %v362 = vunpack.c.h.b16 %v72
  %v363 = vunpack.c.l.b16 %v73
  %v364 = vunpack.c.h.b16 %v73
  %v365 = vunpack.c.l.b16 %v74
  %v366 = vunpack.c.l.b16 %v75
  %v367 = vunpack.c.h.b16 %v75
  %v368 = vunpack.c.l.b16 %v76
  %v369 = vunpack.c.h.b16 %v76
  %v370 = vunpack.c.l.b16 %v77
  %v371 = vunpack.c.h.b16 %v77
  %v372 = vunpack.c.l.b16 %v78
  %v373 = vpack.c.b16 %v268, %v261
  %v374 = vpack.c.b16 %v269, %v262
  %v375 = vpack.c.b16 %v270, %v263
  %v376 = vpack.c.b16 %v271, %v264
  %v377 = vpack.c.b16 %v272, %v265
  %v378 = vpack.c.b16 %v273, %v266
  %v379 = vpack.c.b16 %v274, %v267
  %v380 = vpack.c.b16 %v282, %v275
  %v381 = vpack.c.b16 %v283, %v276
  %v382 = vpack.c.b16 %v284, %v277
  %v383 = vpack.c.b16 %v285, %v278
  %v384 = vpack.c.b16 %v286, %v279
  %v385 = vpack.c.b16 %v287, %v280
  %v386 = vpack.c.b16 %v288, %v281
  %v387 = vpack.c.b16 %v296, %v289
  %v388 = vpack.c.b16 %v297, %v290
  %v389 = vpack.c.b16 %v298, %v291
  %v390 = vpack.c.b16 %v299, %v292
  %v391 = vpack.c.b16 %v300, %v293
  %v392 = vpack.c.b16 %v301, %v294
  %v393 = vpack.c.b16 %v302, %v295
  %v394 = vpack.c.b16 %v310, %v303
  %v395 = vpack.c.b16 %v311, %v304
  %v396 = vpack.c.b16 %v312, %v305
  %v397 = vpack.c.b16 %v313, %v306
  %v398 = vpack.c.b16 %v314, %v307
  %v399 = vpack.c.b16 %v315, %v308
  %v400 = vpack.c.b16 %v316, %v309
  %v401 = vpack.c.b16 %v324, %v317
  %v402 = vpack.c.b16 %v325, %v318
  %v403 = vpack.c.b16 %v326, %v319
  %v404 = vpack.c.b16 %v327, %v320
  %v405 = vpack.c.b16 %v328, %v321
  %v406 = vpack.c.b16 %v329, %v322
  %v407 = vpack.c.b16 %v330, %v323
  %v408 = vpack.c.b16 %v338, %v331
  %v409 = vpack.c.b16 %v339, %v332
  %v410 = vpack.c.b16 %v340, %v333
  %v411 = vpack.c.b16 %v341, %v334
  %v412 = vpack.c.b16 %v342, %v335
  %v413 = vpack.c.b16 %v343, %v336
  %v414 = vpack.c.b16 %v344, %v337
  %v415 = vpack.c.b16 %v352, %v345
  %v416 = vpack.c.b16 %v353, %v346
  %v417 = vpack.c.b16 %v354, %v347
  %v418 = vpack.c.b16 %v355, %v348
  %v419 = vpack.c.b16 %v356, %v349
  %v420 = vpack.c.b16 %v357, %v350
  %v421 = vpack.c.b16 %v358, %v351
  %v422 = vpack.c.b16 %v366, %v359
  %v423 = vpack.c.b16 %v367, %v360
  %v424 = vpack.c.b16 %v368, %v361
  %v425 = vpack.c.b16 %v369, %v362
  %v426 = vpack.c.b16 %v370, %v363
  %v427 = vpack.c.b16 %v371, %v364
  %v428 = vpack.c.b16 %v372, %v365
  %v597 = vunpack.c.l.b16 %v79
  %v598 = vunpack.c.l.b16 %v80
  %v599 = vunpack.c.l.b16 %v81
  %v600 = vunpack.c.l.b16 %v82
  %v601 = vunpack.c.l.b16 %v83
  %v602 = vunpack.c.l.b16 %v84
  %v603 = vunpack.c.l.b16 %v85
  %v604 = vunpack.c.l.b16 %v86
  %v605 = vunpack.c.l.b16 %v87
  %v606 = vunpack.c.l.b16 %v88
  %v607 = vunpack.c.l.b16 %v89
  %v608 = vunpack.c.l.b16 %v90
  %v609 = vunpack.c.l.b16 %v91
  %v610 = vunpack.c.l.b16 %v92
  %v611 = vunpack.c.l.b16 %v93
  %v612 = vunpack.c.l.b16 %v94
  %v613 = vunpack.c.l.b16 %v95
  %v614 = vunpack.c.l.b16 %v96
  %v615 = vunpack.c.l.b16 %v97
  %v616 = vunpack.c.l.b16 %v98
  %v617 = vunpack.c.l.b16 %v99
  %v618 = vunpack.c.l.b16 %v100
  %v619 = vunpack.c.l.b16 %v101
  %v620 = vunpack.c.l.b16 %v102
  %v621 = vunpack.c.l.b16 %v103
  %v622 = vunpack.c.l.b16 %v104
  %v623 = vunpack.c.l.b16 %v105
  %v624 = vunpack.c.l.b16 %v106
  %v625 = vunpack.c.l.b16 %v107
  %v626 = vunpack.c.l.b16 %v108
  %v627 = vunpack.c.l.b16 %v109
  %v628 = vunpack.c.l.b16 %v110
  %v629 = vunpack.c.l.b16 %v111
  %v630 = vunpack.c.l.b16 %v112
  %v631 = vunpack.c.l.b16 %v113
  %v632 = vunpack.c.l.b16 %v114
  %v633 = vunpack.c.l.b16 %v115
  %v634 = vunpack.c.l.b16 %v116
  %v635 = vunpack.c.l.b16 %v117
  %v636 = vunpack.c.l.b16 %v118
  %v637 = vunpack.c.l.b16 %v119
  %v638 = vunpack.c.l.b16 %v120
  %v639 = vunpack.c.l.b16 %v121
  %v640 = vunpack.c.l.b16 %v122
  %v641 = vunpack.c.l.b16 %v123
  %v642 = vunpack.c.l.b16 %v124
  %v643 = vunpack.c.l.b16 %v125
  %v644 = vunpack.c.l.b16 %v126
  %v645 = vunpack.c.l.b16 %v127
  %v646 = vunpack.c.l.b16 %v128
  %v647 = vunpack.c.l.b16 %v129
  %v648 = vunpack.c.l.b16 %v130
  %v649 = vunpack.c.l.b16 %v131
  %v650 = vunpack.c.l.b16 %v132
  %v651 = vunpack.c.l.b16 %v133
  %v652 = vunpack.c.l.b16 %v134
  %v653 = vunpack.c.l.b16 %v135
  %v654 = vunpack.c.l.b16 %v136
  %v655 = vunpack.c.l.b16 %v137
  %v656 = vunpack.c.l.b16 %v138
  %v657 = vunpack.c.l.b16 %v139
  %v658 = vunpack.c.l.b16 %v140
  %v659 = vunpack.c.l.b16 %v141
  %v660 = vunpack.c.l.b16 %v142
  %v661 = vunpack.c.l.b16 %v143
  %v662 = vunpack.c.l.b16 %v144
  %v663 = vunpack.c.l.b16 %v145
  %v664 = vunpack.c.l.b16 %v146
  %v665 = vunpack.c.l.b16 %v147
  %v666 = vunpack.c.l.b16 %v148
  %v667 = vunpack.c.l.b16 %v149
  %v668 = vunpack.c.l.b16 %v150
  %v669 = vunpack.c.l.b16 %v151
  %v670 = vunpack.c.l.b16 %v152
  %v671 = vunpack.c.l.b16 %v153
  %v672 = vunpack.c.l.b16 %v154
  %v673 = vunpack.c.l.b16 %v155
  %v674 = vunpack.c.l.b16 %v156
  %v675 = vunpack.c.l.b16 %v157
  %v676 = vunpack.c.l.b16 %v158
  %v677 = vunpack.c.l.b16 %v159
  %v678 = vunpack.c.l.b16 %v160
  %v679 = vunpack.c.l.b16 %v161
  %v680 = vunpack.c.l.b16 %v162
  %v681 = vunpack.c.l.b16 %v163
  %v682 = vunpack.c.l.b16 %v164
  %v683 = vunpack.c.l.b16 %v165
  %v684 = vunpack.c.l.b16 %v166
  %v685 = vunpack.c.l.b16 %v167
  %v686 = vunpack.c.l.b16 %v168
  %v687 = vunpack.c.l.b16 %v169
  %v688 = vunpack.c.l.b16 %v170
  %v689 = vunpack.c.l.b16 %v171
  %v690 = vunpack.c.l.b16 %v172
  %v691 = vunpack.c.l.b16 %v173
  %v692 = vunpack.c.l.b16 %v174
  %v693 = vunpack.c.l.b16 %v175
  %v694 = vunpack.c.l.b16 %v176
  %v695 = vunpack.c.l.b16 %v177
  %v696 = vunpack.c.l.b16 %v178
  %v697 = vunpack.c.l.b16 %v179
  %v698 = vunpack.c.l.b16 %v180
  %v699 = vunpack.c.l.b16 %v181
  %v700 = vunpack.c.l.b16 %v182
  %v701 = vunpack.c.l.b16 %v183
  %v702 = vunpack.c.l.b16 %v184
  %v703 = vunpack.c.l.b16 %v185
  %v704 = vunpack.c.l.b16 %v186
  %v705 = vunpack.c.l.b16 %v187
  %v706 = vunpack.c.l.b16 %v188
  %v707 = vunpack.c.l.b16 %v189
  %v708 = vunpack.c.l.b16 %v190
  %v709 = vpack.c.b16 %v598, %v597
  %v710 = vpack.c.b16 %v600, %v599
  %v711 = vpack.c.b16 %v602, %v601
  %v712 = vpack.c.b16 %v604, %v603
  %v713 = vpack.c.b16 %v606, %v605
  %v714 = vpack.c.b16 %v608, %v607
  %v715 = vpack.c.b16 %v610, %v609
  %v716 = vpack.c.b16 %v612, %v611
  %v717 = vpack.c.b16 %v614, %v613
  %v718 = vpack.c.b16 %v616, %v615
  %v719 = vpack.c.b16 %v618, %v617
  %v720 = vpack.c.b16 %v620, %v619
  %v721 = vpack.c.b16 %v622, %v621
  %v722 = vpack.c.b16 %v624, %v623
  %v723 = vpack.c.b16 %v626, %v625
  %v724 = vpack.c.b16 %v628, %v627
  %v725 = vpack.c.b16 %v630, %v629
  %v726 = vpack.c.b16 %v632, %v631
  %v727 = vpack.c.b16 %v634, %v633
  %v728 = vpack.c.b16 %v636, %v635
  %v729 = vpack.c.b16 %v638, %v637
  %v730 = vpack.c.b16 %v640, %v639
  %v731 = vpack.c.b16 %v642, %v641
  %v732 = vpack.c.b16 %v644, %v643
  %v733 = vpack.c.b16 %v646, %v645
  %v734 = vpack.c.b16 %v648, %v647
  %v735 = vpack.c.b16 %v650, %v649
  %v736 = vpack.c.b16 %v652, %v651
  %v737 = vpack.c.b16 %v654, %v653
  %v738 = vpack.c.b16 %v656, %v655
  %v739 = vpack.c.b16 %v658, %v657
  %v740 = vpack.c.b16 %v660, %v659
  %v741 = vpack.c.b16 %v662, %v661
  %v742 = vpack.c.b16 %v664, %v663
  %v743 = vpack.c.b16 %v666, %v665
  %v744 = vpack.c.b16 %v668, %v667
  %v745 = vpack.c.b16 %v670, %v669
  %v746 = vpack.c.b16 %v672, %v671
  %v747 = vpack.c.b16 %v674, %v673
  %v748 = vpack.c.b16 %v676, %v675
  %v749 = vpack.c.b16 %v678, %v677
  %v750 = vpack.c.b16 %v680, %v679
  %v751 = vpack.c.b16 %v682, %v681
  %v752 = vpack.c.b16 %v684, %v683
  %v753 = vpack.c.b16 %v686, %v685
  %v754 = vpack.c.b16 %v688, %v687
  %v755 = vpack.c.b16 %v690, %v689
  %v756 = vpack.c.b16 %v692, %v691
  %v757 = vpack.c.b16 %v694, %v693
  %v758 = vpack.c.b16 %v696, %v695
  %v759 = vpack.c.b16 %v698, %v697
  %v760 = vpack.c.b16 %v700, %v699
  %v761 = vpack.c.b16 %v702, %v701
  %v762 = vpack.c.b16 %v704, %v703
  %v763 = vpack.c.b16 %v706, %v705
  %v764 = vpack.c.b16 %v708, %v707
  %821 = vmatprep.subr.bf16.mxu0 0
  %822 = vmatpush1.bf16.msra.mxu0 %v709
  %823 = vmatprep.subr.bf16.mxu0 0
  %824 = vmatpush1.bf16.msra.mxu0 %v710
  %825 = vmatprep.subr.bf16.mxu0 0
  %826 = vmatpush1.bf16.msra.mxu0 %v711
  %827 = vmatprep.subr.bf16.mxu0 0
  %828 = vmatpush1.bf16.msra.mxu0 %v712
  %829 = vmatprep.subr.bf16.mxu0 0
  %830 = vmatpush1.bf16.msra.mxu0 %v713
  %831 = vmatprep.subr.bf16.mxu0 0
  %832 = vmatpush1.bf16.msra.mxu0 %v714
  %833 = vmatprep.subr.bf16.mxu0 0
  %834 = vmatpush1.bf16.msra.mxu0 %v715
  %835 = vmatprep.subr.bf16.mxu0 0
  %836 = vmatpush1.bf16.msra.mxu0 %v716
  %837 = vmatprep.subr.bf16.mxu0 0
  %838 = vmatpush1.bf16.msra.mxu0 %v717
  %839 = vmatprep.subr.bf16.mxu0 0
  %840 = vmatpush1.bf16.msra.mxu0 %v718
  %841 = vmatprep.subr.bf16.mxu0 0
  %842 = vmatpush1.bf16.msra.mxu0 %v719
  %843 = vmatprep.subr.bf16.mxu0 0
  %844 = vmatpush1.bf16.msra.mxu0 %v720
  %845 = vmatprep.subr.bf16.mxu0 0
  %846 = vmatpush1.bf16.msra.mxu0 %v721
  %847 = vmatprep.subr.bf16.mxu0 0
  %848 = vmatpush1.bf16.msra.mxu0 %v722
  %849 = vmatprep.subr.bf16.mxu0 0
  %850 = vmatpush1.bf16.msra.mxu0 %v723
  %851 = vmatprep.subr.bf16.mxu0 0
  %852 = vmatpush1.bf16.msra.mxu0 %v724
  %853 = vmatprep.mubr.bf16.mxu0 %v374
  %854 = vmatmul.mubr.bf16.gmra.mrb[0].mxu0 %v373
  %v855 = vpop.f32.mrb[0].mxu0
  %v856 = vadd.f32 %v196, %v855
  %v857 = vpop.f32.mrb[0].mxu0
  %v858 = vpop.f32.mrb[0].mxu0
  %v859 = vadd.f32 %v196, %v858
  %v860 = vpop.f32.mrb[0].mxu0
  %861 = vmatprep.mubr.bf16.mxu0 %v381
  %862 = vmatmul.mubr.bf16.gmra.mrb[0].mxu0 %v380
  %v863 = vpop.f32.mrb[0].mxu0
  %v864 = vadd.f32 %v196, %v863
  %v865 = vpop.f32.mrb[0].mxu0
  %v866 = vpop.f32.mrb[0].mxu0
  %v867 = vadd.f32 %v196, %v866
  %v868 = vpop.f32.mrb[0].mxu0
  %869 = vmatprep.mubr.bf16.mxu0 %v388
  %870 = vmatmul.mubr.bf16.gmra.mrb[0].mxu0 %v387
  %v871 = vpop.f32.mrb[0].mxu0
  %v872 = vadd.f32 %v196, %v871
  %v873 = vpop.f32.mrb[0].mxu0
  %v874 = vpop.f32.mrb[0].mxu0
  %v875 = vadd.f32 %v196, %v874
  %v876 = vpop.f32.mrb[0].mxu0
  %877 = vmatprep.mubr.bf16.mxu0 %v395
  %878 = vmatmul.mubr.bf16.gmra.mrb[0].mxu0 %v394
  %v879 = vpop.f32.mrb[0].mxu0
  %v880 = vadd.f32 %v196, %v879
  %v881 = vpop.f32.mrb[0].mxu0
  %v882 = vpop.f32.mrb[0].mxu0
  %v883 = vadd.f32 %v196, %v882
  %v884 = vpop.f32.mrb[0].mxu0
  %885 = vmatprep.mubr.bf16.mxu0 %v402
  %886 = vmatmul.mubr.bf16.gmra.mrb[0].mxu0 %v401
  %v887 = vpop.f32.mrb[0].mxu0
  %v888 = vadd.f32 %v196, %v887
  %v889 = vpop.f32.mrb[0].mxu0
  %v890 = vpop.f32.mrb[0].mxu0
  %v891 = vadd.f32 %v196, %v890
  %v892 = vpop.f32.mrb[0].mxu0
  %893 = vmatprep.mubr.bf16.mxu0 %v409
  %894 = vmatmul.mubr.bf16.gmra.mrb[0].mxu0 %v408
  %v895 = vpop.f32.mrb[0].mxu0
  %v896 = vadd.f32 %v196, %v895
  %v897 = vpop.f32.mrb[0].mxu0
  %v898 = vpop.f32.mrb[0].mxu0
  %v899 = vadd.f32 %v196, %v898
  %v900 = vpop.f32.mrb[0].mxu0
  %901 = vmatprep.mubr.bf16.mxu0 %v416
  %902 = vmatmul.mubr.bf16.gmra.mrb[0].mxu0 %v415
  %v903 = vpop.f32.mrb[0].mxu0
  %v904 = vadd.f32 %v196, %v903
  %v905 = vpop.f32.mrb[0].mxu0
  %v906 = vpop.f32.mrb[0].mxu0
  %v907 = vadd.f32 %v196, %v906
  %v908 = vpop.f32.mrb[0].mxu0
  %909 = vmatprep.mubr.bf16.mxu0 %v423
  %910 = vmatmul.mubr.bf16.gmra.mrb[0].mxu0 %v422
  %v911 = vpop.f32.mrb[0].mxu0
  %v912 = vadd.f32 %v196, %v911
  %v913 = vpop.f32.mrb[0].mxu0
  %v914 = vpop.f32.mrb[0].mxu0
  %v915 = vadd.f32 %v196, %v914
  %v916 = vpop.f32.mrb[0].mxu0
  %917 = vdwg.mxu0
  %918 = vmatprep.subr.bf16.mxu0 0
  %919 = vmatpush1.bf16.msra.mxu0 %v725
  %920 = vmatprep.subr.bf16.mxu0 0
  %921 = vmatpush1.bf16.msra.mxu0 %v726
  %922 = vmatprep.subr.bf16.mxu0 0
  %923 = vmatpush1.bf16.msra.mxu0 %v727
  %924 = vmatprep.subr.bf16.mxu0 0
  %925 = vmatpush1.bf16.msra.mxu0 %v728
  %926 = vmatprep.subr.bf16.mxu0 0
  %927 = vmatpush1.bf16.msra.mxu0 %v729
  %928 = vmatprep.subr.bf16.mxu0 0
  %929 = vmatpush1.bf16.msra.mxu0 %v730
  %930 = vmatprep.subr.bf16.mxu0 0
  %931 = vmatpush1.bf16.msra.mxu0 %v731
  %932 = vmatprep.subr.bf16.mxu0 0
  %933 = vmatpush1.bf16.msra.mxu0 %v732
  %934 = vmatprep.subr.bf16.mxu0 0
  %935 = vmatpush1.bf16.msra.mxu0 %v733
  %936 = vmatprep.subr.bf16.mxu0 0
  %937 = vmatpush1.bf16.msra.mxu0 %v734
  %938 = vmatprep.subr.bf16.mxu0 0
  %939 = vmatpush1.bf16.msra.mxu0 %v735
  %940 = vmatprep.subr.bf16.mxu0 0
  %941 = vmatpush1.bf16.msra.mxu0 %v736
  %942 = vmatprep.subr.bf16.mxu0 0
  %943 = vmatpush1.bf16.msra.mxu0 %v737
  %944 = vmatprep.subr.bf16.mxu0 0
  %945 = vmatpush1.bf16.msra.mxu0 %v738
  %946 = vmatprep.subr.bf16.mxu0 0
  %947 = vmatpush1.bf16.msra.mxu0 %v739
  %948 = vmatprep.subr.bf16.mxu0 0
  %949 = vmatpush1.bf16.msra.mxu0 %v740
  %950 = vmatprep.mubr.bf16.mxu0 %v376
  %951 = vmatmul.mubr.bf16.gmra.mrb[0].mxu0 %v375
  %v952 = vpop.f32.mrb[0].mxu0
  %v953 = vadd.f32 %v856, %v952
  %v954 = vpop.f32.mrb[0].mxu0
  %v955 = vpop.f32.mrb[0].mxu0
  %v956 = vadd.f32 %v859, %v955
  %v957 = vpop.f32.mrb[0].mxu0
  %958 = vmatprep.mubr.bf16.mxu0 %v383
  %959 = vmatmul.mubr.bf16.gmra.mrb[0].mxu0 %v382
  %v960 = vpop.f32.mrb[0].mxu0
  %v961 = vadd.f32 %v864, %v960
  %v962 = vpop.f32.mrb[0].mxu0
  %v963 = vpop.f32.mrb[0].mxu0
  %v964 = vadd.f32 %v867, %v963
  %v965 = vpop.f32.mrb[0].mxu0
  %966 = vmatprep.mubr.bf16.mxu0 %v390
  %967 = vmatmul.mubr.bf16.gmra.mrb[0].mxu0 %v389
  %v968 = vpop.f32.mrb[0].mxu0
  %v969 = vadd.f32 %v872, %v968
  %v970 = vpop.f32.mrb[0].mxu0
  %v971 = vpop.f32.mrb[0].mxu0
  %v972 = vadd.f32 %v875, %v971
  %v973 = vpop.f32.mrb[0].mxu0
  %974 = vmatprep.mubr.bf16.mxu0 %v397
  %975 = vmatmul.mubr.bf16.gmra.mrb[0].mxu0 %v396
  %v976 = vpop.f32.mrb[0].mxu0
  %v977 = vadd.f32 %v880, %v976
  %v978 = vpop.f32.mrb[0].mxu0
  %v979 = vpop.f32.mrb[0].mxu0
  %v980 = vadd.f32 %v883, %v979
  %v981 = vpop.f32.mrb[0].mxu0
  %982 = vmatprep.mubr.bf16.mxu0 %v404
  %983 = vmatmul.mubr.bf16.gmra.mrb[0].mxu0 %v403
  %v984 = vpop.f32.mrb[0].mxu0
  %v985 = vadd.f32 %v888, %v984
  %v986 = vpop.f32.mrb[0].mxu0
  %v987 = vpop.f32.mrb[0].mxu0
  %v988 = vadd.f32 %v891, %v987
  %v989 = vpop.f32.mrb[0].mxu0
  %990 = vmatprep.mubr.bf16.mxu0 %v411
  %991 = vmatmul.mubr.bf16.gmra.mrb[0].mxu0 %v410
  %v992 = vpop.f32.mrb[0].mxu0
  %v993 = vadd.f32 %v896, %v992
  %v994 = vpop.f32.mrb[0].mxu0
  %v995 = vpop.f32.mrb[0].mxu0
  %v996 = vadd.f32 %v899, %v995
  %v997 = vpop.f32.mrb[0].mxu0
  %998 = vmatprep.mubr.bf16.mxu0 %v418
  %999 = vmatmul.mubr.bf16.gmra.mrb[0].mxu0 %v417
  %v1000 = vpop.f32.mrb[0].mxu0
  %v1001 = vadd.f32 %v904, %v1000
  %v1002 = vpop.f32.mrb[0].mxu0
  %v1003 = vpop.f32.mrb[0].mxu0
  %v1004 = vadd.f32 %v907, %v1003
  %v1005 = vpop.f32.mrb[0].mxu0
  %1006 = vmatprep.mubr.bf16.mxu0 %v425
  %1007 = vmatmul.mubr.bf16.gmra.mrb[0].mxu0 %v424
  %v1008 = vpop.f32.mrb[0].mxu0
  %v1009 = vadd.f32 %v912, %v1008
  %v1010 = vpop.f32.mrb[0].mxu0
  %v1011 = vpop.f32.mrb[0].mxu0
  %v1012 = vadd.f32 %v915, %v1011
  %v1013 = vpop.f32.mrb[0].mxu0
  %1014 = vdwg.mxu0
  %1015 = vmatprep.subr.bf16.mxu0 0
  %1016 = vmatpush1.bf16.msra.mxu0 %v741
  %1017 = vmatprep.subr.bf16.mxu0 0
  %1018 = vmatpush1.bf16.msra.mxu0 %v742
  %1019 = vmatprep.subr.bf16.mxu0 0
  %1020 = vmatpush1.bf16.msra.mxu0 %v743
  %1021 = vmatprep.subr.bf16.mxu0 0
  %1022 = vmatpush1.bf16.msra.mxu0 %v744
  %1023 = vmatprep.subr.bf16.mxu0 0
  %1024 = vmatpush1.bf16.msra.mxu0 %v745
  %1025 = vmatprep.subr.bf16.mxu0 0
  %1026 = vmatpush1.bf16.msra.mxu0 %v746
  %1027 = vmatprep.subr.bf16.mxu0 0
  %1028 = vmatpush1.bf16.msra.mxu0 %v747
  %1029 = vmatprep.subr.bf16.mxu0 0
  %1030 = vmatpush1.bf16.msra.mxu0 %v748
  %1031 = vmatprep.subr.bf16.mxu0 0
  %1032 = vmatpush1.bf16.msra.mxu0 %v749
  %1033 = vmatprep.subr.bf16.mxu0 0
  %1034 = vmatpush1.bf16.msra.mxu0 %v750
  %1035 = vmatprep.subr.bf16.mxu0 0
  %1036 = vmatpush1.bf16.msra.mxu0 %v751
  %1037 = vmatprep.subr.bf16.mxu0 0
  %1038 = vmatpush1.bf16.msra.mxu0 %v752
  %1039 = vmatprep.subr.bf16.mxu0 0
  %1040 = vmatpush1.bf16.msra.mxu0 %v753
  %1041 = vmatprep.subr.bf16.mxu0 0
  %1042 = vmatpush1.bf16.msra.mxu0 %v754
  %1043 = vmatprep.subr.bf16.mxu0 0
  %1044 = vmatpush1.bf16.msra.mxu0 %v755
  %1045 = vmatprep.subr.bf16.mxu0 0
  %1046 = vmatpush1.bf16.msra.mxu0 %v756
  %1047 = vmatprep.mubr.bf16.mxu0 %v378
  %1048 = vmatmul.mubr.bf16.gmra.mrb[0].mxu0 %v377
  %v1049 = vpop.f32.mrb[0].mxu0
  %v1050 = vadd.f32 %v953, %v1049
  %v1051 = vpop.f32.mrb[0].mxu0
  %v1052 = vpop.f32.mrb[0].mxu0
  %v1053 = vadd.f32 %v956, %v1052
  %v1054 = vpop.f32.mrb[0].mxu0
  %1055 = vmatprep.mubr.bf16.mxu0 %v385
  %1056 = vmatmul.mubr.bf16.gmra.mrb[0].mxu0 %v384
  %v1057 = vpop.f32.mrb[0].mxu0
  %v1058 = vadd.f32 %v961, %v1057
  %v1059 = vpop.f32.mrb[0].mxu0
  %v1060 = vpop.f32.mrb[0].mxu0
  %v1061 = vadd.f32 %v964, %v1060
  %v1062 = vpop.f32.mrb[0].mxu0
  %1063 = vmatprep.mubr.bf16.mxu0 %v392
  %1064 = vmatmul.mubr.bf16.gmra.mrb[0].mxu0 %v391
  %v1065 = vpop.f32.mrb[0].mxu0
  %v1066 = vadd.f32 %v969, %v1065
  %v1067 = vpop.f32.mrb[0].mxu0
  %v1068 = vpop.f32.mrb[0].mxu0
  %v1069 = vadd.f32 %v972, %v1068
  %v1070 = vpop.f32.mrb[0].mxu0
  %1071 = vmatprep.mubr.bf16.mxu0 %v399
  %1072 = vmatmul.mubr.bf16.gmra.mrb[0].mxu0 %v398
  %v1073 = vpop.f32.mrb[0].mxu0
  %v1074 = vadd.f32 %v977, %v1073
  %v1075 = vpop.f32.mrb[0].mxu0
  %v1076 = vpop.f32.mrb[0].mxu0
  %v1077 = vadd.f32 %v980, %v1076
  %v1078 = vpop.f32.mrb[0].mxu0
  %1079 = vmatprep.mubr.bf16.mxu0 %v406
  %1080 = vmatmul.mubr.bf16.gmra.mrb[0].mxu0 %v405
  %v1081 = vpop.f32.mrb[0].mxu0
  %v1082 = vadd.f32 %v985, %v1081
  %v1083 = vpop.f32.mrb[0].mxu0
  %v1084 = vpop.f32.mrb[0].mxu0
  %v1085 = vadd.f32 %v988, %v1084
  %v1086 = vpop.f32.mrb[0].mxu0
  %1087 = vmatprep.mubr.bf16.mxu0 %v413
  %1088 = vmatmul.mubr.bf16.gmra.mrb[0].mxu0 %v412
  %v1089 = vpop.f32.mrb[0].mxu0
  %v1090 = vadd.f32 %v993, %v1089
  %v1091 = vpop.f32.mrb[0].mxu0
  %v1092 = vpop.f32.mrb[0].mxu0
  %v1093 = vadd.f32 %v996, %v1092
  %v1094 = vpop.f32.mrb[0].mxu0
  %1095 = vmatprep.mubr.bf16.mxu0 %v420
  %1096 = vmatmul.mubr.bf16.gmra.mrb[0].mxu0 %v419
  %v1097 = vpop.f32.mrb[0].mxu0
  %v1098 = vadd.f32 %v1001, %v1097
  %v1099 = vpop.f32.mrb[0].mxu0
  %v1100 = vpop.f32.mrb[0].mxu0
  %v1101 = vadd.f32 %v1004, %v1100
  %v1102 = vpop.f32.mrb[0].mxu0
  %1103 = vmatprep.mubr.bf16.mxu0 %v427
  %1104 = vmatmul.mubr.bf16.gmra.mrb[0].mxu0 %v426
  %v1105 = vpop.f32.mrb[0].mxu0
  %v1106 = vadd.f32 %v1009, %v1105
  %v1107 = vpop.f32.mrb[0].mxu0
  %v1108 = vpop.f32.mrb[0].mxu0
  %v1109 = vadd.f32 %v1012, %v1108
  %v1110 = vpop.f32.mrb[0].mxu0
  %1111 = vdwg.mxu0
  %1112 = vmatprep.subr.bf16.mxu0 0
  %1113 = vmatpush1.bf16.msra.mxu0 %v757
  %1114 = vmatprep.subr.bf16.mxu0 0
  %1115 = vmatpush1.bf16.msra.mxu0 %v758
  %1116 = vmatprep.subr.bf16.mxu0 0
  %1117 = vmatpush1.bf16.msra.mxu0 %v759
  %1118 = vmatprep.subr.bf16.mxu0 0
  %1119 = vmatpush1.bf16.msra.mxu0 %v760
  %1120 = vmatprep.subr.bf16.mxu0 0
  %1121 = vmatpush1.bf16.msra.mxu0 %v761
  %1122 = vmatprep.subr.bf16.mxu0 0
  %1123 = vmatpush1.bf16.msra.mxu0 %v762
  %1124 = vmatprep.subr.bf16.mxu0 0
  %1125 = vmatpush1.bf16.msra.mxu0 %v763
  %1126 = vmatprep.subr.bf16.mxu0 0
  %1127 = vmatpush1.bf16.msra.mxu0 %v764
  %1128 = vmatprep.subr.bf16.mxu0 0
  %1129 = vmatpush1.bf16.msra.mxu0 0
  %1130 = vmatprep.subr.bf16.mxu0 0
  %1131 = vmatpush1.bf16.msra.mxu0 0
  %1132 = vmatprep.subr.bf16.mxu0 0
  %1133 = vmatpush1.bf16.msra.mxu0 0
  %1134 = vmatprep.subr.bf16.mxu0 0
  %1135 = vmatpush1.bf16.msra.mxu0 0
  %1136 = vmatprep.subr.bf16.mxu0 0
  %1137 = vmatpush1.bf16.msra.mxu0 0
  %1138 = vmatprep.subr.bf16.mxu0 0
  %1139 = vmatpush1.bf16.msra.mxu0 0
  %1140 = vmatprep.subr.bf16.mxu0 0
  %1141 = vmatpush1.bf16.msra.mxu0 0
  %1142 = vmatprep.subr.bf16.mxu0 0
  %1143 = vmatpush1.bf16.msra.mxu0 0
  %1144 = vmatprep.mubr.bf16.mxu0 0
  %1145 = vmatmul.mubr.bf16.gmra.mrb[0].mxu0 %v379
  %v1146 = vpop.f32.mrb[0].mxu0
  %v1147 = vadd.f32 %v1050, %v1146
  %v1148 = vpop.f32.mrb[0].mxu0
  %v1149 = vpop.f32.mrb[0].mxu0
  %v1150 = vadd.f32 %v1053, %v1149
  %v1151 = vpop.f32.mrb[0].mxu0
  %1152 = vmatprep.mubr.bf16.mxu0 0
  %1153 = vmatmul.mubr.bf16.gmra.mrb[0].mxu0 %v386
  %v1154 = vpop.f32.mrb[0].mxu0
  %v1155 = vadd.f32 %v1058, %v1154
  %v1156 = vpop.f32.mrb[0].mxu0
  %v1157 = vpop.f32.mrb[0].mxu0
  %v1158 = vadd.f32 %v1061, %v1157
  %v1159 = vpop.f32.mrb[0].mxu0
  %1160 = vmatprep.mubr.bf16.mxu0 0
  %1161 = vmatmul.mubr.bf16.gmra.mrb[0].mxu0 %v393
  %v1162 = vpop.f32.mrb[0].mxu0
  %v1163 = vadd.f32 %v1066, %v1162
  %v1164 = vpop.f32.mrb[0].mxu0
  %v1165 = vpop.f32.mrb[0].mxu0
  %v1166 = vadd.f32 %v1069, %v1165
  %v1167 = vpop.f32.mrb[0].mxu0
  %1168 = vmatprep.mubr.bf16.mxu0 0
  %1169 = vmatmul.mubr.bf16.gmra.mrb[0].mxu0 %v400
  %v1170 = vpop.f32.mrb[0].mxu0
  %v1171 = vadd.f32 %v1074, %v1170
  %v1172 = vpop.f32.mrb[0].mxu0
  %v1173 = vpop.f32.mrb[0].mxu0
  %v1174 = vadd.f32 %v1077, %v1173
  %v1175 = vpop.f32.mrb[0].mxu0
  %1176 = vmatprep.mubr.bf16.mxu0 0
  %1177 = vmatmul.mubr.bf16.gmra.mrb[0].mxu0 %v407
  %v1178 = vpop.f32.mrb[0].mxu0
  %v1179 = vadd.f32 %v1082, %v1178
  %v1180 = vpop.f32.mrb[0].mxu0
  %v1181 = vpop.f32.mrb[0].mxu0
  %v1182 = vadd.f32 %v1085, %v1181
  %v1183 = vpop.f32.mrb[0].mxu0
  %1184 = vmatprep.mubr.bf16.mxu0 0
  %1185 = vmatmul.mubr.bf16.gmra.mrb[0].mxu0 %v414
  %v1186 = vpop.f32.mrb[0].mxu0
  %v1187 = vadd.f32 %v1090, %v1186
  %v1188 = vpop.f32.mrb[0].mxu0
  %v1189 = vpop.f32.mrb[0].mxu0
  %v1190 = vadd.f32 %v1093, %v1189
  %v1191 = vpop.f32.mrb[0].mxu0
  %1192 = vmatprep.mubr.bf16.mxu0 0
  %1193 = vmatmul.mubr.bf16.gmra.mrb[0].mxu0 %v421
  %v1194 = vpop.f32.mrb[0].mxu0
  %v1195 = vadd.f32 %v1098, %v1194
  %v1196 = vpop.f32.mrb[0].mxu0
  %v1197 = vpop.f32.mrb[0].mxu0
  %v1198 = vadd.f32 %v1101, %v1197
  %v1199 = vpop.f32.mrb[0].mxu0
  %1200 = vmatprep.mubr.bf16.mxu0 0
  %1201 = vmatmul.mubr.bf16.gmra.mrb[0].mxu0 %v428
  %v1202 = vpop.f32.mrb[0].mxu0
  %v1203 = vadd.f32 %v1106, %v1202
  %v1204 = vpop.f32.mrb[0].mxu0
  %v1205 = vpop.f32.mrb[0].mxu0
  %v1206 = vadd.f32 %v1109, %v1205
  %v1207 = vpop.f32.mrb[0].mxu0
  %1208 = vdwg.mxu0
  %v1209 = vmax.f32 %v1147, 0.0
  %v1210 = vmax.f32 %v1150, 0.0
  %v1211 = vmax.f32 %v1155, 0.0
  %v1212 = vmax.f32 %v1158, 0.0
  %v1213 = vmax.f32 %v1163, 0.0
  %v1214 = vmax.f32 %v1166, 0.0
  %v1215 = vmax.f32 %v1171, 0.0
  %v1216 = vmax.f32 %v1174, 0.0
  %v1217 = vmax.f32 %v1179, 0.0
  %v1218 = vmax.f32 %v1182, 0.0
  %v1219 = vmax.f32 %v1187, 0.0
  %v1220 = vmax.f32 %v1190, 0.0
  %v1221 = vmax.f32 %v1195, 0.0
  %v1222 = vmax.f32 %v1198, 0.0
  %v1223 = vmax.f32 %v1203, 0.0
  %v1224 = vmax.f32 %v1206, 0.0
  %s1225 = scalar_lea.vmem %s3, %s191
  %1226 = vst [vmem:[%s1225] sm:$0xff] %v1209
  %1227 = vst [vmem:[%s1225 + $0x8] sm:$0xff] %v1210
  %1228 = vst [vmem:[%s1225 + $0x10] sm:$0xff] %v1211
  %1229 = vst [vmem:[%s1225 + $0x18] sm:$0xff] %v1212
  %1230 = vst [vmem:[%s1225 + $0x20] sm:$0xff] %v1213
  %1231 = vst [vmem:[%s1225 + $0x28] sm:$0xff] %v1214
  %1232 = vst [vmem:[%s1225 + $0x30] sm:$0xff] %v1215
  %1233 = vst [vmem:[%s1225 + $0x38] sm:$0xff] %v1216
  %1234 = vst [vmem:[%s1225 + $0x40] sm:$0xff] %v1217
  %1235 = vst [vmem:[%s1225 + $0x48] sm:$0xff] %v1218
  %1236 = vst [vmem:[%s1225 + $0x50] sm:$0xff] %v1219
  %1237 = vst [vmem:[%s1225 + $0x58] sm:$0xff] %v1220
  %1238 = vst [vmem:[%s1225 + $0x60] sm:$0xff] %v1221
  %1239 = vst [vmem:[%s1225 + $0x68] sm:$0xff] %v1222
  %1240 = vst [vmem:[%s1225 + $0x70] sm:$0xff] %v1223
  %1241 = vst [vmem:[%s1225 + $0x78] sm:$0xff] %v1224
  // Predicated region
  $region14: #{generator_forward.6} parent=0 // pred_check
    _
  $region15: #{generator_forward.6} parent=0 // pred_check_branch
    %1243 = sbr.rel (0) target = $region17
  $region16: #{generator_forward.6} parent=0 // pred_region
    _
  $region17: #{generator_forward.6} parent=0 // pred_fallthru
    _
  // Predicated region
  $region18: #{generator_forward.6} parent=0 // pred_check
    _
  $region19: #{generator_forward.6} parent=0 // pred_check_branch
    %1245 = sbr.rel (0) target = $region21
  $region20: #{generator_forward.6} parent=0 // pred_region
    _
  $region21: #{generator_forward.6} parent=0 // pred_fallthru
    _

// kernel: generator_forward.7
$region0: #{generator_forward.7}
  #allocation0 [shape = 'u32[]', space=smem, size = 0x4, offset = 0x4, fixed_abs, tag = 'smem constant byte address 0x4 - core index']
  #allocation1 [shape = 'u32[144,128]{1,0:T(1,128)}', space=vmem, size = 0x12000, scoped, tag = 'internal scratch']
  %s0 = inlined_call_operand.vmem [shape: bf16[32,1024], index: 0, kind: input, shape index: {}]
  %s1 = inlined_call_operand.vmem [shape: bf16[1,1024,128], index: 1, kind: input, shape index: {}]
  %s2 = inlined_call_operand.vmem [shape: f32[8,128], index: 2, kind: input, shape index: {}]
  %s3 = inlined_call_operand.vmem [shape: f32[32,128], index: 3, kind: output, shape index: {}]
  %s4 = sld [smem:[#allocation0]]
  $region26: #{generator_forward.7} parent=0
    _
  %s6 = ssub.s32 1, %s4
  %s7 = scalar_select 0, %s6, %s4
  // Predicated region
  $region2: #{generator_forward.7} parent=0 // pred_check
    _
  $region3: #{generator_forward.7} parent=0 // pred_check_branch
    %9 = sbr.rel (0) target = $region5
  $region4: #{generator_forward.7} parent=0 // pred_region
    _
  $region5: #{generator_forward.7} parent=0 // pred_fallthru
    _
  // Predicated region
  $region6: #{generator_forward.7} parent=0 // pred_check
    _
  $region7: #{generator_forward.7} parent=0 // pred_check_branch
    %11 = sbr.rel (0) target = $region9
  $region8: #{generator_forward.7} parent=0 // pred_region
    _
  $region9: #{generator_forward.7} parent=0 // pred_fallthru
    _
  // Predicated region
  $region10: #{generator_forward.7} parent=0 // pred_check
    _
  $region11: #{generator_forward.7} parent=0 // pred_check_branch
    %13 = sbr.rel (0) target = $region13
  $region12: #{generator_forward.7} parent=0 // pred_region
    _
  $region13: #{generator_forward.7} parent=0 // pred_fallthru
    _
  %v15 = vld [vmem:[%s0] sm:$0xff]
  %v16 = vld [vmem:[%s0 + $0x8] sm:$0xff]
  %v17 = vld [vmem:[%s0 + $0x10] sm:$0xff]
  %v18 = vld [vmem:[%s0 + $0x18] sm:$0xff]
  %v19 = vld [vmem:[%s0 + $0x20] sm:$0xff]
  %v20 = vld [vmem:[%s0 + $0x28] sm:$0xff]
  %v21 = vld [vmem:[%s0 + $0x30] sm:$0xff]
  %v22 = vld [vmem:[%s0 + $0x38] sm:$0xff]
  %v23 = vld [vmem:[%s0 + $0x40] sm:$0xff]
  %v24 = vld [vmem:[%s0 + $0x48] sm:$0xff]
  %v25 = vld [vmem:[%s0 + $0x50] sm:$0xff]
  %v26 = vld [vmem:[%s0 + $0x58] sm:$0xff]
  %v27 = vld [vmem:[%s0 + $0x60] sm:$0xff]
  %v28 = vld [vmem:[%s0 + $0x68] sm:$0xff]
  %v29 = vld [vmem:[%s0 + $0x70] sm:$0xff]
  %v30 = vld [vmem:[%s0 + $0x78] sm:$0xff]
  %v31 = vld [vmem:[%s1] sm:$0xf]
  %v32 = vld [vmem:[%s1 + $0x4] sm:$0xf]
  %v33 = vld [vmem:[%s1 + $0x8] sm:$0xf]
  %v34 = vld [vmem:[%s1 + $0xc] sm:$0xf]
  %v35 = vld [vmem:[%s1 + $0x10] sm:$0xf]
  %v36 = vld [vmem:[%s1 + $0x14] sm:$0xf]
  %v37 = vld [vmem:[%s1 + $0x18] sm:$0xf]
  %v38 = vld [vmem:[%s1 + $0x1c] sm:$0xf]
  %v39 = vld [vmem:[%s1 + $0x20] sm:$0xf]
  %v40 = vld [vmem:[%s1 + $0x24] sm:$0xf]
  %v41 = vld [vmem:[%s1 + $0x28] sm:$0xf]
  %v42 = vld [vmem:[%s1 + $0x2c] sm:$0xf]
  %v43 = vld [vmem:[%s1 + $0x30] sm:$0xf]
  %v44 = vld [vmem:[%s1 + $0x34] sm:$0xf]
  %v45 = vld [vmem:[%s1 + $0x38] sm:$0xf]
  %v46 = vld [vmem:[%s1 + $0x3c] sm:$0xf]
  %v47 = vld [vmem:[%s1 + $0x40] sm:$0xf]
  %v48 = vld [vmem:[%s1 + $0x44] sm:$0xf]
  %v49 = vld [vmem:[%s1 + $0x48] sm:$0xf]
  %v50 = vld [vmem:[%s1 + $0x4c] sm:$0xf]
  %v51 = vld [vmem:[%s1 + $0x50] sm:$0xf]
  %v52 = vld [vmem:[%s1 + $0x54] sm:$0xf]
  %v53 = vld [vmem:[%s1 + $0x58] sm:$0xf]
  %v54 = vld [vmem:[%s1 + $0x5c] sm:$0xf]
  %v55 = vld [vmem:[%s1 + $0x60] sm:$0xf]
  %v56 = vld [vmem:[%s1 + $0x64] sm:$0xf]
  %v57 = vld [vmem:[%s1 + $0x68] sm:$0xf]
  %v58 = vld [vmem:[%s1 + $0x6c] sm:$0xf]
  %v59 = vld [vmem:[%s1 + $0x70] sm:$0xf]
  %v60 = vld [vmem:[%s1 + $0x74] sm:$0xf]
  %v61 = vld [vmem:[%s1 + $0x78] sm:$0xf]
  %v62 = vld [vmem:[%s1 + $0x7c] sm:$0xf]
  %v63 = vld [vmem:[%s1 + $0x80] sm:$0xf]
  %v64 = vld [vmem:[%s1 + $0x84] sm:$0xf]
  %v65 = vld [vmem:[%s1 + $0x88] sm:$0xf]
  %v66 = vld [vmem:[%s1 + $0x8c] sm:$0xf]
  %v67 = vld [vmem:[%s1 + $0x90] sm:$0xf]
  %v68 = vld [vmem:[%s1 + $0x94] sm:$0xf]
  %v69 = vld [vmem:[%s1 + $0x98] sm:$0xf]
  %v70 = vld [vmem:[%s1 + $0x9c] sm:$0xf]
  %v71 = vld [vmem:[%s1 + $0xa0] sm:$0xf]
  %v72 = vld [vmem:[%s1 + $0xa4] sm:$0xf]
  %v73 = vld [vmem:[%s1 + $0xa8] sm:$0xf]
  %v74 = vld [vmem:[%s1 + $0xac] sm:$0xf]
  %v75 = vld [vmem:[%s1 + $0xb0] sm:$0xf]
  %v76 = vld [vmem:[%s1 + $0xb4] sm:$0xf]
  %v77 = vld [vmem:[%s1 + $0xb8] sm:$0xf]
  %v78 = vld [vmem:[%s1 + $0xbc] sm:$0xf]
  %v79 = vld [vmem:[%s1 + $0xc0] sm:$0xf]
  %v80 = vld [vmem:[%s1 + $0xc4] sm:$0xf]
  %v81 = vld [vmem:[%s1 + $0xc8] sm:$0xf]
  %v82 = vld [vmem:[%s1 + $0xcc] sm:$0xf]
  %v83 = vld [vmem:[%s1 + $0xd0] sm:$0xf]
  %v84 = vld [vmem:[%s1 + $0xd4] sm:$0xf]
  %v85 = vld [vmem:[%s1 + $0xd8] sm:$0xf]
  %v86 = vld [vmem:[%s1 + $0xdc] sm:$0xf]
  %v87 = vld [vmem:[%s1 + $0xe0] sm:$0xf]
  %v88 = vld [vmem:[%s1 + $0xe4] sm:$0xf]
  %v89 = vld [vmem:[%s1 + $0xe8] sm:$0xf]
  %v90 = vld [vmem:[%s1 + $0xec] sm:$0xf]
  %v91 = vld [vmem:[%s1 + $0xf0] sm:$0xf]
  %v92 = vld [vmem:[%s1 + $0xf4] sm:$0xf]
  %v93 = vld [vmem:[%s1 + $0xf8] sm:$0xf]
  %v94 = vld [vmem:[%s1 + $0xfc] sm:$0xf]
  %v95 = vld [vmem:[%s1 + $0x100] sm:$0xf]
  %v96 = vld [vmem:[%s1 + $0x104] sm:$0xf]
  %v97 = vld [vmem:[%s1 + $0x108] sm:$0xf]
  %v98 = vld [vmem:[%s1 + $0x10c] sm:$0xf]
  %v99 = vld [vmem:[%s1 + $0x110] sm:$0xf]
  %v100 = vld [vmem:[%s1 + $0x114] sm:$0xf]
  %v101 = vld [vmem:[%s1 + $0x118] sm:$0xf]
  %v102 = vld [vmem:[%s1 + $0x11c] sm:$0xf]
  %v103 = vld [vmem:[%s1 + $0x120] sm:$0xf]
  %v104 = vld [vmem:[%s1 + $0x124] sm:$0xf]
  %v105 = vld [vmem:[%s1 + $0x128] sm:$0xf]
  %v106 = vld [vmem:[%s1 + $0x12c] sm:$0xf]
  %v107 = vld [vmem:[%s1 + $0x130] sm:$0xf]
  %v108 = vld [vmem:[%s1 + $0x134] sm:$0xf]
  %v109 = vld [vmem:[%s1 + $0x138] sm:$0xf]
  %v110 = vld [vmem:[%s1 + $0x13c] sm:$0xf]
  %v111 = vld [vmem:[%s1 + $0x140] sm:$0xf]
  %v112 = vld [vmem:[%s1 + $0x144] sm:$0xf]
  %v113 = vld [vmem:[%s1 + $0x148] sm:$0xf]
  %v114 = vld [vmem:[%s1 + $0x14c] sm:$0xf]
  %v115 = vld [vmem:[%s1 + $0x150] sm:$0xf]
  %v116 = vld [vmem:[%s1 + $0x154] sm:$0xf]
  %v117 = vld [vmem:[%s1 + $0x158] sm:$0xf]
  %v118 = vld [vmem:[%s1 + $0x15c] sm:$0xf]
  %v119 = vld [vmem:[%s1 + $0x160] sm:$0xf]
  %v120 = vld [vmem:[%s1 + $0x164] sm:$0xf]
  %v121 = vld [vmem:[%s1 + $0x168] sm:$0xf]
  %v122 = vld [vmem:[%s1 + $0x16c] sm:$0xf]
  %v123 = vld [vmem:[%s1 + $0x170] sm:$0xf]
  %v124 = vld [vmem:[%s1 + $0x174] sm:$0xf]
  %v125 = vld [vmem:[%s1 + $0x178] sm:$0xf]
  %v126 = vld [vmem:[%s1 + $0x17c] sm:$0xf]
  %v127 = vld [vmem:[%s1 + $0x180] sm:$0xf]
  %v128 = vld [vmem:[%s1 + $0x184] sm:$0xf]
  %v129 = vld [vmem:[%s1 + $0x188] sm:$0xf]
  %v130 = vld [vmem:[%s1 + $0x18c] sm:$0xf]
  %v131 = vld [vmem:[%s1 + $0x190] sm:$0xf]
  %v132 = vld [vmem:[%s1 + $0x194] sm:$0xf]
  %v133 = vld [vmem:[%s1 + $0x198] sm:$0xf]
  %v134 = vld [vmem:[%s1 + $0x19c] sm:$0xf]
  %v135 = vld [vmem:[%s1 + $0x1a0] sm:$0xf]
  %v136 = vld [vmem:[%s1 + $0x1a4] sm:$0xf]
  %v137 = vld [vmem:[%s1 + $0x1a8] sm:$0xf]
  %v138 = vld [vmem:[%s1 + $0x1ac] sm:$0xf]
  %v139 = vld [vmem:[%s1 + $0x1b0] sm:$0xf]
  %v140 = vld [vmem:[%s1 + $0x1b4] sm:$0xf]
  %v141 = vld [vmem:[%s1 + $0x1b8] sm:$0xf]
  %v142 = vld [vmem:[%s1 + $0x1bc] sm:$0xf]
  %v143 = vld [vmem:[%s1 + $0x1c0] sm:$0xf]
  %v144 = vld [vmem:[%s1 + $0x1c4] sm:$0xf]
  %v145 = vld [vmem:[%s1 + $0x1c8] sm:$0xf]
  %v146 = vld [vmem:[%s1 + $0x1cc] sm:$0xf]
  %v147 = vld [vmem:[%s1 + $0x1d0] sm:$0xf]
  %v148 = vld [vmem:[%s1 + $0x1d4] sm:$0xf]
  %v149 = vld [vmem:[%s1 + $0x1d8] sm:$0xf]
  %v150 = vld [vmem:[%s1 + $0x1dc] sm:$0xf]
  %v151 = vld [vmem:[%s1 + $0x1e0] sm:$0xf]
  %v152 = vld [vmem:[%s1 + $0x1e4] sm:$0xf]
  %v153 = vld [vmem:[%s1 + $0x1e8] sm:$0xf]
  %v154 = vld [vmem:[%s1 + $0x1ec] sm:$0xf]
  %v155 = vld [vmem:[%s1 + $0x1f0] sm:$0xf]
  %v156 = vld [vmem:[%s1 + $0x1f4] sm:$0xf]
  %v157 = vld [vmem:[%s1 + $0x1f8] sm:$0xf]
  %v158 = vld [vmem:[%s1 + $0x1fc] sm:$0xf]
  %v175 = vunpack.c.l.b16 %v15
  %v176 = vunpack.c.h.b16 %v15
  %v177 = vunpack.c.l.b16 %v16
  %v178 = vunpack.c.h.b16 %v16
  %v179 = vunpack.c.l.b16 %v17
  %v180 = vunpack.c.h.b16 %v17
  %v181 = vunpack.c.l.b16 %v18
  %v182 = vunpack.c.h.b16 %v18
  %v183 = vunpack.c.l.b16 %v19
  %v184 = vunpack.c.h.b16 %v19
  %v185 = vunpack.c.l.b16 %v20
  %v186 = vunpack.c.h.b16 %v20
  %v187 = vunpack.c.l.b16 %v21
  %v188 = vunpack.c.h.b16 %v21
  %v189 = vunpack.c.l.b16 %v22
  %v190 = vunpack.c.h.b16 %v22
  %v191 = vunpack.c.l.b16 %v23
  %v192 = vunpack.c.h.b16 %v23
  %v193 = vunpack.c.l.b16 %v24
  %v194 = vunpack.c.h.b16 %v24
  %v195 = vunpack.c.l.b16 %v25
  %v196 = vunpack.c.h.b16 %v25
  %v197 = vunpack.c.l.b16 %v26
  %v198 = vunpack.c.h.b16 %v26
  %v199 = vunpack.c.l.b16 %v27
  %v200 = vunpack.c.h.b16 %v27
  %v201 = vunpack.c.l.b16 %v28
  %v202 = vunpack.c.h.b16 %v28
  %v203 = vunpack.c.l.b16 %v29
  %v204 = vunpack.c.h.b16 %v29
  %v205 = vunpack.c.l.b16 %v30
  %v206 = vunpack.c.h.b16 %v30
  %v207 = vpack.c.b16 %v183, %v175
  %v208 = vpack.c.b16 %v184, %v176
  %v209 = vpack.c.b16 %v185, %v177
  %v210 = vpack.c.b16 %v186, %v178
  %v211 = vpack.c.b16 %v187, %v179
  %v212 = vpack.c.b16 %v188, %v180
  %v213 = vpack.c.b16 %v189, %v181
  %v214 = vpack.c.b16 %v190, %v182
  %v215 = vpack.c.b16 %v199, %v191
  %v216 = vpack.c.b16 %v200, %v192
  %v217 = vpack.c.b16 %v201, %v193
  %v218 = vpack.c.b16 %v202, %v194
  %v219 = vpack.c.b16 %v203, %v195
  %v220 = vpack.c.b16 %v204, %v196
  %v221 = vpack.c.b16 %v205, %v197
  %v222 = vpack.c.b16 %v206, %v198
  %v367 = vunpack.c.l.b16 %v31
  %v368 = vunpack.c.l.b16 %v32
  %v369 = vunpack.c.l.b16 %v33
  %v370 = vunpack.c.l.b16 %v34
  %v371 = vunpack.c.l.b16 %v35
  %v372 = vunpack.c.l.b16 %v36
  %v373 = vunpack.c.l.b16 %v37
  %v374 = vunpack.c.l.b16 %v38
  %v375 = vunpack.c.l.b16 %v39
  %v376 = vunpack.c.l.b16 %v40
  %v377 = vunpack.c.l.b16 %v41
  %v378 = vunpack.c.l.b16 %v42
  %v379 = vunpack.c.l.b16 %v43
  %v380 = vunpack.c.l.b16 %v44
  %v381 = vunpack.c.l.b16 %v45
  %v382 = vunpack.c.l.b16 %v46
  %v383 = vunpack.c.l.b16 %v47
  %v384 = vunpack.c.l.b16 %v48
  %v385 = vunpack.c.l.b16 %v49
  %v386 = vunpack.c.l.b16 %v50
  %v387 = vunpack.c.l.b16 %v51
  %v388 = vunpack.c.l.b16 %v52
  %v389 = vunpack.c.l.b16 %v53
  %v390 = vunpack.c.l.b16 %v54
  %v391 = vunpack.c.l.b16 %v55
  %v392 = vunpack.c.l.b16 %v56
  %v393 = vunpack.c.l.b16 %v57
  %v394 = vunpack.c.l.b16 %v58
  %v395 = vunpack.c.l.b16 %v59
  %v396 = vunpack.c.l.b16 %v60
  %v397 = vunpack.c.l.b16 %v61
  %v398 = vunpack.c.l.b16 %v62
  %v399 = vunpack.c.l.b16 %v63
  %v400 = vunpack.c.l.b16 %v64
  %v401 = vunpack.c.l.b16 %v65
  %v402 = vunpack.c.l.b16 %v66
  %v403 = vunpack.c.l.b16 %v67
  %v404 = vunpack.c.l.b16 %v68
  %v405 = vunpack.c.l.b16 %v69
  %v406 = vunpack.c.l.b16 %v70
  %v407 = vunpack.c.l.b16 %v71
  %v408 = vunpack.c.l.b16 %v72
  %v409 = vunpack.c.l.b16 %v73
  %v410 = vunpack.c.l.b16 %v74
  %v411 = vunpack.c.l.b16 %v75
  %v412 = vunpack.c.l.b16 %v76
  %v413 = vunpack.c.l.b16 %v77
  %v414 = vunpack.c.l.b16 %v78
  %v415 = vunpack.c.l.b16 %v79
  %v416 = vunpack.c.l.b16 %v80
  %v417 = vunpack.c.l.b16 %v81
  %v418 = vunpack.c.l.b16 %v82
  %v419 = vunpack.c.l.b16 %v83
  %v420 = vunpack.c.l.b16 %v84
  %v421 = vunpack.c.l.b16 %v85
  %v422 = vunpack.c.l.b16 %v86
  %v423 = vunpack.c.l.b16 %v87
  %v424 = vunpack.c.l.b16 %v88
  %v425 = vunpack.c.l.b16 %v89
  %v426 = vunpack.c.l.b16 %v90
  %v427 = vunpack.c.l.b16 %v91
  %v428 = vunpack.c.l.b16 %v92
  %v429 = vunpack.c.l.b16 %v93
  %v430 = vunpack.c.l.b16 %v94
  %v431 = vunpack.c.l.b16 %v95
  %v432 = vunpack.c.l.b16 %v96
  %v433 = vunpack.c.l.b16 %v97
  %v434 = vunpack.c.l.b16 %v98
  %v435 = vunpack.c.l.b16 %v99
  %v436 = vunpack.c.l.b16 %v100
  %v437 = vunpack.c.l.b16 %v101
  %v438 = vunpack.c.l.b16 %v102
  %v439 = vunpack.c.l.b16 %v103
  %v440 = vunpack.c.l.b16 %v104
  %v441 = vunpack.c.l.b16 %v105
  %v442 = vunpack.c.l.b16 %v106
  %v443 = vunpack.c.l.b16 %v107
  %v444 = vunpack.c.l.b16 %v108
  %v445 = vunpack.c.l.b16 %v109
  %v446 = vunpack.c.l.b16 %v110
  %v447 = vunpack.c.l.b16 %v111
  %v448 = vunpack.c.l.b16 %v112
  %v449 = vunpack.c.l.b16 %v113
  %v450 = vunpack.c.l.b16 %v114
  %v451 = vunpack.c.l.b16 %v115
  %v452 = vunpack.c.l.b16 %v116
  %v453 = vunpack.c.l.b16 %v117
  %v454 = vunpack.c.l.b16 %v118
  %v455 = vunpack.c.l.b16 %v119
  %v456 = vunpack.c.l.b16 %v120
  %v457 = vunpack.c.l.b16 %v121
  %v458 = vunpack.c.l.b16 %v122
  %v459 = vunpack.c.l.b16 %v123
  %v460 = vunpack.c.l.b16 %v124
  %v461 = vunpack.c.l.b16 %v125
  %v462 = vunpack.c.l.b16 %v126
  %v463 = vunpack.c.l.b16 %v127
  %v464 = vunpack.c.l.b16 %v128
  %v465 = vunpack.c.l.b16 %v129
  %v466 = vunpack.c.l.b16 %v130
  %v467 = vunpack.c.l.b16 %v131
  %v468 = vunpack.c.l.b16 %v132
  %v469 = vunpack.c.l.b16 %v133
  %v470 = vunpack.c.l.b16 %v134
  %v471 = vunpack.c.l.b16 %v135
  %v472 = vunpack.c.l.b16 %v136
  %v473 = vunpack.c.l.b16 %v137
  %v474 = vunpack.c.l.b16 %v138
  %v475 = vunpack.c.l.b16 %v139
  %v476 = vunpack.c.l.b16 %v140
  %v477 = vunpack.c.l.b16 %v141
  %v478 = vunpack.c.l.b16 %v142
  %v479 = vunpack.c.l.b16 %v143
  %v480 = vunpack.c.l.b16 %v144
  %v481 = vunpack.c.l.b16 %v145
  %v482 = vunpack.c.l.b16 %v146
  %v483 = vunpack.c.l.b16 %v147
  %v484 = vunpack.c.l.b16 %v148
  %v485 = vunpack.c.l.b16 %v149
  %v486 = vunpack.c.l.b16 %v150
  %v487 = vunpack.c.l.b16 %v151
  %v488 = vunpack.c.l.b16 %v152
  %v489 = vunpack.c.l.b16 %v153
  %v490 = vunpack.c.l.b16 %v154
  %v491 = vunpack.c.l.b16 %v155
  %v492 = vunpack.c.l.b16 %v156
  %v493 = vunpack.c.l.b16 %v157
  %v494 = vunpack.c.l.b16 %v158
  %v495 = vpack.c.b16 %v368, %v367
  %v496 = vpack.c.b16 %v370, %v369
  %v497 = vpack.c.b16 %v372, %v371
  %v498 = vpack.c.b16 %v374, %v373
  %v499 = vpack.c.b16 %v376, %v375
  %v500 = vpack.c.b16 %v378, %v377
  %v501 = vpack.c.b16 %v380, %v379
  %v502 = vpack.c.b16 %v382, %v381
  %v503 = vpack.c.b16 %v384, %v383
  %v504 = vpack.c.b16 %v386, %v385
  %v505 = vpack.c.b16 %v388, %v387
  %v506 = vpack.c.b16 %v390, %v389
  %v507 = vpack.c.b16 %v392, %v391
  %v508 = vpack.c.b16 %v394, %v393
  %v509 = vpack.c.b16 %v396, %v395
  %v510 = vpack.c.b16 %v398, %v397
  %v511 = vpack.c.b16 %v400, %v399
  %v512 = vpack.c.b16 %v402, %v401
  %v513 = vpack.c.b16 %v404, %v403
  %v514 = vpack.c.b16 %v406, %v405
  %v515 = vpack.c.b16 %v408, %v407
  %v516 = vpack.c.b16 %v410, %v409
  %v517 = vpack.c.b16 %v412, %v411
  %v518 = vpack.c.b16 %v414, %v413
  %v519 = vpack.c.b16 %v416, %v415
  %v520 = vpack.c.b16 %v418, %v417
  %v521 = vpack.c.b16 %v420, %v419
  %v522 = vpack.c.b16 %v422, %v421
  %v523 = vpack.c.b16 %v424, %v423
  %v524 = vpack.c.b16 %v426, %v425
  %v525 = vpack.c.b16 %v428, %v427
  %v526 = vpack.c.b16 %v430, %v429
  %v527 = vpack.c.b16 %v432, %v431
  %v528 = vpack.c.b16 %v434, %v433
  %v529 = vpack.c.b16 %v436, %v435
  %v530 = vpack.c.b16 %v438, %v437
  %v531 = vpack.c.b16 %v440, %v439
  %v532 = vpack.c.b16 %v442, %v441
  %v533 = vpack.c.b16 %v444, %v443
  %v534 = vpack.c.b16 %v446, %v445
  %v535 = vpack.c.b16 %v448, %v447
  %v536 = vpack.c.b16 %v450, %v449
  %v537 = vpack.c.b16 %v452, %v451
  %v538 = vpack.c.b16 %v454, %v453
  %v539 = vpack.c.b16 %v456, %v455
  %v540 = vpack.c.b16 %v458, %v457
  %v541 = vpack.c.b16 %v460, %v459
  %v542 = vpack.c.b16 %v462, %v461
  %v543 = vpack.c.b16 %v464, %v463
  %v544 = vpack.c.b16 %v466, %v465
  %v545 = vpack.c.b16 %v468, %v467
  %v546 = vpack.c.b16 %v470, %v469
  %v547 = vpack.c.b16 %v472, %v471
  %v548 = vpack.c.b16 %v474, %v473
  %v549 = vpack.c.b16 %v476, %v475
  %v550 = vpack.c.b16 %v478, %v477
  %v551 = vpack.c.b16 %v480, %v479
  %v552 = vpack.c.b16 %v482, %v481
  %v553 = vpack.c.b16 %v484, %v483
  %v554 = vpack.c.b16 %v486, %v485
  %v555 = vpack.c.b16 %v488, %v487
  %v556 = vpack.c.b16 %v490, %v489
  %v557 = vpack.c.b16 %v492, %v491
  %v558 = vpack.c.b16 %v494, %v493
  %623 = vmatprep.subr.bf16.mxu0 0
  %624 = vmatpush1.bf16.msra.mxu0 %v495
  %625 = vmatprep.subr.bf16.mxu0 0
  %626 = vmatpush1.bf16.msra.mxu0 %v496
  %627 = vmatprep.subr.bf16.mxu0 0
  %628 = vmatpush1.bf16.msra.mxu0 %v497
  %629 = vmatprep.subr.bf16.mxu0 0
  %630 = vmatpush1.bf16.msra.mxu0 %v498
  %631 = vmatprep.subr.bf16.mxu0 0
  %632 = vmatpush1.bf16.msra.mxu0 %v499
  %633 = vmatprep.subr.bf16.mxu0 0
  %634 = vmatpush1.bf16.msra.mxu0 %v500
  %635 = vmatprep.subr.bf16.mxu0 0
  %636 = vmatpush1.bf16.msra.mxu0 %v501
  %637 = vmatprep.subr.bf16.mxu0 0
  %638 = vmatpush1.bf16.msra.mxu0 %v502
  %639 = vmatprep.subr.bf16.mxu0 0
  %640 = vmatpush1.bf16.msra.mxu0 %v503
  %641 = vmatprep.subr.bf16.mxu0 0
  %642 = vmatpush1.bf16.msra.mxu0 %v504
  %643 = vmatprep.subr.bf16.mxu0 0
  %644 = vmatpush1.bf16.msra.mxu0 %v505
  %645 = vmatprep.subr.bf16.mxu0 0
  %646 = vmatpush1.bf16.msra.mxu0 %v506
  %647 = vmatprep.subr.bf16.mxu0 0
  %648 = vmatpush1.bf16.msra.mxu0 %v507
  %649 = vmatprep.subr.bf16.mxu0 0
  %650 = vmatpush1.bf16.msra.mxu0 %v508
  %651 = vmatprep.subr.bf16.mxu0 0
  %652 = vmatpush1.bf16.msra.mxu0 %v509
  %653 = vmatprep.subr.bf16.mxu0 0
  %654 = vmatpush1.bf16.msra.mxu0 %v510
  %655 = vmatprep.mubr.bf16.mxu0 %v208
  %656 = vmatmul.mubr.bf16.gmra.mrb[0].mxu0 %v207
  %v657 = vpop.f32.mrb[0].mxu0
  %v658 = vadd.f32 0.0, %v657
  %v659 = vpop.f32.mrb[0].mxu0
  %v660 = vpop.f32.mrb[0].mxu0
  %v661 = vadd.f32 0.0, %v660
  %v662 = vpop.f32.mrb[0].mxu0
  %663 = vmatprep.mubr.bf16.mxu0 %v216
  %664 = vmatmul.mubr.bf16.gmra.mrb[0].mxu0 %v215
  %v665 = vpop.f32.mrb[0].mxu0
  %v666 = vadd.f32 0.0, %v665
  %v667 = vpop.f32.mrb[0].mxu0
  %v668 = vpop.f32.mrb[0].mxu0
  %v669 = vadd.f32 0.0, %v668
  %v670 = vpop.f32.mrb[0].mxu0
  %671 = vdwg.mxu0
  %672 = vmatprep.subr.bf16.mxu0 0
  %673 = vmatpush1.bf16.msra.mxu0 %v511
  %674 = vmatprep.subr.bf16.mxu0 0
  %675 = vmatpush1.bf16.msra.mxu0 %v512
  %676 = vmatprep.subr.bf16.mxu0 0
  %677 = vmatpush1.bf16.msra.mxu0 %v513
  %678 = vmatprep.subr.bf16.mxu0 0
  %679 = vmatpush1.bf16.msra.mxu0 %v514
  %680 = vmatprep.subr.bf16.mxu0 0
  %681 = vmatpush1.bf16.msra.mxu0 %v515
  %682 = vmatprep.subr.bf16.mxu0 0
  %683 = vmatpush1.bf16.msra.mxu0 %v516
  %684 = vmatprep.subr.bf16.mxu0 0
  %685 = vmatpush1.bf16.msra.mxu0 %v517
  %686 = vmatprep.subr.bf16.mxu0 0
  %687 = vmatpush1.bf16.msra.mxu0 %v518
  %688 = vmatprep.subr.bf16.mxu0 0
  %689 = vmatpush1.bf16.msra.mxu0 %v519
  %690 = vmatprep.subr.bf16.mxu0 0
  %691 = vmatpush1.bf16.msra.mxu0 %v520
  %692 = vmatprep.subr.bf16.mxu0 0
  %693 = vmatpush1.bf16.msra.mxu0 %v521
  %694 = vmatprep.subr.bf16.mxu0 0
  %695 = vmatpush1.bf16.msra.mxu0 %v522
  %696 = vmatprep.subr.bf16.mxu0 0
  %697 = vmatpush1.bf16.msra.mxu0 %v523
  %698 = vmatprep.subr.bf16.mxu0 0
  %699 = vmatpush1.bf16.msra.mxu0 %v524
  %700 = vmatprep.subr.bf16.mxu0 0
  %701 = vmatpush1.bf16.msra.mxu0 %v525
  %702 = vmatprep.subr.bf16.mxu0 0
  %703 = vmatpush1.bf16.msra.mxu0 %v526
  %704 = vmatprep.mubr.bf16.mxu0 %v210
  %705 = vmatmul.mubr.bf16.gmra.mrb[0].mxu0 %v209
  %v706 = vpop.f32.mrb[0].mxu0
  %v707 = vadd.f32 %v658, %v706
  %v708 = vpop.f32.mrb[0].mxu0
  %v709 = vpop.f32.mrb[0].mxu0
  %v710 = vadd.f32 %v661, %v709
  %v711 = vpop.f32.mrb[0].mxu0
  %712 = vmatprep.mubr.bf16.mxu0 %v218
  %713 = vmatmul.mubr.bf16.gmra.mrb[0].mxu0 %v217
  %v714 = vpop.f32.mrb[0].mxu0
  %v715 = vadd.f32 %v666, %v714
  %v716 = vpop.f32.mrb[0].mxu0
  %v717 = vpop.f32.mrb[0].mxu0
  %v718 = vadd.f32 %v669, %v717
  %v719 = vpop.f32.mrb[0].mxu0
  %720 = vdwg.mxu0
  %721 = vmatprep.subr.bf16.mxu0 0
  %722 = vmatpush1.bf16.msra.mxu0 %v527
  %723 = vmatprep.subr.bf16.mxu0 0
  %724 = vmatpush1.bf16.msra.mxu0 %v528
  %725 = vmatprep.subr.bf16.mxu0 0
  %726 = vmatpush1.bf16.msra.mxu0 %v529
  %727 = vmatprep.subr.bf16.mxu0 0
  %728 = vmatpush1.bf16.msra.mxu0 %v530
  %729 = vmatprep.subr.bf16.mxu0 0
  %730 = vmatpush1.bf16.msra.mxu0 %v531
  %731 = vmatprep.subr.bf16.mxu0 0
  %732 = vmatpush1.bf16.msra.mxu0 %v532
  %733 = vmatprep.subr.bf16.mxu0 0
  %734 = vmatpush1.bf16.msra.mxu0 %v533
  %735 = vmatprep.subr.bf16.mxu0 0
  %736 = vmatpush1.bf16.msra.mxu0 %v534
  %737 = vmatprep.subr.bf16.mxu0 0
  %738 = vmatpush1.bf16.msra.mxu0 %v535
  %739 = vmatprep.subr.bf16.mxu0 0
  %740 = vmatpush1.bf16.msra.mxu0 %v536
  %741 = vmatprep.subr.bf16.mxu0 0
  %742 = vmatpush1.bf16.msra.mxu0 %v537
  %743 = vmatprep.subr.bf16.mxu0 0
  %744 = vmatpush1.bf16.msra.mxu0 %v538
  %745 = vmatprep.subr.bf16.mxu0 0
  %746 = vmatpush1.bf16.msra.mxu0 %v539
  %747 = vmatprep.subr.bf16.mxu0 0
  %748 = vmatpush1.bf16.msra.mxu0 %v540
  %749 = vmatprep.subr.bf16.mxu0 0
  %750 = vmatpush1.bf16.msra.mxu0 %v541
  %751 = vmatprep.subr.bf16.mxu0 0
  %752 = vmatpush1.bf16.msra.mxu0 %v542
  %753 = vmatprep.mubr.bf16.mxu0 %v212
  %754 = vmatmul.mubr.bf16.gmra.mrb[0].mxu0 %v211
  %v755 = vpop.f32.mrb[0].mxu0
  %v756 = vadd.f32 %v707, %v755
  %v757 = vpop.f32.mrb[0].mxu0
  %v758 = vpop.f32.mrb[0].mxu0
  %v759 = vadd.f32 %v710, %v758
  %v760 = vpop.f32.mrb[0].mxu0
  %761 = vmatprep.mubr.bf16.mxu0 %v220
  %762 = vmatmul.mubr.bf16.gmra.mrb[0].mxu0 %v219
  %v763 = vpop.f32.mrb[0].mxu0
  %v764 = vadd.f32 %v715, %v763
  %v765 = vpop.f32.mrb[0].mxu0
  %v766 = vpop.f32.mrb[0].mxu0
  %v767 = vadd.f32 %v718, %v766
  %v768 = vpop.f32.mrb[0].mxu0
  %769 = vdwg.mxu0
  %770 = vmatprep.subr.bf16.mxu0 0
  %771 = vmatpush1.bf16.msra.mxu0 %v543
  %772 = vmatprep.subr.bf16.mxu0 0
  %773 = vmatpush1.bf16.msra.mxu0 %v544
  %774 = vmatprep.subr.bf16.mxu0 0
  %775 = vmatpush1.bf16.msra.mxu0 %v545
  %776 = vmatprep.subr.bf16.mxu0 0
  %777 = vmatpush1.bf16.msra.mxu0 %v546
  %778 = vmatprep.subr.bf16.mxu0 0
  %779 = vmatpush1.bf16.msra.mxu0 %v547
  %780 = vmatprep.subr.bf16.mxu0 0
  %781 = vmatpush1.bf16.msra.mxu0 %v548
  %782 = vmatprep.subr.bf16.mxu0 0
  %783 = vmatpush1.bf16.msra.mxu0 %v549
  %784 = vmatprep.subr.bf16.mxu0 0
  %785 = vmatpush1.bf16.msra.mxu0 %v550
  %786 = vmatprep.subr.bf16.mxu0 0
  %787 = vmatpush1.bf16.msra.mxu0 %v551
  %788 = vmatprep.subr.bf16.mxu0 0
  %789 = vmatpush1.bf16.msra.mxu0 %v552
  %790 = vmatprep.subr.bf16.mxu0 0
  %791 = vmatpush1.bf16.msra.mxu0 %v553
  %792 = vmatprep.subr.bf16.mxu0 0
  %793 = vmatpush1.bf16.msra.mxu0 %v554
  %794 = vmatprep.subr.bf16.mxu0 0
  %795 = vmatpush1.bf16.msra.mxu0 %v555
  %796 = vmatprep.subr.bf16.mxu0 0
  %797 = vmatpush1.bf16.msra.mxu0 %v556
  %798 = vmatprep.subr.bf16.mxu0 0
  %799 = vmatpush1.bf16.msra.mxu0 %v557
  %800 = vmatprep.subr.bf16.mxu0 0
  %801 = vmatpush1.bf16.msra.mxu0 %v558
  %802 = vmatprep.mubr.bf16.mxu0 %v214
  %803 = vmatmul.mubr.bf16.gmra.mrb[0].mxu0 %v213
  %v804 = vpop.f32.mrb[0].mxu0
  %v805 = vadd.f32 %v756, %v804
  %v806 = vpop.f32.mrb[0].mxu0
  %v807 = vpop.f32.mrb[0].mxu0
  %v808 = vadd.f32 %v759, %v807
  %v809 = vpop.f32.mrb[0].mxu0
  %810 = vmatprep.mubr.bf16.mxu0 %v222
  %811 = vmatmul.mubr.bf16.gmra.mrb[0].mxu0 %v221
  %v812 = vpop.f32.mrb[0].mxu0
  %v813 = vadd.f32 %v764, %v812
  %v814 = vpop.f32.mrb[0].mxu0
  %v815 = vpop.f32.mrb[0].mxu0
  %v816 = vadd.f32 %v767, %v815
  %v817 = vpop.f32.mrb[0].mxu0
  %818 = vdwg.mxu0
  %s819 = smul.u32 0, 32
  %s820 = scalar_lea.vmem %s3, %s819
  %821 = vst [vmem:[%s820] sm:$0xff] %v805
  %822 = vst [vmem:[%s820 + $0x8] sm:$0xff] %v808
  %823 = vst [vmem:[%s820 + $0x10] sm:$0xff] %v813
  %824 = vst [vmem:[%s820 + $0x18] sm:$0xff] %v816
  %p825 = scmp.eq.s32.totalorder 0, 0
  // Predicated region
  $region14: #{generator_forward.7} parent=0 // pred_check
    %p826 = pneg %p825
  $region15: #{generator_forward.7} parent=0 // pred_check_branch
    %828 = sbr.rel (%p826) target = $region17
  $region16: #{generator_forward.7} parent=0 // pred_region
    %v829 = vld [vmem:[%s3] sm:$0xff]
    %v830 = vld [vmem:[%s3 + $0x8] sm:$0xff]
    %v831 = vld [vmem:[%s3 + $0x10] sm:$0xff]
    %v832 = vld [vmem:[%s3 + $0x18] sm:$0xff]
    %v833 = vadd.f32 %v829, %v830
    %v834 = vadd.f32 %v833, %v831
    %v835 = vadd.f32 %v834, %v832
    %v836 = vrot.slane %v835, 4
    %v837 = vadd.f32 %v835, %v836
    %v838 = vrot.slane %v837, 2
    %v839 = vadd.f32 %v837, %v838
    %v840 = vrot.slane %v839, 1
    %v841 = vadd.f32 %v839, %v840
    %v842 = vmul.f32 %v841, 0.03125
    %v843 = vsub.f32 %v829, %v842
    %v844 = vsub.f32 %v830, %v842
    %v845 = vsub.f32 %v831, %v842
    %v846 = vsub.f32 %v832, %v842
    %v847 = vmul.f32 %v843, %v843
    %v848 = vmul.f32 %v844, %v844
    %v849 = vmul.f32 %v845, %v845
    %v850 = vmul.f32 %v846, %v846
    %v851 = vadd.f32 %v847, %v848
    %v852 = vadd.f32 %v851, %v849
    %v853 = vadd.f32 %v852, %v850
    %v854 = vrot.slane %v853, 4
    %v855 = vadd.f32 %v853, %v854
    %v856 = vrot.slane %v855, 2
    %v857 = vadd.f32 %v855, %v856
    %v858 = vrot.slane %v857, 1
    %v859 = vadd.f32 %v857, %v858
    %v860 = vmul.f32 %v859, 0.03125
    %v861 = vadd.f32 %v860, 1e-05
    %v862 = vrsqrt.pop %v861
    %v863 = vmul.f32 %v843, %v862
    %v864 = vmul.f32 %v844, %v862
    %v865 = vmul.f32 %v845, %v862
    %v866 = vmul.f32 %v846, %v862
    %v867 = vld [vmem:[%s2 + $0x1] sm:$0x1]
    %v868 = vld [vmem:[%s2 + $0x2] sm:$0x1]
    %v869 = vlaneseq
    %v870 = vshrl.u32 %v869, 7
    %v871 = vsub.s32 0, %v870
    %v872 = vrot.slane %v867, %v871
    %v873 = vmul.f32 %v863, %v872
    %v874 = vmul.f32 %v864, %v872
    %v875 = vmul.f32 %v865, %v872
    %v876 = vmul.f32 %v866, %v872
    %v877 = vlaneseq
    %v878 = vshrl.u32 %v877, 7
    %v879 = vsub.s32 0, %v878
    %v880 = vrot.slane %v868, %v879
    %v881 = vadd.f32 %v873, %v880
    %v882 = vadd.f32 %v874, %v880
    %v883 = vadd.f32 %v875, %v880
    %v884 = vadd.f32 %v876, %v880
    %v885 = vmax.f32 %v881, 0.0
    %v886 = vmax.f32 %v882, 0.0
    %v887 = vmax.f32 %v883, 0.0
    %v888 = vmax.f32 %v884, 0.0
    %889 = vst [vmem:[%s3] sm:$0xff] %v885
    %890 = vst [vmem:[%s3 + $0x8] sm:$0xff] %v886
    %891 = vst [vmem:[%s3 + $0x10] sm:$0xff] %v887
    %892 = vst [vmem:[%s3 + $0x18] sm:$0xff] %v888
  $region17: #{generator_forward.7} parent=0 // pred_fallthru
    _
  // Predicated region
  $region18: #{generator_forward.7} parent=0 // pred_check
    _
  $region19: #{generator_forward.7} parent=0 // pred_check_branch
    %894 = sbr.rel (0) target = $region21
  $region20: #{generator_forward.7} parent=0 // pred_region
    _
  $region21: #{generator_forward.7} parent=0 // pred_fallthru
    _
  // Predicated region
  $region22: #{generator_forward.7} parent=0 // pred_check
    _
  $region23: #{generator_forward.7} parent=0 // pred_check_branch
    %896 = sbr.rel (0) target = $region25
  $region24: #{generator_forward.7} parent=0 // pred_region
    _
  $region25: #{generator_forward.7} parent=0 // pred_fallthru
    _

// kernel: generator_forward.8
$region0: #{generator_forward.8}
  #allocation0 [shape = 'u32[]', space=smem, size = 0x4, offset = 0x4, fixed_abs, tag = 'smem constant byte address 0x4 - core index']
  #allocation1 [shape = 'u32[144,128]{1,0:T(1,128)}', space=vmem, size = 0x12000, scoped, tag = 'internal scratch']
  %s0 = inlined_call_operand.vmem [shape: bf16[8,2048], index: 0, kind: input, shape index: {}]
  %s1 = inlined_call_operand.vmem [shape: bf16[1,2048,256], index: 1, kind: input, shape index: {}]
  %s2 = inlined_call_operand.vmem [shape: f32[8,256], index: 2, kind: input, shape index: {}]
  %s3 = inlined_call_operand.vmem [shape: f32[8,256], index: 3, kind: output, shape index: {}]
  %s4 = sld [smem:[#allocation0]]
  $region26: #{generator_forward.8} parent=0
    _
  %s6 = ssub.s32 1, %s4
  %s7 = scalar_select 0, %s6, %s4
  // Predicated region
  $region2: #{generator_forward.8} parent=0 // pred_check
    _
  $region3: #{generator_forward.8} parent=0 // pred_check_branch
    %9 = sbr.rel (0) target = $region5
  $region4: #{generator_forward.8} parent=0 // pred_region
    _
  $region5: #{generator_forward.8} parent=0 // pred_fallthru
    _
  // Predicated region
  $region6: #{generator_forward.8} parent=0 // pred_check
    _
  $region7: #{generator_forward.8} parent=0 // pred_check_branch
    %11 = sbr.rel (0) target = $region9
  $region8: #{generator_forward.8} parent=0 // pred_region
    _
  $region9: #{generator_forward.8} parent=0 // pred_fallthru
    _
  // Predicated region
  $region10: #{generator_forward.8} parent=0 // pred_check
    _
  $region11: #{generator_forward.8} parent=0 // pred_check_branch
    %13 = sbr.rel (0) target = $region13
  $region12: #{generator_forward.8} parent=0 // pred_region
    _
  $region13: #{generator_forward.8} parent=0 // pred_fallthru
    _
  %v14 = vld [vmem:[%s0] sm:$0xff]
  %v15 = vld [vmem:[%s0 + $0x8] sm:$0xff]
  %v16 = vld [vmem:[%s0 + $0x10] sm:$0xff]
  %v17 = vld [vmem:[%s0 + $0x18] sm:$0xff]
  %v18 = vld [vmem:[%s0 + $0x20] sm:$0xff]
  %v19 = vld [vmem:[%s0 + $0x28] sm:$0xff]
  %v20 = vld [vmem:[%s0 + $0x30] sm:$0xff]
  %v21 = vld [vmem:[%s0 + $0x38] sm:$0xff]
  %v22 = vld [vmem:[%s1] sm:$0xff]
  %v23 = vld [vmem:[%s1 + $0x8] sm:$0xff]
  %v24 = vld [vmem:[%s1 + $0x10] sm:$0xff]
  %v25 = vld [vmem:[%s1 + $0x18] sm:$0xff]
  %v26 = vld [vmem:[%s1 + $0x20] sm:$0xff]
  %v27 = vld [vmem:[%s1 + $0x28] sm:$0xff]
  %v28 = vld [vmem:[%s1 + $0x30] sm:$0xff]
  %v29 = vld [vmem:[%s1 + $0x38] sm:$0xff]
  %v30 = vld [vmem:[%s1 + $0x40] sm:$0xff]
  %v31 = vld [vmem:[%s1 + $0x48] sm:$0xff]
  %v32 = vld [vmem:[%s1 + $0x50] sm:$0xff]
  %v33 = vld [vmem:[%s1 + $0x58] sm:$0xff]
  %v34 = vld [vmem:[%s1 + $0x60] sm:$0xff]
  %v35 = vld [vmem:[%s1 + $0x68] sm:$0xff]
  %v36 = vld [vmem:[%s1 + $0x70] sm:$0xff]
  %v37 = vld [vmem:[%s1 + $0x78] sm:$0xff]
  %v38 = vld [vmem:[%s1 + $0x80] sm:$0xff]
  %v39 = vld [vmem:[%s1 + $0x88] sm:$0xff]
  %v40 = vld [vmem:[%s1 + $0x90] sm:$0xff]
  %v41 = vld [vmem:[%s1 + $0x98] sm:$0xff]
  %v42 = vld [vmem:[%s1 + $0xa0] sm:$0xff]
  %v43 = vld [vmem:[%s1 + $0xa8] sm:$0xff]
  %v44 = vld [vmem:[%s1 + $0xb0] sm:$0xff]
  %v45 = vld [vmem:[%s1 + $0xb8] sm:$0xff]
  %v46 = vld [vmem:[%s1 + $0xc0] sm:$0xff]
  %v47 = vld [vmem:[%s1 + $0xc8] sm:$0xff]
  %v48 = vld [vmem:[%s1 + $0xd0] sm:$0xff]
  %v49 = vld [vmem:[%s1 + $0xd8] sm:$0xff]
  %v50 = vld [vmem:[%s1 + $0xe0] sm:$0xff]
  %v51 = vld [vmem:[%s1 + $0xe8] sm:$0xff]
  %v52 = vld [vmem:[%s1 + $0xf0] sm:$0xff]
  %v53 = vld [vmem:[%s1 + $0xf8] sm:$0xff]
  %v54 = vld [vmem:[%s1 + $0x100] sm:$0xff]
  %v55 = vld [vmem:[%s1 + $0x108] sm:$0xff]
  %v56 = vld [vmem:[%s1 + $0x110] sm:$0xff]
  %v57 = vld [vmem:[%s1 + $0x118] sm:$0xff]
  %v58 = vld [vmem:[%s1 + $0x120] sm:$0xff]
  %v59 = vld [vmem:[%s1 + $0x128] sm:$0xff]
  %v60 = vld [vmem:[%s1 + $0x130] sm:$0xff]
  %v61 = vld [vmem:[%s1 + $0x138] sm:$0xff]
  %v62 = vld [vmem:[%s1 + $0x140] sm:$0xff]
  %v63 = vld [vmem:[%s1 + $0x148] sm:$0xff]
  %v64 = vld [vmem:[%s1 + $0x150] sm:$0xff]
  %v65 = vld [vmem:[%s1 + $0x158] sm:$0xff]
  %v66 = vld [vmem:[%s1 + $0x160] sm:$0xff]
  %v67 = vld [vmem:[%s1 + $0x168] sm:$0xff]
  %v68 = vld [vmem:[%s1 + $0x170] sm:$0xff]
  %v69 = vld [vmem:[%s1 + $0x178] sm:$0xff]
  %v70 = vld [vmem:[%s1 + $0x180] sm:$0xff]
  %v71 = vld [vmem:[%s1 + $0x188] sm:$0xff]
  %v72 = vld [vmem:[%s1 + $0x190] sm:$0xff]
  %v73 = vld [vmem:[%s1 + $0x198] sm:$0xff]
  %v74 = vld [vmem:[%s1 + $0x1a0] sm:$0xff]
  %v75 = vld [vmem:[%s1 + $0x1a8] sm:$0xff]
  %v76 = vld [vmem:[%s1 + $0x1b0] sm:$0xff]
  %v77 = vld [vmem:[%s1 + $0x1b8] sm:$0xff]
  %v78 = vld [vmem:[%s1 + $0x1c0] sm:$0xff]
  %v79 = vld [vmem:[%s1 + $0x1c8] sm:$0xff]
  %v80 = vld [vmem:[%s1 + $0x1d0] sm:$0xff]
  %v81 = vld [vmem:[%s1 + $0x1d8] sm:$0xff]
  %v82 = vld [vmem:[%s1 + $0x1e0] sm:$0xff]
  %v83 = vld [vmem:[%s1 + $0x1e8] sm:$0xff]
  %v84 = vld [vmem:[%s1 + $0x1f0] sm:$0xff]
  %v85 = vld [vmem:[%s1 + $0x1f8] sm:$0xff]
  %v86 = vld [vmem:[%s1 + $0x200] sm:$0xff]
  %v87 = vld [vmem:[%s1 + $0x208] sm:$0xff]
  %v88 = vld [vmem:[%s1 + $0x210] sm:$0xff]
  %v89 = vld [vmem:[%s1 + $0x218] sm:$0xff]
  %v90 = vld [vmem:[%s1 + $0x220] sm:$0xff]
  %v91 = vld [vmem:[%s1 + $0x228] sm:$0xff]
  %v92 = vld [vmem:[%s1 + $0x230] sm:$0xff]
  %v93 = vld [vmem:[%s1 + $0x238] sm:$0xff]
  %v94 = vld [vmem:[%s1 + $0x240] sm:$0xff]
  %v95 = vld [vmem:[%s1 + $0x248] sm:$0xff]
  %v96 = vld [vmem:[%s1 + $0x250] sm:$0xff]
  %v97 = vld [vmem:[%s1 + $0x258] sm:$0xff]
  %v98 = vld [vmem:[%s1 + $0x260] sm:$0xff]
  %v99 = vld [vmem:[%s1 + $0x268] sm:$0xff]
  %v100 = vld [vmem:[%s1 + $0x270] sm:$0xff]
  %v101 = vld [vmem:[%s1 + $0x278] sm:$0xff]
  %v102 = vld [vmem:[%s1 + $0x280] sm:$0xff]
  %v103 = vld [vmem:[%s1 + $0x288] sm:$0xff]
  %v104 = vld [vmem:[%s1 + $0x290] sm:$0xff]
  %v105 = vld [vmem:[%s1 + $0x298] sm:$0xff]
  %v106 = vld [vmem:[%s1 + $0x2a0] sm:$0xff]
  %v107 = vld [vmem:[%s1 + $0x2a8] sm:$0xff]
  %v108 = vld [vmem:[%s1 + $0x2b0] sm:$0xff]
  %v109 = vld [vmem:[%s1 + $0x2b8] sm:$0xff]
  %v110 = vld [vmem:[%s1 + $0x2c0] sm:$0xff]
  %v111 = vld [vmem:[%s1 + $0x2c8] sm:$0xff]
  %v112 = vld [vmem:[%s1 + $0x2d0] sm:$0xff]
  %v113 = vld [vmem:[%s1 + $0x2d8] sm:$0xff]
  %v114 = vld [vmem:[%s1 + $0x2e0] sm:$0xff]
  %v115 = vld [vmem:[%s1 + $0x2e8] sm:$0xff]
  %v116 = vld [vmem:[%s1 + $0x2f0] sm:$0xff]
  %v117 = vld [vmem:[%s1 + $0x2f8] sm:$0xff]
  %v118 = vld [vmem:[%s1 + $0x300] sm:$0xff]
  %v119 = vld [vmem:[%s1 + $0x308] sm:$0xff]
  %v120 = vld [vmem:[%s1 + $0x310] sm:$0xff]
  %v121 = vld [vmem:[%s1 + $0x318] sm:$0xff]
  %v122 = vld [vmem:[%s1 + $0x320] sm:$0xff]
  %v123 = vld [vmem:[%s1 + $0x328] sm:$0xff]
  %v124 = vld [vmem:[%s1 + $0x330] sm:$0xff]
  %v125 = vld [vmem:[%s1 + $0x338] sm:$0xff]
  %v126 = vld [vmem:[%s1 + $0x340] sm:$0xff]
  %v127 = vld [vmem:[%s1 + $0x348] sm:$0xff]
  %v128 = vld [vmem:[%s1 + $0x350] sm:$0xff]
  %v129 = vld [vmem:[%s1 + $0x358] sm:$0xff]
  %v130 = vld [vmem:[%s1 + $0x360] sm:$0xff]
  %v131 = vld [vmem:[%s1 + $0x368] sm:$0xff]
  %v132 = vld [vmem:[%s1 + $0x370] sm:$0xff]
  %v133 = vld [vmem:[%s1 + $0x378] sm:$0xff]
  %v134 = vld [vmem:[%s1 + $0x380] sm:$0xff]
  %v135 = vld [vmem:[%s1 + $0x388] sm:$0xff]
  %v136 = vld [vmem:[%s1 + $0x390] sm:$0xff]
  %v137 = vld [vmem:[%s1 + $0x398] sm:$0xff]
  %v138 = vld [vmem:[%s1 + $0x3a0] sm:$0xff]
  %v139 = vld [vmem:[%s1 + $0x3a8] sm:$0xff]
  %v140 = vld [vmem:[%s1 + $0x3b0] sm:$0xff]
  %v141 = vld [vmem:[%s1 + $0x3b8] sm:$0xff]
  %v142 = vld [vmem:[%s1 + $0x3c0] sm:$0xff]
  %v143 = vld [vmem:[%s1 + $0x3c8] sm:$0xff]
  %v144 = vld [vmem:[%s1 + $0x3d0] sm:$0xff]
  %v145 = vld [vmem:[%s1 + $0x3d8] sm:$0xff]
  %v146 = vld [vmem:[%s1 + $0x3e0] sm:$0xff]
  %v147 = vld [vmem:[%s1 + $0x3e8] sm:$0xff]
  %v148 = vld [vmem:[%s1 + $0x3f0] sm:$0xff]
  %v149 = vld [vmem:[%s1 + $0x3f8] sm:$0xff]
  %v150 = vld [vmem:[%s1 + $0x400] sm:$0xff]
  %v151 = vld [vmem:[%s1 + $0x408] sm:$0xff]
  %v152 = vld [vmem:[%s1 + $0x410] sm:$0xff]
  %v153 = vld [vmem:[%s1 + $0x418] sm:$0xff]
  %v154 = vld [vmem:[%s1 + $0x420] sm:$0xff]
  %v155 = vld [vmem:[%s1 + $0x428] sm:$0xff]
  %v156 = vld [vmem:[%s1 + $0x430] sm:$0xff]
  %v157 = vld [vmem:[%s1 + $0x438] sm:$0xff]
  %v158 = vld [vmem:[%s1 + $0x440] sm:$0xff]
  %v159 = vld [vmem:[%s1 + $0x448] sm:$0xff]
  %v160 = vld [vmem:[%s1 + $0x450] sm:$0xff]
  %v161 = vld [vmem:[%s1 + $0x458] sm:$0xff]
  %v162 = vld [vmem:[%s1 + $0x460] sm:$0xff]
  %v163 = vld [vmem:[%s1 + $0x468] sm:$0xff]
  %v164 = vld [vmem:[%s1 + $0x470] sm:$0xff]
  %v165 = vld [vmem:[%s1 + $0x478] sm:$0xff]
  %v166 = vld [vmem:[%s1 + $0x480] sm:$0xff]
  %v167 = vld [vmem:[%s1 + $0x488] sm:$0xff]
  %v168 = vld [vmem:[%s1 + $0x490] sm:$0xff]
  %v169 = vld [vmem:[%s1 + $0x498] sm:$0xff]
  %v170 = vld [vmem:[%s1 + $0x4a0] sm:$0xff]
  %v171 = vld [vmem:[%s1 + $0x4a8] sm:$0xff]
  %v172 = vld [vmem:[%s1 + $0x4b0] sm:$0xff]
  %v173 = vld [vmem:[%s1 + $0x4b8] sm:$0xff]
  %v174 = vld [vmem:[%s1 + $0x4c0] sm:$0xff]
  %v175 = vld [vmem:[%s1 + $0x4c8] sm:$0xff]
  %v176 = vld [vmem:[%s1 + $0x4d0] sm:$0xff]
  %v177 = vld [vmem:[%s1 + $0x4d8] sm:$0xff]
  %v178 = vld [vmem:[%s1 + $0x4e0] sm:$0xff]
  %v179 = vld [vmem:[%s1 + $0x4e8] sm:$0xff]
  %v180 = vld [vmem:[%s1 + $0x4f0] sm:$0xff]
  %v181 = vld [vmem:[%s1 + $0x4f8] sm:$0xff]
  %v182 = vld [vmem:[%s1 + $0x500] sm:$0xff]
  %v183 = vld [vmem:[%s1 + $0x508] sm:$0xff]
  %v184 = vld [vmem:[%s1 + $0x510] sm:$0xff]
  %v185 = vld [vmem:[%s1 + $0x518] sm:$0xff]
  %v186 = vld [vmem:[%s1 + $0x520] sm:$0xff]
  %v187 = vld [vmem:[%s1 + $0x528] sm:$0xff]
  %v188 = vld [vmem:[%s1 + $0x530] sm:$0xff]
  %v189 = vld [vmem:[%s1 + $0x538] sm:$0xff]
  %v190 = vld [vmem:[%s1 + $0x540] sm:$0xff]
  %v191 = vld [vmem:[%s1 + $0x548] sm:$0xff]
  %v192 = vld [vmem:[%s1 + $0x550] sm:$0xff]
  %v193 = vld [vmem:[%s1 + $0x558] sm:$0xff]
  %v194 = vld [vmem:[%s1 + $0x560] sm:$0xff]
  %v195 = vld [vmem:[%s1 + $0x568] sm:$0xff]
  %v196 = vld [vmem:[%s1 + $0x570] sm:$0xff]
  %v197 = vld [vmem:[%s1 + $0x578] sm:$0xff]
  %v198 = vld [vmem:[%s1 + $0x580] sm:$0xff]
  %v199 = vld [vmem:[%s1 + $0x588] sm:$0xff]
  %v200 = vld [vmem:[%s1 + $0x590] sm:$0xff]
  %v201 = vld [vmem:[%s1 + $0x598] sm:$0xff]
  %v202 = vld [vmem:[%s1 + $0x5a0] sm:$0xff]
  %v203 = vld [vmem:[%s1 + $0x5a8] sm:$0xff]
  %v204 = vld [vmem:[%s1 + $0x5b0] sm:$0xff]
  %v205 = vld [vmem:[%s1 + $0x5b8] sm:$0xff]
  %v206 = vld [vmem:[%s1 + $0x5c0] sm:$0xff]
  %v207 = vld [vmem:[%s1 + $0x5c8] sm:$0xff]
  %v208 = vld [vmem:[%s1 + $0x5d0] sm:$0xff]
  %v209 = vld [vmem:[%s1 + $0x5d8] sm:$0xff]
  %v210 = vld [vmem:[%s1 + $0x5e0] sm:$0xff]
  %v211 = vld [vmem:[%s1 + $0x5e8] sm:$0xff]
  %v212 = vld [vmem:[%s1 + $0x5f0] sm:$0xff]
  %v213 = vld [vmem:[%s1 + $0x5f8] sm:$0xff]
  %v214 = vld [vmem:[%s1 + $0x600] sm:$0xff]
  %v215 = vld [vmem:[%s1 + $0x608] sm:$0xff]
  %v216 = vld [vmem:[%s1 + $0x610] sm:$0xff]
  %v217 = vld [vmem:[%s1 + $0x618] sm:$0xff]
  %v218 = vld [vmem:[%s1 + $0x620] sm:$0xff]
  %v219 = vld [vmem:[%s1 + $0x628] sm:$0xff]
  %v220 = vld [vmem:[%s1 + $0x630] sm:$0xff]
  %v221 = vld [vmem:[%s1 + $0x638] sm:$0xff]
  %v222 = vld [vmem:[%s1 + $0x640] sm:$0xff]
  %v223 = vld [vmem:[%s1 + $0x648] sm:$0xff]
  %v224 = vld [vmem:[%s1 + $0x650] sm:$0xff]
  %v225 = vld [vmem:[%s1 + $0x658] sm:$0xff]
  %v226 = vld [vmem:[%s1 + $0x660] sm:$0xff]
  %v227 = vld [vmem:[%s1 + $0x668] sm:$0xff]
  %v228 = vld [vmem:[%s1 + $0x670] sm:$0xff]
  %v229 = vld [vmem:[%s1 + $0x678] sm:$0xff]
  %v230 = vld [vmem:[%s1 + $0x680] sm:$0xff]
  %v231 = vld [vmem:[%s1 + $0x688] sm:$0xff]
  %v232 = vld [vmem:[%s1 + $0x690] sm:$0xff]
  %v233 = vld [vmem:[%s1 + $0x698] sm:$0xff]
  %v234 = vld [vmem:[%s1 + $0x6a0] sm:$0xff]
  %v235 = vld [vmem:[%s1 + $0x6a8] sm:$0xff]
  %v236 = vld [vmem:[%s1 + $0x6b0] sm:$0xff]
  %v237 = vld [vmem:[%s1 + $0x6b8] sm:$0xff]
  %v238 = vld [vmem:[%s1 + $0x6c0] sm:$0xff]
  %v239 = vld [vmem:[%s1 + $0x6c8] sm:$0xff]
  %v240 = vld [vmem:[%s1 + $0x6d0] sm:$0xff]
  %v241 = vld [vmem:[%s1 + $0x6d8] sm:$0xff]
  %v242 = vld [vmem:[%s1 + $0x6e0] sm:$0xff]
  %v243 = vld [vmem:[%s1 + $0x6e8] sm:$0xff]
  %v244 = vld [vmem:[%s1 + $0x6f0] sm:$0xff]
  %v245 = vld [vmem:[%s1 + $0x6f8] sm:$0xff]
  %v246 = vld [vmem:[%s1 + $0x700] sm:$0xff]
  %v247 = vld [vmem:[%s1 + $0x708] sm:$0xff]
  %v248 = vld [vmem:[%s1 + $0x710] sm:$0xff]
  %v249 = vld [vmem:[%s1 + $0x718] sm:$0xff]
  %v250 = vld [vmem:[%s1 + $0x720] sm:$0xff]
  %v251 = vld [vmem:[%s1 + $0x728] sm:$0xff]
  %v252 = vld [vmem:[%s1 + $0x730] sm:$0xff]
  %v253 = vld [vmem:[%s1 + $0x738] sm:$0xff]
  %v254 = vld [vmem:[%s1 + $0x740] sm:$0xff]
  %v255 = vld [vmem:[%s1 + $0x748] sm:$0xff]
  %v256 = vld [vmem:[%s1 + $0x750] sm:$0xff]
  %v257 = vld [vmem:[%s1 + $0x758] sm:$0xff]
  %v258 = vld [vmem:[%s1 + $0x760] sm:$0xff]
  %v259 = vld [vmem:[%s1 + $0x768] sm:$0xff]
  %v260 = vld [vmem:[%s1 + $0x770] sm:$0xff]
  %v261 = vld [vmem:[%s1 + $0x778] sm:$0xff]
  %v262 = vld [vmem:[%s1 + $0x780] sm:$0xff]
  %v263 = vld [vmem:[%s1 + $0x788] sm:$0xff]
  %v264 = vld [vmem:[%s1 + $0x790] sm:$0xff]
  %v265 = vld [vmem:[%s1 + $0x798] sm:$0xff]
  %v266 = vld [vmem:[%s1 + $0x7a0] sm:$0xff]
  %v267 = vld [vmem:[%s1 + $0x7a8] sm:$0xff]
  %v268 = vld [vmem:[%s1 + $0x7b0] sm:$0xff]
  %v269 = vld [vmem:[%s1 + $0x7b8] sm:$0xff]
  %v270 = vld [vmem:[%s1 + $0x7c0] sm:$0xff]
  %v271 = vld [vmem:[%s1 + $0x7c8] sm:$0xff]
  %v272 = vld [vmem:[%s1 + $0x7d0] sm:$0xff]
  %v273 = vld [vmem:[%s1 + $0x7d8] sm:$0xff]
  %v274 = vld [vmem:[%s1 + $0x7e0] sm:$0xff]
  %v275 = vld [vmem:[%s1 + $0x7e8] sm:$0xff]
  %v276 = vld [vmem:[%s1 + $0x7f0] sm:$0xff]
  %v277 = vld [vmem:[%s1 + $0x7f8] sm:$0xff]
  %v286 = vunpack.c.l.b16 %v14
  %v287 = vunpack.c.h.b16 %v14
  %v288 = vunpack.c.l.b16 %v15
  %v289 = vunpack.c.h.b16 %v15
  %v290 = vunpack.c.l.b16 %v16
  %v291 = vunpack.c.h.b16 %v16
  %v292 = vunpack.c.l.b16 %v17
  %v293 = vunpack.c.h.b16 %v17
  %v294 = vunpack.c.l.b16 %v18
  %v295 = vunpack.c.h.b16 %v18
  %v296 = vunpack.c.l.b16 %v19
  %v297 = vunpack.c.h.b16 %v19
  %v298 = vunpack.c.l.b16 %v20
  %v299 = vunpack.c.h.b16 %v20
  %v300 = vunpack.c.l.b16 %v21
  %v301 = vunpack.c.h.b16 %v21
  %v302 = vpack.c.b16 %v286, %v286
  %v303 = vpack.c.b16 %v287, %v287
  %v304 = vpack.c.b16 %v288, %v288
  %v305 = vpack.c.b16 %v289, %v289
  %v306 = vpack.c.b16 %v290, %v290
  %v307 = vpack.c.b16 %v291, %v291
  %v308 = vpack.c.b16 %v292, %v292
  %v309 = vpack.c.b16 %v293, %v293
  %v310 = vpack.c.b16 %v294, %v294
  %v311 = vpack.c.b16 %v295, %v295
  %v312 = vpack.c.b16 %v296, %v296
  %v313 = vpack.c.b16 %v297, %v297
  %v314 = vpack.c.b16 %v298, %v298
  %v315 = vpack.c.b16 %v299, %v299
  %v316 = vpack.c.b16 %v300, %v300
  %v317 = vpack.c.b16 %v301, %v301
  %v590 = vunpack.c.l.b16 %v22
  %v591 = vunpack.c.h.b16 %v22
  %v592 = vunpack.c.l.b16 %v23
  %v593 = vunpack.c.h.b16 %v23
  %v594 = vunpack.c.l.b16 %v24
  %v595 = vunpack.c.h.b16 %v24
  %v596 = vunpack.c.l.b16 %v25
  %v597 = vunpack.c.h.b16 %v25
  %v598 = vunpack.c.l.b16 %v26
  %v599 = vunpack.c.h.b16 %v26
  %v600 = vunpack.c.l.b16 %v27
  %v601 = vunpack.c.h.b16 %v27
  %v602 = vunpack.c.l.b16 %v28
  %v603 = vunpack.c.h.b16 %v28
  %v604 = vunpack.c.l.b16 %v29
  %v605 = vunpack.c.h.b16 %v29
  %v606 = vunpack.c.l.b16 %v30
  %v607 = vunpack.c.h.b16 %v30
  %v608 = vunpack.c.l.b16 %v31
  %v609 = vunpack.c.h.b16 %v31
  %v610 = vunpack.c.l.b16 %v32
  %v611 = vunpack.c.h.b16 %v32
  %v612 = vunpack.c.l.b16 %v33
  %v613 = vunpack.c.h.b16 %v33
  %v614 = vunpack.c.l.b16 %v34
  %v615 = vunpack.c.h.b16 %v34
  %v616 = vunpack.c.l.b16 %v35
  %v617 = vunpack.c.h.b16 %v35
  %v618 = vunpack.c.l.b16 %v36
  %v619 = vunpack.c.h.b16 %v36
  %v620 = vunpack.c.l.b16 %v37
  %v621 = vunpack.c.h.b16 %v37
  %v622 = vunpack.c.l.b16 %v38
  %v623 = vunpack.c.h.b16 %v38
  %v624 = vunpack.c.l.b16 %v39
  %v625 = vunpack.c.h.b16 %v39
  %v626 = vunpack.c.l.b16 %v40
  %v627 = vunpack.c.h.b16 %v40
  %v628 = vunpack.c.l.b16 %v41
  %v629 = vunpack.c.h.b16 %v41
  %v630 = vunpack.c.l.b16 %v42
  %v631 = vunpack.c.h.b16 %v42
  %v632 = vunpack.c.l.b16 %v43
  %v633 = vunpack.c.h.b16 %v43
  %v634 = vunpack.c.l.b16 %v44
  %v635 = vunpack.c.h.b16 %v44
  %v636 = vunpack.c.l.b16 %v45
  %v637 = vunpack.c.h.b16 %v45
  %v638 = vunpack.c.l.b16 %v46
  %v639 = vunpack.c.h.b16 %v46
  %v640 = vunpack.c.l.b16 %v47
  %v641 = vunpack.c.h.b16 %v47
  %v642 = vunpack.c.l.b16 %v48
  %v643 = vunpack.c.h.b16 %v48
  %v644 = vunpack.c.l.b16 %v49
  %v645 = vunpack.c.h.b16 %v49
  %v646 = vunpack.c.l.b16 %v50
  %v647 = vunpack.c.h.b16 %v50
  %v648 = vunpack.c.l.b16 %v51
  %v649 = vunpack.c.h.b16 %v51
  %v650 = vunpack.c.l.b16 %v52
  %v651 = vunpack.c.h.b16 %v52
  %v652 = vunpack.c.l.b16 %v53
  %v653 = vunpack.c.h.b16 %v53
  %v654 = vunpack.c.l.b16 %v54
  %v655 = vunpack.c.h.b16 %v54
  %v656 = vunpack.c.l.b16 %v55
  %v657 = vunpack.c.h.b16 %v55
  %v658 = vunpack.c.l.b16 %v56
  %v659 = vunpack.c.h.b16 %v56
  %v660 = vunpack.c.l.b16 %v57
  %v661 = vunpack.c.h.b16 %v57
  %v662 = vunpack.c.l.b16 %v58
  %v663 = vunpack.c.h.b16 %v58
  %v664 = vunpack.c.l.b16 %v59
  %v665 = vunpack.c.h.b16 %v59
  %v666 = vunpack.c.l.b16 %v60
  %v667 = vunpack.c.h.b16 %v60
  %v668 = vunpack.c.l.b16 %v61
  %v669 = vunpack.c.h.b16 %v61
  %v670 = vunpack.c.l.b16 %v62
  %v671 = vunpack.c.h.b16 %v62
  %v672 = vunpack.c.l.b16 %v63
  %v673 = vunpack.c.h.b16 %v63
  %v674 = vunpack.c.l.b16 %v64
  %v675 = vunpack.c.h.b16 %v64
  %v676 = vunpack.c.l.b16 %v65
  %v677 = vunpack.c.h.b16 %v65
  %v678 = vunpack.c.l.b16 %v66
  %v679 = vunpack.c.h.b16 %v66
  %v680 = vunpack.c.l.b16 %v67
  %v681 = vunpack.c.h.b16 %v67
  %v682 = vunpack.c.l.b16 %v68
  %v683 = vunpack.c.h.b16 %v68
  %v684 = vunpack.c.l.b16 %v69
  %v685 = vunpack.c.h.b16 %v69
  %v686 = vunpack.c.l.b16 %v70
  %v687 = vunpack.c.h.b16 %v70
  %v688 = vunpack.c.l.b16 %v71
  %v689 = vunpack.c.h.b16 %v71
  %v690 = vunpack.c.l.b16 %v72
  %v691 = vunpack.c.h.b16 %v72
  %v692 = vunpack.c.l.b16 %v73
  %v693 = vunpack.c.h.b16 %v73
  %v694 = vunpack.c.l.b16 %v74
  %v695 = vunpack.c.h.b16 %v74
  %v696 = vunpack.c.l.b16 %v75
  %v697 = vunpack.c.h.b16 %v75
  %v698 = vunpack.c.l.b16 %v76
  %v699 = vunpack.c.h.b16 %v76
  %v700 = vunpack.c.l.b16 %v77
  %v701 = vunpack.c.h.b16 %v77
  %v702 = vunpack.c.l.b16 %v78
  %v703 = vunpack.c.h.b16 %v78
  %v704 = vunpack.c.l.b16 %v79
  %v705 = vunpack.c.h.b16 %v79
  %v706 = vunpack.c.l.b16 %v80
  %v707 = vunpack.c.h.b16 %v80
  %v708 = vunpack.c.l.b16 %v81
  %v709 = vunpack.c.h.b16 %v81
  %v710 = vunpack.c.l.b16 %v82
  %v711 = vunpack.c.h.b16 %v82
  %v712 = vunpack.c.l.b16 %v83
  %v713 = vunpack.c.h.b16 %v83
  %v714 = vunpack.c.l.b16 %v84
  %v715 = vunpack.c.h.b16 %v84
  %v716 = vunpack.c.l.b16 %v85
  %v717 = vunpack.c.h.b16 %v85
  %v718 = vunpack.c.l.b16 %v86
  %v719 = vunpack.c.h.b16 %v86
  %v720 = vunpack.c.l.b16 %v87
  %v721 = vunpack.c.h.b16 %v87
  %v722 = vunpack.c.l.b16 %v88
  %v723 = vunpack.c.h.b16 %v88
  %v724 = vunpack.c.l.b16 %v89
  %v725 = vunpack.c.h.b16 %v89
  %v726 = vunpack.c.l.b16 %v90
  %v727 = vunpack.c.h.b16 %v90
  %v728 = vunpack.c.l.b16 %v91
  %v729 = vunpack.c.h.b16 %v91
  %v730 = vunpack.c.l.b16 %v92
  %v731 = vunpack.c.h.b16 %v92
  %v732 = vunpack.c.l.b16 %v93
  %v733 = vunpack.c.h.b16 %v93
  %v734 = vunpack.c.l.b16 %v94
  %v735 = vunpack.c.h.b16 %v94
  %v736 = vunpack.c.l.b16 %v95
  %v737 = vunpack.c.h.b16 %v95
  %v738 = vunpack.c.l.b16 %v96
  %v739 = vunpack.c.h.b16 %v96
  %v740 = vunpack.c.l.b16 %v97
  %v741 = vunpack.c.h.b16 %v97
  %v742 = vunpack.c.l.b16 %v98
  %v743 = vunpack.c.h.b16 %v98
  %v744 = vunpack.c.l.b16 %v99
  %v745 = vunpack.c.h.b16 %v99
  %v746 = vunpack.c.l.b16 %v100
  %v747 = vunpack.c.h.b16 %v100
  %v748 = vunpack.c.l.b16 %v101
  %v749 = vunpack.c.h.b16 %v101
  %v750 = vunpack.c.l.b16 %v102
  %v751 = vunpack.c.h.b16 %v102
  %v752 = vunpack.c.l.b16 %v103
  %v753 = vunpack.c.h.b16 %v103
  %v754 = vunpack.c.l.b16 %v104
  %v755 = vunpack.c.h.b16 %v104
  %v756 = vunpack.c.l.b16 %v105
  %v757 = vunpack.c.h.b16 %v105
  %v758 = vunpack.c.l.b16 %v106
  %v759 = vunpack.c.h.b16 %v106
  %v760 = vunpack.c.l.b16 %v107
  %v761 = vunpack.c.h.b16 %v107
  %v762 = vunpack.c.l.b16 %v108
  %v763 = vunpack.c.h.b16 %v108
  %v764 = vunpack.c.l.b16 %v109
  %v765 = vunpack.c.h.b16 %v109
  %v766 = vunpack.c.l.b16 %v110
  %v767 = vunpack.c.h.b16 %v110
  %v768 = vunpack.c.l.b16 %v111
  %v769 = vunpack.c.h.b16 %v111
  %v770 = vunpack.c.l.b16 %v112
  %v771 = vunpack.c.h.b16 %v112
  %v772 = vunpack.c.l.b16 %v113
  %v773 = vunpack.c.h.b16 %v113
  %v774 = vunpack.c.l.b16 %v114
  %v775 = vunpack.c.h.b16 %v114
  %v776 = vunpack.c.l.b16 %v115
  %v777 = vunpack.c.h.b16 %v115
  %v778 = vunpack.c.l.b16 %v116
  %v779 = vunpack.c.h.b16 %v116
  %v780 = vunpack.c.l.b16 %v117
  %v781 = vunpack.c.h.b16 %v117
  %v782 = vunpack.c.l.b16 %v118
  %v783 = vunpack.c.h.b16 %v118
  %v784 = vunpack.c.l.b16 %v119
  %v785 = vunpack.c.h.b16 %v119
  %v786 = vunpack.c.l.b16 %v120
  %v787 = vunpack.c.h.b16 %v120
  %v788 = vunpack.c.l.b16 %v121
  %v789 = vunpack.c.h.b16 %v121
  %v790 = vunpack.c.l.b16 %v122
  %v791 = vunpack.c.h.b16 %v122
  %v792 = vunpack.c.l.b16 %v123
  %v793 = vunpack.c.h.b16 %v123
  %v794 = vunpack.c.l.b16 %v124
  %v795 = vunpack.c.h.b16 %v124
  %v796 = vunpack.c.l.b16 %v125
  %v797 = vunpack.c.h.b16 %v125
  %v798 = vunpack.c.l.b16 %v126
  %v799 = vunpack.c.h.b16 %v126
  %v800 = vunpack.c.l.b16 %v127
  %v801 = vunpack.c.h.b16 %v127
  %v802 = vunpack.c.l.b16 %v128
  %v803 = vunpack.c.h.b16 %v128
  %v804 = vunpack.c.l.b16 %v129
  %v805 = vunpack.c.h.b16 %v129
  %v806 = vunpack.c.l.b16 %v130
  %v807 = vunpack.c.h.b16 %v130
  %v808 = vunpack.c.l.b16 %v131
  %v809 = vunpack.c.h.b16 %v131
  %v810 = vunpack.c.l.b16 %v132
  %v811 = vunpack.c.h.b16 %v132
  %v812 = vunpack.c.l.b16 %v133
  %v813 = vunpack.c.h.b16 %v133
  %v814 = vunpack.c.l.b16 %v134
  %v815 = vunpack.c.h.b16 %v134
  %v816 = vunpack.c.l.b16 %v135
  %v817 = vunpack.c.h.b16 %v135
  %v818 = vunpack.c.l.b16 %v136
  %v819 = vunpack.c.h.b16 %v136
  %v820 = vunpack.c.l.b16 %v137
  %v821 = vunpack.c.h.b16 %v137
  %v822 = vunpack.c.l.b16 %v138
  %v823 = vunpack.c.h.b16 %v138
  %v824 = vunpack.c.l.b16 %v139
  %v825 = vunpack.c.h.b16 %v139
  %v826 = vunpack.c.l.b16 %v140
  %v827 = vunpack.c.h.b16 %v140
  %v828 = vunpack.c.l.b16 %v141
  %v829 = vunpack.c.h.b16 %v141
  %v830 = vunpack.c.l.b16 %v142
  %v831 = vunpack.c.h.b16 %v142
  %v832 = vunpack.c.l.b16 %v143
  %v833 = vunpack.c.h.b16 %v143
  %v834 = vunpack.c.l.b16 %v144
  %v835 = vunpack.c.h.b16 %v144
  %v836 = vunpack.c.l.b16 %v145
  %v837 = vunpack.c.h.b16 %v145
  %v838 = vunpack.c.l.b16 %v146
  %v839 = vunpack.c.h.b16 %v146
  %v840 = vunpack.c.l.b16 %v147
  %v841 = vunpack.c.h.b16 %v147
  %v842 = vunpack.c.l.b16 %v148
  %v843 = vunpack.c.h.b16 %v148
  %v844 = vunpack.c.l.b16 %v149
  %v845 = vunpack.c.h.b16 %v149
  %v846 = vunpack.c.l.b16 %v150
  %v847 = vunpack.c.h.b16 %v150
  %v848 = vunpack.c.l.b16 %v151
  %v849 = vunpack.c.h.b16 %v151
  %v850 = vunpack.c.l.b16 %v152
  %v851 = vunpack.c.h.b16 %v152
  %v852 = vunpack.c.l.b16 %v153
  %v853 = vunpack.c.h.b16 %v153
  %v854 = vunpack.c.l.b16 %v154
  %v855 = vunpack.c.h.b16 %v154
  %v856 = vunpack.c.l.b16 %v155
  %v857 = vunpack.c.h.b16 %v155
  %v858 = vunpack.c.l.b16 %v156
  %v859 = vunpack.c.h.b16 %v156
  %v860 = vunpack.c.l.b16 %v157
  %v861 = vunpack.c.h.b16 %v157
  %v862 = vunpack.c.l.b16 %v158
  %v863 = vunpack.c.h.b16 %v158
  %v864 = vunpack.c.l.b16 %v159
  %v865 = vunpack.c.h.b16 %v159
  %v866 = vunpack.c.l.b16 %v160
  %v867 = vunpack.c.h.b16 %v160
  %v868 = vunpack.c.l.b16 %v161
  %v869 = vunpack.c.h.b16 %v161
  %v870 = vunpack.c.l.b16 %v162
  %v871 = vunpack.c.h.b16 %v162
  %v872 = vunpack.c.l.b16 %v163
  %v873 = vunpack.c.h.b16 %v163
  %v874 = vunpack.c.l.b16 %v164
  %v875 = vunpack.c.h.b16 %v164
  %v876 = vunpack.c.l.b16 %v165
  %v877 = vunpack.c.h.b16 %v165
  %v878 = vunpack.c.l.b16 %v166
  %v879 = vunpack.c.h.b16 %v166
  %v880 = vunpack.c.l.b16 %v167
  %v881 = vunpack.c.h.b16 %v167
  %v882 = vunpack.c.l.b16 %v168
  %v883 = vunpack.c.h.b16 %v168
  %v884 = vunpack.c.l.b16 %v169
  %v885 = vunpack.c.h.b16 %v169
  %v886 = vunpack.c.l.b16 %v170
  %v887 = vunpack.c.h.b16 %v170
  %v888 = vunpack.c.l.b16 %v171
  %v889 = vunpack.c.h.b16 %v171
  %v890 = vunpack.c.l.b16 %v172
  %v891 = vunpack.c.h.b16 %v172
  %v892 = vunpack.c.l.b16 %v173
  %v893 = vunpack.c.h.b16 %v173
  %v894 = vunpack.c.l.b16 %v174
  %v895 = vunpack.c.h.b16 %v174
  %v896 = vunpack.c.l.b16 %v175
  %v897 = vunpack.c.h.b16 %v175
  %v898 = vunpack.c.l.b16 %v176
  %v899 = vunpack.c.h.b16 %v176
  %v900 = vunpack.c.l.b16 %v177
  %v901 = vunpack.c.h.b16 %v177
  %v902 = vunpack.c.l.b16 %v178
  %v903 = vunpack.c.h.b16 %v178
  %v904 = vunpack.c.l.b16 %v179
  %v905 = vunpack.c.h.b16 %v179
  %v906 = vunpack.c.l.b16 %v180
  %v907 = vunpack.c.h.b16 %v180
  %v908 = vunpack.c.l.b16 %v181
  %v909 = vunpack.c.h.b16 %v181
  %v910 = vunpack.c.l.b16 %v182
  %v911 = vunpack.c.h.b16 %v182
  %v912 = vunpack.c.l.b16 %v183
  %v913 = vunpack.c.h.b16 %v183
  %v914 = vunpack.c.l.b16 %v184
  %v915 = vunpack.c.h.b16 %v184
  %v916 = vunpack.c.l.b16 %v185
  %v917 = vunpack.c.h.b16 %v185
  %v918 = vunpack.c.l.b16 %v186
  %v919 = vunpack.c.h.b16 %v186
  %v920 = vunpack.c.l.b16 %v187
  %v921 = vunpack.c.h.b16 %v187
  %v922 = vunpack.c.l.b16 %v188
  %v923 = vunpack.c.h.b16 %v188
  %v924 = vunpack.c.l.b16 %v189
  %v925 = vunpack.c.h.b16 %v189
  %v926 = vunpack.c.l.b16 %v190
  %v927 = vunpack.c.h.b16 %v190
  %v928 = vunpack.c.l.b16 %v191
  %v929 = vunpack.c.h.b16 %v191
  %v930 = vunpack.c.l.b16 %v192
  %v931 = vunpack.c.h.b16 %v192
  %v932 = vunpack.c.l.b16 %v193
  %v933 = vunpack.c.h.b16 %v193
  %v934 = vunpack.c.l.b16 %v194
  %v935 = vunpack.c.h.b16 %v194
  %v936 = vunpack.c.l.b16 %v195
  %v937 = vunpack.c.h.b16 %v195
  %v938 = vunpack.c.l.b16 %v196
  %v939 = vunpack.c.h.b16 %v196
  %v940 = vunpack.c.l.b16 %v197
  %v941 = vunpack.c.h.b16 %v197
  %v942 = vunpack.c.l.b16 %v198
  %v943 = vunpack.c.h.b16 %v198
  %v944 = vunpack.c.l.b16 %v199
  %v945 = vunpack.c.h.b16 %v199
  %v946 = vunpack.c.l.b16 %v200
  %v947 = vunpack.c.h.b16 %v200
  %v948 = vunpack.c.l.b16 %v201
  %v949 = vunpack.c.h.b16 %v201
  %v950 = vunpack.c.l.b16 %v202
  %v951 = vunpack.c.h.b16 %v202
  %v952 = vunpack.c.l.b16 %v203
  %v953 = vunpack.c.h.b16 %v203
  %v954 = vunpack.c.l.b16 %v204
  %v955 = vunpack.c.h.b16 %v204
  %v956 = vunpack.c.l.b16 %v205
  %v957 = vunpack.c.h.b16 %v205
  %v958 = vunpack.c.l.b16 %v206
  %v959 = vunpack.c.h.b16 %v206
  %v960 = vunpack.c.l.b16 %v207
  %v961 = vunpack.c.h.b16 %v207
  %v962 = vunpack.c.l.b16 %v208
  %v963 = vunpack.c.h.b16 %v208
  %v964 = vunpack.c.l.b16 %v209
  %v965 = vunpack.c.h.b16 %v209
  %v966 = vunpack.c.l.b16 %v210
  %v967 = vunpack.c.h.b16 %v210
  %v968 = vunpack.c.l.b16 %v211
  %v969 = vunpack.c.h.b16 %v211
  %v970 = vunpack.c.l.b16 %v212
  %v971 = vunpack.c.h.b16 %v212
  %v972 = vunpack.c.l.b16 %v213
  %v973 = vunpack.c.h.b16 %v213
  %v974 = vunpack.c.l.b16 %v214
  %v975 = vunpack.c.h.b16 %v214
  %v976 = vunpack.c.l.b16 %v215
  %v977 = vunpack.c.h.b16 %v215
  %v978 = vunpack.c.l.b16 %v216
  %v979 = vunpack.c.h.b16 %v216
  %v980 = vunpack.c.l.b16 %v217
  %v981 = vunpack.c.h.b16 %v217
  %v982 = vunpack.c.l.b16 %v218
  %v983 = vunpack.c.h.b16 %v218
  %v984 = vunpack.c.l.b16 %v219
  %v985 = vunpack.c.h.b16 %v219
  %v986 = vunpack.c.l.b16 %v220
  %v987 = vunpack.c.h.b16 %v220
  %v988 = vunpack.c.l.b16 %v221
  %v989 = vunpack.c.h.b16 %v221
  %v990 = vunpack.c.l.b16 %v222
  %v991 = vunpack.c.h.b16 %v222
  %v992 = vunpack.c.l.b16 %v223
  %v993 = vunpack.c.h.b16 %v223
  %v994 = vunpack.c.l.b16 %v224
  %v995 = vunpack.c.h.b16 %v224
  %v996 = vunpack.c.l.b16 %v225
  %v997 = vunpack.c.h.b16 %v225
  %v998 = vunpack.c.l.b16 %v226
  %v999 = vunpack.c.h.b16 %v226
  %v1000 = vunpack.c.l.b16 %v227
  %v1001 = vunpack.c.h.b16 %v227
  %v1002 = vunpack.c.l.b16 %v228
  %v1003 = vunpack.c.h.b16 %v228
  %v1004 = vunpack.c.l.b16 %v229
  %v1005 = vunpack.c.h.b16 %v229
  %v1006 = vunpack.c.l.b16 %v230
  %v1007 = vunpack.c.h.b16 %v230
  %v1008 = vunpack.c.l.b16 %v231
  %v1009 = vunpack.c.h.b16 %v231
  %v1010 = vunpack.c.l.b16 %v232
  %v1011 = vunpack.c.h.b16 %v232
  %v1012 = vunpack.c.l.b16 %v233
  %v1013 = vunpack.c.h.b16 %v233
  %v1014 = vunpack.c.l.b16 %v234
  %v1015 = vunpack.c.h.b16 %v234
  %v1016 = vunpack.c.l.b16 %v235
  %v1017 = vunpack.c.h.b16 %v235
  %v1018 = vunpack.c.l.b16 %v236
  %v1019 = vunpack.c.h.b16 %v236
  %v1020 = vunpack.c.l.b16 %v237
  %v1021 = vunpack.c.h.b16 %v237
  %v1022 = vunpack.c.l.b16 %v238
  %v1023 = vunpack.c.h.b16 %v238
  %v1024 = vunpack.c.l.b16 %v239
  %v1025 = vunpack.c.h.b16 %v239
  %v1026 = vunpack.c.l.b16 %v240
  %v1027 = vunpack.c.h.b16 %v240
  %v1028 = vunpack.c.l.b16 %v241
  %v1029 = vunpack.c.h.b16 %v241
  %v1030 = vunpack.c.l.b16 %v242
  %v1031 = vunpack.c.h.b16 %v242
  %v1032 = vunpack.c.l.b16 %v243
  %v1033 = vunpack.c.h.b16 %v243
  %v1034 = vunpack.c.l.b16 %v244
  %v1035 = vunpack.c.h.b16 %v244
  %v1036 = vunpack.c.l.b16 %v245
  %v1037 = vunpack.c.h.b16 %v245
  %v1038 = vunpack.c.l.b16 %v246
  %v1039 = vunpack.c.h.b16 %v246
  %v1040 = vunpack.c.l.b16 %v247
  %v1041 = vunpack.c.h.b16 %v247
  %v1042 = vunpack.c.l.b16 %v248
  %v1043 = vunpack.c.h.b16 %v248
  %v1044 = vunpack.c.l.b16 %v249
  %v1045 = vunpack.c.h.b16 %v249
  %v1046 = vunpack.c.l.b16 %v250
  %v1047 = vunpack.c.h.b16 %v250
  %v1048 = vunpack.c.l.b16 %v251
  %v1049 = vunpack.c.h.b16 %v251
  %v1050 = vunpack.c.l.b16 %v252
  %v1051 = vunpack.c.h.b16 %v252
  %v1052 = vunpack.c.l.b16 %v253
  %v1053 = vunpack.c.h.b16 %v253
  %v1054 = vunpack.c.l.b16 %v254
  %v1055 = vunpack.c.h.b16 %v254
  %v1056 = vunpack.c.l.b16 %v255
  %v1057 = vunpack.c.h.b16 %v255
  %v1058 = vunpack.c.l.b16 %v256
  %v1059 = vunpack.c.h.b16 %v256
  %v1060 = vunpack.c.l.b16 %v257
  %v1061 = vunpack.c.h.b16 %v257
  %v1062 = vunpack.c.l.b16 %v258
  %v1063 = vunpack.c.h.b16 %v258
  %v1064 = vunpack.c.l.b16 %v259
  %v1065 = vunpack.c.h.b16 %v259
  %v1066 = vunpack.c.l.b16 %v260
  %v1067 = vunpack.c.h.b16 %v260
  %v1068 = vunpack.c.l.b16 %v261
  %v1069 = vunpack.c.h.b16 %v261
  %v1070 = vunpack.c.l.b16 %v262
  %v1071 = vunpack.c.h.b16 %v262
  %v1072 = vunpack.c.l.b16 %v263
  %v1073 = vunpack.c.h.b16 %v263
  %v1074 = vunpack.c.l.b16 %v264
  %v1075 = vunpack.c.h.b16 %v264
  %v1076 = vunpack.c.l.b16 %v265
  %v1077 = vunpack.c.h.b16 %v265
  %v1078 = vunpack.c.l.b16 %v266
  %v1079 = vunpack.c.h.b16 %v266
  %v1080 = vunpack.c.l.b16 %v267
  %v1081 = vunpack.c.h.b16 %v267
  %v1082 = vunpack.c.l.b16 %v268
  %v1083 = vunpack.c.h.b16 %v268
  %v1084 = vunpack.c.l.b16 %v269
  %v1085 = vunpack.c.h.b16 %v269
  %v1086 = vunpack.c.l.b16 %v270
  %v1087 = vunpack.c.h.b16 %v270
  %v1088 = vunpack.c.l.b16 %v271
  %v1089 = vunpack.c.h.b16 %v271
  %v1090 = vunpack.c.l.b16 %v272
  %v1091 = vunpack.c.h.b16 %v272
  %v1092 = vunpack.c.l.b16 %v273
  %v1093 = vunpack.c.h.b16 %v273
  %v1094 = vunpack.c.l.b16 %v274
  %v1095 = vunpack.c.h.b16 %v274
  %v1096 = vunpack.c.l.b16 %v275
  %v1097 = vunpack.c.h.b16 %v275
  %v1098 = vunpack.c.l.b16 %v276
  %v1099 = vunpack.c.h.b16 %v276
  %v1100 = vunpack.c.l.b16 %v277
  %v1101 = vunpack.c.h.b16 %v277
  %v1102 = vpack.c.b16 %v592, %v590
  %v1103 = vpack.c.b16 %v593, %v591
  %v1104 = vpack.c.b16 %v596, %v594
  %v1105 = vpack.c.b16 %v597, %v595
  %v1106 = vpack.c.b16 %v600, %v598
  %v1107 = vpack.c.b16 %v601, %v599
  %v1108 = vpack.c.b16 %v604, %v602
  %v1109 = vpack.c.b16 %v605, %v603
  %v1110 = vpack.c.b16 %v608, %v606
  %v1111 = vpack.c.b16 %v609, %v607
  %v1112 = vpack.c.b16 %v612, %v610
  %v1113 = vpack.c.b16 %v613, %v611
  %v1114 = vpack.c.b16 %v616, %v614
  %v1115 = vpack.c.b16 %v617, %v615
  %v1116 = vpack.c.b16 %v620, %v618
  %v1117 = vpack.c.b16 %v621, %v619
  %v1118 = vpack.c.b16 %v624, %v622
  %v1119 = vpack.c.b16 %v625, %v623
  %v1120 = vpack.c.b16 %v628, %v626
  %v1121 = vpack.c.b16 %v629, %v627
  %v1122 = vpack.c.b16 %v632, %v630
  %v1123 = vpack.c.b16 %v633, %v631
  %v1124 = vpack.c.b16 %v636, %v634
  %v1125 = vpack.c.b16 %v637, %v635
  %v1126 = vpack.c.b16 %v640, %v638
  %v1127 = vpack.c.b16 %v641, %v639
  %v1128 = vpack.c.b16 %v644, %v642
  %v1129 = vpack.c.b16 %v645, %v643
  %v1130 = vpack.c.b16 %v648, %v646
  %v1131 = vpack.c.b16 %v649, %v647
  %v1132 = vpack.c.b16 %v652, %v650
  %v1133 = vpack.c.b16 %v653, %v651
  %v1134 = vpack.c.b16 %v656, %v654
  %v1135 = vpack.c.b16 %v657, %v655
  %v1136 = vpack.c.b16 %v660, %v658
  %v1137 = vpack.c.b16 %v661, %v659
  %v1138 = vpack.c.b16 %v664, %v662
  %v1139 = vpack.c.b16 %v665, %v663
  %v1140 = vpack.c.b16 %v668, %v666
  %v1141 = vpack.c.b16 %v669, %v667
  %v1142 = vpack.c.b16 %v672, %v670
  %v1143 = vpack.c.b16 %v673, %v671
  %v1144 = vpack.c.b16 %v676, %v674
  %v1145 = vpack.c.b16 %v677, %v675
  %v1146 = vpack.c.b16 %v680, %v678
  %v1147 = vpack.c.b16 %v681, %v679
  %v1148 = vpack.c.b16 %v684, %v682
  %v1149 = vpack.c.b16 %v685, %v683
  %v1150 = vpack.c.b16 %v688, %v686
  %v1151 = vpack.c.b16 %v689, %v687
  %v1152 = vpack.c.b16 %v692, %v690
  %v1153 = vpack.c.b16 %v693, %v691
  %v1154 = vpack.c.b16 %v696, %v694
  %v1155 = vpack.c.b16 %v697, %v695
  %v1156 = vpack.c.b16 %v700, %v698
  %v1157 = vpack.c.b16 %v701, %v699
  %v1158 = vpack.c.b16 %v704, %v702
  %v1159 = vpack.c.b16 %v705, %v703
  %v1160 = vpack.c.b16 %v708, %v706
  %v1161 = vpack.c.b16 %v709, %v707
  %v1162 = vpack.c.b16 %v712, %v710
  %v1163 = vpack.c.b16 %v713, %v711
  %v1164 = vpack.c.b16 %v716, %v714
  %v1165 = vpack.c.b16 %v717, %v715
  %v1166 = vpack.c.b16 %v720, %v718
  %v1167 = vpack.c.b16 %v721, %v719
  %v1168 = vpack.c.b16 %v724, %v722
  %v1169 = vpack.c.b16 %v725, %v723
  %v1170 = vpack.c.b16 %v728, %v726
  %v1171 = vpack.c.b16 %v729, %v727
  %v1172 = vpack.c.b16 %v732, %v730
  %v1173 = vpack.c.b16 %v733, %v731
  %v1174 = vpack.c.b16 %v736, %v734
  %v1175 = vpack.c.b16 %v737, %v735
  %v1176 = vpack.c.b16 %v740, %v738
  %v1177 = vpack.c.b16 %v741, %v739
  %v1178 = vpack.c.b16 %v744, %v742
  %v1179 = vpack.c.b16 %v745, %v743
  %v1180 = vpack.c.b16 %v748, %v746
  %v1181 = vpack.c.b16 %v749, %v747
  %v1182 = vpack.c.b16 %v752, %v750
  %v1183 = vpack.c.b16 %v753, %v751
  %v1184 = vpack.c.b16 %v756, %v754
  %v1185 = vpack.c.b16 %v757, %v755
  %v1186 = vpack.c.b16 %v760, %v758
  %v1187 = vpack.c.b16 %v761, %v759
  %v1188 = vpack.c.b16 %v764, %v762
  %v1189 = vpack.c.b16 %v765, %v763
  %v1190 = vpack.c.b16 %v768, %v766
  %v1191 = vpack.c.b16 %v769, %v767
  %v1192 = vpack.c.b16 %v772, %v770
  %v1193 = vpack.c.b16 %v773, %v771
  %v1194 = vpack.c.b16 %v776, %v774
  %v1195 = vpack.c.b16 %v777, %v775
  %v1196 = vpack.c.b16 %v780, %v778
  %v1197 = vpack.c.b16 %v781, %v779
  %v1198 = vpack.c.b16 %v784, %v782
  %v1199 = vpack.c.b16 %v785, %v783
  %v1200 = vpack.c.b16 %v788, %v786
  %v1201 = vpack.c.b16 %v789, %v787
  %v1202 = vpack.c.b16 %v792, %v790
  %v1203 = vpack.c.b16 %v793, %v791
  %v1204 = vpack.c.b16 %v796, %v794
  %v1205 = vpack.c.b16 %v797, %v795
  %v1206 = vpack.c.b16 %v800, %v798
  %v1207 = vpack.c.b16 %v801, %v799
  %v1208 = vpack.c.b16 %v804, %v802
  %v1209 = vpack.c.b16 %v805, %v803
  %v1210 = vpack.c.b16 %v808, %v806
  %v1211 = vpack.c.b16 %v809, %v807
  %v1212 = vpack.c.b16 %v812, %v810
  %v1213 = vpack.c.b16 %v813, %v811
  %v1214 = vpack.c.b16 %v816, %v814
  %v1215 = vpack.c.b16 %v817, %v815
  %v1216 = vpack.c.b16 %v820, %v818
  %v1217 = vpack.c.b16 %v821, %v819
  %v1218 = vpack.c.b16 %v824, %v822
  %v1219 = vpack.c.b16 %v825, %v823
  %v1220 = vpack.c.b16 %v828, %v826
  %v1221 = vpack.c.b16 %v829, %v827
  %v1222 = vpack.c.b16 %v832, %v830
  %v1223 = vpack.c.b16 %v833, %v831
  %v1224 = vpack.c.b16 %v836, %v834
  %v1225 = vpack.c.b16 %v837, %v835
  %v1226 = vpack.c.b16 %v840, %v838
  %v1227 = vpack.c.b16 %v841, %v839
  %v1228 = vpack.c.b16 %v844, %v842
  %v1229 = vpack.c.b16 %v845, %v843
  %v1230 = vpack.c.b16 %v848, %v846
  %v1231 = vpack.c.b16 %v849, %v847
  %v1232 = vpack.c.b16 %v852, %v850
  %v1233 = vpack.c.b16 %v853, %v851
  %v1234 = vpack.c.b16 %v856, %v854
  %v1235 = vpack.c.b16 %v857, %v855
  %v1236 = vpack.c.b16 %v860, %v858
  %v1237 = vpack.c.b16 %v861, %v859
  %v1238 = vpack.c.b16 %v864, %v862
  %v1239 = vpack.c.b16 %v865, %v863
  %v1240 = vpack.c.b16 %v868, %v866
  %v1241 = vpack.c.b16 %v869, %v867
  %v1242 = vpack.c.b16 %v872, %v870
  %v1243 = vpack.c.b16 %v873, %v871
  %v1244 = vpack.c.b16 %v876, %v874
  %v1245 = vpack.c.b16 %v877, %v875
  %v1246 = vpack.c.b16 %v880, %v878
  %v1247 = vpack.c.b16 %v881, %v879
  %v1248 = vpack.c.b16 %v884, %v882
  %v1249 = vpack.c.b16 %v885, %v883
  %v1250 = vpack.c.b16 %v888, %v886
  %v1251 = vpack.c.b16 %v889, %v887
  %v1252 = vpack.c.b16 %v892, %v890
  %v1253 = vpack.c.b16 %v893, %v891
  %v1254 = vpack.c.b16 %v896, %v894
  %v1255 = vpack.c.b16 %v897, %v895
  %v1256 = vpack.c.b16 %v900, %v898
  %v1257 = vpack.c.b16 %v901, %v899
  %v1258 = vpack.c.b16 %v904, %v902
  %v1259 = vpack.c.b16 %v905, %v903
  %v1260 = vpack.c.b16 %v908, %v906
  %v1261 = vpack.c.b16 %v909, %v907
  %v1262 = vpack.c.b16 %v912, %v910
  %v1263 = vpack.c.b16 %v913, %v911
  %v1264 = vpack.c.b16 %v916, %v914
  %v1265 = vpack.c.b16 %v917, %v915
  %v1266 = vpack.c.b16 %v920, %v918
  %v1267 = vpack.c.b16 %v921, %v919
  %v1268 = vpack.c.b16 %v924, %v922
  %v1269 = vpack.c.b16 %v925, %v923
  %v1270 = vpack.c.b16 %v928, %v926
  %v1271 = vpack.c.b16 %v929, %v927
  %v1272 = vpack.c.b16 %v932, %v930
  %v1273 = vpack.c.b16 %v933, %v931
  %v1274 = vpack.c.b16 %v936, %v934
  %v1275 = vpack.c.b16 %v937, %v935
  %v1276 = vpack.c.b16 %v940, %v938
  %v1277 = vpack.c.b16 %v941, %v939
  %v1278 = vpack.c.b16 %v944, %v942
  %v1279 = vpack.c.b16 %v945, %v943
  %v1280 = vpack.c.b16 %v948, %v946
  %v1281 = vpack.c.b16 %v949, %v947
  %v1282 = vpack.c.b16 %v952, %v950
  %v1283 = vpack.c.b16 %v953, %v951
  %v1284 = vpack.c.b16 %v956, %v954
  %v1285 = vpack.c.b16 %v957, %v955
  %v1286 = vpack.c.b16 %v960, %v958
  %v1287 = vpack.c.b16 %v961, %v959
  %v1288 = vpack.c.b16 %v964, %v962
  %v1289 = vpack.c.b16 %v965, %v963
  %v1290 = vpack.c.b16 %v968, %v966
  %v1291 = vpack.c.b16 %v969, %v967
  %v1292 = vpack.c.b16 %v972, %v970
  %v1293 = vpack.c.b16 %v973, %v971
  %v1294 = vpack.c.b16 %v976, %v974
  %v1295 = vpack.c.b16 %v977, %v975
  %v1296 = vpack.c.b16 %v980, %v978
  %v1297 = vpack.c.b16 %v981, %v979
  %v1298 = vpack.c.b16 %v984, %v982
  %v1299 = vpack.c.b16 %v985, %v983
  %v1300 = vpack.c.b16 %v988, %v986
  %v1301 = vpack.c.b16 %v989, %v987
  %v1302 = vpack.c.b16 %v992, %v990
  %v1303 = vpack.c.b16 %v993, %v991
  %v1304 = vpack.c.b16 %v996, %v994
  %v1305 = vpack.c.b16 %v997, %v995
  %v1306 = vpack.c.b16 %v1000, %v998
  %v1307 = vpack.c.b16 %v1001, %v999
  %v1308 = vpack.c.b16 %v1004, %v1002
  %v1309 = vpack.c.b16 %v1005, %v1003
  %v1310 = vpack.c.b16 %v1008, %v1006
  %v1311 = vpack.c.b16 %v1009, %v1007
  %v1312 = vpack.c.b16 %v1012, %v1010
  %v1313 = vpack.c.b16 %v1013, %v1011
  %v1314 = vpack.c.b16 %v1016, %v1014
  %v1315 = vpack.c.b16 %v1017, %v1015
  %v1316 = vpack.c.b16 %v1020, %v1018
  %v1317 = vpack.c.b16 %v1021, %v1019
  %v1318 = vpack.c.b16 %v1024, %v1022
  %v1319 = vpack.c.b16 %v1025, %v1023
  %v1320 = vpack.c.b16 %v1028, %v1026
  %v1321 = vpack.c.b16 %v1029, %v1027
  %v1322 = vpack.c.b16 %v1032, %v1030
  %v1323 = vpack.c.b16 %v1033, %v1031
  %v1324 = vpack.c.b16 %v1036, %v1034
  %v1325 = vpack.c.b16 %v1037, %v1035
  %v1326 = vpack.c.b16 %v1040, %v1038
  %v1327 = vpack.c.b16 %v1041, %v1039
  %v1328 = vpack.c.b16 %v1044, %v1042
  %v1329 = vpack.c.b16 %v1045, %v1043
  %v1330 = vpack.c.b16 %v1048, %v1046
  %v1331 = vpack.c.b16 %v1049, %v1047
  %v1332 = vpack.c.b16 %v1052, %v1050
  %v1333 = vpack.c.b16 %v1053, %v1051
  %v1334 = vpack.c.b16 %v1056, %v1054
  %v1335 = vpack.c.b16 %v1057, %v1055
  %v1336 = vpack.c.b16 %v1060, %v1058
  %v1337 = vpack.c.b16 %v1061, %v1059
  %v1338 = vpack.c.b16 %v1064, %v1062
  %v1339 = vpack.c.b16 %v1065, %v1063
  %v1340 = vpack.c.b16 %v1068, %v1066
  %v1341 = vpack.c.b16 %v1069, %v1067
  %v1342 = vpack.c.b16 %v1072, %v1070
  %v1343 = vpack.c.b16 %v1073, %v1071
  %v1344 = vpack.c.b16 %v1076, %v1074
  %v1345 = vpack.c.b16 %v1077, %v1075
  %v1346 = vpack.c.b16 %v1080, %v1078
  %v1347 = vpack.c.b16 %v1081, %v1079
  %v1348 = vpack.c.b16 %v1084, %v1082
  %v1349 = vpack.c.b16 %v1085, %v1083
  %v1350 = vpack.c.b16 %v1088, %v1086
  %v1351 = vpack.c.b16 %v1089, %v1087
  %v1352 = vpack.c.b16 %v1092, %v1090
  %v1353 = vpack.c.b16 %v1093, %v1091
  %v1354 = vpack.c.b16 %v1096, %v1094
  %v1355 = vpack.c.b16 %v1097, %v1095
  %v1356 = vpack.c.b16 %v1100, %v1098
  %v1357 = vpack.c.b16 %v1101, %v1099
  %1614 = vmatprep.subr.bf16.mxu0 %v1103
  %1615 = vmatpush1.bf16.msra.mxu0 %v1102
  %1616 = vmatprep.subr.bf16.mxu0 %v1105
  %1617 = vmatpush1.bf16.msra.mxu0 %v1104
  %1618 = vmatprep.subr.bf16.mxu0 %v1107
  %1619 = vmatpush1.bf16.msra.mxu0 %v1106
  %1620 = vmatprep.subr.bf16.mxu0 %v1109
  %1621 = vmatpush1.bf16.msra.mxu0 %v1108
  %1622 = vmatprep.subr.bf16.mxu0 %v1111
  %1623 = vmatpush1.bf16.msra.mxu0 %v1110
  %1624 = vmatprep.subr.bf16.mxu0 %v1113
  %1625 = vmatpush1.bf16.msra.mxu0 %v1112
  %1626 = vmatprep.subr.bf16.mxu0 %v1115
  %1627 = vmatpush1.bf16.msra.mxu0 %v1114
  %1628 = vmatprep.subr.bf16.mxu0 %v1117
  %1629 = vmatpush1.bf16.msra.mxu0 %v1116
  %1630 = vmatprep.subr.bf16.mxu0 %v1119
  %1631 = vmatpush1.bf16.msra.mxu0 %v1118
  %1632 = vmatprep.subr.bf16.mxu0 %v1121
  %1633 = vmatpush1.bf16.msra.mxu0 %v1120
  %1634 = vmatprep.subr.bf16.mxu0 %v1123
  %1635 = vmatpush1.bf16.msra.mxu0 %v1122
  %1636 = vmatprep.subr.bf16.mxu0 %v1125
  %1637 = vmatpush1.bf16.msra.mxu0 %v1124
  %1638 = vmatprep.subr.bf16.mxu0 %v1127
  %1639 = vmatpush1.bf16.msra.mxu0 %v1126
  %1640 = vmatprep.subr.bf16.mxu0 %v1129
  %1641 = vmatpush1.bf16.msra.mxu0 %v1128
  %1642 = vmatprep.subr.bf16.mxu0 %v1131
  %1643 = vmatpush1.bf16.msra.mxu0 %v1130
  %1644 = vmatprep.subr.bf16.mxu0 %v1133
  %1645 = vmatpush1.bf16.msra.mxu0 %v1132
  %1646 = vmatprep.mubr.bf16.mxu0 %v303
  %1647 = vmatmul.mubr.bf16.gmra.mrb[0].mxu0 %v302
  %v1648 = vpop.f32.mrb[0].mxu0
  %v1649 = vadd.f32 0.0, %v1648
  %v1650 = vpop.f32.mrb[0].mxu0
  %v1651 = vadd.f32 0.0, %v1650
  %v1652 = vpop.f32.mrb[0].mxu0
  %v1653 = vpop.f32.mrb[0].mxu0
  %1654 = vdwg.mxu0
  %1655 = vmatprep.subr.bf16.mxu0 %v1135
  %1656 = vmatpush1.bf16.msra.mxu0 %v1134
  %1657 = vmatprep.subr.bf16.mxu0 %v1137
  %1658 = vmatpush1.bf16.msra.mxu0 %v1136
  %1659 = vmatprep.subr.bf16.mxu0 %v1139
  %1660 = vmatpush1.bf16.msra.mxu0 %v1138
  %1661 = vmatprep.subr.bf16.mxu0 %v1141
  %1662 = vmatpush1.bf16.msra.mxu0 %v1140
  %1663 = vmatprep.subr.bf16.mxu0 %v1143
  %1664 = vmatpush1.bf16.msra.mxu0 %v1142
  %1665 = vmatprep.subr.bf16.mxu0 %v1145
  %1666 = vmatpush1.bf16.msra.mxu0 %v1144
  %1667 = vmatprep.subr.bf16.mxu0 %v1147
  %1668 = vmatpush1.bf16.msra.mxu0 %v1146
  %1669 = vmatprep.subr.bf16.mxu0 %v1149
  %1670 = vmatpush1.bf16.msra.mxu0 %v1148
  %1671 = vmatprep.subr.bf16.mxu0 %v1151
  %1672 = vmatpush1.bf16.msra.mxu0 %v1150
  %1673 = vmatprep.subr.bf16.mxu0 %v1153
  %1674 = vmatpush1.bf16.msra.mxu0 %v1152
  %1675 = vmatprep.subr.bf16.mxu0 %v1155
  %1676 = vmatpush1.bf16.msra.mxu0 %v1154
  %1677 = vmatprep.subr.bf16.mxu0 %v1157
  %1678 = vmatpush1.bf16.msra.mxu0 %v1156
  %1679 = vmatprep.subr.bf16.mxu0 %v1159
  %1680 = vmatpush1.bf16.msra.mxu0 %v1158
  %1681 = vmatprep.subr.bf16.mxu0 %v1161
  %1682 = vmatpush1.bf16.msra.mxu0 %v1160
  %1683 = vmatprep.subr.bf16.mxu0 %v1163
  %1684 = vmatpush1.bf16.msra.mxu0 %v1162
  %1685 = vmatprep.subr.bf16.mxu0 %v1165
  %1686 = vmatpush1.bf16.msra.mxu0 %v1164
  %1687 = vmatprep.mubr.bf16.mxu0 %v305
  %1688 = vmatmul.mubr.bf16.gmra.mrb[0].mxu0 %v304
  %v1689 = vpop.f32.mrb[0].mxu0
  %v1690 = vadd.f32 %v1649, %v1689
  %v1691 = vpop.f32.mrb[0].mxu0
  %v1692 = vadd.f32 %v1651, %v1691
  %v1693 = vpop.f32.mrb[0].mxu0
  %v1694 = vpop.f32.mrb[0].mxu0
  %1695 = vdwg.mxu0
  %1696 = vmatprep.subr.bf16.mxu0 %v1167
  %1697 = vmatpush1.bf16.msra.mxu0 %v1166
  %1698 = vmatprep.subr.bf16.mxu0 %v1169
  %1699 = vmatpush1.bf16.msra.mxu0 %v1168
  %1700 = vmatprep.subr.bf16.mxu0 %v1171
  %1701 = vmatpush1.bf16.msra.mxu0 %v1170
  %1702 = vmatprep.subr.bf16.mxu0 %v1173
  %1703 = vmatpush1.bf16.msra.mxu0 %v1172
  %1704 = vmatprep.subr.bf16.mxu0 %v1175
  %1705 = vmatpush1.bf16.msra.mxu0 %v1174
  %1706 = vmatprep.subr.bf16.mxu0 %v1177
  %1707 = vmatpush1.bf16.msra.mxu0 %v1176
  %1708 = vmatprep.subr.bf16.mxu0 %v1179
  %1709 = vmatpush1.bf16.msra.mxu0 %v1178
  %1710 = vmatprep.subr.bf16.mxu0 %v1181
  %1711 = vmatpush1.bf16.msra.mxu0 %v1180
  %1712 = vmatprep.subr.bf16.mxu0 %v1183
  %1713 = vmatpush1.bf16.msra.mxu0 %v1182
  %1714 = vmatprep.subr.bf16.mxu0 %v1185
  %1715 = vmatpush1.bf16.msra.mxu0 %v1184
  %1716 = vmatprep.subr.bf16.mxu0 %v1187
  %1717 = vmatpush1.bf16.msra.mxu0 %v1186
  %1718 = vmatprep.subr.bf16.mxu0 %v1189
  %1719 = vmatpush1.bf16.msra.mxu0 %v1188
  %1720 = vmatprep.subr.bf16.mxu0 %v1191
  %1721 = vmatpush1.bf16.msra.mxu0 %v1190
  %1722 = vmatprep.subr.bf16.mxu0 %v1193
  %1723 = vmatpush1.bf16.msra.mxu0 %v1192
  %1724 = vmatprep.subr.bf16.mxu0 %v1195
  %1725 = vmatpush1.bf16.msra.mxu0 %v1194
  %1726 = vmatprep.subr.bf16.mxu0 %v1197
  %1727 = vmatpush1.bf16.msra.mxu0 %v1196
  %1728 = vmatprep.mubr.bf16.mxu0 %v307
  %1729 = vmatmul.mubr.bf16.gmra.mrb[0].mxu0 %v306
  %v1730 = vpop.f32.mrb[0].mxu0
  %v1731 = vadd.f32 %v1690, %v1730
  %v1732 = vpop.f32.mrb[0].mxu0
  %v1733 = vadd.f32 %v1692, %v1732
  %v1734 = vpop.f32.mrb[0].mxu0
  %v1735 = vpop.f32.mrb[0].mxu0
  %1736 = vdwg.mxu0
  %1737 = vmatprep.subr.bf16.mxu0 %v1199
  %1738 = vmatpush1.bf16.msra.mxu0 %v1198
  %1739 = vmatprep.subr.bf16.mxu0 %v1201
  %1740 = vmatpush1.bf16.msra.mxu0 %v1200
  %1741 = vmatprep.subr.bf16.mxu0 %v1203
  %1742 = vmatpush1.bf16.msra.mxu0 %v1202
  %1743 = vmatprep.subr.bf16.mxu0 %v1205
  %1744 = vmatpush1.bf16.msra.mxu0 %v1204
  %1745 = vmatprep.subr.bf16.mxu0 %v1207
  %1746 = vmatpush1.bf16.msra.mxu0 %v1206
  %1747 = vmatprep.subr.bf16.mxu0 %v1209
  %1748 = vmatpush1.bf16.msra.mxu0 %v1208
  %1749 = vmatprep.subr.bf16.mxu0 %v1211
  %1750 = vmatpush1.bf16.msra.mxu0 %v1210
  %1751 = vmatprep.subr.bf16.mxu0 %v1213
  %1752 = vmatpush1.bf16.msra.mxu0 %v1212
  %1753 = vmatprep.subr.bf16.mxu0 %v1215
  %1754 = vmatpush1.bf16.msra.mxu0 %v1214
  %1755 = vmatprep.subr.bf16.mxu0 %v1217
  %1756 = vmatpush1.bf16.msra.mxu0 %v1216
  %1757 = vmatprep.subr.bf16.mxu0 %v1219
  %1758 = vmatpush1.bf16.msra.mxu0 %v1218
  %1759 = vmatprep.subr.bf16.mxu0 %v1221
  %1760 = vmatpush1.bf16.msra.mxu0 %v1220
  %1761 = vmatprep.subr.bf16.mxu0 %v1223
  %1762 = vmatpush1.bf16.msra.mxu0 %v1222
  %1763 = vmatprep.subr.bf16.mxu0 %v1225
  %1764 = vmatpush1.bf16.msra.mxu0 %v1224
  %1765 = vmatprep.subr.bf16.mxu0 %v1227
  %1766 = vmatpush1.bf16.msra.mxu0 %v1226
  %1767 = vmatprep.subr.bf16.mxu0 %v1229
  %1768 = vmatpush1.bf16.msra.mxu0 %v1228
  %1769 = vmatprep.mubr.bf16.mxu0 %v309
  %1770 = vmatmul.mubr.bf16.gmra.mrb[0].mxu0 %v308
  %v1771 = vpop.f32.mrb[0].mxu0
  %v1772 = vadd.f32 %v1731, %v1771
  %v1773 = vpop.f32.mrb[0].mxu0
  %v1774 = vadd.f32 %v1733, %v1773
  %v1775 = vpop.f32.mrb[0].mxu0
  %v1776 = vpop.f32.mrb[0].mxu0
  %1777 = vdwg.mxu0
  %1778 = vmatprep.subr.bf16.mxu0 %v1231
  %1779 = vmatpush1.bf16.msra.mxu0 %v1230
  %1780 = vmatprep.subr.bf16.mxu0 %v1233
  %1781 = vmatpush1.bf16.msra.mxu0 %v1232
  %1782 = vmatprep.subr.bf16.mxu0 %v1235
  %1783 = vmatpush1.bf16.msra.mxu0 %v1234
  %1784 = vmatprep.subr.bf16.mxu0 %v1237
  %1785 = vmatpush1.bf16.msra.mxu0 %v1236
  %1786 = vmatprep.subr.bf16.mxu0 %v1239
  %1787 = vmatpush1.bf16.msra.mxu0 %v1238
  %1788 = vmatprep.subr.bf16.mxu0 %v1241
  %1789 = vmatpush1.bf16.msra.mxu0 %v1240
  %1790 = vmatprep.subr.bf16.mxu0 %v1243
  %1791 = vmatpush1.bf16.msra.mxu0 %v1242
  %1792 = vmatprep.subr.bf16.mxu0 %v1245
  %1793 = vmatpush1.bf16.msra.mxu0 %v1244
  %1794 = vmatprep.subr.bf16.mxu0 %v1247
  %1795 = vmatpush1.bf16.msra.mxu0 %v1246
  %1796 = vmatprep.subr.bf16.mxu0 %v1249
  %1797 = vmatpush1.bf16.msra.mxu0 %v1248
  %1798 = vmatprep.subr.bf16.mxu0 %v1251
  %1799 = vmatpush1.bf16.msra.mxu0 %v1250
  %1800 = vmatprep.subr.bf16.mxu0 %v1253
  %1801 = vmatpush1.bf16.msra.mxu0 %v1252
  %1802 = vmatprep.subr.bf16.mxu0 %v1255
  %1803 = vmatpush1.bf16.msra.mxu0 %v1254
  %1804 = vmatprep.subr.bf16.mxu0 %v1257
  %1805 = vmatpush1.bf16.msra.mxu0 %v1256
  %1806 = vmatprep.subr.bf16.mxu0 %v1259
  %1807 = vmatpush1.bf16.msra.mxu0 %v1258
  %1808 = vmatprep.subr.bf16.mxu0 %v1261
  %1809 = vmatpush1.bf16.msra.mxu0 %v1260
  %1810 = vmatprep.mubr.bf16.mxu0 %v311
  %1811 = vmatmul.mubr.bf16.gmra.mrb[0].mxu0 %v310
  %v1812 = vpop.f32.mrb[0].mxu0
  %v1813 = vadd.f32 %v1772, %v1812
  %v1814 = vpop.f32.mrb[0].mxu0
  %v1815 = vadd.f32 %v1774, %v1814
  %v1816 = vpop.f32.mrb[0].mxu0
  %v1817 = vpop.f32.mrb[0].mxu0
  %1818 = vdwg.mxu0
  %1819 = vmatprep.subr.bf16.mxu0 %v1263
  %1820 = vmatpush1.bf16.msra.mxu0 %v1262
  %1821 = vmatprep.subr.bf16.mxu0 %v1265
  %1822 = vmatpush1.bf16.msra.mxu0 %v1264
  %1823 = vmatprep.subr.bf16.mxu0 %v1267
  %1824 = vmatpush1.bf16.msra.mxu0 %v1266
  %1825 = vmatprep.subr.bf16.mxu0 %v1269
  %1826 = vmatpush1.bf16.msra.mxu0 %v1268
  %1827 = vmatprep.subr.bf16.mxu0 %v1271
  %1828 = vmatpush1.bf16.msra.mxu0 %v1270
  %1829 = vmatprep.subr.bf16.mxu0 %v1273
  %1830 = vmatpush1.bf16.msra.mxu0 %v1272
  %1831 = vmatprep.subr.bf16.mxu0 %v1275
  %1832 = vmatpush1.bf16.msra.mxu0 %v1274
  %1833 = vmatprep.subr.bf16.mxu0 %v1277
  %1834 = vmatpush1.bf16.msra.mxu0 %v1276
  %1835 = vmatprep.subr.bf16.mxu0 %v1279
  %1836 = vmatpush1.bf16.msra.mxu0 %v1278
  %1837 = vmatprep.subr.bf16.mxu0 %v1281
  %1838 = vmatpush1.bf16.msra.mxu0 %v1280
  %1839 = vmatprep.subr.bf16.mxu0 %v1283
  %1840 = vmatpush1.bf16.msra.mxu0 %v1282
  %1841 = vmatprep.subr.bf16.mxu0 %v1285
  %1842 = vmatpush1.bf16.msra.mxu0 %v1284
  %1843 = vmatprep.subr.bf16.mxu0 %v1287
  %1844 = vmatpush1.bf16.msra.mxu0 %v1286
  %1845 = vmatprep.subr.bf16.mxu0 %v1289
  %1846 = vmatpush1.bf16.msra.mxu0 %v1288
  %1847 = vmatprep.subr.bf16.mxu0 %v1291
  %1848 = vmatpush1.bf16.msra.mxu0 %v1290
  %1849 = vmatprep.subr.bf16.mxu0 %v1293
  %1850 = vmatpush1.bf16.msra.mxu0 %v1292
  %1851 = vmatprep.mubr.bf16.mxu0 %v313
  %1852 = vmatmul.mubr.bf16.gmra.mrb[0].mxu0 %v312
  %v1853 = vpop.f32.mrb[0].mxu0
  %v1854 = vadd.f32 %v1813, %v1853
  %v1855 = vpop.f32.mrb[0].mxu0
  %v1856 = vadd.f32 %v1815, %v1855
  %v1857 = vpop.f32.mrb[0].mxu0
  %v1858 = vpop.f32.mrb[0].mxu0
  %1859 = vdwg.mxu0
  %1860 = vmatprep.subr.bf16.mxu0 %v1295
  %1861 = vmatpush1.bf16.msra.mxu0 %v1294
  %1862 = vmatprep.subr.bf16.mxu0 %v1297
  %1863 = vmatpush1.bf16.msra.mxu0 %v1296
  %1864 = vmatprep.subr.bf16.mxu0 %v1299
  %1865 = vmatpush1.bf16.msra.mxu0 %v1298
  %1866 = vmatprep.subr.bf16.mxu0 %v1301
  %1867 = vmatpush1.bf16.msra.mxu0 %v1300
  %1868 = vmatprep.subr.bf16.mxu0 %v1303
  %1869 = vmatpush1.bf16.msra.mxu0 %v1302
  %1870 = vmatprep.subr.bf16.mxu0 %v1305
  %1871 = vmatpush1.bf16.msra.mxu0 %v1304
  %1872 = vmatprep.subr.bf16.mxu0 %v1307
  %1873 = vmatpush1.bf16.msra.mxu0 %v1306
  %1874 = vmatprep.subr.bf16.mxu0 %v1309
  %1875 = vmatpush1.bf16.msra.mxu0 %v1308
  %1876 = vmatprep.subr.bf16.mxu0 %v1311
  %1877 = vmatpush1.bf16.msra.mxu0 %v1310
  %1878 = vmatprep.subr.bf16.mxu0 %v1313
  %1879 = vmatpush1.bf16.msra.mxu0 %v1312
  %1880 = vmatprep.subr.bf16.mxu0 %v1315
  %1881 = vmatpush1.bf16.msra.mxu0 %v1314
  %1882 = vmatprep.subr.bf16.mxu0 %v1317
  %1883 = vmatpush1.bf16.msra.mxu0 %v1316
  %1884 = vmatprep.subr.bf16.mxu0 %v1319
  %1885 = vmatpush1.bf16.msra.mxu0 %v1318
  %1886 = vmatprep.subr.bf16.mxu0 %v1321
  %1887 = vmatpush1.bf16.msra.mxu0 %v1320
  %1888 = vmatprep.subr.bf16.mxu0 %v1323
  %1889 = vmatpush1.bf16.msra.mxu0 %v1322
  %1890 = vmatprep.subr.bf16.mxu0 %v1325
  %1891 = vmatpush1.bf16.msra.mxu0 %v1324
  %1892 = vmatprep.mubr.bf16.mxu0 %v315
  %1893 = vmatmul.mubr.bf16.gmra.mrb[0].mxu0 %v314
  %v1894 = vpop.f32.mrb[0].mxu0
  %v1895 = vadd.f32 %v1854, %v1894
  %v1896 = vpop.f32.mrb[0].mxu0
  %v1897 = vadd.f32 %v1856, %v1896
  %v1898 = vpop.f32.mrb[0].mxu0
  %v1899 = vpop.f32.mrb[0].mxu0
  %1900 = vdwg.mxu0
  %1901 = vmatprep.subr.bf16.mxu0 %v1327
  %1902 = vmatpush1.bf16.msra.mxu0 %v1326
  %1903 = vmatprep.subr.bf16.mxu0 %v1329
  %1904 = vmatpush1.bf16.msra.mxu0 %v1328
  %1905 = vmatprep.subr.bf16.mxu0 %v1331
  %1906 = vmatpush1.bf16.msra.mxu0 %v1330
  %1907 = vmatprep.subr.bf16.mxu0 %v1333
  %1908 = vmatpush1.bf16.msra.mxu0 %v1332
  %1909 = vmatprep.subr.bf16.mxu0 %v1335
  %1910 = vmatpush1.bf16.msra.mxu0 %v1334
  %1911 = vmatprep.subr.bf16.mxu0 %v1337
  %1912 = vmatpush1.bf16.msra.mxu0 %v1336
  %1913 = vmatprep.subr.bf16.mxu0 %v1339
  %1914 = vmatpush1.bf16.msra.mxu0 %v1338
  %1915 = vmatprep.subr.bf16.mxu0 %v1341
  %1916 = vmatpush1.bf16.msra.mxu0 %v1340
  %1917 = vmatprep.subr.bf16.mxu0 %v1343
  %1918 = vmatpush1.bf16.msra.mxu0 %v1342
  %1919 = vmatprep.subr.bf16.mxu0 %v1345
  %1920 = vmatpush1.bf16.msra.mxu0 %v1344
  %1921 = vmatprep.subr.bf16.mxu0 %v1347
  %1922 = vmatpush1.bf16.msra.mxu0 %v1346
  %1923 = vmatprep.subr.bf16.mxu0 %v1349
  %1924 = vmatpush1.bf16.msra.mxu0 %v1348
  %1925 = vmatprep.subr.bf16.mxu0 %v1351
  %1926 = vmatpush1.bf16.msra.mxu0 %v1350
  %1927 = vmatprep.subr.bf16.mxu0 %v1353
  %1928 = vmatpush1.bf16.msra.mxu0 %v1352
  %1929 = vmatprep.subr.bf16.mxu0 %v1355
  %1930 = vmatpush1.bf16.msra.mxu0 %v1354
  %1931 = vmatprep.subr.bf16.mxu0 %v1357
  %1932 = vmatpush1.bf16.msra.mxu0 %v1356
  %1933 = vmatprep.mubr.bf16.mxu0 %v317
  %1934 = vmatmul.mubr.bf16.gmra.mrb[0].mxu0 %v316
  %v1935 = vpop.f32.mrb[0].mxu0
  %v1936 = vadd.f32 %v1895, %v1935
  %v1937 = vpop.f32.mrb[0].mxu0
  %v1938 = vadd.f32 %v1897, %v1937
  %v1939 = vpop.f32.mrb[0].mxu0
  %v1940 = vpop.f32.mrb[0].mxu0
  %1941 = vdwg.mxu0
  %s1942 = smul.u32 0, 8
  %s1943 = sshra.s32 %s1942, 3
  %s1944 = sand.u32 %s1942, 7
  %s1945 = smul.u32 %s1943, 2
  %s1946 = smul.addr %s1945, 8
  %s1947 = scalar_lea.vmem %s3, %s1946
  %1948 = vst [vmem:[%s1947] sm:$0xff] %v1936
  %1949 = vst [vmem:[%s1947 + $0x8] sm:$0xff] %v1938
  %p1950 = scmp.eq.s32.totalorder 0, 0
  // Predicated region
  $region14: #{generator_forward.8} parent=0 // pred_check
    %p1951 = pneg %p1950
  $region15: #{generator_forward.8} parent=0 // pred_check_branch
    %1953 = sbr.rel (%p1951) target = $region17
  $region16: #{generator_forward.8} parent=0 // pred_region
    %v1954 = vld [vmem:[%s3] sm:$0xff]
    %v1955 = vld [vmem:[%s3 + $0x8] sm:$0xff]
    %v1956 = vrot.slane %v1954, 4
    %v1957 = vadd.f32 %v1954, %v1956
    %v1958 = vrot.slane %v1957, 2
    %v1959 = vadd.f32 %v1957, %v1958
    %v1960 = vrot.slane %v1959, 1
    %v1961 = vadd.f32 %v1959, %v1960
    %v1962 = vrot.slane %v1955, 4
    %v1963 = vadd.f32 %v1955, %v1962
    %v1964 = vrot.slane %v1963, 2
    %v1965 = vadd.f32 %v1963, %v1964
    %v1966 = vrot.slane %v1965, 1
    %v1967 = vadd.f32 %v1965, %v1966
    %v1968 = vmul.f32 %v1961, 0.125
    %v1969 = vmul.f32 %v1967, 0.125
    %v1970 = vsub.f32 %v1954, %v1968
    %v1971 = vsub.f32 %v1955, %v1969
    %v1972 = vmul.f32 %v1970, %v1970
    %v1973 = vmul.f32 %v1971, %v1971
    %v1974 = vrot.slane %v1972, 4
    %v1975 = vadd.f32 %v1972, %v1974
    %v1976 = vrot.slane %v1975, 2
    %v1977 = vadd.f32 %v1975, %v1976
    %v1978 = vrot.slane %v1977, 1
    %v1979 = vadd.f32 %v1977, %v1978
    %v1980 = vrot.slane %v1973, 4
    %v1981 = vadd.f32 %v1973, %v1980
    %v1982 = vrot.slane %v1981, 2
    %v1983 = vadd.f32 %v1981, %v1982
    %v1984 = vrot.slane %v1983, 1
    %v1985 = vadd.f32 %v1983, %v1984
    %v1986 = vmul.f32 %v1979, 0.125
    %v1987 = vmul.f32 %v1985, 0.125
    %v1988 = vadd.f32 %v1986, 1e-05
    %v1989 = vadd.f32 %v1987, 1e-05
    %v1990 = vrsqrt.pop %v1988
    %v1991 = vrsqrt.pop %v1989
    %v1992 = vmul.f32 %v1970, %v1990
    %v1993 = vmul.f32 %v1971, %v1991
    %s1994 = scalar_lea.vmem %s2, 1
    %v1995 = vld [vmem:[%s1994] ss:$8 sm:$0x3]
    %s1996 = scalar_lea.vmem %s2, 2
    %v1997 = vld [vmem:[%s1996] ss:$8 sm:$0x3]
    %v1999 = vlaneseq
    %v2000 = vshrl.u32 %v1999, 7
    %v2001 = vsub.s32 0, %v2000
    %v2002 = vrot.slane %v1995, %v2001
    %v2003 = vlaneseq
    %v2004 = vshrl.u32 %v2003, 7
    %v2005 = vsub.s32 1, %v2004
    %v2006 = vrot.slane %v1995, %v2005
    %v2009 = vmul.f32 %v1992, %v2002
    %v2010 = vmul.f32 %v1993, %v2006
    %v2012 = vlaneseq
    %v2013 = vshrl.u32 %v2012, 7
    %v2014 = vsub.s32 0, %v2013
    %v2015 = vrot.slane %v1997, %v2014
    %v2016 = vlaneseq
    %v2017 = vshrl.u32 %v2016, 7
    %v2018 = vsub.s32 1, %v2017
    %v2019 = vrot.slane %v1997, %v2018
    %v2022 = vadd.f32 %v2009, %v2015
    %v2023 = vadd.f32 %v2010, %v2019
    %v2024 = vmax.f32 %v2022, 0.0
    %v2025 = vmax.f32 %v2023, 0.0
    %2026 = vst [vmem:[%s3] sm:$0xff] %v2024
    %2027 = vst [vmem:[%s3 + $0x8] sm:$0xff] %v2025
  $region17: #{generator_forward.8} parent=0 // pred_fallthru
    _
  // Predicated region
  $region18: #{generator_forward.8} parent=0 // pred_check
    _
  $region19: #{generator_forward.8} parent=0 // pred_check_branch
    %2029 = sbr.rel (0) target = $region21
  $region20: #{generator_forward.8} parent=0 // pred_region
    _
  $region21: #{generator_forward.8} parent=0 // pred_fallthru
    _
  // Predicated region
  $region22: #{generator_forward.8} parent=0 // pred_check
    _
  $region23: #{generator_forward.8} parent=0 // pred_check_branch
    %2031 = sbr.rel (0) target = $region25
  $region24: #{generator_forward.8} parent=0 // pred_region
    _
  $region25: #{generator_forward.8} parent=0 // pred_fallthru
    _

// kernel: generator_forward.9
$region0: #{generator_forward.9}
  #allocation0 [shape = 'u32[]', space=smem, size = 0x4, offset = 0x4, fixed_abs, tag = 'smem constant byte address 0x4 - core index']
  #allocation1 [shape = 'u32[144,128]{1,0:T(1,128)}', space=vmem, size = 0x12000, scoped, tag = 'internal scratch']
  %s0 = inlined_call_operand.vmem [shape: bf16[8,2304], index: 0, kind: input, shape index: {}]
  %s1 = inlined_call_operand.vmem [shape: bf16[4,2304,128], index: 1, kind: input, shape index: {}]
  %s2 = inlined_call_operand.vmem [shape: f32[8,128], index: 2, kind: input, shape index: {}]
  %s3 = inlined_call_operand.vmem [shape: f32[32,128], index: 3, kind: output, shape index: {}]
  %s4 = sld [smem:[#allocation0]]
  $region49: #{generator_forward.9} parent=0
    _
  %s6 = ssub.s32 1, %s4
  %s7 = scalar_select 0, %s6, %s4
  loop: start=0, step=1, limit=6
  $region2: #{generator_forward.9} parent=0 // loop_pre_header
    _
  $region3: #{generator_forward.9} parent=0 // loop_header
    %s9 = sphi 0, %s13
    %p10 = scmp.ge.s32.totalorder %s9, 6
    %s17 = sphi 0, %s17
    %s19 = sphi 0, %s17
    %s20 = sphi 0, %s19
    %s34 = sphi 0, %s20
    %s40 = sphi 0, %s42
    %s43 = sphi 0, %s40
    %s44 = sphi 0, %s43
    %s60 = sphi 0, %s44
    %s64 = sphi 0, %s64
    %s66 = sphi 0, %s64
    %s67 = sphi 0, %s66
    %s81 = sphi 0, %s67
    %s85 = sphi 0, %s85
    %s87 = sphi 0, %s85
    %s88 = sphi 0, %s87
    %s102 = sphi 0, %s88
  $region4: #{generator_forward.9} parent=0 // loop_header_branch
    %12 = sbr.rel (%p10) target = $region8
  $region5: #{generator_forward.9} parent=0 // loop_body
    %s14 = ssub.s32 %s9, 1
    %s15 = ssub.s32 %s9, 2
    %s16 = sadd.s32 %s9, 1
    %s18 = sadd.s32 %s17, 1
    %p21 = scmp.eq.s32.totalorder %s9, 3
    %p22 = scmp.ne.s32.totalorder %s17, %s19
    %p23 = scmp.eq.s32.totalorder %s9, 0
    %p24 = por %p22, %p23
    %p25 = scmp.ne.s32.totalorder %s17, %s19
    %p26 = scmp.eq.s32.totalorder %s14, 3
    %p27 = por %p25, %p26
    %p28 = scmp.ne.s32.totalorder %s19, %s20
    %p29 = scmp.eq.s32.totalorder %s14, 0
    %p30 = por %p28, %p29
    %p31 = scmp.ne.s32.totalorder %s19, %s20
    %p32 = scmp.eq.s32.totalorder %s15, 3
    %p33 = por %p31, %p32
    %p35 = scmp.ne.s32.totalorder %s20, %s34
    %p36 = scmp.eq.s32.totalorder %s15, 0
    %p37 = por %p35, %p36
    %s38 = ssub.s32 %s9, %s16
    %p39 = scmp.eq.s32.totalorder %s38, 0
    %s41 = sadd.s32 %s40, 1
    %s42 = scalar_select %p39, %s40, %s41
    %p45 = pneg %p39
    %p46 = scmp.eq.s32.totalorder %s9, 3
    %p47 = por %p45, %p46
    %p48 = scmp.ne.s32.totalorder %s40, %s43
    %p49 = scmp.eq.s32.totalorder %s9, 0
    %p50 = por %p48, %p49
    %p51 = scmp.ne.s32.totalorder %s40, %s43
    %p52 = scmp.eq.s32.totalorder %s14, 3
    %p53 = por %p51, %p52
    %p54 = scmp.ne.s32.totalorder %s43, %s44
    %p55 = scmp.eq.s32.totalorder %s14, 0
    %p56 = por %p54, %p55
    %p57 = scmp.ne.s32.totalorder %s43, %s44
    %p58 = scmp.eq.s32.totalorder %s15, 3
    %p59 = por %p57, %p58
    %p61 = scmp.ne.s32.totalorder %s44, %s60
    %p62 = scmp.eq.s32.totalorder %s15, 0
    %p63 = por %p61, %p62
    %s65 = sadd.s32 %s64, 1
    %p68 = scmp.eq.s32.totalorder %s9, 3
    %p69 = scmp.ne.s32.totalorder %s64, %s66
    %p70 = scmp.eq.s32.totalorder %s9, 0
    %p71 = por %p69, %p70
    %p72 = scmp.ne.s32.totalorder %s64, %s66
    %p73 = scmp.eq.s32.totalorder %s14, 3
    %p74 = por %p72, %p73
    %p75 = scmp.ne.s32.totalorder %s66, %s67
    %p76 = scmp.eq.s32.totalorder %s14, 0
    %p77 = por %p75, %p76
    %p78 = scmp.ne.s32.totalorder %s66, %s67
    %p79 = scmp.eq.s32.totalorder %s15, 3
    %p80 = por %p78, %p79
    %p82 = scmp.ne.s32.totalorder %s67, %s81
    %p83 = scmp.eq.s32.totalorder %s15, 0
    %p84 = por %p82, %p83
    %s86 = sadd.s32 %s85, 1
    %p89 = scmp.eq.s32.totalorder %s9, 3
    %p90 = scmp.ne.s32.totalorder %s85, %s87
    %p91 = scmp.eq.s32.totalorder %s9, 0
    %p92 = por %p90, %p91
    %p93 = scmp.ne.s32.totalorder %s85, %s87
    %p94 = scmp.eq.s32.totalorder %s14, 3
    %p95 = por %p93, %p94
    %p96 = scmp.ne.s32.totalorder %s87, %s88
    %p97 = scmp.eq.s32.totalorder %s14, 0
    %p98 = por %p96, %p97
    %p99 = scmp.ne.s32.totalorder %s87, %s88
    %p100 = scmp.eq.s32.totalorder %s15, 3
    %p101 = por %p99, %p100
    %p103 = scmp.ne.s32.totalorder %s88, %s102
    %p104 = scmp.eq.s32.totalorder %s15, 0
    %p105 = por %p103, %p104
    %p106 = scmp.le.s32.totalorder 1, %s9
    %p107 = scmp.lt.s32.totalorder %s9, 5
    %p108 = pnand %p106, %p107
    %p109 = pneg %p108
    // Predicated region
    $region9: #{generator_forward.9} parent=5 // pred_check
      _
    $region10: #{generator_forward.9} parent=5 // pred_check_branch
      %111 = sbr.rel (%p108) target = $region12
    $region11: #{generator_forward.9} parent=5 // pred_region
      %s112 = ssub.s32 %s9, 1
      // Predicated region
      $region13: #{generator_forward.9} parent=11 // pred_check
        %p113 = pneg %p30
      $region14: #{generator_forward.9} parent=11 // pred_check_branch
        %115 = sbr.rel (%p113) target = $region16
      $region15: #{generator_forward.9} parent=11 // pred_region
        _
      $region16: #{generator_forward.9} parent=11 // pred_fallthru
        _
      // Predicated region
      $region17: #{generator_forward.9} parent=11 // pred_check
        %p116 = pneg %p77
      $region18: #{generator_forward.9} parent=11 // pred_check_branch
        %118 = sbr.rel (%p116) target = $region20
      $region19: #{generator_forward.9} parent=11 // pred_region
        _
      $region20: #{generator_forward.9} parent=11 // pred_fallthru
        _
    $region12: #{generator_forward.9} parent=5 // pred_fallthru
      _
    %p119 = scmp.lt.s32.totalorder %s9, 4
    // Predicated region
    $region21: #{generator_forward.9} parent=5 // pred_check
      %p120 = pneg %p119
    $region22: #{generator_forward.9} parent=5 // pred_check_branch
      %122 = sbr.rel (%p120) target = $region24
    $region23: #{generator_forward.9} parent=5 // pred_region
      // Predicated region
      $region25: #{generator_forward.9} parent=23 // pred_check
        %p123 = pneg %p50
      $region26: #{generator_forward.9} parent=23 // pred_check_branch
        %125 = sbr.rel (%p123) target = $region28
      $region27: #{generator_forward.9} parent=23 // pred_region
        %p126 = scmp.lt.s32.totalorder %s9, 3
        %s127 = scalar_select %p126, %s9, 3
        %s128 = smul.addr %s127, 288
        %s129 = smul.addr %s128, 4
        %s130 = scalar_lea.vmem %s1, %s129
      $region28: #{generator_forward.9} parent=23 // pred_fallthru
        _
    $region24: #{generator_forward.9} parent=5 // pred_fallthru
      _
    %p131 = scmp.le.s32.totalorder 1, %s9
    %p132 = scmp.lt.s32.totalorder %s9, 5
    %p133 = pnand %p131, %p132
    %p134 = pneg %p133
    // Predicated region
    $region29: #{generator_forward.9} parent=5 // pred_check
      _
    $region30: #{generator_forward.9} parent=5 // pred_check_branch
      %136 = sbr.rel (%p133) target = $region32
    $region31: #{generator_forward.9} parent=5 // pred_region
      %s137 = ssub.s32 %s9, 1
      %p138 = pneg %p30
      %p139 = pneg %p27
      %p140 = scmp.lt.s32.totalorder %s14, 3
      %s141 = scalar_select %p140, %s14, 3
      %s142 = smul.addr %s141, 288
      %s143 = smul.addr %s142, 4
      %s144 = scalar_lea.vmem %s1, %s143
      %p145 = pneg %p56
      %p146 = pneg %p53
      %p147 = pneg %p77
      %p148 = pneg %p74
      %p149 = pneg %p98
      %p150 = pneg %p95
      %p151 = scmp.lt.s32.totalorder %s14, 3
      %s152 = scalar_select %p151, %s14, 3
      %s153 = smul.addr %s152, 288
      %s154 = smul.addr %s153, 4
      %s155 = scalar_lea.vmem %s1, %s154
      %v157 = vld [vmem:[%s0] sm:$0xff]
      %v158 = vld [vmem:[%s0 + $0x8] sm:$0xff]
      %v159 = vld [vmem:[%s0 + $0x10] sm:$0xff]
      %v160 = vld [vmem:[%s0 + $0x18] sm:$0xff]
      %v161 = vld [vmem:[%s0 + $0x20] sm:$0xff]
      %v162 = vld [vmem:[%s0 + $0x28] sm:$0xff]
      %v163 = vld [vmem:[%s0 + $0x30] sm:$0xff]
      %v164 = vld [vmem:[%s0 + $0x38] sm:$0xff]
      %v165 = vld [vmem:[%s0 + $0x40] sm:$0xff]
      %v166 = vld [vmem:[%s155] sm:$0xf]
      %v167 = vld [vmem:[%s155 + $0x4] sm:$0xf]
      %v168 = vld [vmem:[%s155 + $0x8] sm:$0xf]
      %v169 = vld [vmem:[%s155 + $0xc] sm:$0xf]
      %v170 = vld [vmem:[%s155 + $0x10] sm:$0xf]
      %v171 = vld [vmem:[%s155 + $0x14] sm:$0xf]
      %v172 = vld [vmem:[%s155 + $0x18] sm:$0xf]
      %v173 = vld [vmem:[%s155 + $0x1c] sm:$0xf]
      %v174 = vld [vmem:[%s155 + $0x20] sm:$0xf]
      %v175 = vld [vmem:[%s155 + $0x24] sm:$0xf]
      %v176 = vld [vmem:[%s155 + $0x28] sm:$0xf]
      %v177 = vld [vmem:[%s155 + $0x2c] sm:$0xf]
      %v178 = vld [vmem:[%s155 + $0x30] sm:$0xf]
      %v179 = vld [vmem:[%s155 + $0x34] sm:$0xf]
      %v180 = vld [vmem:[%s155 + $0x38] sm:$0xf]
      %v181 = vld [vmem:[%s155 + $0x3c] sm:$0xf]
      %v182 = vld [vmem:[%s155 + $0x40] sm:$0xf]
      %v183 = vld [vmem:[%s155 + $0x44] sm:$0xf]
      %v184 = vld [vmem:[%s155 + $0x48] sm:$0xf]
      %v185 = vld [vmem:[%s155 + $0x4c] sm:$0xf]
      %v186 = vld [vmem:[%s155 + $0x50] sm:$0xf]
      %v187 = vld [vmem:[%s155 + $0x54] sm:$0xf]
      %v188 = vld [vmem:[%s155 + $0x58] sm:$0xf]
      %v189 = vld [vmem:[%s155 + $0x5c] sm:$0xf]
      %v190 = vld [vmem:[%s155 + $0x60] sm:$0xf]
      %v191 = vld [vmem:[%s155 + $0x64] sm:$0xf]
      %v192 = vld [vmem:[%s155 + $0x68] sm:$0xf]
      %v193 = vld [vmem:[%s155 + $0x6c] sm:$0xf]
      %v194 = vld [vmem:[%s155 + $0x70] sm:$0xf]
      %v195 = vld [vmem:[%s155 + $0x74] sm:$0xf]
      %v196 = vld [vmem:[%s155 + $0x78] sm:$0xf]
      %v197 = vld [vmem:[%s155 + $0x7c] sm:$0xf]
      %v198 = vld [vmem:[%s155 + $0x80] sm:$0xf]
      %v199 = vld [vmem:[%s155 + $0x84] sm:$0xf]
      %v200 = vld [vmem:[%s155 + $0x88] sm:$0xf]
      %v201 = vld [vmem:[%s155 + $0x8c] sm:$0xf]
      %v202 = vld [vmem:[%s155 + $0x90] sm:$0xf]
      %v203 = vld [vmem:[%s155 + $0x94] sm:$0xf]
      %v204 = vld [vmem:[%s155 + $0x98] sm:$0xf]
      %v205 = vld [vmem:[%s155 + $0x9c] sm:$0xf]
      %v206 = vld [vmem:[%s155 + $0xa0] sm:$0xf]
      %v207 = vld [vmem:[%s155 + $0xa4] sm:$0xf]
      %v208 = vld [vmem:[%s155 + $0xa8] sm:$0xf]
      %v209 = vld [vmem:[%s155 + $0xac] sm:$0xf]
      %v210 = vld [vmem:[%s155 + $0xb0] sm:$0xf]
      %v211 = vld [vmem:[%s155 + $0xb4] sm:$0xf]
      %v212 = vld [vmem:[%s155 + $0xb8] sm:$0xf]
      %v213 = vld [vmem:[%s155 + $0xbc] sm:$0xf]
      %v214 = vld [vmem:[%s155 + $0xc0] sm:$0xf]
      %v215 = vld [vmem:[%s155 + $0xc4] sm:$0xf]
      %v216 = vld [vmem:[%s155 + $0xc8] sm:$0xf]
      %v217 = vld [vmem:[%s155 + $0xcc] sm:$0xf]
      %v218 = vld [vmem:[%s155 + $0xd0] sm:$0xf]
      %v219 = vld [vmem:[%s155 + $0xd4] sm:$0xf]
      %v220 = vld [vmem:[%s155 + $0xd8] sm:$0xf]
      %v221 = vld [vmem:[%s155 + $0xdc] sm:$0xf]
      %v222 = vld [vmem:[%s155 + $0xe0] sm:$0xf]
      %v223 = vld [vmem:[%s155 + $0xe4] sm:$0xf]
      %v224 = vld [vmem:[%s155 + $0xe8] sm:$0xf]
      %v225 = vld [vmem:[%s155 + $0xec] sm:$0xf]
      %v226 = vld [vmem:[%s155 + $0xf0] sm:$0xf]
      %v227 = vld [vmem:[%s155 + $0xf4] sm:$0xf]
      %v228 = vld [vmem:[%s155 + $0xf8] sm:$0xf]
      %v229 = vld [vmem:[%s155 + $0xfc] sm:$0xf]
      %v230 = vld [vmem:[%s155 + $0x100] sm:$0xf]
      %v231 = vld [vmem:[%s155 + $0x104] sm:$0xf]
      %v232 = vld [vmem:[%s155 + $0x108] sm:$0xf]
      %v233 = vld [vmem:[%s155 + $0x10c] sm:$0xf]
      %v234 = vld [vmem:[%s155 + $0x110] sm:$0xf]
      %v235 = vld [vmem:[%s155 + $0x114] sm:$0xf]
      %v236 = vld [vmem:[%s155 + $0x118] sm:$0xf]
      %v237 = vld [vmem:[%s155 + $0x11c] sm:$0xf]
      %v238 = vld [vmem:[%s155 + $0x120] sm:$0xf]
      %v239 = vld [vmem:[%s155 + $0x124] sm:$0xf]
      %v240 = vld [vmem:[%s155 + $0x128] sm:$0xf]
      %v241 = vld [vmem:[%s155 + $0x12c] sm:$0xf]
      %v242 = vld [vmem:[%s155 + $0x130] sm:$0xf]
      %v243 = vld [vmem:[%s155 + $0x134] sm:$0xf]
      %v244 = vld [vmem:[%s155 + $0x138] sm:$0xf]
      %v245 = vld [vmem:[%s155 + $0x13c] sm:$0xf]
      %v246 = vld [vmem:[%s155 + $0x140] sm:$0xf]
      %v247 = vld [vmem:[%s155 + $0x144] sm:$0xf]
      %v248 = vld [vmem:[%s155 + $0x148] sm:$0xf]
      %v249 = vld [vmem:[%s155 + $0x14c] sm:$0xf]
      %v250 = vld [vmem:[%s155 + $0x150] sm:$0xf]
      %v251 = vld [vmem:[%s155 + $0x154] sm:$0xf]
      %v252 = vld [vmem:[%s155 + $0x158] sm:$0xf]
      %v253 = vld [vmem:[%s155 + $0x15c] sm:$0xf]
      %v254 = vld [vmem:[%s155 + $0x160] sm:$0xf]
      %v255 = vld [vmem:[%s155 + $0x164] sm:$0xf]
      %v256 = vld [vmem:[%s155 + $0x168] sm:$0xf]
      %v257 = vld [vmem:[%s155 + $0x16c] sm:$0xf]
      %v258 = vld [vmem:[%s155 + $0x170] sm:$0xf]
      %v259 = vld [vmem:[%s155 + $0x174] sm:$0xf]
      %v260 = vld [vmem:[%s155 + $0x178] sm:$0xf]
      %v261 = vld [vmem:[%s155 + $0x17c] sm:$0xf]
      %v262 = vld [vmem:[%s155 + $0x180] sm:$0xf]
      %v263 = vld [vmem:[%s155 + $0x184] sm:$0xf]
      %v264 = vld [vmem:[%s155 + $0x188] sm:$0xf]
      %v265 = vld [vmem:[%s155 + $0x18c] sm:$0xf]
      %v266 = vld [vmem:[%s155 + $0x190] sm:$0xf]
      %v267 = vld [vmem:[%s155 + $0x194] sm:$0xf]
      %v268 = vld [vmem:[%s155 + $0x198] sm:$0xf]
      %v269 = vld [vmem:[%s155 + $0x19c] sm:$0xf]
      %v270 = vld [vmem:[%s155 + $0x1a0] sm:$0xf]
      %v271 = vld [vmem:[%s155 + $0x1a4] sm:$0xf]
      %v272 = vld [vmem:[%s155 + $0x1a8] sm:$0xf]
      %v273 = vld [vmem:[%s155 + $0x1ac] sm:$0xf]
      %v274 = vld [vmem:[%s155 + $0x1b0] sm:$0xf]
      %v275 = vld [vmem:[%s155 + $0x1b4] sm:$0xf]
      %v276 = vld [vmem:[%s155 + $0x1b8] sm:$0xf]
      %v277 = vld [vmem:[%s155 + $0x1bc] sm:$0xf]
      %v278 = vld [vmem:[%s155 + $0x1c0] sm:$0xf]
      %v279 = vld [vmem:[%s155 + $0x1c4] sm:$0xf]
      %v280 = vld [vmem:[%s155 + $0x1c8] sm:$0xf]
      %v281 = vld [vmem:[%s155 + $0x1cc] sm:$0xf]
      %v282 = vld [vmem:[%s155 + $0x1d0] sm:$0xf]
      %v283 = vld [vmem:[%s155 + $0x1d4] sm:$0xf]
      %v284 = vld [vmem:[%s155 + $0x1d8] sm:$0xf]
      %v285 = vld [vmem:[%s155 + $0x1dc] sm:$0xf]
      %v286 = vld [vmem:[%s155 + $0x1e0] sm:$0xf]
      %v287 = vld [vmem:[%s155 + $0x1e4] sm:$0xf]
      %v288 = vld [vmem:[%s155 + $0x1e8] sm:$0xf]
      %v289 = vld [vmem:[%s155 + $0x1ec] sm:$0xf]
      %v290 = vld [vmem:[%s155 + $0x1f0] sm:$0xf]
      %v291 = vld [vmem:[%s155 + $0x1f4] sm:$0xf]
      %v292 = vld [vmem:[%s155 + $0x1f8] sm:$0xf]
      %v293 = vld [vmem:[%s155 + $0x1fc] sm:$0xf]
      %v294 = vld [vmem:[%s155 + $0x200] sm:$0xf]
      %v295 = vld [vmem:[%s155 + $0x204] sm:$0xf]
      %v296 = vld [vmem:[%s155 + $0x208] sm:$0xf]
      %v297 = vld [vmem:[%s155 + $0x20c] sm:$0xf]
      %v298 = vld [vmem:[%s155 + $0x210] sm:$0xf]
      %v299 = vld [vmem:[%s155 + $0x214] sm:$0xf]
      %v300 = vld [vmem:[%s155 + $0x218] sm:$0xf]
      %v301 = vld [vmem:[%s155 + $0x21c] sm:$0xf]
      %v302 = vld [vmem:[%s155 + $0x220] sm:$0xf]
      %v303 = vld [vmem:[%s155 + $0x224] sm:$0xf]
      %v304 = vld [vmem:[%s155 + $0x228] sm:$0xf]
      %v305 = vld [vmem:[%s155 + $0x22c] sm:$0xf]
      %v306 = vld [vmem:[%s155 + $0x230] sm:$0xf]
      %v307 = vld [vmem:[%s155 + $0x234] sm:$0xf]
      %v308 = vld [vmem:[%s155 + $0x238] sm:$0xf]
      %v309 = vld [vmem:[%s155 + $0x23c] sm:$0xf]
      %v310 = vld [vmem:[%s155 + $0x240] sm:$0xf]
      %v311 = vld [vmem:[%s155 + $0x244] sm:$0xf]
      %v312 = vld [vmem:[%s155 + $0x248] sm:$0xf]
      %v313 = vld [vmem:[%s155 + $0x24c] sm:$0xf]
      %v314 = vld [vmem:[%s155 + $0x250] sm:$0xf]
      %v315 = vld [vmem:[%s155 + $0x254] sm:$0xf]
      %v316 = vld [vmem:[%s155 + $0x258] sm:$0xf]
      %v317 = vld [vmem:[%s155 + $0x25c] sm:$0xf]
      %v318 = vld [vmem:[%s155 + $0x260] sm:$0xf]
      %v319 = vld [vmem:[%s155 + $0x264] sm:$0xf]
      %v320 = vld [vmem:[%s155 + $0x268] sm:$0xf]
      %v321 = vld [vmem:[%s155 + $0x26c] sm:$0xf]
      %v322 = vld [vmem:[%s155 + $0x270] sm:$0xf]
      %v323 = vld [vmem:[%s155 + $0x274] sm:$0xf]
      %v324 = vld [vmem:[%s155 + $0x278] sm:$0xf]
      %v325 = vld [vmem:[%s155 + $0x27c] sm:$0xf]
      %v326 = vld [vmem:[%s155 + $0x280] sm:$0xf]
      %v327 = vld [vmem:[%s155 + $0x284] sm:$0xf]
      %v328 = vld [vmem:[%s155 + $0x288] sm:$0xf]
      %v329 = vld [vmem:[%s155 + $0x28c] sm:$0xf]
      %v330 = vld [vmem:[%s155 + $0x290] sm:$0xf]
      %v331 = vld [vmem:[%s155 + $0x294] sm:$0xf]
      %v332 = vld [vmem:[%s155 + $0x298] sm:$0xf]
      %v333 = vld [vmem:[%s155 + $0x29c] sm:$0xf]
      %v334 = vld [vmem:[%s155 + $0x2a0] sm:$0xf]
      %v335 = vld [vmem:[%s155 + $0x2a4] sm:$0xf]
      %v336 = vld [vmem:[%s155 + $0x2a8] sm:$0xf]
      %v337 = vld [vmem:[%s155 + $0x2ac] sm:$0xf]
      %v338 = vld [vmem:[%s155 + $0x2b0] sm:$0xf]
      %v339 = vld [vmem:[%s155 + $0x2b4] sm:$0xf]
      %v340 = vld [vmem:[%s155 + $0x2b8] sm:$0xf]
      %v341 = vld [vmem:[%s155 + $0x2bc] sm:$0xf]
      %v342 = vld [vmem:[%s155 + $0x2c0] sm:$0xf]
      %v343 = vld [vmem:[%s155 + $0x2c4] sm:$0xf]
      %v344 = vld [vmem:[%s155 + $0x2c8] sm:$0xf]
      %v345 = vld [vmem:[%s155 + $0x2cc] sm:$0xf]
      %v346 = vld [vmem:[%s155 + $0x2d0] sm:$0xf]
      %v347 = vld [vmem:[%s155 + $0x2d4] sm:$0xf]
      %v348 = vld [vmem:[%s155 + $0x2d8] sm:$0xf]
      %v349 = vld [vmem:[%s155 + $0x2dc] sm:$0xf]
      %v350 = vld [vmem:[%s155 + $0x2e0] sm:$0xf]
      %v351 = vld [vmem:[%s155 + $0x2e4] sm:$0xf]
      %v352 = vld [vmem:[%s155 + $0x2e8] sm:$0xf]
      %v353 = vld [vmem:[%s155 + $0x2ec] sm:$0xf]
      %v354 = vld [vmem:[%s155 + $0x2f0] sm:$0xf]
      %v355 = vld [vmem:[%s155 + $0x2f4] sm:$0xf]
      %v356 = vld [vmem:[%s155 + $0x2f8] sm:$0xf]
      %v357 = vld [vmem:[%s155 + $0x2fc] sm:$0xf]
      %v358 = vld [vmem:[%s155 + $0x300] sm:$0xf]
      %v359 = vld [vmem:[%s155 + $0x304] sm:$0xf]
      %v360 = vld [vmem:[%s155 + $0x308] sm:$0xf]
      %v361 = vld [vmem:[%s155 + $0x30c] sm:$0xf]
      %v362 = vld [vmem:[%s155 + $0x310] sm:$0xf]
      %v363 = vld [vmem:[%s155 + $0x314] sm:$0xf]
      %v364 = vld [vmem:[%s155 + $0x318] sm:$0xf]
      %v365 = vld [vmem:[%s155 + $0x31c] sm:$0xf]
      %v366 = vld [vmem:[%s155 + $0x320] sm:$0xf]
      %v367 = vld [vmem:[%s155 + $0x324] sm:$0xf]
      %v368 = vld [vmem:[%s155 + $0x328] sm:$0xf]
      %v369 = vld [vmem:[%s155 + $0x32c] sm:$0xf]
      %v370 = vld [vmem:[%s155 + $0x330] sm:$0xf]
      %v371 = vld [vmem:[%s155 + $0x334] sm:$0xf]
      %v372 = vld [vmem:[%s155 + $0x338] sm:$0xf]
      %v373 = vld [vmem:[%s155 + $0x33c] sm:$0xf]
      %v374 = vld [vmem:[%s155 + $0x340] sm:$0xf]
      %v375 = vld [vmem:[%s155 + $0x344] sm:$0xf]
      %v376 = vld [vmem:[%s155 + $0x348] sm:$0xf]
      %v377 = vld [vmem:[%s155 + $0x34c] sm:$0xf]
      %v378 = vld [vmem:[%s155 + $0x350] sm:$0xf]
      %v379 = vld [vmem:[%s155 + $0x354] sm:$0xf]
      %v380 = vld [vmem:[%s155 + $0x358] sm:$0xf]
      %v381 = vld [vmem:[%s155 + $0x35c] sm:$0xf]
      %v382 = vld [vmem:[%s155 + $0x360] sm:$0xf]
      %v383 = vld [vmem:[%s155 + $0x364] sm:$0xf]
      %v384 = vld [vmem:[%s155 + $0x368] sm:$0xf]
      %v385 = vld [vmem:[%s155 + $0x36c] sm:$0xf]
      %v386 = vld [vmem:[%s155 + $0x370] sm:$0xf]
      %v387 = vld [vmem:[%s155 + $0x374] sm:$0xf]
      %v388 = vld [vmem:[%s155 + $0x378] sm:$0xf]
      %v389 = vld [vmem:[%s155 + $0x37c] sm:$0xf]
      %v390 = vld [vmem:[%s155 + $0x380] sm:$0xf]
      %v391 = vld [vmem:[%s155 + $0x384] sm:$0xf]
      %v392 = vld [vmem:[%s155 + $0x388] sm:$0xf]
      %v393 = vld [vmem:[%s155 + $0x38c] sm:$0xf]
      %v394 = vld [vmem:[%s155 + $0x390] sm:$0xf]
      %v395 = vld [vmem:[%s155 + $0x394] sm:$0xf]
      %v396 = vld [vmem:[%s155 + $0x398] sm:$0xf]
      %v397 = vld [vmem:[%s155 + $0x39c] sm:$0xf]
      %v398 = vld [vmem:[%s155 + $0x3a0] sm:$0xf]
      %v399 = vld [vmem:[%s155 + $0x3a4] sm:$0xf]
      %v400 = vld [vmem:[%s155 + $0x3a8] sm:$0xf]
      %v401 = vld [vmem:[%s155 + $0x3ac] sm:$0xf]
      %v402 = vld [vmem:[%s155 + $0x3b0] sm:$0xf]
      %v403 = vld [vmem:[%s155 + $0x3b4] sm:$0xf]
      %v404 = vld [vmem:[%s155 + $0x3b8] sm:$0xf]
      %v405 = vld [vmem:[%s155 + $0x3bc] sm:$0xf]
      %v406 = vld [vmem:[%s155 + $0x3c0] sm:$0xf]
      %v407 = vld [vmem:[%s155 + $0x3c4] sm:$0xf]
      %v408 = vld [vmem:[%s155 + $0x3c8] sm:$0xf]
      %v409 = vld [vmem:[%s155 + $0x3cc] sm:$0xf]
      %v410 = vld [vmem:[%s155 + $0x3d0] sm:$0xf]
      %v411 = vld [vmem:[%s155 + $0x3d4] sm:$0xf]
      %v412 = vld [vmem:[%s155 + $0x3d8] sm:$0xf]
      %v413 = vld [vmem:[%s155 + $0x3dc] sm:$0xf]
      %v414 = vld [vmem:[%s155 + $0x3e0] sm:$0xf]
      %v415 = vld [vmem:[%s155 + $0x3e4] sm:$0xf]
      %v416 = vld [vmem:[%s155 + $0x3e8] sm:$0xf]
      %v417 = vld [vmem:[%s155 + $0x3ec] sm:$0xf]
      %v418 = vld [vmem:[%s155 + $0x3f0] sm:$0xf]
      %v419 = vld [vmem:[%s155 + $0x3f4] sm:$0xf]
      %v420 = vld [vmem:[%s155 + $0x3f8] sm:$0xf]
      %v421 = vld [vmem:[%s155 + $0x3fc] sm:$0xf]
      %v422 = vld [vmem:[%s155 + $0x400] sm:$0xf]
      %v423 = vld [vmem:[%s155 + $0x404] sm:$0xf]
      %v424 = vld [vmem:[%s155 + $0x408] sm:$0xf]
      %v425 = vld [vmem:[%s155 + $0x40c] sm:$0xf]
      %v426 = vld [vmem:[%s155 + $0x410] sm:$0xf]
      %v427 = vld [vmem:[%s155 + $0x414] sm:$0xf]
      %v428 = vld [vmem:[%s155 + $0x418] sm:$0xf]
      %v429 = vld [vmem:[%s155 + $0x41c] sm:$0xf]
      %v430 = vld [vmem:[%s155 + $0x420] sm:$0xf]
      %v431 = vld [vmem:[%s155 + $0x424] sm:$0xf]
      %v432 = vld [vmem:[%s155 + $0x428] sm:$0xf]
      %v433 = vld [vmem:[%s155 + $0x42c] sm:$0xf]
      %v434 = vld [vmem:[%s155 + $0x430] sm:$0xf]
      %v435 = vld [vmem:[%s155 + $0x434] sm:$0xf]
      %v436 = vld [vmem:[%s155 + $0x438] sm:$0xf]
      %v437 = vld [vmem:[%s155 + $0x43c] sm:$0xf]
      %v438 = vld [vmem:[%s155 + $0x440] sm:$0xf]
      %v439 = vld [vmem:[%s155 + $0x444] sm:$0xf]
      %v440 = vld [vmem:[%s155 + $0x448] sm:$0xf]
      %v441 = vld [vmem:[%s155 + $0x44c] sm:$0xf]
      %v442 = vld [vmem:[%s155 + $0x450] sm:$0xf]
      %v443 = vld [vmem:[%s155 + $0x454] sm:$0xf]
      %v444 = vld [vmem:[%s155 + $0x458] sm:$0xf]
      %v445 = vld [vmem:[%s155 + $0x45c] sm:$0xf]
      %v446 = vld [vmem:[%s155 + $0x460] sm:$0xf]
      %v447 = vld [vmem:[%s155 + $0x464] sm:$0xf]
      %v448 = vld [vmem:[%s155 + $0x468] sm:$0xf]
      %v449 = vld [vmem:[%s155 + $0x46c] sm:$0xf]
      %v450 = vld [vmem:[%s155 + $0x470] sm:$0xf]
      %v451 = vld [vmem:[%s155 + $0x474] sm:$0xf]
      %v452 = vld [vmem:[%s155 + $0x478] sm:$0xf]
      %v453 = vld [vmem:[%s155 + $0x47c] sm:$0xf]
      %v463 = vunpack.c.l.b16 %v157
      %v464 = vunpack.c.h.b16 %v157
      %v465 = vunpack.c.l.b16 %v158
      %v466 = vunpack.c.h.b16 %v158
      %v467 = vunpack.c.l.b16 %v159
      %v468 = vunpack.c.h.b16 %v159
      %v469 = vunpack.c.l.b16 %v160
      %v470 = vunpack.c.h.b16 %v160
      %v471 = vunpack.c.l.b16 %v161
      %v472 = vunpack.c.h.b16 %v161
      %v473 = vunpack.c.l.b16 %v162
      %v474 = vunpack.c.h.b16 %v162
      %v475 = vunpack.c.l.b16 %v163
      %v476 = vunpack.c.h.b16 %v163
      %v477 = vunpack.c.l.b16 %v164
      %v478 = vunpack.c.h.b16 %v164
      %v479 = vunpack.c.l.b16 %v165
      %v480 = vunpack.c.h.b16 %v165
      %v481 = vpack.c.b16 %v463, %v463
      %v482 = vpack.c.b16 %v464, %v464
      %v483 = vpack.c.b16 %v465, %v465
      %v484 = vpack.c.b16 %v466, %v466
      %v485 = vpack.c.b16 %v467, %v467
      %v486 = vpack.c.b16 %v468, %v468
      %v487 = vpack.c.b16 %v469, %v469
      %v488 = vpack.c.b16 %v470, %v470
      %v489 = vpack.c.b16 %v471, %v471
      %v490 = vpack.c.b16 %v472, %v472
      %v491 = vpack.c.b16 %v473, %v473
      %v492 = vpack.c.b16 %v474, %v474
      %v493 = vpack.c.b16 %v475, %v475
      %v494 = vpack.c.b16 %v476, %v476
      %v495 = vpack.c.b16 %v477, %v477
      %v496 = vpack.c.b16 %v478, %v478
      %v497 = vpack.c.b16 %v479, %v479
      %v498 = vpack.c.b16 %v480, %v480
      %v805 = vunpack.c.l.b16 %v166
      %v806 = vunpack.c.l.b16 %v167
      %v807 = vunpack.c.l.b16 %v168
      %v808 = vunpack.c.l.b16 %v169
      %v809 = vunpack.c.l.b16 %v170
      %v810 = vunpack.c.l.b16 %v171
      %v811 = vunpack.c.l.b16 %v172
      %v812 = vunpack.c.l.b16 %v173
      %v813 = vunpack.c.l.b16 %v174
      %v814 = vunpack.c.l.b16 %v175
      %v815 = vunpack.c.l.b16 %v176
      %v816 = vunpack.c.l.b16 %v177
      %v817 = vunpack.c.l.b16 %v178
      %v818 = vunpack.c.l.b16 %v179
      %v819 = vunpack.c.l.b16 %v180
      %v820 = vunpack.c.l.b16 %v181
      %v821 = vunpack.c.l.b16 %v182
      %v822 = vunpack.c.l.b16 %v183
      %v823 = vunpack.c.l.b16 %v184
      %v824 = vunpack.c.l.b16 %v185
      %v825 = vunpack.c.l.b16 %v186
      %v826 = vunpack.c.l.b16 %v187
      %v827 = vunpack.c.l.b16 %v188
      %v828 = vunpack.c.l.b16 %v189
      %v829 = vunpack.c.l.b16 %v190
      %v830 = vunpack.c.l.b16 %v191
      %v831 = vunpack.c.l.b16 %v192
      %v832 = vunpack.c.l.b16 %v193
      %v833 = vunpack.c.l.b16 %v194
      %v834 = vunpack.c.l.b16 %v195
      %v835 = vunpack.c.l.b16 %v196
      %v836 = vunpack.c.l.b16 %v197
      %v837 = vunpack.c.l.b16 %v198
      %v838 = vunpack.c.l.b16 %v199
      %v839 = vunpack.c.l.b16 %v200
      %v840 = vunpack.c.l.b16 %v201
      %v841 = vunpack.c.l.b16 %v202
      %v842 = vunpack.c.l.b16 %v203
      %v843 = vunpack.c.l.b16 %v204
      %v844 = vunpack.c.l.b16 %v205
      %v845 = vunpack.c.l.b16 %v206
      %v846 = vunpack.c.l.b16 %v207
      %v847 = vunpack.c.l.b16 %v208
      %v848 = vunpack.c.l.b16 %v209
      %v849 = vunpack.c.l.b16 %v210
      %v850 = vunpack.c.l.b16 %v211
      %v851 = vunpack.c.l.b16 %v212
      %v852 = vunpack.c.l.b16 %v213
      %v853 = vunpack.c.l.b16 %v214
      %v854 = vunpack.c.l.b16 %v215
      %v855 = vunpack.c.l.b16 %v216
      %v856 = vunpack.c.l.b16 %v217
      %v857 = vunpack.c.l.b16 %v218
      %v858 = vunpack.c.l.b16 %v219
      %v859 = vunpack.c.l.b16 %v220
      %v860 = vunpack.c.l.b16 %v221
      %v861 = vunpack.c.l.b16 %v222
      %v862 = vunpack.c.l.b16 %v223
      %v863 = vunpack.c.l.b16 %v224
      %v864 = vunpack.c.l.b16 %v225
      %v865 = vunpack.c.l.b16 %v226
      %v866 = vunpack.c.l.b16 %v227
      %v867 = vunpack.c.l.b16 %v228
      %v868 = vunpack.c.l.b16 %v229
      %v869 = vunpack.c.l.b16 %v230
      %v870 = vunpack.c.l.b16 %v231
      %v871 = vunpack.c.l.b16 %v232
      %v872 = vunpack.c.l.b16 %v233
      %v873 = vunpack.c.l.b16 %v234
      %v874 = vunpack.c.l.b16 %v235
      %v875 = vunpack.c.l.b16 %v236
      %v876 = vunpack.c.l.b16 %v237
      %v877 = vunpack.c.l.b16 %v238
      %v878 = vunpack.c.l.b16 %v239
      %v879 = vunpack.c.l.b16 %v240
      %v880 = vunpack.c.l.b16 %v241
      %v881 = vunpack.c.l.b16 %v242
      %v882 = vunpack.c.l.b16 %v243
      %v883 = vunpack.c.l.b16 %v244
      %v884 = vunpack.c.l.b16 %v245
      %v885 = vunpack.c.l.b16 %v246
      %v886 = vunpack.c.l.b16 %v247
      %v887 = vunpack.c.l.b16 %v248
      %v888 = vunpack.c.l.b16 %v249
      %v889 = vunpack.c.l.b16 %v250
      %v890 = vunpack.c.l.b16 %v251
      %v891 = vunpack.c.l.b16 %v252
      %v892 = vunpack.c.l.b16 %v253
      %v893 = vunpack.c.l.b16 %v254
      %v894 = vunpack.c.l.b16 %v255
      %v895 = vunpack.c.l.b16 %v256
      %v896 = vunpack.c.l.b16 %v257
      %v897 = vunpack.c.l.b16 %v258
      %v898 = vunpack.c.l.b16 %v259
      %v899 = vunpack.c.l.b16 %v260
      %v900 = vunpack.c.l.b16 %v261
      %v901 = vunpack.c.l.b16 %v262
      %v902 = vunpack.c.l.b16 %v263
      %v903 = vunpack.c.l.b16 %v264
      %v904 = vunpack.c.l.b16 %v265
      %v905 = vunpack.c.l.b16 %v266
      %v906 = vunpack.c.l.b16 %v267
      %v907 = vunpack.c.l.b16 %v268
      %v908 = vunpack.c.l.b16 %v269
      %v909 = vunpack.c.l.b16 %v270
      %v910 = vunpack.c.l.b16 %v271
      %v911 = vunpack.c.l.b16 %v272
      %v912 = vunpack.c.l.b16 %v273
      %v913 = vunpack.c.l.b16 %v274
      %v914 = vunpack.c.l.b16 %v275
      %v915 = vunpack.c.l.b16 %v276
      %v916 = vunpack.c.l.b16 %v277
      %v917 = vunpack.c.l.b16 %v278
      %v918 = vunpack.c.l.b16 %v279
      %v919 = vunpack.c.l.b16 %v280
      %v920 = vunpack.c.l.b16 %v281
      %v921 = vunpack.c.l.b16 %v282
      %v922 = vunpack.c.l.b16 %v283
      %v923 = vunpack.c.l.b16 %v284
      %v924 = vunpack.c.l.b16 %v285
      %v925 = vunpack.c.l.b16 %v286
      %v926 = vunpack.c.l.b16 %v287
      %v927 = vunpack.c.l.b16 %v288
      %v928 = vunpack.c.l.b16 %v289
      %v929 = vunpack.c.l.b16 %v290
      %v930 = vunpack.c.l.b16 %v291
      %v931 = vunpack.c.l.b16 %v292
      %v932 = vunpack.c.l.b16 %v293
      %v933 = vunpack.c.l.b16 %v294
      %v934 = vunpack.c.l.b16 %v295
      %v935 = vunpack.c.l.b16 %v296
      %v936 = vunpack.c.l.b16 %v297
      %v937 = vunpack.c.l.b16 %v298
      %v938 = vunpack.c.l.b16 %v299
      %v939 = vunpack.c.l.b16 %v300
      %v940 = vunpack.c.l.b16 %v301
      %v941 = vunpack.c.l.b16 %v302
      %v942 = vunpack.c.l.b16 %v303
      %v943 = vunpack.c.l.b16 %v304
      %v944 = vunpack.c.l.b16 %v305
      %v945 = vunpack.c.l.b16 %v306
      %v946 = vunpack.c.l.b16 %v307
      %v947 = vunpack.c.l.b16 %v308
      %v948 = vunpack.c.l.b16 %v309
      %v949 = vunpack.c.l.b16 %v310
      %v950 = vunpack.c.l.b16 %v311
      %v951 = vunpack.c.l.b16 %v312
      %v952 = vunpack.c.l.b16 %v313
      %v953 = vunpack.c.l.b16 %v314
      %v954 = vunpack.c.l.b16 %v315
      %v955 = vunpack.c.l.b16 %v316
      %v956 = vunpack.c.l.b16 %v317
      %v957 = vunpack.c.l.b16 %v318
      %v958 = vunpack.c.l.b16 %v319
      %v959 = vunpack.c.l.b16 %v320
      %v960 = vunpack.c.l.b16 %v321
      %v961 = vunpack.c.l.b16 %v322
      %v962 = vunpack.c.l.b16 %v323
      %v963 = vunpack.c.l.b16 %v324
      %v964 = vunpack.c.l.b16 %v325
      %v965 = vunpack.c.l.b16 %v326
      %v966 = vunpack.c.l.b16 %v327
      %v967 = vunpack.c.l.b16 %v328
      %v968 = vunpack.c.l.b16 %v329
      %v969 = vunpack.c.l.b16 %v330
      %v970 = vunpack.c.l.b16 %v331
      %v971 = vunpack.c.l.b16 %v332
      %v972 = vunpack.c.l.b16 %v333
      %v973 = vunpack.c.l.b16 %v334
      %v974 = vunpack.c.l.b16 %v335
      %v975 = vunpack.c.l.b16 %v336
      %v976 = vunpack.c.l.b16 %v337
      %v977 = vunpack.c.l.b16 %v338
      %v978 = vunpack.c.l.b16 %v339
      %v979 = vunpack.c.l.b16 %v340
      %v980 = vunpack.c.l.b16 %v341
      %v981 = vunpack.c.l.b16 %v342
      %v982 = vunpack.c.l.b16 %v343
      %v983 = vunpack.c.l.b16 %v344
      %v984 = vunpack.c.l.b16 %v345
      %v985 = vunpack.c.l.b16 %v346
      %v986 = vunpack.c.l.b16 %v347
      %v987 = vunpack.c.l.b16 %v348
      %v988 = vunpack.c.l.b16 %v349
      %v989 = vunpack.c.l.b16 %v350
      %v990 = vunpack.c.l.b16 %v351
      %v991 = vunpack.c.l.b16 %v352
      %v992 = vunpack.c.l.b16 %v353
      %v993 = vunpack.c.l.b16 %v354
      %v994 = vunpack.c.l.b16 %v355
      %v995 = vunpack.c.l.b16 %v356
      %v996 = vunpack.c.l.b16 %v357
      %v997 = vunpack.c.l.b16 %v358
      %v998 = vunpack.c.l.b16 %v359
      %v999 = vunpack.c.l.b16 %v360
      %v1000 = vunpack.c.l.b16 %v361
      %v1001 = vunpack.c.l.b16 %v362
      %v1002 = vunpack.c.l.b16 %v363
      %v1003 = vunpack.c.l.b16 %v364
      %v1004 = vunpack.c.l.b16 %v365
      %v1005 = vunpack.c.l.b16 %v366
      %v1006 = vunpack.c.l.b16 %v367
      %v1007 = vunpack.c.l.b16 %v368
      %v1008 = vunpack.c.l.b16 %v369
      %v1009 = vunpack.c.l.b16 %v370
      %v1010 = vunpack.c.l.b16 %v371
      %v1011 = vunpack.c.l.b16 %v372
      %v1012 = vunpack.c.l.b16 %v373
      %v1013 = vunpack.c.l.b16 %v374
      %v1014 = vunpack.c.l.b16 %v375
      %v1015 = vunpack.c.l.b16 %v376
      %v1016 = vunpack.c.l.b16 %v377
      %v1017 = vunpack.c.l.b16 %v378
      %v1018 = vunpack.c.l.b16 %v379
      %v1019 = vunpack.c.l.b16 %v380
      %v1020 = vunpack.c.l.b16 %v381
      %v1021 = vunpack.c.l.b16 %v382
      %v1022 = vunpack.c.l.b16 %v383
      %v1023 = vunpack.c.l.b16 %v384
      %v1024 = vunpack.c.l.b16 %v385
      %v1025 = vunpack.c.l.b16 %v386
      %v1026 = vunpack.c.l.b16 %v387
      %v1027 = vunpack.c.l.b16 %v388
      %v1028 = vunpack.c.l.b16 %v389
      %v1029 = vunpack.c.l.b16 %v390
      %v1030 = vunpack.c.l.b16 %v391
      %v1031 = vunpack.c.l.b16 %v392
      %v1032 = vunpack.c.l.b16 %v393
      %v1033 = vunpack.c.l.b16 %v394
      %v1034 = vunpack.c.l.b16 %v395
      %v1035 = vunpack.c.l.b16 %v396
      %v1036 = vunpack.c.l.b16 %v397
      %v1037 = vunpack.c.l.b16 %v398
      %v1038 = vunpack.c.l.b16 %v399
      %v1039 = vunpack.c.l.b16 %v400
      %v1040 = vunpack.c.l.b16 %v401
      %v1041 = vunpack.c.l.b16 %v402
      %v1042 = vunpack.c.l.b16 %v403
      %v1043 = vunpack.c.l.b16 %v404
      %v1044 = vunpack.c.l.b16 %v405
      %v1045 = vunpack.c.l.b16 %v406
      %v1046 = vunpack.c.l.b16 %v407
      %v1047 = vunpack.c.l.b16 %v408
      %v1048 = vunpack.c.l.b16 %v409
      %v1049 = vunpack.c.l.b16 %v410
      %v1050 = vunpack.c.l.b16 %v411
      %v1051 = vunpack.c.l.b16 %v412
      %v1052 = vunpack.c.l.b16 %v413
      %v1053 = vunpack.c.l.b16 %v414
      %v1054 = vunpack.c.l.b16 %v415
      %v1055 = vunpack.c.l.b16 %v416
      %v1056 = vunpack.c.l.b16 %v417
      %v1057 = vunpack.c.l.b16 %v418
      %v1058 = vunpack.c.l.b16 %v419
      %v1059 = vunpack.c.l.b16 %v420
      %v1060 = vunpack.c.l.b16 %v421
      %v1061 = vunpack.c.l.b16 %v422
      %v1062 = vunpack.c.l.b16 %v423
      %v1063 = vunpack.c.l.b16 %v424
      %v1064 = vunpack.c.l.b16 %v425
      %v1065 = vunpack.c.l.b16 %v426
      %v1066 = vunpack.c.l.b16 %v427
      %v1067 = vunpack.c.l.b16 %v428
      %v1068 = vunpack.c.l.b16 %v429
      %v1069 = vunpack.c.l.b16 %v430
      %v1070 = vunpack.c.l.b16 %v431
      %v1071 = vunpack.c.l.b16 %v432
      %v1072 = vunpack.c.l.b16 %v433
      %v1073 = vunpack.c.l.b16 %v434
      %v1074 = vunpack.c.l.b16 %v435
      %v1075 = vunpack.c.l.b16 %v436
      %v1076 = vunpack.c.l.b16 %v437
      %v1077 = vunpack.c.l.b16 %v438
      %v1078 = vunpack.c.l.b16 %v439
      %v1079 = vunpack.c.l.b16 %v440
      %v1080 = vunpack.c.l.b16 %v441
      %v1081 = vunpack.c.l.b16 %v442
      %v1082 = vunpack.c.l.b16 %v443
      %v1083 = vunpack.c.l.b16 %v444
      %v1084 = vunpack.c.l.b16 %v445
      %v1085 = vunpack.c.l.b16 %v446
      %v1086 = vunpack.c.l.b16 %v447
      %v1087 = vunpack.c.l.b16 %v448
      %v1088 = vunpack.c.l.b16 %v449
      %v1089 = vunpack.c.l.b16 %v450
      %v1090 = vunpack.c.l.b16 %v451
      %v1091 = vunpack.c.l.b16 %v452
      %v1092 = vunpack.c.l.b16 %v453
      %v1093 = vpack.c.b16 %v806, %v805
      %v1094 = vpack.c.b16 %v808, %v807
      %v1095 = vpack.c.b16 %v810, %v809
      %v1096 = vpack.c.b16 %v812, %v811
      %v1097 = vpack.c.b16 %v814, %v813
      %v1098 = vpack.c.b16 %v816, %v815
      %v1099 = vpack.c.b16 %v818, %v817
      %v1100 = vpack.c.b16 %v820, %v819
      %v1101 = vpack.c.b16 %v822, %v821
      %v1102 = vpack.c.b16 %v824, %v823
      %v1103 = vpack.c.b16 %v826, %v825
      %v1104 = vpack.c.b16 %v828, %v827
      %v1105 = vpack.c.b16 %v830, %v829
      %v1106 = vpack.c.b16 %v832, %v831
      %v1107 = vpack.c.b16 %v834, %v833
      %v1108 = vpack.c.b16 %v836, %v835
      %v1109 = vpack.c.b16 %v838, %v837
      %v1110 = vpack.c.b16 %v840, %v839
      %v1111 = vpack.c.b16 %v842, %v841
      %v1112 = vpack.c.b16 %v844, %v843
      %v1113 = vpack.c.b16 %v846, %v845
      %v1114 = vpack.c.b16 %v848, %v847
      %v1115 = vpack.c.b16 %v850, %v849
      %v1116 = vpack.c.b16 %v852, %v851
      %v1117 = vpack.c.b16 %v854, %v853
      %v1118 = vpack.c.b16 %v856, %v855
      %v1119 = vpack.c.b16 %v858, %v857
      %v1120 = vpack.c.b16 %v860, %v859
      %v1121 = vpack.c.b16 %v862, %v861
      %v1122 = vpack.c.b16 %v864, %v863
      %v1123 = vpack.c.b16 %v866, %v865
      %v1124 = vpack.c.b16 %v868, %v867
      %v1125 = vpack.c.b16 %v870, %v869
      %v1126 = vpack.c.b16 %v872, %v871
      %v1127 = vpack.c.b16 %v874, %v873
      %v1128 = vpack.c.b16 %v876, %v875
      %v1129 = vpack.c.b16 %v878, %v877
      %v1130 = vpack.c.b16 %v880, %v879
      %v1131 = vpack.c.b16 %v882, %v881
      %v1132 = vpack.c.b16 %v884, %v883
      %v1133 = vpack.c.b16 %v886, %v885
      %v1134 = vpack.c.b16 %v888, %v887
      %v1135 = vpack.c.b16 %v890, %v889
      %v1136 = vpack.c.b16 %v892, %v891
      %v1137 = vpack.c.b16 %v894, %v893
      %v1138 = vpack.c.b16 %v896, %v895
      %v1139 = vpack.c.b16 %v898, %v897
      %v1140 = vpack.c.b16 %v900, %v899
      %v1141 = vpack.c.b16 %v902, %v901
      %v1142 = vpack.c.b16 %v904, %v903
      %v1143 = vpack.c.b16 %v906, %v905
      %v1144 = vpack.c.b16 %v908, %v907
      %v1145 = vpack.c.b16 %v910, %v909
      %v1146 = vpack.c.b16 %v912, %v911
      %v1147 = vpack.c.b16 %v914, %v913
      %v1148 = vpack.c.b16 %v916, %v915
      %v1149 = vpack.c.b16 %v918, %v917
      %v1150 = vpack.c.b16 %v920, %v919
      %v1151 = vpack.c.b16 %v922, %v921
      %v1152 = vpack.c.b16 %v924, %v923
      %v1153 = vpack.c.b16 %v926, %v925
      %v1154 = vpack.c.b16 %v928, %v927
      %v1155 = vpack.c.b16 %v930, %v929
      %v1156 = vpack.c.b16 %v932, %v931
      %v1157 = vpack.c.b16 %v934, %v933
      %v1158 = vpack.c.b16 %v936, %v935
      %v1159 = vpack.c.b16 %v938, %v937
      %v1160 = vpack.c.b16 %v940, %v939
      %v1161 = vpack.c.b16 %v942, %v941
      %v1162 = vpack.c.b16 %v944, %v943
      %v1163 = vpack.c.b16 %v946, %v945
      %v1164 = vpack.c.b16 %v948, %v947
      %v1165 = vpack.c.b16 %v950, %v949
      %v1166 = vpack.c.b16 %v952, %v951
      %v1167 = vpack.c.b16 %v954, %v953
      %v1168 = vpack.c.b16 %v956, %v955
      %v1169 = vpack.c.b16 %v958, %v957
      %v1170 = vpack.c.b16 %v960, %v959
      %v1171 = vpack.c.b16 %v962, %v961
      %v1172 = vpack.c.b16 %v964, %v963
      %v1173 = vpack.c.b16 %v966, %v965
      %v1174 = vpack.c.b16 %v968, %v967
      %v1175 = vpack.c.b16 %v970, %v969
      %v1176 = vpack.c.b16 %v972, %v971
      %v1177 = vpack.c.b16 %v974, %v973
      %v1178 = vpack.c.b16 %v976, %v975
      %v1179 = vpack.c.b16 %v978, %v977
      %v1180 = vpack.c.b16 %v980, %v979
      %v1181 = vpack.c.b16 %v982, %v981
      %v1182 = vpack.c.b16 %v984, %v983
      %v1183 = vpack.c.b16 %v986, %v985
      %v1184 = vpack.c.b16 %v988, %v987
      %v1185 = vpack.c.b16 %v990, %v989
      %v1186 = vpack.c.b16 %v992, %v991
      %v1187 = vpack.c.b16 %v994, %v993
      %v1188 = vpack.c.b16 %v996, %v995
      %v1189 = vpack.c.b16 %v998, %v997
      %v1190 = vpack.c.b16 %v1000, %v999
      %v1191 = vpack.c.b16 %v1002, %v1001
      %v1192 = vpack.c.b16 %v1004, %v1003
      %v1193 = vpack.c.b16 %v1006, %v1005
      %v1194 = vpack.c.b16 %v1008, %v1007
      %v1195 = vpack.c.b16 %v1010, %v1009
      %v1196 = vpack.c.b16 %v1012, %v1011
      %v1197 = vpack.c.b16 %v1014, %v1013
      %v1198 = vpack.c.b16 %v1016, %v1015
      %v1199 = vpack.c.b16 %v1018, %v1017
      %v1200 = vpack.c.b16 %v1020, %v1019
      %v1201 = vpack.c.b16 %v1022, %v1021
      %v1202 = vpack.c.b16 %v1024, %v1023
      %v1203 = vpack.c.b16 %v1026, %v1025
      %v1204 = vpack.c.b16 %v1028, %v1027
      %v1205 = vpack.c.b16 %v1030, %v1029
      %v1206 = vpack.c.b16 %v1032, %v1031
      %v1207 = vpack.c.b16 %v1034, %v1033
      %v1208 = vpack.c.b16 %v1036, %v1035
      %v1209 = vpack.c.b16 %v1038, %v1037
      %v1210 = vpack.c.b16 %v1040, %v1039
      %v1211 = vpack.c.b16 %v1042, %v1041
      %v1212 = vpack.c.b16 %v1044, %v1043
      %v1213 = vpack.c.b16 %v1046, %v1045
      %v1214 = vpack.c.b16 %v1048, %v1047
      %v1215 = vpack.c.b16 %v1050, %v1049
      %v1216 = vpack.c.b16 %v1052, %v1051
      %v1217 = vpack.c.b16 %v1054, %v1053
      %v1218 = vpack.c.b16 %v1056, %v1055
      %v1219 = vpack.c.b16 %v1058, %v1057
      %v1220 = vpack.c.b16 %v1060, %v1059
      %v1221 = vpack.c.b16 %v1062, %v1061
      %v1222 = vpack.c.b16 %v1064, %v1063
      %v1223 = vpack.c.b16 %v1066, %v1065
      %v1224 = vpack.c.b16 %v1068, %v1067
      %v1225 = vpack.c.b16 %v1070, %v1069
      %v1226 = vpack.c.b16 %v1072, %v1071
      %v1227 = vpack.c.b16 %v1074, %v1073
      %v1228 = vpack.c.b16 %v1076, %v1075
      %v1229 = vpack.c.b16 %v1078, %v1077
      %v1230 = vpack.c.b16 %v1080, %v1079
      %v1231 = vpack.c.b16 %v1082, %v1081
      %v1232 = vpack.c.b16 %v1084, %v1083
      %v1233 = vpack.c.b16 %v1086, %v1085
      %v1234 = vpack.c.b16 %v1088, %v1087
      %v1235 = vpack.c.b16 %v1090, %v1089
      %v1236 = vpack.c.b16 %v1092, %v1091
      %1381 = vmatprep.subr.bf16.mxu0 0
      %1382 = vmatpush1.bf16.msra.mxu0 %v1093
      %1383 = vmatprep.subr.bf16.mxu0 0
      %1384 = vmatpush1.bf16.msra.mxu0 %v1094
      %1385 = vmatprep.subr.bf16.mxu0 0
      %1386 = vmatpush1.bf16.msra.mxu0 %v1095
      %1387 = vmatprep.subr.bf16.mxu0 0
      %1388 = vmatpush1.bf16.msra.mxu0 %v1096
      %1389 = vmatprep.subr.bf16.mxu0 0
      %1390 = vmatpush1.bf16.msra.mxu0 %v1097
      %1391 = vmatprep.subr.bf16.mxu0 0
      %1392 = vmatpush1.bf16.msra.mxu0 %v1098
      %1393 = vmatprep.subr.bf16.mxu0 0
      %1394 = vmatpush1.bf16.msra.mxu0 %v1099
      %1395 = vmatprep.subr.bf16.mxu0 0
      %1396 = vmatpush1.bf16.msra.mxu0 %v1100
      %1397 = vmatprep.subr.bf16.mxu0 0
      %1398 = vmatpush1.bf16.msra.mxu0 %v1101
      %1399 = vmatprep.subr.bf16.mxu0 0
      %1400 = vmatpush1.bf16.msra.mxu0 %v1102
      %1401 = vmatprep.subr.bf16.mxu0 0
      %1402 = vmatpush1.bf16.msra.mxu0 %v1103
      %1403 = vmatprep.subr.bf16.mxu0 0
      %1404 = vmatpush1.bf16.msra.mxu0 %v1104
      %1405 = vmatprep.subr.bf16.mxu0 0
      %1406 = vmatpush1.bf16.msra.mxu0 %v1105
      %1407 = vmatprep.subr.bf16.mxu0 0
      %1408 = vmatpush1.bf16.msra.mxu0 %v1106
      %1409 = vmatprep.subr.bf16.mxu0 0
      %1410 = vmatpush1.bf16.msra.mxu0 %v1107
      %1411 = vmatprep.subr.bf16.mxu0 0
      %1412 = vmatpush1.bf16.msra.mxu0 %v1108
      %1413 = vmatprep.mubr.bf16.mxu0 %v482
      %1414 = vmatmul.mubr.bf16.gmra.mrb[0].mxu0 %v481
      %v1415 = vpop.f32.mrb[0].mxu0
      %v1416 = vadd.f32 0.0, %v1415
      %v1417 = vpop.f32.mrb[0].mxu0
      %v1418 = vpop.f32.mrb[0].mxu0
      %v1419 = vpop.f32.mrb[0].mxu0
      %1420 = vdwg.mxu0
      %1421 = vmatprep.subr.bf16.mxu0 0
      %1422 = vmatpush1.bf16.msra.mxu0 %v1109
      %1423 = vmatprep.subr.bf16.mxu0 0
      %1424 = vmatpush1.bf16.msra.mxu0 %v1110
      %1425 = vmatprep.subr.bf16.mxu0 0
      %1426 = vmatpush1.bf16.msra.mxu0 %v1111
      %1427 = vmatprep.subr.bf16.mxu0 0
      %1428 = vmatpush1.bf16.msra.mxu0 %v1112
      %1429 = vmatprep.subr.bf16.mxu0 0
      %1430 = vmatpush1.bf16.msra.mxu0 %v1113
      %1431 = vmatprep.subr.bf16.mxu0 0
      %1432 = vmatpush1.bf16.msra.mxu0 %v1114
      %1433 = vmatprep.subr.bf16.mxu0 0
      %1434 = vmatpush1.bf16.msra.mxu0 %v1115
      %1435 = vmatprep.subr.bf16.mxu0 0
      %1436 = vmatpush1.bf16.msra.mxu0 %v1116
      %1437 = vmatprep.subr.bf16.mxu0 0
      %1438 = vmatpush1.bf16.msra.mxu0 %v1117
      %1439 = vmatprep.subr.bf16.mxu0 0
      %1440 = vmatpush1.bf16.msra.mxu0 %v1118
      %1441 = vmatprep.subr.bf16.mxu0 0
      %1442 = vmatpush1.bf16.msra.mxu0 %v1119
      %1443 = vmatprep.subr.bf16.mxu0 0
      %1444 = vmatpush1.bf16.msra.mxu0 %v1120
      %1445 = vmatprep.subr.bf16.mxu0 0
      %1446 = vmatpush1.bf16.msra.mxu0 %v1121
      %1447 = vmatprep.subr.bf16.mxu0 0
      %1448 = vmatpush1.bf16.msra.mxu0 %v1122
      %1449 = vmatprep.subr.bf16.mxu0 0
      %1450 = vmatpush1.bf16.msra.mxu0 %v1123
      %1451 = vmatprep.subr.bf16.mxu0 0
      %1452 = vmatpush1.bf16.msra.mxu0 %v1124
      %1453 = vmatprep.mubr.bf16.mxu0 %v484
      %1454 = vmatmul.mubr.bf16.gmra.mrb[0].mxu0 %v483
      %v1455 = vpop.f32.mrb[0].mxu0
      %v1456 = vadd.f32 %v1416, %v1455
      %v1457 = vpop.f32.mrb[0].mxu0
      %v1458 = vpop.f32.mrb[0].mxu0
      %v1459 = vpop.f32.mrb[0].mxu0
      %1460 = vdwg.mxu0
      %1461 = vmatprep.subr.bf16.mxu0 0
      %1462 = vmatpush1.bf16.msra.mxu0 %v1125
      %1463 = vmatprep.subr.bf16.mxu0 0
      %1464 = vmatpush1.bf16.msra.mxu0 %v1126
      %1465 = vmatprep.subr.bf16.mxu0 0
      %1466 = vmatpush1.bf16.msra.mxu0 %v1127
      %1467 = vmatprep.subr.bf16.mxu0 0
      %1468 = vmatpush1.bf16.msra.mxu0 %v1128
      %1469 = vmatprep.subr.bf16.mxu0 0
      %1470 = vmatpush1.bf16.msra.mxu0 %v1129
      %1471 = vmatprep.subr.bf16.mxu0 0
      %1472 = vmatpush1.bf16.msra.mxu0 %v1130
      %1473 = vmatprep.subr.bf16.mxu0 0
      %1474 = vmatpush1.bf16.msra.mxu0 %v1131
      %1475 = vmatprep.subr.bf16.mxu0 0
      %1476 = vmatpush1.bf16.msra.mxu0 %v1132
      %1477 = vmatprep.subr.bf16.mxu0 0
      %1478 = vmatpush1.bf16.msra.mxu0 %v1133
      %1479 = vmatprep.subr.bf16.mxu0 0
      %1480 = vmatpush1.bf16.msra.mxu0 %v1134
      %1481 = vmatprep.subr.bf16.mxu0 0
      %1482 = vmatpush1.bf16.msra.mxu0 %v1135
      %1483 = vmatprep.subr.bf16.mxu0 0
      %1484 = vmatpush1.bf16.msra.mxu0 %v1136
      %1485 = vmatprep.subr.bf16.mxu0 0
      %1486 = vmatpush1.bf16.msra.mxu0 %v1137
      %1487 = vmatprep.subr.bf16.mxu0 0
      %1488 = vmatpush1.bf16.msra.mxu0 %v1138
      %1489 = vmatprep.subr.bf16.mxu0 0
      %1490 = vmatpush1.bf16.msra.mxu0 %v1139
      %1491 = vmatprep.subr.bf16.mxu0 0
      %1492 = vmatpush1.bf16.msra.mxu0 %v1140
      %1493 = vmatprep.mubr.bf16.mxu0 %v486
      %1494 = vmatmul.mubr.bf16.gmra.mrb[0].mxu0 %v485
      %v1495 = vpop.f32.mrb[0].mxu0
      %v1496 = vadd.f32 %v1456, %v1495
      %v1497 = vpop.f32.mrb[0].mxu0
      %v1498 = vpop.f32.mrb[0].mxu0
      %v1499 = vpop.f32.mrb[0].mxu0
      %1500 = vdwg.mxu0
      %1501 = vmatprep.subr.bf16.mxu0 0
      %1502 = vmatpush1.bf16.msra.mxu0 %v1141
      %1503 = vmatprep.subr.bf16.mxu0 0
      %1504 = vmatpush1.bf16.msra.mxu0 %v1142
      %1505 = vmatprep.subr.bf16.mxu0 0
      %1506 = vmatpush1.bf16.msra.mxu0 %v1143
      %1507 = vmatprep.subr.bf16.mxu0 0
      %1508 = vmatpush1.bf16.msra.mxu0 %v1144
      %1509 = vmatprep.subr.bf16.mxu0 0
      %1510 = vmatpush1.bf16.msra.mxu0 %v1145
      %1511 = vmatprep.subr.bf16.mxu0 0
      %1512 = vmatpush1.bf16.msra.mxu0 %v1146
      %1513 = vmatprep.subr.bf16.mxu0 0
      %1514 = vmatpush1.bf16.msra.mxu0 %v1147
      %1515 = vmatprep.subr.bf16.mxu0 0
      %1516 = vmatpush1.bf16.msra.mxu0 %v1148
      %1517 = vmatprep.subr.bf16.mxu0 0
      %1518 = vmatpush1.bf16.msra.mxu0 %v1149
      %1519 = vmatprep.subr.bf16.mxu0 0
      %1520 = vmatpush1.bf16.msra.mxu0 %v1150
      %1521 = vmatprep.subr.bf16.mxu0 0
      %1522 = vmatpush1.bf16.msra.mxu0 %v1151
      %1523 = vmatprep.subr.bf16.mxu0 0
      %1524 = vmatpush1.bf16.msra.mxu0 %v1152
      %1525 = vmatprep.subr.bf16.mxu0 0
      %1526 = vmatpush1.bf16.msra.mxu0 %v1153
      %1527 = vmatprep.subr.bf16.mxu0 0
      %1528 = vmatpush1.bf16.msra.mxu0 %v1154
      %1529 = vmatprep.subr.bf16.mxu0 0
      %1530 = vmatpush1.bf16.msra.mxu0 %v1155
      %1531 = vmatprep.subr.bf16.mxu0 0
      %1532 = vmatpush1.bf16.msra.mxu0 %v1156
      %1533 = vmatprep.mubr.bf16.mxu0 %v488
      %1534 = vmatmul.mubr.bf16.gmra.mrb[0].mxu0 %v487
      %v1535 = vpop.f32.mrb[0].mxu0
      %v1536 = vadd.f32 %v1496, %v1535
      %v1537 = vpop.f32.mrb[0].mxu0
      %v1538 = vpop.f32.mrb[0].mxu0
      %v1539 = vpop.f32.mrb[0].mxu0
      %1540 = vdwg.mxu0
      %1541 = vmatprep.subr.bf16.mxu0 0
      %1542 = vmatpush1.bf16.msra.mxu0 %v1157
      %1543 = vmatprep.subr.bf16.mxu0 0
      %1544 = vmatpush1.bf16.msra.mxu0 %v1158
      %1545 = vmatprep.subr.bf16.mxu0 0
      %1546 = vmatpush1.bf16.msra.mxu0 %v1159
      %1547 = vmatprep.subr.bf16.mxu0 0
      %1548 = vmatpush1.bf16.msra.mxu0 %v1160
      %1549 = vmatprep.subr.bf16.mxu0 0
      %1550 = vmatpush1.bf16.msra.mxu0 %v1161
      %1551 = vmatprep.subr.bf16.mxu0 0
      %1552 = vmatpush1.bf16.msra.mxu0 %v1162
      %1553 = vmatprep.subr.bf16.mxu0 0
      %1554 = vmatpush1.bf16.msra.mxu0 %v1163
      %1555 = vmatprep.subr.bf16.mxu0 0
      %1556 = vmatpush1.bf16.msra.mxu0 %v1164
      %1557 = vmatprep.subr.bf16.mxu0 0
      %1558 = vmatpush1.bf16.msra.mxu0 %v1165
      %1559 = vmatprep.subr.bf16.mxu0 0
      %1560 = vmatpush1.bf16.msra.mxu0 %v1166
      %1561 = vmatprep.subr.bf16.mxu0 0
      %1562 = vmatpush1.bf16.msra.mxu0 %v1167
      %1563 = vmatprep.subr.bf16.mxu0 0
      %1564 = vmatpush1.bf16.msra.mxu0 %v1168
      %1565 = vmatprep.subr.bf16.mxu0 0
      %1566 = vmatpush1.bf16.msra.mxu0 %v1169
      %1567 = vmatprep.subr.bf16.mxu0 0
      %1568 = vmatpush1.bf16.msra.mxu0 %v1170
      %1569 = vmatprep.subr.bf16.mxu0 0
      %1570 = vmatpush1.bf16.msra.mxu0 %v1171
      %1571 = vmatprep.subr.bf16.mxu0 0
      %1572 = vmatpush1.bf16.msra.mxu0 %v1172
      %1573 = vmatprep.mubr.bf16.mxu0 %v490
      %1574 = vmatmul.mubr.bf16.gmra.mrb[0].mxu0 %v489
      %v1575 = vpop.f32.mrb[0].mxu0
      %v1576 = vadd.f32 %v1536, %v1575
      %v1577 = vpop.f32.mrb[0].mxu0
      %v1578 = vpop.f32.mrb[0].mxu0
      %v1579 = vpop.f32.mrb[0].mxu0
      %1580 = vdwg.mxu0
      %1581 = vmatprep.subr.bf16.mxu0 0
      %1582 = vmatpush1.bf16.msra.mxu0 %v1173
      %1583 = vmatprep.subr.bf16.mxu0 0
      %1584 = vmatpush1.bf16.msra.mxu0 %v1174
      %1585 = vmatprep.subr.bf16.mxu0 0
      %1586 = vmatpush1.bf16.msra.mxu0 %v1175
      %1587 = vmatprep.subr.bf16.mxu0 0
      %1588 = vmatpush1.bf16.msra.mxu0 %v1176
      %1589 = vmatprep.subr.bf16.mxu0 0
      %1590 = vmatpush1.bf16.msra.mxu0 %v1177
      %1591 = vmatprep.subr.bf16.mxu0 0
      %1592 = vmatpush1.bf16.msra.mxu0 %v1178
      %1593 = vmatprep.subr.bf16.mxu0 0
      %1594 = vmatpush1.bf16.msra.mxu0 %v1179
      %1595 = vmatprep.subr.bf16.mxu0 0
      %1596 = vmatpush1.bf16.msra.mxu0 %v1180
      %1597 = vmatprep.subr.bf16.mxu0 0
      %1598 = vmatpush1.bf16.msra.mxu0 %v1181
      %1599 = vmatprep.subr.bf16.mxu0 0
      %1600 = vmatpush1.bf16.msra.mxu0 %v1182
      %1601 = vmatprep.subr.bf16.mxu0 0
      %1602 = vmatpush1.bf16.msra.mxu0 %v1183
      %1603 = vmatprep.subr.bf16.mxu0 0
      %1604 = vmatpush1.bf16.msra.mxu0 %v1184
      %1605 = vmatprep.subr.bf16.mxu0 0
      %1606 = vmatpush1.bf16.msra.mxu0 %v1185
      %1607 = vmatprep.subr.bf16.mxu0 0
      %1608 = vmatpush1.bf16.msra.mxu0 %v1186
      %1609 = vmatprep.subr.bf16.mxu0 0
      %1610 = vmatpush1.bf16.msra.mxu0 %v1187
      %1611 = vmatprep.subr.bf16.mxu0 0
      %1612 = vmatpush1.bf16.msra.mxu0 %v1188
      %1613 = vmatprep.mubr.bf16.mxu0 %v492
      %1614 = vmatmul.mubr.bf16.gmra.mrb[0].mxu0 %v491
      %v1615 = vpop.f32.mrb[0].mxu0
      %v1616 = vadd.f32 %v1576, %v1615
      %v1617 = vpop.f32.mrb[0].mxu0
      %v1618 = vpop.f32.mrb[0].mxu0
      %v1619 = vpop.f32.mrb[0].mxu0
      %1620 = vdwg.mxu0
      %1621 = vmatprep.subr.bf16.mxu0 0
      %1622 = vmatpush1.bf16.msra.mxu0 %v1189
      %1623 = vmatprep.subr.bf16.mxu0 0
      %1624 = vmatpush1.bf16.msra.mxu0 %v1190
      %1625 = vmatprep.subr.bf16.mxu0 0
      %1626 = vmatpush1.bf16.msra.mxu0 %v1191
      %1627 = vmatprep.subr.bf16.mxu0 0
      %1628 = vmatpush1.bf16.msra.mxu0 %v1192
      %1629 = vmatprep.subr.bf16.mxu0 0
      %1630 = vmatpush1.bf16.msra.mxu0 %v1193
      %1631 = vmatprep.subr.bf16.mxu0 0
      %1632 = vmatpush1.bf16.msra.mxu0 %v1194
      %1633 = vmatprep.subr.bf16.mxu0 0
      %1634 = vmatpush1.bf16.msra.mxu0 %v1195
      %1635 = vmatprep.subr.bf16.mxu0 0
      %1636 = vmatpush1.bf16.msra.mxu0 %v1196
      %1637 = vmatprep.subr.bf16.mxu0 0
      %1638 = vmatpush1.bf16.msra.mxu0 %v1197
      %1639 = vmatprep.subr.bf16.mxu0 0
      %1640 = vmatpush1.bf16.msra.mxu0 %v1198
      %1641 = vmatprep.subr.bf16.mxu0 0
      %1642 = vmatpush1.bf16.msra.mxu0 %v1199
      %1643 = vmatprep.subr.bf16.mxu0 0
      %1644 = vmatpush1.bf16.msra.mxu0 %v1200
      %1645 = vmatprep.subr.bf16.mxu0 0
      %1646 = vmatpush1.bf16.msra.mxu0 %v1201
      %1647 = vmatprep.subr.bf16.mxu0 0
      %1648 = vmatpush1.bf16.msra.mxu0 %v1202
      %1649 = vmatprep.subr.bf16.mxu0 0
      %1650 = vmatpush1.bf16.msra.mxu0 %v1203
      %1651 = vmatprep.subr.bf16.mxu0 0
      %1652 = vmatpush1.bf16.msra.mxu0 %v1204
      %1653 = vmatprep.mubr.bf16.mxu0 %v494
      %1654 = vmatmul.mubr.bf16.gmra.mrb[0].mxu0 %v493
      %v1655 = vpop.f32.mrb[0].mxu0
      %v1656 = vadd.f32 %v1616, %v1655
      %v1657 = vpop.f32.mrb[0].mxu0
      %v1658 = vpop.f32.mrb[0].mxu0
      %v1659 = vpop.f32.mrb[0].mxu0
      %1660 = vdwg.mxu0
      %1661 = vmatprep.subr.bf16.mxu0 0
      %1662 = vmatpush1.bf16.msra.mxu0 %v1205
      %1663 = vmatprep.subr.bf16.mxu0 0
      %1664 = vmatpush1.bf16.msra.mxu0 %v1206
      %1665 = vmatprep.subr.bf16.mxu0 0
      %1666 = vmatpush1.bf16.msra.mxu0 %v1207
      %1667 = vmatprep.subr.bf16.mxu0 0
      %1668 = vmatpush1.bf16.msra.mxu0 %v1208
      %1669 = vmatprep.subr.bf16.mxu0 0
      %1670 = vmatpush1.bf16.msra.mxu0 %v1209
      %1671 = vmatprep.subr.bf16.mxu0 0
      %1672 = vmatpush1.bf16.msra.mxu0 %v1210
      %1673 = vmatprep.subr.bf16.mxu0 0
      %1674 = vmatpush1.bf16.msra.mxu0 %v1211
      %1675 = vmatprep.subr.bf16.mxu0 0
      %1676 = vmatpush1.bf16.msra.mxu0 %v1212
      %1677 = vmatprep.subr.bf16.mxu0 0
      %1678 = vmatpush1.bf16.msra.mxu0 %v1213
      %1679 = vmatprep.subr.bf16.mxu0 0
      %1680 = vmatpush1.bf16.msra.mxu0 %v1214
      %1681 = vmatprep.subr.bf16.mxu0 0
      %1682 = vmatpush1.bf16.msra.mxu0 %v1215
      %1683 = vmatprep.subr.bf16.mxu0 0
      %1684 = vmatpush1.bf16.msra.mxu0 %v1216
      %1685 = vmatprep.subr.bf16.mxu0 0
      %1686 = vmatpush1.bf16.msra.mxu0 %v1217
      %1687 = vmatprep.subr.bf16.mxu0 0
      %1688 = vmatpush1.bf16.msra.mxu0 %v1218
      %1689 = vmatprep.subr.bf16.mxu0 0
      %1690 = vmatpush1.bf16.msra.mxu0 %v1219
      %1691 = vmatprep.subr.bf16.mxu0 0
      %1692 = vmatpush1.bf16.msra.mxu0 %v1220
      %1693 = vmatprep.mubr.bf16.mxu0 %v496
      %1694 = vmatmul.mubr.bf16.gmra.mrb[0].mxu0 %v495
      %v1695 = vpop.f32.mrb[0].mxu0
      %v1696 = vadd.f32 %v1656, %v1695
      %v1697 = vpop.f32.mrb[0].mxu0
      %v1698 = vpop.f32.mrb[0].mxu0
      %v1699 = vpop.f32.mrb[0].mxu0
      %1700 = vdwg.mxu0
      %1701 = vmatprep.subr.bf16.mxu0 0
      %1702 = vmatpush1.bf16.msra.mxu0 %v1221
      %1703 = vmatprep.subr.bf16.mxu0 0
      %1704 = vmatpush1.bf16.msra.mxu0 %v1222
      %1705 = vmatprep.subr.bf16.mxu0 0
      %1706 = vmatpush1.bf16.msra.mxu0 %v1223
      %1707 = vmatprep.subr.bf16.mxu0 0
      %1708 = vmatpush1.bf16.msra.mxu0 %v1224
      %1709 = vmatprep.subr.bf16.mxu0 0
      %1710 = vmatpush1.bf16.msra.mxu0 %v1225
      %1711 = vmatprep.subr.bf16.mxu0 0
      %1712 = vmatpush1.bf16.msra.mxu0 %v1226
      %1713 = vmatprep.subr.bf16.mxu0 0
      %1714 = vmatpush1.bf16.msra.mxu0 %v1227
      %1715 = vmatprep.subr.bf16.mxu0 0
      %1716 = vmatpush1.bf16.msra.mxu0 %v1228
      %1717 = vmatprep.subr.bf16.mxu0 0
      %1718 = vmatpush1.bf16.msra.mxu0 %v1229
      %1719 = vmatprep.subr.bf16.mxu0 0
      %1720 = vmatpush1.bf16.msra.mxu0 %v1230
      %1721 = vmatprep.subr.bf16.mxu0 0
      %1722 = vmatpush1.bf16.msra.mxu0 %v1231
      %1723 = vmatprep.subr.bf16.mxu0 0
      %1724 = vmatpush1.bf16.msra.mxu0 %v1232
      %1725 = vmatprep.subr.bf16.mxu0 0
      %1726 = vmatpush1.bf16.msra.mxu0 %v1233
      %1727 = vmatprep.subr.bf16.mxu0 0
      %1728 = vmatpush1.bf16.msra.mxu0 %v1234
      %1729 = vmatprep.subr.bf16.mxu0 0
      %1730 = vmatpush1.bf16.msra.mxu0 %v1235
      %1731 = vmatprep.subr.bf16.mxu0 0
      %1732 = vmatpush1.bf16.msra.mxu0 %v1236
      %1733 = vmatprep.mubr.bf16.mxu0 %v498
      %1734 = vmatmul.mubr.bf16.gmra.mrb[0].mxu0 %v497
      %v1735 = vpop.f32.mrb[0].mxu0
      %v1736 = vadd.f32 %v1696, %v1735
      %v1737 = vpop.f32.mrb[0].mxu0
      %v1738 = vpop.f32.mrb[0].mxu0
      %v1739 = vpop.f32.mrb[0].mxu0
      %1740 = vdwg.mxu0
      %s1741 = smul.u32 %s14, 8
      %s1742 = scalar_lea.vmem %s3, %s1741
      %1743 = vst [vmem:[%s1742] sm:$0xff] %v1736
      %p1744 = scmp.eq.s32.totalorder %s14, 3
      // Predicated region
      $region33: #{generator_forward.9} parent=31 // pred_check
        %p1745 = pneg %p1744
      $region34: #{generator_forward.9} parent=31 // pred_check_branch
        %1747 = sbr.rel (%p1745) target = $region36
      $region35: #{generator_forward.9} parent=31 // pred_region
        %v1748 = vld [vmem:[%s3] sm:$0xff]
        %v1749 = vld [vmem:[%s3 + $0x8] sm:$0xff]
        %v1750 = vld [vmem:[%s3 + $0x10] sm:$0xff]
        %v1751 = vld [vmem:[%s3 + $0x18] sm:$0xff]
        %v1752 = vadd.f32 %v1748, %v1749
        %v1753 = vadd.f32 %v1752, %v1750
        %v1754 = vadd.f32 %v1753, %v1751
        %v1755 = vrot.slane %v1754, 4
        %v1756 = vadd.f32 %v1754, %v1755
        %v1757 = vrot.slane %v1756, 2
        %v1758 = vadd.f32 %v1756, %v1757
        %v1759 = vrot.slane %v1758, 1
        %v1760 = vadd.f32 %v1758, %v1759
        %v1761 = vmul.f32 %v1760, 0.03125
        %v1762 = vsub.f32 %v1748, %v1761
        %v1763 = vsub.f32 %v1749, %v1761
        %v1764 = vsub.f32 %v1750, %v1761
        %v1765 = vsub.f32 %v1751, %v1761
        %v1766 = vmul.f32 %v1762, %v1762
        %v1767 = vmul.f32 %v1763, %v1763
        %v1768 = vmul.f32 %v1764, %v1764
        %v1769 = vmul.f32 %v1765, %v1765
        %v1770 = vadd.f32 %v1766, %v1767
        %v1771 = vadd.f32 %v1770, %v1768
        %v1772 = vadd.f32 %v1771, %v1769
        %v1773 = vrot.slane %v1772, 4
        %v1774 = vadd.f32 %v1772, %v1773
        %v1775 = vrot.slane %v1774, 2
        %v1776 = vadd.f32 %v1774, %v1775
        %v1777 = vrot.slane %v1776, 1
        %v1778 = vadd.f32 %v1776, %v1777
        %v1779 = vmul.f32 %v1778, 0.03125
        %v1780 = vadd.f32 %v1779, 1e-05
        %v1781 = vrsqrt.pop %v1780
        %v1782 = vmul.f32 %v1762, %v1781
        %v1783 = vmul.f32 %v1763, %v1781
        %v1784 = vmul.f32 %v1764, %v1781
        %v1785 = vmul.f32 %v1765, %v1781
        %v1786 = vld [vmem:[%s2 + $0x1] sm:$0x1]
        %v1787 = vld [vmem:[%s2 + $0x2] sm:$0x1]
        %v1788 = vlaneseq
        %v1789 = vshrl.u32 %v1788, 7
        %v1790 = vsub.s32 0, %v1789
        %v1791 = vrot.slane %v1786, %v1790
        %v1792 = vmul.f32 %v1782, %v1791
        %v1793 = vmul.f32 %v1783, %v1791
        %v1794 = vmul.f32 %v1784, %v1791
        %v1795 = vmul.f32 %v1785, %v1791
        %v1796 = vlaneseq
        %v1797 = vshrl.u32 %v1796, 7
        %v1798 = vsub.s32 0, %v1797
        %v1799 = vrot.slane %v1787, %v1798
        %v1800 = vadd.f32 %v1792, %v1799
        %v1801 = vadd.f32 %v1793, %v1799
        %v1802 = vadd.f32 %v1794, %v1799
        %v1803 = vadd.f32 %v1795, %v1799
        %v1804 = vmax.f32 %v1800, 0.0
        %v1805 = vmax.f32 %v1801, 0.0
        %v1806 = vmax.f32 %v1802, 0.0
        %v1807 = vmax.f32 %v1803, 0.0
        %1808 = vst [vmem:[%s3] sm:$0xff] %v1804
        %1809 = vst [vmem:[%s3 + $0x8] sm:$0xff] %v1805
        %1810 = vst [vmem:[%s3 + $0x10] sm:$0xff] %v1806
        %1811 = vst [vmem:[%s3 + $0x18] sm:$0xff] %v1807
      $region36: #{generator_forward.9} parent=31 // pred_fallthru
        _
      // Predicated region
      $region37: #{generator_forward.9} parent=31 // pred_check
        %p1812 = pneg %p95
      $region38: #{generator_forward.9} parent=31 // pred_check_branch
        %1814 = sbr.rel (%p1812) target = $region40
      $region39: #{generator_forward.9} parent=31 // pred_region
        _
      $region40: #{generator_forward.9} parent=31 // pred_fallthru
        _
      // Predicated region
      $region41: #{generator_forward.9} parent=31 // pred_check
        %p1815 = pneg %p95
      $region42: #{generator_forward.9} parent=31 // pred_check_branch
        %1817 = sbr.rel (%p1815) target = $region44
      $region43: #{generator_forward.9} parent=31 // pred_region
        _
      $region44: #{generator_forward.9} parent=31 // pred_fallthru
        _
    $region32: #{generator_forward.9} parent=5 // pred_fallthru
      _
    %p1818 = scmp.le.s32.totalorder 2, %s9
    // Predicated region
    $region45: #{generator_forward.9} parent=5 // pred_check
      %p1819 = pneg %p1818
    $region46: #{generator_forward.9} parent=5 // pred_check_branch
      %1821 = sbr.rel (%p1819) target = $region48
    $region47: #{generator_forward.9} parent=5 // pred_region
      %s1822 = ssub.s32 %s9, 2
    $region48: #{generator_forward.9} parent=5 // pred_fallthru
      _
  $region6: #{generator_forward.9} parent=0 // loop_footer
    %s13 = sadd.s32 1, %s9
  $region7: #{generator_forward.9} parent=0 // loop_footer_branch
    %8 = sbr.rel target = $region3
  $region8: #{generator_forward.9} parent=0 // loop_exit
    _

// kernel: generator_forward.10
$region0: #{generator_forward.10}
  #allocation0 [shape = 'u32[]', space=smem, size = 0x4, offset = 0x4, fixed_abs, tag = 'smem constant byte address 0x4 - core index']
  #allocation1 [shape = 'u32[144,128]{1,0:T(1,128)}', space=vmem, size = 0x12000, scoped, tag = 'internal scratch']
  %s0 = inlined_call_operand.vmem [shape: bf16[32,1152], index: 0, kind: input, shape index: {}]
  %s1 = inlined_call_operand.vmem [shape: bf16[4,1152,128], index: 1, kind: input, shape index: {}]
  %s2 = inlined_call_operand.vmem [shape: f32[8,128], index: 2, kind: input, shape index: {}]
  %s3 = inlined_call_operand.vmem [shape: f32[128,128], index: 3, kind: output, shape index: {}]
  %s4 = sld [smem:[#allocation0]]
  $region49: #{generator_forward.10} parent=0
    _
  %s6 = ssub.s32 1, %s4
  %s7 = scalar_select 0, %s6, %s4
  loop: start=0, step=1, limit=6
  $region2: #{generator_forward.10} parent=0 // loop_pre_header
    _
  $region3: #{generator_forward.10} parent=0 // loop_header
    %s9 = sphi 0, %s13
    %p10 = scmp.ge.s32.totalorder %s9, 6
    %s17 = sphi 0, %s17
    %s19 = sphi 0, %s17
    %s20 = sphi 0, %s19
    %s34 = sphi 0, %s20
    %s40 = sphi 0, %s42
    %s43 = sphi 0, %s40
    %s44 = sphi 0, %s43
    %s60 = sphi 0, %s44
    %s64 = sphi 0, %s64
    %s66 = sphi 0, %s64
    %s67 = sphi 0, %s66
    %s81 = sphi 0, %s67
    %s85 = sphi 0, %s85
    %s87 = sphi 0, %s85
    %s88 = sphi 0, %s87
    %s102 = sphi 0, %s88
  $region4: #{generator_forward.10} parent=0 // loop_header_branch
    %12 = sbr.rel (%p10) target = $region8
  $region5: #{generator_forward.10} parent=0 // loop_body
    %s14 = ssub.s32 %s9, 1
    %s15 = ssub.s32 %s9, 2
    %s16 = sadd.s32 %s9, 1
    %s18 = sadd.s32 %s17, 1
    %p21 = scmp.eq.s32.totalorder %s9, 3
    %p22 = scmp.ne.s32.totalorder %s17, %s19
    %p23 = scmp.eq.s32.totalorder %s9, 0
    %p24 = por %p22, %p23
    %p25 = scmp.ne.s32.totalorder %s17, %s19
    %p26 = scmp.eq.s32.totalorder %s14, 3
    %p27 = por %p25, %p26
    %p28 = scmp.ne.s32.totalorder %s19, %s20
    %p29 = scmp.eq.s32.totalorder %s14, 0
    %p30 = por %p28, %p29
    %p31 = scmp.ne.s32.totalorder %s19, %s20
    %p32 = scmp.eq.s32.totalorder %s15, 3
    %p33 = por %p31, %p32
    %p35 = scmp.ne.s32.totalorder %s20, %s34
    %p36 = scmp.eq.s32.totalorder %s15, 0
    %p37 = por %p35, %p36
    %s38 = ssub.s32 %s9, %s16
    %p39 = scmp.eq.s32.totalorder %s38, 0
    %s41 = sadd.s32 %s40, 1
    %s42 = scalar_select %p39, %s40, %s41
    %p45 = pneg %p39
    %p46 = scmp.eq.s32.totalorder %s9, 3
    %p47 = por %p45, %p46
    %p48 = scmp.ne.s32.totalorder %s40, %s43
    %p49 = scmp.eq.s32.totalorder %s9, 0
    %p50 = por %p48, %p49
    %p51 = scmp.ne.s32.totalorder %s40, %s43
    %p52 = scmp.eq.s32.totalorder %s14, 3
    %p53 = por %p51, %p52
    %p54 = scmp.ne.s32.totalorder %s43, %s44
    %p55 = scmp.eq.s32.totalorder %s14, 0
    %p56 = por %p54, %p55
    %p57 = scmp.ne.s32.totalorder %s43, %s44
    %p58 = scmp.eq.s32.totalorder %s15, 3
    %p59 = por %p57, %p58
    %p61 = scmp.ne.s32.totalorder %s44, %s60
    %p62 = scmp.eq.s32.totalorder %s15, 0
    %p63 = por %p61, %p62
    %s65 = sadd.s32 %s64, 1
    %p68 = scmp.eq.s32.totalorder %s9, 3
    %p69 = scmp.ne.s32.totalorder %s64, %s66
    %p70 = scmp.eq.s32.totalorder %s9, 0
    %p71 = por %p69, %p70
    %p72 = scmp.ne.s32.totalorder %s64, %s66
    %p73 = scmp.eq.s32.totalorder %s14, 3
    %p74 = por %p72, %p73
    %p75 = scmp.ne.s32.totalorder %s66, %s67
    %p76 = scmp.eq.s32.totalorder %s14, 0
    %p77 = por %p75, %p76
    %p78 = scmp.ne.s32.totalorder %s66, %s67
    %p79 = scmp.eq.s32.totalorder %s15, 3
    %p80 = por %p78, %p79
    %p82 = scmp.ne.s32.totalorder %s67, %s81
    %p83 = scmp.eq.s32.totalorder %s15, 0
    %p84 = por %p82, %p83
    %s86 = sadd.s32 %s85, 1
    %p89 = scmp.eq.s32.totalorder %s9, 3
    %p90 = scmp.ne.s32.totalorder %s85, %s87
    %p91 = scmp.eq.s32.totalorder %s9, 0
    %p92 = por %p90, %p91
    %p93 = scmp.ne.s32.totalorder %s85, %s87
    %p94 = scmp.eq.s32.totalorder %s14, 3
    %p95 = por %p93, %p94
    %p96 = scmp.ne.s32.totalorder %s87, %s88
    %p97 = scmp.eq.s32.totalorder %s14, 0
    %p98 = por %p96, %p97
    %p99 = scmp.ne.s32.totalorder %s87, %s88
    %p100 = scmp.eq.s32.totalorder %s15, 3
    %p101 = por %p99, %p100
    %p103 = scmp.ne.s32.totalorder %s88, %s102
    %p104 = scmp.eq.s32.totalorder %s15, 0
    %p105 = por %p103, %p104
    %p106 = scmp.le.s32.totalorder 1, %s9
    %p107 = scmp.lt.s32.totalorder %s9, 5
    %p108 = pnand %p106, %p107
    %p109 = pneg %p108
    // Predicated region
    $region9: #{generator_forward.10} parent=5 // pred_check
      _
    $region10: #{generator_forward.10} parent=5 // pred_check_branch
      %111 = sbr.rel (%p108) target = $region12
    $region11: #{generator_forward.10} parent=5 // pred_region
      %s112 = ssub.s32 %s9, 1
      // Predicated region
      $region13: #{generator_forward.10} parent=11 // pred_check
        %p113 = pneg %p30
      $region14: #{generator_forward.10} parent=11 // pred_check_branch
        %115 = sbr.rel (%p113) target = $region16
      $region15: #{generator_forward.10} parent=11 // pred_region
        _
      $region16: #{generator_forward.10} parent=11 // pred_fallthru
        _
      // Predicated region
      $region17: #{generator_forward.10} parent=11 // pred_check
        %p116 = pneg %p77
      $region18: #{generator_forward.10} parent=11 // pred_check_branch
        %118 = sbr.rel (%p116) target = $region20
      $region19: #{generator_forward.10} parent=11 // pred_region
        _
      $region20: #{generator_forward.10} parent=11 // pred_fallthru
        _
    $region12: #{generator_forward.10} parent=5 // pred_fallthru
      _
    %p119 = scmp.lt.s32.totalorder %s9, 4
    // Predicated region
    $region21: #{generator_forward.10} parent=5 // pred_check
      %p120 = pneg %p119
    $region22: #{generator_forward.10} parent=5 // pred_check_branch
      %122 = sbr.rel (%p120) target = $region24
    $region23: #{generator_forward.10} parent=5 // pred_region
      // Predicated region
      $region25: #{generator_forward.10} parent=23 // pred_check
        %p123 = pneg %p50
      $region26: #{generator_forward.10} parent=23 // pred_check_branch
        %125 = sbr.rel (%p123) target = $region28
      $region27: #{generator_forward.10} parent=23 // pred_region
        %p126 = scmp.lt.s32.totalorder %s9, 3
        %s127 = scalar_select %p126, %s9, 3
        %s128 = smul.addr %s127, 144
        %s129 = smul.addr %s128, 4
        %s130 = scalar_lea.vmem %s1, %s129
      $region28: #{generator_forward.10} parent=23 // pred_fallthru
        _
    $region24: #{generator_forward.10} parent=5 // pred_fallthru
      _
    %p131 = scmp.le.s32.totalorder 1, %s9
    %p132 = scmp.lt.s32.totalorder %s9, 5
    %p133 = pnand %p131, %p132
    %p134 = pneg %p133
    // Predicated region
    $region29: #{generator_forward.10} parent=5 // pred_check
      _
    $region30: #{generator_forward.10} parent=5 // pred_check_branch
      %136 = sbr.rel (%p133) target = $region32
    $region31: #{generator_forward.10} parent=5 // pred_region
      %s137 = ssub.s32 %s9, 1
      %p138 = pneg %p30
      %p139 = pneg %p27
      %p140 = scmp.lt.s32.totalorder %s14, 3
      %s141 = scalar_select %p140, %s14, 3
      %s142 = smul.addr %s141, 144
      %s143 = smul.addr %s142, 4
      %s144 = scalar_lea.vmem %s1, %s143
      %p145 = pneg %p56
      %p146 = pneg %p53
      %p147 = pneg %p77
      %p148 = pneg %p74
      %p149 = pneg %p98
      %p150 = pneg %p95
      %p151 = scmp.lt.s32.totalorder %s14, 3
      %s152 = scalar_select %p151, %s14, 3
      %s153 = smul.addr %s152, 144
      %s154 = smul.addr %s153, 4
      %s155 = scalar_lea.vmem %s1, %s154
      %v157 = vld [vmem:[%s0] sm:$0xff]
      %v158 = vld [vmem:[%s0 + $0x8] sm:$0xff]
      %v159 = vld [vmem:[%s0 + $0x10] sm:$0xff]
      %v160 = vld [vmem:[%s0 + $0x18] sm:$0xff]
      %v161 = vld [vmem:[%s0 + $0x20] sm:$0xf]
      %v162 = vld [vmem:[%s0 + $0x24] sm:$0xff]
      %v163 = vld [vmem:[%s0 + $0x2c] sm:$0xff]
      %v164 = vld [vmem:[%s0 + $0x34] sm:$0xff]
      %v165 = vld [vmem:[%s0 + $0x3c] sm:$0xff]
      %v166 = vld [vmem:[%s0 + $0x44] sm:$0xf]
      %v167 = vld [vmem:[%s0 + $0x48] sm:$0xff]
      %v168 = vld [vmem:[%s0 + $0x50] sm:$0xff]
      %v169 = vld [vmem:[%s0 + $0x58] sm:$0xff]
      %v170 = vld [vmem:[%s0 + $0x60] sm:$0xff]
      %v171 = vld [vmem:[%s0 + $0x68] sm:$0xf]
      %v172 = vld [vmem:[%s0 + $0x6c] sm:$0xff]
      %v173 = vld [vmem:[%s0 + $0x74] sm:$0xff]
      %v174 = vld [vmem:[%s0 + $0x7c] sm:$0xff]
      %v175 = vld [vmem:[%s0 + $0x84] sm:$0xff]
      %v176 = vld [vmem:[%s0 + $0x8c] sm:$0xf]
      %v177 = vld [vmem:[%s155] sm:$0xf]
      %v178 = vld [vmem:[%s155 + $0x4] sm:$0xf]
      %v179 = vld [vmem:[%s155 + $0x8] sm:$0xf]
      %v180 = vld [vmem:[%s155 + $0xc] sm:$0xf]
      %v181 = vld [vmem:[%s155 + $0x10] sm:$0xf]
      %v182 = vld [vmem:[%s155 + $0x14] sm:$0xf]
      %v183 = vld [vmem:[%s155 + $0x18] sm:$0xf]
      %v184 = vld [vmem:[%s155 + $0x1c] sm:$0xf]
      %v185 = vld [vmem:[%s155 + $0x20] sm:$0xf]
      %v186 = vld [vmem:[%s155 + $0x24] sm:$0xf]
      %v187 = vld [vmem:[%s155 + $0x28] sm:$0xf]
      %v188 = vld [vmem:[%s155 + $0x2c] sm:$0xf]
      %v189 = vld [vmem:[%s155 + $0x30] sm:$0xf]
      %v190 = vld [vmem:[%s155 + $0x34] sm:$0xf]
      %v191 = vld [vmem:[%s155 + $0x38] sm:$0xf]
      %v192 = vld [vmem:[%s155 + $0x3c] sm:$0xf]
      %v193 = vld [vmem:[%s155 + $0x40] sm:$0xf]
      %v194 = vld [vmem:[%s155 + $0x44] sm:$0xf]
      %v195 = vld [vmem:[%s155 + $0x48] sm:$0xf]
      %v196 = vld [vmem:[%s155 + $0x4c] sm:$0xf]
      %v197 = vld [vmem:[%s155 + $0x50] sm:$0xf]
      %v198 = vld [vmem:[%s155 + $0x54] sm:$0xf]
      %v199 = vld [vmem:[%s155 + $0x58] sm:$0xf]
      %v200 = vld [vmem:[%s155 + $0x5c] sm:$0xf]
      %v201 = vld [vmem:[%s155 + $0x60] sm:$0xf]
      %v202 = vld [vmem:[%s155 + $0x64] sm:$0xf]
      %v203 = vld [vmem:[%s155 + $0x68] sm:$0xf]
      %v204 = vld [vmem:[%s155 + $0x6c] sm:$0xf]
      %v205 = vld [vmem:[%s155 + $0x70] sm:$0xf]
      %v206 = vld [vmem:[%s155 + $0x74] sm:$0xf]
      %v207 = vld [vmem:[%s155 + $0x78] sm:$0xf]
      %v208 = vld [vmem:[%s155 + $0x7c] sm:$0xf]
      %v209 = vld [vmem:[%s155 + $0x80] sm:$0xf]
      %v210 = vld [vmem:[%s155 + $0x84] sm:$0xf]
      %v211 = vld [vmem:[%s155 + $0x88] sm:$0xf]
      %v212 = vld [vmem:[%s155 + $0x8c] sm:$0xf]
      %v213 = vld [vmem:[%s155 + $0x90] sm:$0xf]
      %v214 = vld [vmem:[%s155 + $0x94] sm:$0xf]
      %v215 = vld [vmem:[%s155 + $0x98] sm:$0xf]
      %v216 = vld [vmem:[%s155 + $0x9c] sm:$0xf]
      %v217 = vld [vmem:[%s155 + $0xa0] sm:$0xf]
      %v218 = vld [vmem:[%s155 + $0xa4] sm:$0xf]
      %v219 = vld [vmem:[%s155 + $0xa8] sm:$0xf]
      %v220 = vld [vmem:[%s155 + $0xac] sm:$0xf]
      %v221 = vld [vmem:[%s155 + $0xb0] sm:$0xf]
      %v222 = vld [vmem:[%s155 + $0xb4] sm:$0xf]
      %v223 = vld [vmem:[%s155 + $0xb8] sm:$0xf]
      %v224 = vld [vmem:[%s155 + $0xbc] sm:$0xf]
      %v225 = vld [vmem:[%s155 + $0xc0] sm:$0xf]
      %v226 = vld [vmem:[%s155 + $0xc4] sm:$0xf]
      %v227 = vld [vmem:[%s155 + $0xc8] sm:$0xf]
      %v228 = vld [vmem:[%s155 + $0xcc] sm:$0xf]
      %v229 = vld [vmem:[%s155 + $0xd0] sm:$0xf]
      %v230 = vld [vmem:[%s155 + $0xd4] sm:$0xf]
      %v231 = vld [vmem:[%s155 + $0xd8] sm:$0xf]
      %v232 = vld [vmem:[%s155 + $0xdc] sm:$0xf]
      %v233 = vld [vmem:[%s155 + $0xe0] sm:$0xf]
      %v234 = vld [vmem:[%s155 + $0xe4] sm:$0xf]
      %v235 = vld [vmem:[%s155 + $0xe8] sm:$0xf]
      %v236 = vld [vmem:[%s155 + $0xec] sm:$0xf]
      %v237 = vld [vmem:[%s155 + $0xf0] sm:$0xf]
      %v238 = vld [vmem:[%s155 + $0xf4] sm:$0xf]
      %v239 = vld [vmem:[%s155 + $0xf8] sm:$0xf]
      %v240 = vld [vmem:[%s155 + $0xfc] sm:$0xf]
      %v241 = vld [vmem:[%s155 + $0x100] sm:$0xf]
      %v242 = vld [vmem:[%s155 + $0x104] sm:$0xf]
      %v243 = vld [vmem:[%s155 + $0x108] sm:$0xf]
      %v244 = vld [vmem:[%s155 + $0x10c] sm:$0xf]
      %v245 = vld [vmem:[%s155 + $0x110] sm:$0xf]
      %v246 = vld [vmem:[%s155 + $0x114] sm:$0xf]
      %v247 = vld [vmem:[%s155 + $0x118] sm:$0xf]
      %v248 = vld [vmem:[%s155 + $0x11c] sm:$0xf]
      %v249 = vld [vmem:[%s155 + $0x120] sm:$0xf]
      %v250 = vld [vmem:[%s155 + $0x124] sm:$0xf]
      %v251 = vld [vmem:[%s155 + $0x128] sm:$0xf]
      %v252 = vld [vmem:[%s155 + $0x12c] sm:$0xf]
      %v253 = vld [vmem:[%s155 + $0x130] sm:$0xf]
      %v254 = vld [vmem:[%s155 + $0x134] sm:$0xf]
      %v255 = vld [vmem:[%s155 + $0x138] sm:$0xf]
      %v256 = vld [vmem:[%s155 + $0x13c] sm:$0xf]
      %v257 = vld [vmem:[%s155 + $0x140] sm:$0xf]
      %v258 = vld [vmem:[%s155 + $0x144] sm:$0xf]
      %v259 = vld [vmem:[%s155 + $0x148] sm:$0xf]
      %v260 = vld [vmem:[%s155 + $0x14c] sm:$0xf]
      %v261 = vld [vmem:[%s155 + $0x150] sm:$0xf]
      %v262 = vld [vmem:[%s155 + $0x154] sm:$0xf]
      %v263 = vld [vmem:[%s155 + $0x158] sm:$0xf]
      %v264 = vld [vmem:[%s155 + $0x15c] sm:$0xf]
      %v265 = vld [vmem:[%s155 + $0x160] sm:$0xf]
      %v266 = vld [vmem:[%s155 + $0x164] sm:$0xf]
      %v267 = vld [vmem:[%s155 + $0x168] sm:$0xf]
      %v268 = vld [vmem:[%s155 + $0x16c] sm:$0xf]
      %v269 = vld [vmem:[%s155 + $0x170] sm:$0xf]
      %v270 = vld [vmem:[%s155 + $0x174] sm:$0xf]
      %v271 = vld [vmem:[%s155 + $0x178] sm:$0xf]
      %v272 = vld [vmem:[%s155 + $0x17c] sm:$0xf]
      %v273 = vld [vmem:[%s155 + $0x180] sm:$0xf]
      %v274 = vld [vmem:[%s155 + $0x184] sm:$0xf]
      %v275 = vld [vmem:[%s155 + $0x188] sm:$0xf]
      %v276 = vld [vmem:[%s155 + $0x18c] sm:$0xf]
      %v277 = vld [vmem:[%s155 + $0x190] sm:$0xf]
      %v278 = vld [vmem:[%s155 + $0x194] sm:$0xf]
      %v279 = vld [vmem:[%s155 + $0x198] sm:$0xf]
      %v280 = vld [vmem:[%s155 + $0x19c] sm:$0xf]
      %v281 = vld [vmem:[%s155 + $0x1a0] sm:$0xf]
      %v282 = vld [vmem:[%s155 + $0x1a4] sm:$0xf]
      %v283 = vld [vmem:[%s155 + $0x1a8] sm:$0xf]
      %v284 = vld [vmem:[%s155 + $0x1ac] sm:$0xf]
      %v285 = vld [vmem:[%s155 + $0x1b0] sm:$0xf]
      %v286 = vld [vmem:[%s155 + $0x1b4] sm:$0xf]
      %v287 = vld [vmem:[%s155 + $0x1b8] sm:$0xf]
      %v288 = vld [vmem:[%s155 + $0x1bc] sm:$0xf]
      %v289 = vld [vmem:[%s155 + $0x1c0] sm:$0xf]
      %v290 = vld [vmem:[%s155 + $0x1c4] sm:$0xf]
      %v291 = vld [vmem:[%s155 + $0x1c8] sm:$0xf]
      %v292 = vld [vmem:[%s155 + $0x1cc] sm:$0xf]
      %v293 = vld [vmem:[%s155 + $0x1d0] sm:$0xf]
      %v294 = vld [vmem:[%s155 + $0x1d4] sm:$0xf]
      %v295 = vld [vmem:[%s155 + $0x1d8] sm:$0xf]
      %v296 = vld [vmem:[%s155 + $0x1dc] sm:$0xf]
      %v297 = vld [vmem:[%s155 + $0x1e0] sm:$0xf]
      %v298 = vld [vmem:[%s155 + $0x1e4] sm:$0xf]
      %v299 = vld [vmem:[%s155 + $0x1e8] sm:$0xf]
      %v300 = vld [vmem:[%s155 + $0x1ec] sm:$0xf]
      %v301 = vld [vmem:[%s155 + $0x1f0] sm:$0xf]
      %v302 = vld [vmem:[%s155 + $0x1f4] sm:$0xf]
      %v303 = vld [vmem:[%s155 + $0x1f8] sm:$0xf]
      %v304 = vld [vmem:[%s155 + $0x1fc] sm:$0xf]
      %v305 = vld [vmem:[%s155 + $0x200] sm:$0xf]
      %v306 = vld [vmem:[%s155 + $0x204] sm:$0xf]
      %v307 = vld [vmem:[%s155 + $0x208] sm:$0xf]
      %v308 = vld [vmem:[%s155 + $0x20c] sm:$0xf]
      %v309 = vld [vmem:[%s155 + $0x210] sm:$0xf]
      %v310 = vld [vmem:[%s155 + $0x214] sm:$0xf]
      %v311 = vld [vmem:[%s155 + $0x218] sm:$0xf]
      %v312 = vld [vmem:[%s155 + $0x21c] sm:$0xf]
      %v313 = vld [vmem:[%s155 + $0x220] sm:$0xf]
      %v314 = vld [vmem:[%s155 + $0x224] sm:$0xf]
      %v315 = vld [vmem:[%s155 + $0x228] sm:$0xf]
      %v316 = vld [vmem:[%s155 + $0x22c] sm:$0xf]
      %v317 = vld [vmem:[%s155 + $0x230] sm:$0xf]
      %v318 = vld [vmem:[%s155 + $0x234] sm:$0xf]
      %v319 = vld [vmem:[%s155 + $0x238] sm:$0xf]
      %v320 = vld [vmem:[%s155 + $0x23c] sm:$0xf]
      %v341 = vunpack.c.l.b16 %v157
      %v342 = vunpack.c.h.b16 %v157
      %v343 = vunpack.c.l.b16 %v158
      %v344 = vunpack.c.h.b16 %v158
      %v345 = vunpack.c.l.b16 %v159
      %v346 = vunpack.c.h.b16 %v159
      %v347 = vunpack.c.l.b16 %v160
      %v348 = vunpack.c.h.b16 %v160
      %v349 = vunpack.c.l.b16 %v161
      %v350 = vunpack.c.l.b16 %v162
      %v351 = vunpack.c.h.b16 %v162
      %v352 = vunpack.c.l.b16 %v163
      %v353 = vunpack.c.h.b16 %v163
      %v354 = vunpack.c.l.b16 %v164
      %v355 = vunpack.c.h.b16 %v164
      %v356 = vunpack.c.l.b16 %v165
      %v357 = vunpack.c.h.b16 %v165
      %v358 = vunpack.c.l.b16 %v166
      %v359 = vunpack.c.l.b16 %v167
      %v360 = vunpack.c.h.b16 %v167
      %v361 = vunpack.c.l.b16 %v168
      %v362 = vunpack.c.h.b16 %v168
      %v363 = vunpack.c.l.b16 %v169
      %v364 = vunpack.c.h.b16 %v169
      %v365 = vunpack.c.l.b16 %v170
      %v366 = vunpack.c.h.b16 %v170
      %v367 = vunpack.c.l.b16 %v171
      %v368 = vunpack.c.l.b16 %v172
      %v369 = vunpack.c.h.b16 %v172
      %v370 = vunpack.c.l.b16 %v173
      %v371 = vunpack.c.h.b16 %v173
      %v372 = vunpack.c.l.b16 %v174
      %v373 = vunpack.c.h.b16 %v174
      %v374 = vunpack.c.l.b16 %v175
      %v375 = vunpack.c.h.b16 %v175
      %v376 = vunpack.c.l.b16 %v176
      %v377 = vpack.c.b16 %v350, %v341
      %v378 = vpack.c.b16 %v351, %v342
      %v379 = vpack.c.b16 %v352, %v343
      %v380 = vpack.c.b16 %v353, %v344
      %v381 = vpack.c.b16 %v354, %v345
      %v382 = vpack.c.b16 %v355, %v346
      %v383 = vpack.c.b16 %v356, %v347
      %v384 = vpack.c.b16 %v357, %v348
      %v385 = vpack.c.b16 %v358, %v349
      %v386 = vpack.c.b16 %v368, %v359
      %v387 = vpack.c.b16 %v369, %v360
      %v388 = vpack.c.b16 %v370, %v361
      %v389 = vpack.c.b16 %v371, %v362
      %v390 = vpack.c.b16 %v372, %v363
      %v391 = vpack.c.b16 %v373, %v364
      %v392 = vpack.c.b16 %v374, %v365
      %v393 = vpack.c.b16 %v375, %v366
      %v394 = vpack.c.b16 %v376, %v367
      %v557 = vunpack.c.l.b16 %v177
      %v558 = vunpack.c.l.b16 %v178
      %v559 = vunpack.c.l.b16 %v179
      %v560 = vunpack.c.l.b16 %v180
      %v561 = vunpack.c.l.b16 %v181
      %v562 = vunpack.c.l.b16 %v182
      %v563 = vunpack.c.l.b16 %v183
      %v564 = vunpack.c.l.b16 %v184
      %v565 = vunpack.c.l.b16 %v185
      %v566 = vunpack.c.l.b16 %v186
      %v567 = vunpack.c.l.b16 %v187
      %v568 = vunpack.c.l.b16 %v188
      %v569 = vunpack.c.l.b16 %v189
      %v570 = vunpack.c.l.b16 %v190
      %v571 = vunpack.c.l.b16 %v191
      %v572 = vunpack.c.l.b16 %v192
      %v573 = vunpack.c.l.b16 %v193
      %v574 = vunpack.c.l.b16 %v194
      %v575 = vunpack.c.l.b16 %v195
      %v576 = vunpack.c.l.b16 %v196
      %v577 = vunpack.c.l.b16 %v197
      %v578 = vunpack.c.l.b16 %v198
      %v579 = vunpack.c.l.b16 %v199
      %v580 = vunpack.c.l.b16 %v200
      %v581 = vunpack.c.l.b16 %v201
      %v582 = vunpack.c.l.b16 %v202
      %v583 = vunpack.c.l.b16 %v203
      %v584 = vunpack.c.l.b16 %v204
      %v585 = vunpack.c.l.b16 %v205
      %v586 = vunpack.c.l.b16 %v206
      %v587 = vunpack.c.l.b16 %v207
      %v588 = vunpack.c.l.b16 %v208
      %v589 = vunpack.c.l.b16 %v209
      %v590 = vunpack.c.l.b16 %v210
      %v591 = vunpack.c.l.b16 %v211
      %v592 = vunpack.c.l.b16 %v212
      %v593 = vunpack.c.l.b16 %v213
      %v594 = vunpack.c.l.b16 %v214
      %v595 = vunpack.c.l.b16 %v215
      %v596 = vunpack.c.l.b16 %v216
      %v597 = vunpack.c.l.b16 %v217
      %v598 = vunpack.c.l.b16 %v218
      %v599 = vunpack.c.l.b16 %v219
      %v600 = vunpack.c.l.b16 %v220
      %v601 = vunpack.c.l.b16 %v221
      %v602 = vunpack.c.l.b16 %v222
      %v603 = vunpack.c.l.b16 %v223
      %v604 = vunpack.c.l.b16 %v224
      %v605 = vunpack.c.l.b16 %v225
      %v606 = vunpack.c.l.b16 %v226
      %v607 = vunpack.c.l.b16 %v227
      %v608 = vunpack.c.l.b16 %v228
      %v609 = vunpack.c.l.b16 %v229
      %v610 = vunpack.c.l.b16 %v230
      %v611 = vunpack.c.l.b16 %v231
      %v612 = vunpack.c.l.b16 %v232
      %v613 = vunpack.c.l.b16 %v233
      %v614 = vunpack.c.l.b16 %v234
      %v615 = vunpack.c.l.b16 %v235
      %v616 = vunpack.c.l.b16 %v236
      %v617 = vunpack.c.l.b16 %v237
      %v618 = vunpack.c.l.b16 %v238
      %v619 = vunpack.c.l.b16 %v239
      %v620 = vunpack.c.l.b16 %v240
      %v621 = vunpack.c.l.b16 %v241
      %v622 = vunpack.c.l.b16 %v242
      %v623 = vunpack.c.l.b16 %v243
      %v624 = vunpack.c.l.b16 %v244
      %v625 = vunpack.c.l.b16 %v245
      %v626 = vunpack.c.l.b16 %v246
      %v627 = vunpack.c.l.b16 %v247
      %v628 = vunpack.c.l.b16 %v248
      %v629 = vunpack.c.l.b16 %v249
      %v630 = vunpack.c.l.b16 %v250
      %v631 = vunpack.c.l.b16 %v251
      %v632 = vunpack.c.l.b16 %v252
      %v633 = vunpack.c.l.b16 %v253
      %v634 = vunpack.c.l.b16 %v254
      %v635 = vunpack.c.l.b16 %v255
      %v636 = vunpack.c.l.b16 %v256
      %v637 = vunpack.c.l.b16 %v257
      %v638 = vunpack.c.l.b16 %v258
      %v639 = vunpack.c.l.b16 %v259
      %v640 = vunpack.c.l.b16 %v260
      %v641 = vunpack.c.l.b16 %v261
      %v642 = vunpack.c.l.b16 %v262
      %v643 = vunpack.c.l.b16 %v263
      %v644 = vunpack.c.l.b16 %v264
      %v645 = vunpack.c.l.b16 %v265
      %v646 = vunpack.c.l.b16 %v266
      %v647 = vunpack.c.l.b16 %v267
      %v648 = vunpack.c.l.b16 %v268
      %v649 = vunpack.c.l.b16 %v269
      %v650 = vunpack.c.l.b16 %v270
      %v651 = vunpack.c.l.b16 %v271
      %v652 = vunpack.c.l.b16 %v272
      %v653 = vunpack.c.l.b16 %v273
      %v654 = vunpack.c.l.b16 %v274
      %v655 = vunpack.c.l.b16 %v275
      %v656 = vunpack.c.l.b16 %v276
      %v657 = vunpack.c.l.b16 %v277
      %v658 = vunpack.c.l.b16 %v278
      %v659 = vunpack.c.l.b16 %v279
      %v660 = vunpack.c.l.b16 %v280
      %v661 = vunpack.c.l.b16 %v281
      %v662 = vunpack.c.l.b16 %v282
      %v663 = vunpack.c.l.b16 %v283
      %v664 = vunpack.c.l.b16 %v284
      %v665 = vunpack.c.l.b16 %v285
      %v666 = vunpack.c.l.b16 %v286
      %v667 = vunpack.c.l.b16 %v287
      %v668 = vunpack.c.l.b16 %v288
      %v669 = vunpack.c.l.b16 %v289
      %v670 = vunpack.c.l.b16 %v290
      %v671 = vunpack.c.l.b16 %v291
      %v672 = vunpack.c.l.b16 %v292
      %v673 = vunpack.c.l.b16 %v293
      %v674 = vunpack.c.l.b16 %v294
      %v675 = vunpack.c.l.b16 %v295
      %v676 = vunpack.c.l.b16 %v296
      %v677 = vunpack.c.l.b16 %v297
      %v678 = vunpack.c.l.b16 %v298
      %v679 = vunpack.c.l.b16 %v299
      %v680 = vunpack.c.l.b16 %v300
      %v681 = vunpack.c.l.b16 %v301
      %v682 = vunpack.c.l.b16 %v302
      %v683 = vunpack.c.l.b16 %v303
      %v684 = vunpack.c.l.b16 %v304
      %v685 = vunpack.c.l.b16 %v305
      %v686 = vunpack.c.l.b16 %v306
      %v687 = vunpack.c.l.b16 %v307
      %v688 = vunpack.c.l.b16 %v308
      %v689 = vunpack.c.l.b16 %v309
      %v690 = vunpack.c.l.b16 %v310
      %v691 = vunpack.c.l.b16 %v311
      %v692 = vunpack.c.l.b16 %v312
      %v693 = vunpack.c.l.b16 %v313
      %v694 = vunpack.c.l.b16 %v314
      %v695 = vunpack.c.l.b16 %v315
      %v696 = vunpack.c.l.b16 %v316
      %v697 = vunpack.c.l.b16 %v317
      %v698 = vunpack.c.l.b16 %v318
      %v699 = vunpack.c.l.b16 %v319
      %v700 = vunpack.c.l.b16 %v320
      %v701 = vpack.c.b16 %v558, %v557
      %v702 = vpack.c.b16 %v560, %v559
      %v703 = vpack.c.b16 %v562, %v561
      %v704 = vpack.c.b16 %v564, %v563
      %v705 = vpack.c.b16 %v566, %v565
      %v706 = vpack.c.b16 %v568, %v567
      %v707 = vpack.c.b16 %v570, %v569
      %v708 = vpack.c.b16 %v572, %v571
      %v709 = vpack.c.b16 %v574, %v573
      %v710 = vpack.c.b16 %v576, %v575
      %v711 = vpack.c.b16 %v578, %v577
      %v712 = vpack.c.b16 %v580, %v579
      %v713 = vpack.c.b16 %v582, %v581
      %v714 = vpack.c.b16 %v584, %v583
      %v715 = vpack.c.b16 %v586, %v585
      %v716 = vpack.c.b16 %v588, %v587
      %v717 = vpack.c.b16 %v590, %v589
      %v718 = vpack.c.b16 %v592, %v591
      %v719 = vpack.c.b16 %v594, %v593
      %v720 = vpack.c.b16 %v596, %v595
      %v721 = vpack.c.b16 %v598, %v597
      %v722 = vpack.c.b16 %v600, %v599
      %v723 = vpack.c.b16 %v602, %v601
      %v724 = vpack.c.b16 %v604, %v603
      %v725 = vpack.c.b16 %v606, %v605
      %v726 = vpack.c.b16 %v608, %v607
      %v727 = vpack.c.b16 %v610, %v609
      %v728 = vpack.c.b16 %v612, %v611
      %v729 = vpack.c.b16 %v614, %v613
      %v730 = vpack.c.b16 %v616, %v615
      %v731 = vpack.c.b16 %v618, %v617
      %v732 = vpack.c.b16 %v620, %v619
      %v733 = vpack.c.b16 %v622, %v621
      %v734 = vpack.c.b16 %v624, %v623
      %v735 = vpack.c.b16 %v626, %v625
      %v736 = vpack.c.b16 %v628, %v627
      %v737 = vpack.c.b16 %v630, %v629
      %v738 = vpack.c.b16 %v632, %v631
      %v739 = vpack.c.b16 %v634, %v633
      %v740 = vpack.c.b16 %v636, %v635
      %v741 = vpack.c.b16 %v638, %v637
      %v742 = vpack.c.b16 %v640, %v639
      %v743 = vpack.c.b16 %v642, %v641
      %v744 = vpack.c.b16 %v644, %v643
      %v745 = vpack.c.b16 %v646, %v645
      %v746 = vpack.c.b16 %v648, %v647
      %v747 = vpack.c.b16 %v650, %v649
      %v748 = vpack.c.b16 %v652, %v651
      %v749 = vpack.c.b16 %v654, %v653
      %v750 = vpack.c.b16 %v656, %v655
      %v751 = vpack.c.b16 %v658, %v657
      %v752 = vpack.c.b16 %v660, %v659
      %v753 = vpack.c.b16 %v662, %v661
      %v754 = vpack.c.b16 %v664, %v663
      %v755 = vpack.c.b16 %v666, %v665
      %v756 = vpack.c.b16 %v668, %v667
      %v757 = vpack.c.b16 %v670, %v669
      %v758 = vpack.c.b16 %v672, %v671
      %v759 = vpack.c.b16 %v674, %v673
      %v760 = vpack.c.b16 %v676, %v675
      %v761 = vpack.c.b16 %v678, %v677
      %v762 = vpack.c.b16 %v680, %v679
      %v763 = vpack.c.b16 %v682, %v681
      %v764 = vpack.c.b16 %v684, %v683
      %v765 = vpack.c.b16 %v686, %v685
      %v766 = vpack.c.b16 %v688, %v687
      %v767 = vpack.c.b16 %v690, %v689
      %v768 = vpack.c.b16 %v692, %v691
      %v769 = vpack.c.b16 %v694, %v693
      %v770 = vpack.c.b16 %v696, %v695
      %v771 = vpack.c.b16 %v698, %v697
      %v772 = vpack.c.b16 %v700, %v699
      %845 = vmatprep.subr.bf16.mxu0 0
      %846 = vmatpush1.bf16.msra.mxu0 %v701
      %847 = vmatprep.subr.bf16.mxu0 0
      %848 = vmatpush1.bf16.msra.mxu0 %v702
      %849 = vmatprep.subr.bf16.mxu0 0
      %850 = vmatpush1.bf16.msra.mxu0 %v703
      %851 = vmatprep.subr.bf16.mxu0 0
      %852 = vmatpush1.bf16.msra.mxu0 %v704
      %853 = vmatprep.subr.bf16.mxu0 0
      %854 = vmatpush1.bf16.msra.mxu0 %v705
      %855 = vmatprep.subr.bf16.mxu0 0
      %856 = vmatpush1.bf16.msra.mxu0 %v706
      %857 = vmatprep.subr.bf16.mxu0 0
      %858 = vmatpush1.bf16.msra.mxu0 %v707
      %859 = vmatprep.subr.bf16.mxu0 0
      %860 = vmatpush1.bf16.msra.mxu0 %v708
      %861 = vmatprep.subr.bf16.mxu0 0
      %862 = vmatpush1.bf16.msra.mxu0 %v709
      %863 = vmatprep.subr.bf16.mxu0 0
      %864 = vmatpush1.bf16.msra.mxu0 %v710
      %865 = vmatprep.subr.bf16.mxu0 0
      %866 = vmatpush1.bf16.msra.mxu0 %v711
      %867 = vmatprep.subr.bf16.mxu0 0
      %868 = vmatpush1.bf16.msra.mxu0 %v712
      %869 = vmatprep.subr.bf16.mxu0 0
      %870 = vmatpush1.bf16.msra.mxu0 %v713
      %871 = vmatprep.subr.bf16.mxu0 0
      %872 = vmatpush1.bf16.msra.mxu0 %v714
      %873 = vmatprep.subr.bf16.mxu0 0
      %874 = vmatpush1.bf16.msra.mxu0 %v715
      %875 = vmatprep.subr.bf16.mxu0 0
      %876 = vmatpush1.bf16.msra.mxu0 %v716
      %877 = vmatprep.mubr.bf16.mxu0 %v378
      %878 = vmatmul.mubr.bf16.gmra.mrb[0].mxu0 %v377
      %v879 = vpop.f32.mrb[0].mxu0
      %v880 = vadd.f32 0.0, %v879
      %v881 = vpop.f32.mrb[0].mxu0
      %v882 = vpop.f32.mrb[0].mxu0
      %v883 = vadd.f32 0.0, %v882
      %v884 = vpop.f32.mrb[0].mxu0
      %885 = vmatprep.mubr.bf16.mxu0 %v387
      %886 = vmatmul.mubr.bf16.gmra.mrb[0].mxu0 %v386
      %v887 = vpop.f32.mrb[0].mxu0
      %v888 = vadd.f32 0.0, %v887
      %v889 = vpop.f32.mrb[0].mxu0
      %v890 = vpop.f32.mrb[0].mxu0
      %v891 = vadd.f32 0.0, %v890
      %v892 = vpop.f32.mrb[0].mxu0
      %893 = vdwg.mxu0
      %894 = vmatprep.subr.bf16.mxu0 0
      %895 = vmatpush1.bf16.msra.mxu0 %v717
      %896 = vmatprep.subr.bf16.mxu0 0
      %897 = vmatpush1.bf16.msra.mxu0 %v718
      %898 = vmatprep.subr.bf16.mxu0 0
      %899 = vmatpush1.bf16.msra.mxu0 %v719
      %900 = vmatprep.subr.bf16.mxu0 0
      %901 = vmatpush1.bf16.msra.mxu0 %v720
      %902 = vmatprep.subr.bf16.mxu0 0
      %903 = vmatpush1.bf16.msra.mxu0 %v721
      %904 = vmatprep.subr.bf16.mxu0 0
      %905 = vmatpush1.bf16.msra.mxu0 %v722
      %906 = vmatprep.subr.bf16.mxu0 0
      %907 = vmatpush1.bf16.msra.mxu0 %v723
      %908 = vmatprep.subr.bf16.mxu0 0
      %909 = vmatpush1.bf16.msra.mxu0 %v724
      %910 = vmatprep.subr.bf16.mxu0 0
      %911 = vmatpush1.bf16.msra.mxu0 %v725
      %912 = vmatprep.subr.bf16.mxu0 0
      %913 = vmatpush1.bf16.msra.mxu0 %v726
      %914 = vmatprep.subr.bf16.mxu0 0
      %915 = vmatpush1.bf16.msra.mxu0 %v727
      %916 = vmatprep.subr.bf16.mxu0 0
      %917 = vmatpush1.bf16.msra.mxu0 %v728
      %918 = vmatprep.subr.bf16.mxu0 0
      %919 = vmatpush1.bf16.msra.mxu0 %v729
      %920 = vmatprep.subr.bf16.mxu0 0
      %921 = vmatpush1.bf16.msra.mxu0 %v730
      %922 = vmatprep.subr.bf16.mxu0 0
      %923 = vmatpush1.bf16.msra.mxu0 %v731
      %924 = vmatprep.subr.bf16.mxu0 0
      %925 = vmatpush1.bf16.msra.mxu0 %v732
      %926 = vmatprep.mubr.bf16.mxu0 %v380
      %927 = vmatmul.mubr.bf16.gmra.mrb[0].mxu0 %v379
      %v928 = vpop.f32.mrb[0].mxu0
      %v929 = vadd.f32 %v880, %v928
      %v930 = vpop.f32.mrb[0].mxu0
      %v931 = vpop.f32.mrb[0].mxu0
      %v932 = vadd.f32 %v883, %v931
      %v933 = vpop.f32.mrb[0].mxu0
      %934 = vmatprep.mubr.bf16.mxu0 %v389
      %935 = vmatmul.mubr.bf16.gmra.mrb[0].mxu0 %v388
      %v936 = vpop.f32.mrb[0].mxu0
      %v937 = vadd.f32 %v888, %v936
      %v938 = vpop.f32.mrb[0].mxu0
      %v939 = vpop.f32.mrb[0].mxu0
      %v940 = vadd.f32 %v891, %v939
      %v941 = vpop.f32.mrb[0].mxu0
      %942 = vdwg.mxu0
      %943 = vmatprep.subr.bf16.mxu0 0
      %944 = vmatpush1.bf16.msra.mxu0 %v733
      %945 = vmatprep.subr.bf16.mxu0 0
      %946 = vmatpush1.bf16.msra.mxu0 %v734
      %947 = vmatprep.subr.bf16.mxu0 0
      %948 = vmatpush1.bf16.msra.mxu0 %v735
      %949 = vmatprep.subr.bf16.mxu0 0
      %950 = vmatpush1.bf16.msra.mxu0 %v736
      %951 = vmatprep.subr.bf16.mxu0 0
      %952 = vmatpush1.bf16.msra.mxu0 %v737
      %953 = vmatprep.subr.bf16.mxu0 0
      %954 = vmatpush1.bf16.msra.mxu0 %v738
      %955 = vmatprep.subr.bf16.mxu0 0
      %956 = vmatpush1.bf16.msra.mxu0 %v739
      %957 = vmatprep.subr.bf16.mxu0 0
      %958 = vmatpush1.bf16.msra.mxu0 %v740
      %959 = vmatprep.subr.bf16.mxu0 0
      %960 = vmatpush1.bf16.msra.mxu0 %v741
      %961 = vmatprep.subr.bf16.mxu0 0
      %962 = vmatpush1.bf16.msra.mxu0 %v742
      %963 = vmatprep.subr.bf16.mxu0 0
      %964 = vmatpush1.bf16.msra.mxu0 %v743
      %965 = vmatprep.subr.bf16.mxu0 0
      %966 = vmatpush1.bf16.msra.mxu0 %v744
      %967 = vmatprep.subr.bf16.mxu0 0
      %968 = vmatpush1.bf16.msra.mxu0 %v745
      %969 = vmatprep.subr.bf16.mxu0 0
      %970 = vmatpush1.bf16.msra.mxu0 %v746
      %971 = vmatprep.subr.bf16.mxu0 0
      %972 = vmatpush1.bf16.msra.mxu0 %v747
      %973 = vmatprep.subr.bf16.mxu0 0
      %974 = vmatpush1.bf16.msra.mxu0 %v748
      %975 = vmatprep.mubr.bf16.mxu0 %v382
      %976 = vmatmul.mubr.bf16.gmra.mrb[0].mxu0 %v381
      %v977 = vpop.f32.mrb[0].mxu0
      %v978 = vadd.f32 %v929, %v977
      %v979 = vpop.f32.mrb[0].mxu0
      %v980 = vpop.f32.mrb[0].mxu0
      %v981 = vadd.f32 %v932, %v980
      %v982 = vpop.f32.mrb[0].mxu0
      %983 = vmatprep.mubr.bf16.mxu0 %v391
      %984 = vmatmul.mubr.bf16.gmra.mrb[0].mxu0 %v390
      %v985 = vpop.f32.mrb[0].mxu0
      %v986 = vadd.f32 %v937, %v985
      %v987 = vpop.f32.mrb[0].mxu0
      %v988 = vpop.f32.mrb[0].mxu0
      %v989 = vadd.f32 %v940, %v988
      %v990 = vpop.f32.mrb[0].mxu0
      %991 = vdwg.mxu0
      %992 = vmatprep.subr.bf16.mxu0 0
      %993 = vmatpush1.bf16.msra.mxu0 %v749
      %994 = vmatprep.subr.bf16.mxu0 0
      %995 = vmatpush1.bf16.msra.mxu0 %v750
      %996 = vmatprep.subr.bf16.mxu0 0
      %997 = vmatpush1.bf16.msra.mxu0 %v751
      %998 = vmatprep.subr.bf16.mxu0 0
      %999 = vmatpush1.bf16.msra.mxu0 %v752
      %1000 = vmatprep.subr.bf16.mxu0 0
      %1001 = vmatpush1.bf16.msra.mxu0 %v753
      %1002 = vmatprep.subr.bf16.mxu0 0
      %1003 = vmatpush1.bf16.msra.mxu0 %v754
      %1004 = vmatprep.subr.bf16.mxu0 0
      %1005 = vmatpush1.bf16.msra.mxu0 %v755
      %1006 = vmatprep.subr.bf16.mxu0 0
      %1007 = vmatpush1.bf16.msra.mxu0 %v756
      %1008 = vmatprep.subr.bf16.mxu0 0
      %1009 = vmatpush1.bf16.msra.mxu0 %v757
      %1010 = vmatprep.subr.bf16.mxu0 0
      %1011 = vmatpush1.bf16.msra.mxu0 %v758
      %1012 = vmatprep.subr.bf16.mxu0 0
      %1013 = vmatpush1.bf16.msra.mxu0 %v759
      %1014 = vmatprep.subr.bf16.mxu0 0
      %1015 = vmatpush1.bf16.msra.mxu0 %v760
      %1016 = vmatprep.subr.bf16.mxu0 0
      %1017 = vmatpush1.bf16.msra.mxu0 %v761
      %1018 = vmatprep.subr.bf16.mxu0 0
      %1019 = vmatpush1.bf16.msra.mxu0 %v762
      %1020 = vmatprep.subr.bf16.mxu0 0
      %1021 = vmatpush1.bf16.msra.mxu0 %v763
      %1022 = vmatprep.subr.bf16.mxu0 0
      %1023 = vmatpush1.bf16.msra.mxu0 %v764
      %1024 = vmatprep.mubr.bf16.mxu0 %v384
      %1025 = vmatmul.mubr.bf16.gmra.mrb[0].mxu0 %v383
      %v1026 = vpop.f32.mrb[0].mxu0
      %v1027 = vadd.f32 %v978, %v1026
      %v1028 = vpop.f32.mrb[0].mxu0
      %v1029 = vpop.f32.mrb[0].mxu0
      %v1030 = vadd.f32 %v981, %v1029
      %v1031 = vpop.f32.mrb[0].mxu0
      %1032 = vmatprep.mubr.bf16.mxu0 %v393
      %1033 = vmatmul.mubr.bf16.gmra.mrb[0].mxu0 %v392
      %v1034 = vpop.f32.mrb[0].mxu0
      %v1035 = vadd.f32 %v986, %v1034
      %v1036 = vpop.f32.mrb[0].mxu0
      %v1037 = vpop.f32.mrb[0].mxu0
      %v1038 = vadd.f32 %v989, %v1037
      %v1039 = vpop.f32.mrb[0].mxu0
      %1040 = vdwg.mxu0
      %1041 = vmatprep.subr.bf16.mxu0 0
      %1042 = vmatpush1.bf16.msra.mxu0 %v765
      %1043 = vmatprep.subr.bf16.mxu0 0
      %1044 = vmatpush1.bf16.msra.mxu0 %v766
      %1045 = vmatprep.subr.bf16.mxu0 0
      %1046 = vmatpush1.bf16.msra.mxu0 %v767
      %1047 = vmatprep.subr.bf16.mxu0 0
      %1048 = vmatpush1.bf16.msra.mxu0 %v768
      %1049 = vmatprep.subr.bf16.mxu0 0
      %1050 = vmatpush1.bf16.msra.mxu0 %v769
      %1051 = vmatprep.subr.bf16.mxu0 0
      %1052 = vmatpush1.bf16.msra.mxu0 %v770
      %1053 = vmatprep.subr.bf16.mxu0 0
      %1054 = vmatpush1.bf16.msra.mxu0 %v771
      %1055 = vmatprep.subr.bf16.mxu0 0
      %1056 = vmatpush1.bf16.msra.mxu0 %v772
      %1057 = vmatprep.subr.bf16.mxu0 0
      %1058 = vmatpush1.bf16.msra.mxu0 0
      %1059 = vmatprep.subr.bf16.mxu0 0
      %1060 = vmatpush1.bf16.msra.mxu0 0
      %1061 = vmatprep.subr.bf16.mxu0 0
      %1062 = vmatpush1.bf16.msra.mxu0 0
      %1063 = vmatprep.subr.bf16.mxu0 0
      %1064 = vmatpush1.bf16.msra.mxu0 0
      %1065 = vmatprep.subr.bf16.mxu0 0
      %1066 = vmatpush1.bf16.msra.mxu0 0
      %1067 = vmatprep.subr.bf16.mxu0 0
      %1068 = vmatpush1.bf16.msra.mxu0 0
      %1069 = vmatprep.subr.bf16.mxu0 0
      %1070 = vmatpush1.bf16.msra.mxu0 0
      %1071 = vmatprep.subr.bf16.mxu0 0
      %1072 = vmatpush1.bf16.msra.mxu0 0
      %1073 = vmatprep.mubr.bf16.mxu0 0
      %1074 = vmatmul.mubr.bf16.gmra.mrb[0].mxu0 %v385
      %v1075 = vpop.f32.mrb[0].mxu0
      %v1076 = vadd.f32 %v1027, %v1075
      %v1077 = vpop.f32.mrb[0].mxu0
      %v1078 = vpop.f32.mrb[0].mxu0
      %v1079 = vadd.f32 %v1030, %v1078
      %v1080 = vpop.f32.mrb[0].mxu0
      %1081 = vmatprep.mubr.bf16.mxu0 0
      %1082 = vmatmul.mubr.bf16.gmra.mrb[0].mxu0 %v394
      %v1083 = vpop.f32.mrb[0].mxu0
      %v1084 = vadd.f32 %v1035, %v1083
      %v1085 = vpop.f32.mrb[0].mxu0
      %v1086 = vpop.f32.mrb[0].mxu0
      %v1087 = vadd.f32 %v1038, %v1086
      %v1088 = vpop.f32.mrb[0].mxu0
      %1089 = vdwg.mxu0
      %s1090 = smul.u32 %s14, 32
      %s1091 = scalar_lea.vmem %s3, %s1090
      %1092 = vst [vmem:[%s1091] sm:$0xff] %v1076
      %1093 = vst [vmem:[%s1091 + $0x8] sm:$0xff] %v1079
      %1094 = vst [vmem:[%s1091 + $0x10] sm:$0xff] %v1084
      %1095 = vst [vmem:[%s1091 + $0x18] sm:$0xff] %v1087
      %p1096 = scmp.eq.s32.totalorder %s14, 3
      // Predicated region
      $region33: #{generator_forward.10} parent=31 // pred_check
        %p1097 = pneg %p1096
      $region34: #{generator_forward.10} parent=31 // pred_check_branch
        %1099 = sbr.rel (%p1097) target = $region36
      $region35: #{generator_forward.10} parent=31 // pred_region
        %v1100 = vld [vmem:[%s3] sm:$0xff]
        %v1101 = vld [vmem:[%s3 + $0x8] sm:$0xff]
        %v1102 = vld [vmem:[%s3 + $0x10] sm:$0xff]
        %v1103 = vld [vmem:[%s3 + $0x18] sm:$0xff]
        %v1104 = vld [vmem:[%s3 + $0x20] sm:$0xff]
        %v1105 = vld [vmem:[%s3 + $0x28] sm:$0xff]
        %v1106 = vld [vmem:[%s3 + $0x30] sm:$0xff]
        %v1107 = vld [vmem:[%s3 + $0x38] sm:$0xff]
        %v1108 = vld [vmem:[%s3 + $0x40] sm:$0xff]
        %v1109 = vld [vmem:[%s3 + $0x48] sm:$0xff]
        %v1110 = vld [vmem:[%s3 + $0x50] sm:$0xff]
        %v1111 = vld [vmem:[%s3 + $0x58] sm:$0xff]
        %v1112 = vld [vmem:[%s3 + $0x60] sm:$0xff]
        %v1113 = vld [vmem:[%s3 + $0x68] sm:$0xff]
        %v1114 = vld [vmem:[%s3 + $0x70] sm:$0xff]
        %v1115 = vld [vmem:[%s3 + $0x78] sm:$0xff]
        %v1116 = vadd.f32 %v1100, %v1101
        %v1117 = vadd.f32 %v1116, %v1102
        %v1118 = vadd.f32 %v1117, %v1103
        %v1119 = vadd.f32 %v1118, %v1104
        %v1120 = vadd.f32 %v1119, %v1105
        %v1121 = vadd.f32 %v1120, %v1106
        %v1122 = vadd.f32 %v1121, %v1107
        %v1123 = vadd.f32 %v1122, %v1108
        %v1124 = vadd.f32 %v1123, %v1109
        %v1125 = vadd.f32 %v1124, %v1110
        %v1126 = vadd.f32 %v1125, %v1111
        %v1127 = vadd.f32 %v1126, %v1112
        %v1128 = vadd.f32 %v1127, %v1113
        %v1129 = vadd.f32 %v1128, %v1114
        %v1130 = vadd.f32 %v1129, %v1115
        %v1131 = vrot.slane %v1130, 4
        %v1132 = vadd.f32 %v1130, %v1131
        %v1133 = vrot.slane %v1132, 2
        %v1134 = vadd.f32 %v1132, %v1133
        %v1135 = vrot.slane %v1134, 1
        %v1136 = vadd.f32 %v1134, %v1135
        %v1137 = vmul.f32 %v1136, 0.0078125
        %v1138 = vsub.f32 %v1100, %v1137
        %v1139 = vsub.f32 %v1101, %v1137
        %v1140 = vsub.f32 %v1102, %v1137
        %v1141 = vsub.f32 %v1103, %v1137
        %v1142 = vsub.f32 %v1104, %v1137
        %v1143 = vsub.f32 %v1105, %v1137
        %v1144 = vsub.f32 %v1106, %v1137
        %v1145 = vsub.f32 %v1107, %v1137
        %v1146 = vsub.f32 %v1108, %v1137
        %v1147 = vsub.f32 %v1109, %v1137
        %v1148 = vsub.f32 %v1110, %v1137
        %v1149 = vsub.f32 %v1111, %v1137
        %v1150 = vsub.f32 %v1112, %v1137
        %v1151 = vsub.f32 %v1113, %v1137
        %v1152 = vsub.f32 %v1114, %v1137
        %v1153 = vsub.f32 %v1115, %v1137
        %v1154 = vmul.f32 %v1138, %v1138
        %v1155 = vmul.f32 %v1139, %v1139
        %v1156 = vmul.f32 %v1140, %v1140
        %v1157 = vmul.f32 %v1141, %v1141
        %v1158 = vmul.f32 %v1142, %v1142
        %v1159 = vmul.f32 %v1143, %v1143
        %v1160 = vmul.f32 %v1144, %v1144
        %v1161 = vmul.f32 %v1145, %v1145
        %v1162 = vmul.f32 %v1146, %v1146
        %v1163 = vmul.f32 %v1147, %v1147
        %v1164 = vmul.f32 %v1148, %v1148
        %v1165 = vmul.f32 %v1149, %v1149
        %v1166 = vmul.f32 %v1150, %v1150
        %v1167 = vmul.f32 %v1151, %v1151
        %v1168 = vmul.f32 %v1152, %v1152
        %v1169 = vmul.f32 %v1153, %v1153
        %v1170 = vadd.f32 %v1154, %v1155
        %v1171 = vadd.f32 %v1170, %v1156
        %v1172 = vadd.f32 %v1171, %v1157
        %v1173 = vadd.f32 %v1172, %v1158
        %v1174 = vadd.f32 %v1173, %v1159
        %v1175 = vadd.f32 %v1174, %v1160
        %v1176 = vadd.f32 %v1175, %v1161
        %v1177 = vadd.f32 %v1176, %v1162
        %v1178 = vadd.f32 %v1177, %v1163
        %v1179 = vadd.f32 %v1178, %v1164
        %v1180 = vadd.f32 %v1179, %v1165
        %v1181 = vadd.f32 %v1180, %v1166
        %v1182 = vadd.f32 %v1181, %v1167
        %v1183 = vadd.f32 %v1182, %v1168
        %v1184 = vadd.f32 %v1183, %v1169
        %v1185 = vrot.slane %v1184, 4
        %v1186 = vadd.f32 %v1184, %v1185
        %v1187 = vrot.slane %v1186, 2
        %v1188 = vadd.f32 %v1186, %v1187
        %v1189 = vrot.slane %v1188, 1
        %v1190 = vadd.f32 %v1188, %v1189
        %v1191 = vmul.f32 %v1190, 0.0078125
        %v1192 = vadd.f32 %v1191, 1e-05
        %v1193 = vrsqrt.pop %v1192
        %v1194 = vmul.f32 %v1138, %v1193
        %v1195 = vmul.f32 %v1139, %v1193
        %v1196 = vmul.f32 %v1140, %v1193
        %v1197 = vmul.f32 %v1141, %v1193
        %v1198 = vmul.f32 %v1142, %v1193
        %v1199 = vmul.f32 %v1143, %v1193
        %v1200 = vmul.f32 %v1144, %v1193
        %v1201 = vmul.f32 %v1145, %v1193
        %v1202 = vmul.f32 %v1146, %v1193
        %v1203 = vmul.f32 %v1147, %v1193
        %v1204 = vmul.f32 %v1148, %v1193
        %v1205 = vmul.f32 %v1149, %v1193
        %v1206 = vmul.f32 %v1150, %v1193
        %v1207 = vmul.f32 %v1151, %v1193
        %v1208 = vmul.f32 %v1152, %v1193
        %v1209 = vmul.f32 %v1153, %v1193
        %v1210 = vld [vmem:[%s2 + $0x1] sm:$0x1]
        %v1211 = vld [vmem:[%s2 + $0x2] sm:$0x1]
        %v1212 = vlaneseq
        %v1213 = vshrl.u32 %v1212, 7
        %v1214 = vsub.s32 0, %v1213
        %v1215 = vrot.slane %v1210, %v1214
        %v1216 = vmul.f32 %v1194, %v1215
        %v1217 = vmul.f32 %v1195, %v1215
        %v1218 = vmul.f32 %v1196, %v1215
        %v1219 = vmul.f32 %v1197, %v1215
        %v1220 = vmul.f32 %v1198, %v1215
        %v1221 = vmul.f32 %v1199, %v1215
        %v1222 = vmul.f32 %v1200, %v1215
        %v1223 = vmul.f32 %v1201, %v1215
        %v1224 = vmul.f32 %v1202, %v1215
        %v1225 = vmul.f32 %v1203, %v1215
        %v1226 = vmul.f32 %v1204, %v1215
        %v1227 = vmul.f32 %v1205, %v1215
        %v1228 = vmul.f32 %v1206, %v1215
        %v1229 = vmul.f32 %v1207, %v1215
        %v1230 = vmul.f32 %v1208, %v1215
        %v1231 = vmul.f32 %v1209, %v1215
        %v1232 = vlaneseq
        %v1233 = vshrl.u32 %v1232, 7
        %v1234 = vsub.s32 0, %v1233
        %v1235 = vrot.slane %v1211, %v1234
        %v1236 = vadd.f32 %v1216, %v1235
        %v1237 = vadd.f32 %v1217, %v1235
        %v1238 = vadd.f32 %v1218, %v1235
        %v1239 = vadd.f32 %v1219, %v1235
        %v1240 = vadd.f32 %v1220, %v1235
        %v1241 = vadd.f32 %v1221, %v1235
        %v1242 = vadd.f32 %v1222, %v1235
        %v1243 = vadd.f32 %v1223, %v1235
        %v1244 = vadd.f32 %v1224, %v1235
        %v1245 = vadd.f32 %v1225, %v1235
        %v1246 = vadd.f32 %v1226, %v1235
        %v1247 = vadd.f32 %v1227, %v1235
        %v1248 = vadd.f32 %v1228, %v1235
        %v1249 = vadd.f32 %v1229, %v1235
        %v1250 = vadd.f32 %v1230, %v1235
        %v1251 = vadd.f32 %v1231, %v1235
        %v1252 = vmax.f32 %v1236, 0.0
        %v1253 = vmax.f32 %v1237, 0.0
        %v1254 = vmax.f32 %v1238, 0.0
        %v1255 = vmax.f32 %v1239, 0.0
        %v1256 = vmax.f32 %v1240, 0.0
        %v1257 = vmax.f32 %v1241, 0.0
        %v1258 = vmax.f32 %v1242, 0.0
        %v1259 = vmax.f32 %v1243, 0.0
        %v1260 = vmax.f32 %v1244, 0.0
        %v1261 = vmax.f32 %v1245, 0.0
        %v1262 = vmax.f32 %v1246, 0.0
        %v1263 = vmax.f32 %v1247, 0.0
        %v1264 = vmax.f32 %v1248, 0.0
        %v1265 = vmax.f32 %v1249, 0.0
        %v1266 = vmax.f32 %v1250, 0.0
        %v1267 = vmax.f32 %v1251, 0.0
        %1268 = vst [vmem:[%s3] sm:$0xff] %v1252
        %1269 = vst [vmem:[%s3 + $0x8] sm:$0xff] %v1253
        %1270 = vst [vmem:[%s3 + $0x10] sm:$0xff] %v1254
        %1271 = vst [vmem:[%s3 + $0x18] sm:$0xff] %v1255
        %1272 = vst [vmem:[%s3 + $0x20] sm:$0xff] %v1256
        %1273 = vst [vmem:[%s3 + $0x28] sm:$0xff] %v1257
        %1274 = vst [vmem:[%s3 + $0x30] sm:$0xff] %v1258
        %1275 = vst [vmem:[%s3 + $0x38] sm:$0xff] %v1259
        %1276 = vst [vmem:[%s3 + $0x40] sm:$0xff] %v1260
        %1277 = vst [vmem:[%s3 + $0x48] sm:$0xff] %v1261
        %1278 = vst [vmem:[%s3 + $0x50] sm:$0xff] %v1262
        %1279 = vst [vmem:[%s3 + $0x58] sm:$0xff] %v1263
        %1280 = vst [vmem:[%s3 + $0x60] sm:$0xff] %v1264
        %1281 = vst [vmem:[%s3 + $0x68] sm:$0xff] %v1265
        %1282 = vst [vmem:[%s3 + $0x70] sm:$0xff] %v1266
        %1283 = vst [vmem:[%s3 + $0x78] sm:$0xff] %v1267
      $region36: #{generator_forward.10} parent=31 // pred_fallthru
        _
      // Predicated region
      $region37: #{generator_forward.10} parent=31 // pred_check
        %p1284 = pneg %p95
      $region38: #{generator_forward.10} parent=31 // pred_check_branch
        %1286 = sbr.rel (%p1284) target = $region40
      $region39: #{generator_forward.10} parent=31 // pred_region
        _
      $region40: #{generator_forward.10} parent=31 // pred_fallthru
        _
      // Predicated region
      $region41: #{generator_forward.10} parent=31 // pred_check
        %p1287 = pneg %p95
      $region42: #{generator_forward.10} parent=31 // pred_check_branch
        %1289 = sbr.rel (%p1287) target = $region44
      $region43: #{generator_forward.10} parent=31 // pred_region
        _
      $region44: #{generator_forward.10} parent=31 // pred_fallthru
        _
    $region32: #{generator_forward.10} parent=5 // pred_fallthru
      _
    %p1290 = scmp.le.s32.totalorder 2, %s9
    // Predicated region
    $region45: #{generator_forward.10} parent=5 // pred_check
      %p1291 = pneg %p1290
    $region46: #{generator_forward.10} parent=5 // pred_check_branch
      %1293 = sbr.rel (%p1291) target = $region48
    $region47: #{generator_forward.10} parent=5 // pred_region
      %s1294 = ssub.s32 %s9, 2
    $region48: #{generator_forward.10} parent=5 // pred_fallthru
      _
  $region6: #{generator_forward.10} parent=0 // loop_footer
    %s13 = sadd.s32 1, %s9
  $region7: #{generator_forward.10} parent=0 // loop_footer_branch
    %8 = sbr.rel target = $region3
  $region8: #{generator_forward.10} parent=0 // loop_exit
    _

// kernel: generator_forward.11
$region0: #{generator_forward.11}
  #allocation0 [shape = 'u32[]', space=smem, size = 0x4, offset = 0x4, fixed_abs, tag = 'smem constant byte address 0x4 - core index']
  #allocation1 [shape = 'u32[144,128]{1,0:T(1,128)}', space=vmem, size = 0x12000, scoped, tag = 'internal scratch']
  %s0 = inlined_call_operand.vmem [shape: bf16[128,640], index: 0, kind: input, shape index: {}]
  %s1 = inlined_call_operand.vmem [shape: bf16[4,640,128], index: 1, kind: input, shape index: {}]
  %s2 = inlined_call_operand.vmem [shape: f32[8,128], index: 2, kind: input, shape index: {}]
  %s3 = inlined_call_operand.vmem [shape: f32[512,128], index: 3, kind: output, shape index: {}]
  %s4 = sld [smem:[#allocation0]]
  $region45: #{generator_forward.11} parent=0
    _
  %s6 = ssub.s32 1, %s4
  %s7 = scalar_select 0, %s6, %s4
  loop: start=0, step=1, limit=6
  $region2: #{generator_forward.11} parent=0 // loop_pre_header
    _
  $region3: #{generator_forward.11} parent=0 // loop_header
    %s9 = sphi 0, %s13
    %p10 = scmp.ge.s32.totalorder %s9, 6
    %s17 = sphi 0, %s17
    %s19 = sphi 0, %s17
    %s20 = sphi 0, %s19
    %s34 = sphi 0, %s20
    %s40 = sphi 0, %s42
    %s43 = sphi 0, %s40
    %s44 = sphi 0, %s43
    %s60 = sphi 0, %s44
    %s64 = sphi 0, %s64
    %s66 = sphi 0, %s64
    %s67 = sphi 0, %s66
    %s81 = sphi 0, %s67
    %s85 = sphi 0, %s85
    %s87 = sphi 0, %s85
    %s88 = sphi 0, %s87
    %s102 = sphi 0, %s88
  $region4: #{generator_forward.11} parent=0 // loop_header_branch
    %12 = sbr.rel (%p10) target = $region8
  $region5: #{generator_forward.11} parent=0 // loop_body
    %s14 = ssub.s32 %s9, 1
    %s15 = ssub.s32 %s9, 2
    %s16 = sadd.s32 %s9, 1
    %s18 = sadd.s32 %s17, 1
    %p21 = scmp.eq.s32.totalorder %s9, 3
    %p22 = scmp.ne.s32.totalorder %s17, %s19
    %p23 = scmp.eq.s32.totalorder %s9, 0
    %p24 = por %p22, %p23
    %p25 = scmp.ne.s32.totalorder %s17, %s19
    %p26 = scmp.eq.s32.totalorder %s14, 3
    %p27 = por %p25, %p26
    %p28 = scmp.ne.s32.totalorder %s19, %s20
    %p29 = scmp.eq.s32.totalorder %s14, 0
    %p30 = por %p28, %p29
    %p31 = scmp.ne.s32.totalorder %s19, %s20
    %p32 = scmp.eq.s32.totalorder %s15, 3
    %p33 = por %p31, %p32
    %p35 = scmp.ne.s32.totalorder %s20, %s34
    %p36 = scmp.eq.s32.totalorder %s15, 0
    %p37 = por %p35, %p36
    %s38 = ssub.s32 %s9, %s16
    %p39 = scmp.eq.s32.totalorder %s38, 0
    %s41 = sadd.s32 %s40, 1
    %s42 = scalar_select %p39, %s40, %s41
    %p45 = pneg %p39
    %p46 = scmp.eq.s32.totalorder %s9, 3
    %p47 = por %p45, %p46
    %p48 = scmp.ne.s32.totalorder %s40, %s43
    %p49 = scmp.eq.s32.totalorder %s9, 0
    %p50 = por %p48, %p49
    %p51 = scmp.ne.s32.totalorder %s40, %s43
    %p52 = scmp.eq.s32.totalorder %s14, 3
    %p53 = por %p51, %p52
    %p54 = scmp.ne.s32.totalorder %s43, %s44
    %p55 = scmp.eq.s32.totalorder %s14, 0
    %p56 = por %p54, %p55
    %p57 = scmp.ne.s32.totalorder %s43, %s44
    %p58 = scmp.eq.s32.totalorder %s15, 3
    %p59 = por %p57, %p58
    %p61 = scmp.ne.s32.totalorder %s44, %s60
    %p62 = scmp.eq.s32.totalorder %s15, 0
    %p63 = por %p61, %p62
    %s65 = sadd.s32 %s64, 1
    %p68 = scmp.eq.s32.totalorder %s9, 3
    %p69 = scmp.ne.s32.totalorder %s64, %s66
    %p70 = scmp.eq.s32.totalorder %s9, 0
    %p71 = por %p69, %p70
    %p72 = scmp.ne.s32.totalorder %s64, %s66
    %p73 = scmp.eq.s32.totalorder %s14, 3
    %p74 = por %p72, %p73
    %p75 = scmp.ne.s32.totalorder %s66, %s67
    %p76 = scmp.eq.s32.totalorder %s14, 0
    %p77 = por %p75, %p76
    %p78 = scmp.ne.s32.totalorder %s66, %s67
    %p79 = scmp.eq.s32.totalorder %s15, 3
    %p80 = por %p78, %p79
    %p82 = scmp.ne.s32.totalorder %s67, %s81
    %p83 = scmp.eq.s32.totalorder %s15, 0
    %p84 = por %p82, %p83
    %s86 = sadd.s32 %s85, 1
    %p89 = scmp.eq.s32.totalorder %s9, 3
    %p90 = scmp.ne.s32.totalorder %s85, %s87
    %p91 = scmp.eq.s32.totalorder %s9, 0
    %p92 = por %p90, %p91
    %p93 = scmp.ne.s32.totalorder %s85, %s87
    %p94 = scmp.eq.s32.totalorder %s14, 3
    %p95 = por %p93, %p94
    %p96 = scmp.ne.s32.totalorder %s87, %s88
    %p97 = scmp.eq.s32.totalorder %s14, 0
    %p98 = por %p96, %p97
    %p99 = scmp.ne.s32.totalorder %s87, %s88
    %p100 = scmp.eq.s32.totalorder %s15, 3
    %p101 = por %p99, %p100
    %p103 = scmp.ne.s32.totalorder %s88, %s102
    %p104 = scmp.eq.s32.totalorder %s15, 0
    %p105 = por %p103, %p104
    %p106 = scmp.le.s32.totalorder 1, %s9
    %p107 = scmp.lt.s32.totalorder %s9, 5
    %p108 = pnand %p106, %p107
    %p109 = pneg %p108
    // Predicated region
    $region9: #{generator_forward.11} parent=5 // pred_check
      _
    $region10: #{generator_forward.11} parent=5 // pred_check_branch
      %111 = sbr.rel (%p108) target = $region12
    $region11: #{generator_forward.11} parent=5 // pred_region
      %s112 = ssub.s32 %s9, 1
      // Predicated region
      $region13: #{generator_forward.11} parent=11 // pred_check
        %p113 = pneg %p30
      $region14: #{generator_forward.11} parent=11 // pred_check_branch
        %115 = sbr.rel (%p113) target = $region16
      $region15: #{generator_forward.11} parent=11 // pred_region
        _
      $region16: #{generator_forward.11} parent=11 // pred_fallthru
        _
      // Predicated region
      $region17: #{generator_forward.11} parent=11 // pred_check
        %p116 = pneg %p77
      $region18: #{generator_forward.11} parent=11 // pred_check_branch
        %118 = sbr.rel (%p116) target = $region20
      $region19: #{generator_forward.11} parent=11 // pred_region
        _
      $region20: #{generator_forward.11} parent=11 // pred_fallthru
        _
    $region12: #{generator_forward.11} parent=5 // pred_fallthru
      _
    %p119 = scmp.lt.s32.totalorder %s9, 4
    // Predicated region
    $region21: #{generator_forward.11} parent=5 // pred_check
      %p120 = pneg %p119
    $region22: #{generator_forward.11} parent=5 // pred_check_branch
      %122 = sbr.rel (%p120) target = $region24
    $region23: #{generator_forward.11} parent=5 // pred_region
      // Predicated region
      $region25: #{generator_forward.11} parent=23 // pred_check
        %p123 = pneg %p50
      $region26: #{generator_forward.11} parent=23 // pred_check_branch
        %125 = sbr.rel (%p123) target = $region28
      $region27: #{generator_forward.11} parent=23 // pred_region
        %p126 = scmp.lt.s32.totalorder %s9, 3
        %s127 = scalar_select %p126, %s9, 3
        %s128 = smul.addr %s127, 80
        %s129 = smul.addr %s128, 4
        %s130 = scalar_lea.vmem %s1, %s129
      $region28: #{generator_forward.11} parent=23 // pred_fallthru
        _
    $region24: #{generator_forward.11} parent=5 // pred_fallthru
      _
    %p131 = scmp.le.s32.totalorder 1, %s9
    %p132 = scmp.lt.s32.totalorder %s9, 5
    %p133 = pnand %p131, %p132
    %p134 = pneg %p133
    // Predicated region
    $region29: #{generator_forward.11} parent=5 // pred_check
      _
    $region30: #{generator_forward.11} parent=5 // pred_check_branch
      %136 = sbr.rel (%p133) target = $region32
    $region31: #{generator_forward.11} parent=5 // pred_region
      %s137 = ssub.s32 %s9, 1
      %p138 = pneg %p30
      %p139 = pneg %p27
      %p140 = scmp.lt.s32.totalorder %s14, 3
      %s141 = scalar_select %p140, %s14, 3
      %s142 = smul.addr %s141, 80
      %s143 = smul.addr %s142, 4
      %s144 = scalar_lea.vmem %s1, %s143
      %p145 = pneg %p56
      %p146 = pneg %p53
      %p147 = pneg %p77
      %p148 = pneg %p74
      %p149 = pneg %p98
      %p150 = pneg %p95
      %p151 = scmp.lt.s32.totalorder %s14, 3
      %s152 = scalar_select %p151, %s14, 3
      %s153 = smul.addr %s152, 80
      %s154 = smul.addr %s153, 4
      %s155 = scalar_lea.vmem %s1, %s154
      %v157 = vld [vmem:[%s0] sm:$0xff]
      %v158 = vld [vmem:[%s0 + $0x8] sm:$0xff]
      %v159 = vld [vmem:[%s0 + $0x10] sm:$0xf]
      %v160 = vld [vmem:[%s0 + $0x14] sm:$0xff]
      %v161 = vld [vmem:[%s0 + $0x1c] sm:$0xff]
      %v162 = vld [vmem:[%s0 + $0x24] sm:$0xf]
      %v163 = vld [vmem:[%s0 + $0x28] sm:$0xff]
      %v164 = vld [vmem:[%s0 + $0x30] sm:$0xff]
      %v165 = vld [vmem:[%s0 + $0x38] sm:$0xf]
      %v166 = vld [vmem:[%s0 + $0x3c] sm:$0xff]
      %v167 = vld [vmem:[%s0 + $0x44] sm:$0xff]
      %v168 = vld [vmem:[%s0 + $0x4c] sm:$0xf]
      %v169 = vld [vmem:[%s0 + $0x50] sm:$0xff]
      %v170 = vld [vmem:[%s0 + $0x58] sm:$0xff]
      %v171 = vld [vmem:[%s0 + $0x60] sm:$0xf]
      %v172 = vld [vmem:[%s0 + $0x64] sm:$0xff]
      %v173 = vld [vmem:[%s0 + $0x6c] sm:$0xff]
      %v174 = vld [vmem:[%s0 + $0x74] sm:$0xf]
      %v175 = vld [vmem:[%s0 + $0x78] sm:$0xff]
      %v176 = vld [vmem:[%s0 + $0x80] sm:$0xff]
      %v177 = vld [vmem:[%s0 + $0x88] sm:$0xf]
      %v178 = vld [vmem:[%s0 + $0x8c] sm:$0xff]
      %v179 = vld [vmem:[%s0 + $0x94] sm:$0xff]
      %v180 = vld [vmem:[%s0 + $0x9c] sm:$0xf]
      %v181 = vld [vmem:[%s0 + $0xa0] sm:$0xff]
      %v182 = vld [vmem:[%s0 + $0xa8] sm:$0xff]
      %v183 = vld [vmem:[%s0 + $0xb0] sm:$0xf]
      %v184 = vld [vmem:[%s0 + $0xb4] sm:$0xff]
      %v185 = vld [vmem:[%s0 + $0xbc] sm:$0xff]
      %v186 = vld [vmem:[%s0 + $0xc4] sm:$0xf]
      %v187 = vld [vmem:[%s0 + $0xc8] sm:$0xff]
      %v188 = vld [vmem:[%s0 + $0xd0] sm:$0xff]
      %v189 = vld [vmem:[%s0 + $0xd8] sm:$0xf]
      %v190 = vld [vmem:[%s0 + $0xdc] sm:$0xff]
      %v191 = vld [vmem:[%s0 + $0xe4] sm:$0xff]
      %v192 = vld [vmem:[%s0 + $0xec] sm:$0xf]
      %v193 = vld [vmem:[%s0 + $0xf0] sm:$0xff]
      %v194 = vld [vmem:[%s0 + $0xf8] sm:$0xff]
      %v195 = vld [vmem:[%s0 + $0x100] sm:$0xf]
      %v196 = vld [vmem:[%s0 + $0x104] sm:$0xff]
      %v197 = vld [vmem:[%s0 + $0x10c] sm:$0xff]
      %v198 = vld [vmem:[%s0 + $0x114] sm:$0xf]
      %v199 = vld [vmem:[%s0 + $0x118] sm:$0xff]
      %v200 = vld [vmem:[%s0 + $0x120] sm:$0xff]
      %v201 = vld [vmem:[%s0 + $0x128] sm:$0xf]
      %v202 = vld [vmem:[%s0 + $0x12c] sm:$0xff]
      %v203 = vld [vmem:[%s0 + $0x134] sm:$0xff]
      %v204 = vld [vmem:[%s0 + $0x13c] sm:$0xf]
      %v205 = vld [vmem:[%s155] sm:$0xf]
      %v206 = vld [vmem:[%s155 + $0x4] sm:$0xf]
      %v207 = vld [vmem:[%s155 + $0x8] sm:$0xf]
      %v208 = vld [vmem:[%s155 + $0xc] sm:$0xf]
      %v209 = vld [vmem:[%s155 + $0x10] sm:$0xf]
      %v210 = vld [vmem:[%s155 + $0x14] sm:$0xf]
      %v211 = vld [vmem:[%s155 + $0x18] sm:$0xf]
      %v212 = vld [vmem:[%s155 + $0x1c] sm:$0xf]
      %v213 = vld [vmem:[%s155 + $0x20] sm:$0xf]
      %v214 = vld [vmem:[%s155 + $0x24] sm:$0xf]
      %v215 = vld [vmem:[%s155 + $0x28] sm:$0xf]
      %v216 = vld [vmem:[%s155 + $0x2c] sm:$0xf]
      %v217 = vld [vmem:[%s155 + $0x30] sm:$0xf]
      %v218 = vld [vmem:[%s155 + $0x34] sm:$0xf]
      %v219 = vld [vmem:[%s155 + $0x38] sm:$0xf]
      %v220 = vld [vmem:[%s155 + $0x3c] sm:$0xf]
      %v221 = vld [vmem:[%s155 + $0x40] sm:$0xf]
      %v222 = vld [vmem:[%s155 + $0x44] sm:$0xf]
      %v223 = vld [vmem:[%s155 + $0x48] sm:$0xf]
      %v224 = vld [vmem:[%s155 + $0x4c] sm:$0xf]
      %v225 = vld [vmem:[%s155 + $0x50] sm:$0xf]
      %v226 = vld [vmem:[%s155 + $0x54] sm:$0xf]
      %v227 = vld [vmem:[%s155 + $0x58] sm:$0xf]
      %v228 = vld [vmem:[%s155 + $0x5c] sm:$0xf]
      %v229 = vld [vmem:[%s155 + $0x60] sm:$0xf]
      %v230 = vld [vmem:[%s155 + $0x64] sm:$0xf]
      %v231 = vld [vmem:[%s155 + $0x68] sm:$0xf]
      %v232 = vld [vmem:[%s155 + $0x6c] sm:$0xf]
      %v233 = vld [vmem:[%s155 + $0x70] sm:$0xf]
      %v234 = vld [vmem:[%s155 + $0x74] sm:$0xf]
      %v235 = vld [vmem:[%s155 + $0x78] sm:$0xf]
      %v236 = vld [vmem:[%s155 + $0x7c] sm:$0xf]
      %v237 = vld [vmem:[%s155 + $0x80] sm:$0xf]
      %v238 = vld [vmem:[%s155 + $0x84] sm:$0xf]
      %v239 = vld [vmem:[%s155 + $0x88] sm:$0xf]
      %v240 = vld [vmem:[%s155 + $0x8c] sm:$0xf]
      %v241 = vld [vmem:[%s155 + $0x90] sm:$0xf]
      %v242 = vld [vmem:[%s155 + $0x94] sm:$0xf]
      %v243 = vld [vmem:[%s155 + $0x98] sm:$0xf]
      %v244 = vld [vmem:[%s155 + $0x9c] sm:$0xf]
      %v245 = vld [vmem:[%s155 + $0xa0] sm:$0xf]
      %v246 = vld [vmem:[%s155 + $0xa4] sm:$0xf]
      %v247 = vld [vmem:[%s155 + $0xa8] sm:$0xf]
      %v248 = vld [vmem:[%s155 + $0xac] sm:$0xf]
      %v249 = vld [vmem:[%s155 + $0xb0] sm:$0xf]
      %v250 = vld [vmem:[%s155 + $0xb4] sm:$0xf]
      %v251 = vld [vmem:[%s155 + $0xb8] sm:$0xf]
      %v252 = vld [vmem:[%s155 + $0xbc] sm:$0xf]
      %v253 = vld [vmem:[%s155 + $0xc0] sm:$0xf]
      %v254 = vld [vmem:[%s155 + $0xc4] sm:$0xf]
      %v255 = vld [vmem:[%s155 + $0xc8] sm:$0xf]
      %v256 = vld [vmem:[%s155 + $0xcc] sm:$0xf]
      %v257 = vld [vmem:[%s155 + $0xd0] sm:$0xf]
      %v258 = vld [vmem:[%s155 + $0xd4] sm:$0xf]
      %v259 = vld [vmem:[%s155 + $0xd8] sm:$0xf]
      %v260 = vld [vmem:[%s155 + $0xdc] sm:$0xf]
      %v261 = vld [vmem:[%s155 + $0xe0] sm:$0xf]
      %v262 = vld [vmem:[%s155 + $0xe4] sm:$0xf]
      %v263 = vld [vmem:[%s155 + $0xe8] sm:$0xf]
      %v264 = vld [vmem:[%s155 + $0xec] sm:$0xf]
      %v265 = vld [vmem:[%s155 + $0xf0] sm:$0xf]
      %v266 = vld [vmem:[%s155 + $0xf4] sm:$0xf]
      %v267 = vld [vmem:[%s155 + $0xf8] sm:$0xf]
      %v268 = vld [vmem:[%s155 + $0xfc] sm:$0xf]
      %v269 = vld [vmem:[%s155 + $0x100] sm:$0xf]
      %v270 = vld [vmem:[%s155 + $0x104] sm:$0xf]
      %v271 = vld [vmem:[%s155 + $0x108] sm:$0xf]
      %v272 = vld [vmem:[%s155 + $0x10c] sm:$0xf]
      %v273 = vld [vmem:[%s155 + $0x110] sm:$0xf]
      %v274 = vld [vmem:[%s155 + $0x114] sm:$0xf]
      %v275 = vld [vmem:[%s155 + $0x118] sm:$0xf]
      %v276 = vld [vmem:[%s155 + $0x11c] sm:$0xf]
      %v277 = vld [vmem:[%s155 + $0x120] sm:$0xf]
      %v278 = vld [vmem:[%s155 + $0x124] sm:$0xf]
      %v279 = vld [vmem:[%s155 + $0x128] sm:$0xf]
      %v280 = vld [vmem:[%s155 + $0x12c] sm:$0xf]
      %v281 = vld [vmem:[%s155 + $0x130] sm:$0xf]
      %v282 = vld [vmem:[%s155 + $0x134] sm:$0xf]
      %v283 = vld [vmem:[%s155 + $0x138] sm:$0xf]
      %v284 = vld [vmem:[%s155 + $0x13c] sm:$0xf]
      %s285 = smul.u32 %s14, 128
      %v286 = vld [vmem:[%s2] sm:$0x1]
      %v287 = vlaneseq
      %v288 = vshrl.u32 %v287, 7
      %v289 = vsub.s32 0, %v288
      %v290 = vrot.slane %v286, %v289
      %v339 = vunpack.c.l.b16 %v157
      %v340 = vunpack.c.h.b16 %v157
      %v341 = vunpack.c.l.b16 %v158
      %v342 = vunpack.c.h.b16 %v158
      %v343 = vunpack.c.l.b16 %v159
      %v344 = vunpack.c.l.b16 %v160
      %v345 = vunpack.c.h.b16 %v160
      %v346 = vunpack.c.l.b16 %v161
      %v347 = vunpack.c.h.b16 %v161
      %v348 = vunpack.c.l.b16 %v162
      %v349 = vunpack.c.l.b16 %v163
      %v350 = vunpack.c.h.b16 %v163
      %v351 = vunpack.c.l.b16 %v164
      %v352 = vunpack.c.h.b16 %v164
      %v353 = vunpack.c.l.b16 %v165
      %v354 = vunpack.c.l.b16 %v166
      %v355 = vunpack.c.h.b16 %v166
      %v356 = vunpack.c.l.b16 %v167
      %v357 = vunpack.c.h.b16 %v167
      %v358 = vunpack.c.l.b16 %v168
      %v359 = vunpack.c.l.b16 %v169
      %v360 = vunpack.c.h.b16 %v169
      %v361 = vunpack.c.l.b16 %v170
      %v362 = vunpack.c.h.b16 %v170
      %v363 = vunpack.c.l.b16 %v171
      %v364 = vunpack.c.l.b16 %v172
      %v365 = vunpack.c.h.b16 %v172
      %v366 = vunpack.c.l.b16 %v173
      %v367 = vunpack.c.h.b16 %v173
      %v368 = vunpack.c.l.b16 %v174
      %v369 = vunpack.c.l.b16 %v175
      %v370 = vunpack.c.h.b16 %v175
      %v371 = vunpack.c.l.b16 %v176
      %v372 = vunpack.c.h.b16 %v176
      %v373 = vunpack.c.l.b16 %v177
      %v374 = vunpack.c.l.b16 %v178
      %v375 = vunpack.c.h.b16 %v178
      %v376 = vunpack.c.l.b16 %v179
      %v377 = vunpack.c.h.b16 %v179
      %v378 = vunpack.c.l.b16 %v180
      %v379 = vunpack.c.l.b16 %v181
      %v380 = vunpack.c.h.b16 %v181
      %v381 = vunpack.c.l.b16 %v182
      %v382 = vunpack.c.h.b16 %v182
      %v383 = vunpack.c.l.b16 %v183
      %v384 = vunpack.c.l.b16 %v184
      %v385 = vunpack.c.h.b16 %v184
      %v386 = vunpack.c.l.b16 %v185
      %v387 = vunpack.c.h.b16 %v185
      %v388 = vunpack.c.l.b16 %v186
      %v389 = vunpack.c.l.b16 %v187
      %v390 = vunpack.c.h.b16 %v187
      %v391 = vunpack.c.l.b16 %v188
      %v392 = vunpack.c.h.b16 %v188
      %v393 = vunpack.c.l.b16 %v189
      %v394 = vunpack.c.l.b16 %v190
      %v395 = vunpack.c.h.b16 %v190
      %v396 = vunpack.c.l.b16 %v191
      %v397 = vunpack.c.h.b16 %v191
      %v398 = vunpack.c.l.b16 %v192
      %v399 = vunpack.c.l.b16 %v193
      %v400 = vunpack.c.h.b16 %v193
      %v401 = vunpack.c.l.b16 %v194
      %v402 = vunpack.c.h.b16 %v194
      %v403 = vunpack.c.l.b16 %v195
      %v404 = vunpack.c.l.b16 %v196
      %v405 = vunpack.c.h.b16 %v196
      %v406 = vunpack.c.l.b16 %v197
      %v407 = vunpack.c.h.b16 %v197
      %v408 = vunpack.c.l.b16 %v198
      %v409 = vunpack.c.l.b16 %v199
      %v410 = vunpack.c.h.b16 %v199
      %v411 = vunpack.c.l.b16 %v200
      %v412 = vunpack.c.h.b16 %v200
      %v413 = vunpack.c.l.b16 %v201
      %v414 = vunpack.c.l.b16 %v202
      %v415 = vunpack.c.h.b16 %v202
      %v416 = vunpack.c.l.b16 %v203
      %v417 = vunpack.c.h.b16 %v203
      %v418 = vunpack.c.l.b16 %v204
      %v419 = vpack.c.b16 %v344, %v339
      %v420 = vpack.c.b16 %v345, %v340
      %v421 = vpack.c.b16 %v346, %v341
      %v422 = vpack.c.b16 %v347, %v342
      %v423 = vpack.c.b16 %v348, %v343
      %v424 = vpack.c.b16 %v354, %v349
      %v425 = vpack.c.b16 %v355, %v350
      %v426 = vpack.c.b16 %v356, %v351
      %v427 = vpack.c.b16 %v357, %v352
      %v428 = vpack.c.b16 %v358, %v353
      %v429 = vpack.c.b16 %v364, %v359
      %v430 = vpack.c.b16 %v365, %v360
      %v431 = vpack.c.b16 %v366, %v361
      %v432 = vpack.c.b16 %v367, %v362
      %v433 = vpack.c.b16 %v368, %v363
      %v434 = vpack.c.b16 %v374, %v369
      %v435 = vpack.c.b16 %v375, %v370
      %v436 = vpack.c.b16 %v376, %v371
      %v437 = vpack.c.b16 %v377, %v372
      %v438 = vpack.c.b16 %v378, %v373
      %v439 = vpack.c.b16 %v384, %v379
      %v440 = vpack.c.b16 %v385, %v380
      %v441 = vpack.c.b16 %v386, %v381
      %v442 = vpack.c.b16 %v387, %v382
      %v443 = vpack.c.b16 %v388, %v383
      %v444 = vpack.c.b16 %v394, %v389
      %v445 = vpack.c.b16 %v395, %v390
      %v446 = vpack.c.b16 %v396, %v391
      %v447 = vpack.c.b16 %v397, %v392
      %v448 = vpack.c.b16 %v398, %v393
      %v449 = vpack.c.b16 %v404, %v399
      %v450 = vpack.c.b16 %v405, %v400
      %v451 = vpack.c.b16 %v406, %v401
      %v452 = vpack.c.b16 %v407, %v402
      %v453 = vpack.c.b16 %v408, %v403
      %v454 = vpack.c.b16 %v414, %v409
      %v455 = vpack.c.b16 %v415, %v410
      %v456 = vpack.c.b16 %v416, %v411
      %v457 = vpack.c.b16 %v417, %v412
      %v458 = vpack.c.b16 %v418, %v413
      %v579 = vunpack.c.l.b16 %v205
      %v580 = vunpack.c.l.b16 %v206
      %v581 = vunpack.c.l.b16 %v207
      %v582 = vunpack.c.l.b16 %v208
      %v583 = vunpack.c.l.b16 %v209
      %v584 = vunpack.c.l.b16 %v210
      %v585 = vunpack.c.l.b16 %v211
      %v586 = vunpack.c.l.b16 %v212
      %v587 = vunpack.c.l.b16 %v213
      %v588 = vunpack.c.l.b16 %v214
      %v589 = vunpack.c.l.b16 %v215
      %v590 = vunpack.c.l.b16 %v216
      %v591 = vunpack.c.l.b16 %v217
      %v592 = vunpack.c.l.b16 %v218
      %v593 = vunpack.c.l.b16 %v219
      %v594 = vunpack.c.l.b16 %v220
      %v595 = vunpack.c.l.b16 %v221
      %v596 = vunpack.c.l.b16 %v222
      %v597 = vunpack.c.l.b16 %v223
      %v598 = vunpack.c.l.b16 %v224
      %v599 = vunpack.c.l.b16 %v225
      %v600 = vunpack.c.l.b16 %v226
      %v601 = vunpack.c.l.b16 %v227
      %v602 = vunpack.c.l.b16 %v228
      %v603 = vunpack.c.l.b16 %v229
      %v604 = vunpack.c.l.b16 %v230
      %v605 = vunpack.c.l.b16 %v231
      %v606 = vunpack.c.l.b16 %v232
      %v607 = vunpack.c.l.b16 %v233
      %v608 = vunpack.c.l.b16 %v234
      %v609 = vunpack.c.l.b16 %v235
      %v610 = vunpack.c.l.b16 %v236
      %v611 = vunpack.c.l.b16 %v237
      %v612 = vunpack.c.l.b16 %v238
      %v613 = vunpack.c.l.b16 %v239
      %v614 = vunpack.c.l.b16 %v240
      %v615 = vunpack.c.l.b16 %v241
      %v616 = vunpack.c.l.b16 %v242
      %v617 = vunpack.c.l.b16 %v243
      %v618 = vunpack.c.l.b16 %v244
      %v619 = vunpack.c.l.b16 %v245
      %v620 = vunpack.c.l.b16 %v246
      %v621 = vunpack.c.l.b16 %v247
      %v622 = vunpack.c.l.b16 %v248
      %v623 = vunpack.c.l.b16 %v249
      %v624 = vunpack.c.l.b16 %v250
      %v625 = vunpack.c.l.b16 %v251
      %v626 = vunpack.c.l.b16 %v252
      %v627 = vunpack.c.l.b16 %v253
      %v628 = vunpack.c.l.b16 %v254
      %v629 = vunpack.c.l.b16 %v255
      %v630 = vunpack.c.l.b16 %v256
      %v631 = vunpack.c.l.b16 %v257
      %v632 = vunpack.c.l.b16 %v258
      %v633 = vunpack.c.l.b16 %v259
      %v634 = vunpack.c.l.b16 %v260
      %v635 = vunpack.c.l.b16 %v261
      %v636 = vunpack.c.l.b16 %v262
      %v637 = vunpack.c.l.b16 %v263
      %v638 = vunpack.c.l.b16 %v264
      %v639 = vunpack.c.l.b16 %v265
      %v640 = vunpack.c.l.b16 %v266
      %v641 = vunpack.c.l.b16 %v267
      %v642 = vunpack.c.l.b16 %v268
      %v643 = vunpack.c.l.b16 %v269
      %v644 = vunpack.c.l.b16 %v270
      %v645 = vunpack.c.l.b16 %v271
      %v646 = vunpack.c.l.b16 %v272
      %v647 = vunpack.c.l.b16 %v273
      %v648 = vunpack.c.l.b16 %v274
      %v649 = vunpack.c.l.b16 %v275
      %v650 = vunpack.c.l.b16 %v276
      %v651 = vunpack.c.l.b16 %v277
      %v652 = vunpack.c.l.b16 %v278
      %v653 = vunpack.c.l.b16 %v279
      %v654 = vunpack.c.l.b16 %v280
      %v655 = vunpack.c.l.b16 %v281
      %v656 = vunpack.c.l.b16 %v282
      %v657 = vunpack.c.l.b16 %v283
      %v658 = vunpack.c.l.b16 %v284
      %v659 = vpack.c.b16 %v580, %v579
      %v660 = vpack.c.b16 %v582, %v581
      %v661 = vpack.c.b16 %v584, %v583
      %v662 = vpack.c.b16 %v586, %v585
      %v663 = vpack.c.b16 %v588, %v587
      %v664 = vpack.c.b16 %v590, %v589
      %v665 = vpack.c.b16 %v592, %v591
      %v666 = vpack.c.b16 %v594, %v593
      %v667 = vpack.c.b16 %v596, %v595
      %v668 = vpack.c.b16 %v598, %v597
      %v669 = vpack.c.b16 %v600, %v599
      %v670 = vpack.c.b16 %v602, %v601
      %v671 = vpack.c.b16 %v604, %v603
      %v672 = vpack.c.b16 %v606, %v605
      %v673 = vpack.c.b16 %v608, %v607
      %v674 = vpack.c.b16 %v610, %v609
      %v675 = vpack.c.b16 %v612, %v611
      %v676 = vpack.c.b16 %v614, %v613
      %v677 = vpack.c.b16 %v616, %v615
      %v678 = vpack.c.b16 %v618, %v617
      %v679 = vpack.c.b16 %v620, %v619
      %v680 = vpack.c.b16 %v622, %v621
      %v681 = vpack.c.b16 %v624, %v623
      %v682 = vpack.c.b16 %v626, %v625
      %v683 = vpack.c.b16 %v628, %v627
      %v684 = vpack.c.b16 %v630, %v629
      %v685 = vpack.c.b16 %v632, %v631
      %v686 = vpack.c.b16 %v634, %v633
      %v687 = vpack.c.b16 %v636, %v635
      %v688 = vpack.c.b16 %v638, %v637
      %v689 = vpack.c.b16 %v640, %v639
      %v690 = vpack.c.b16 %v642, %v641
      %v691 = vpack.c.b16 %v644, %v643
      %v692 = vpack.c.b16 %v646, %v645
      %v693 = vpack.c.b16 %v648, %v647
      %v694 = vpack.c.b16 %v650, %v649
      %v695 = vpack.c.b16 %v652, %v651
      %v696 = vpack.c.b16 %v654, %v653
      %v697 = vpack.c.b16 %v656, %v655
      %v698 = vpack.c.b16 %v658, %v657
      %739 = vmatprep.subr.bf16.mxu0 0
      %740 = vmatpush1.bf16.msra.mxu0 %v659
      %741 = vmatprep.subr.bf16.mxu0 0
      %742 = vmatpush1.bf16.msra.mxu0 %v660
      %743 = vmatprep.subr.bf16.mxu0 0
      %744 = vmatpush1.bf16.msra.mxu0 %v661
      %745 = vmatprep.subr.bf16.mxu0 0
      %746 = vmatpush1.bf16.msra.mxu0 %v662
      %747 = vmatprep.subr.bf16.mxu0 0
      %748 = vmatpush1.bf16.msra.mxu0 %v663
      %749 = vmatprep.subr.bf16.mxu0 0
      %750 = vmatpush1.bf16.msra.mxu0 %v664
      %751 = vmatprep.subr.bf16.mxu0 0
      %752 = vmatpush1.bf16.msra.mxu0 %v665
      %753 = vmatprep.subr.bf16.mxu0 0
      %754 = vmatpush1.bf16.msra.mxu0 %v666
      %755 = vmatprep.subr.bf16.mxu0 0
      %756 = vmatpush1.bf16.msra.mxu0 %v667
      %757 = vmatprep.subr.bf16.mxu0 0
      %758 = vmatpush1.bf16.msra.mxu0 %v668
      %759 = vmatprep.subr.bf16.mxu0 0
      %760 = vmatpush1.bf16.msra.mxu0 %v669
      %761 = vmatprep.subr.bf16.mxu0 0
      %762 = vmatpush1.bf16.msra.mxu0 %v670
      %763 = vmatprep.subr.bf16.mxu0 0
      %764 = vmatpush1.bf16.msra.mxu0 %v671
      %765 = vmatprep.subr.bf16.mxu0 0
      %766 = vmatpush1.bf16.msra.mxu0 %v672
      %767 = vmatprep.subr.bf16.mxu0 0
      %768 = vmatpush1.bf16.msra.mxu0 %v673
      %769 = vmatprep.subr.bf16.mxu0 0
      %770 = vmatpush1.bf16.msra.mxu0 %v674
      %771 = vmatprep.mubr.bf16.mxu0 %v420
      %772 = vmatmul.mubr.bf16.gmra.mrb[0].mxu0 %v419
      %v773 = vpop.f32.mrb[0].mxu0
      %v774 = vadd.f32 %v290, %v773
      %v775 = vpop.f32.mrb[0].mxu0
      %v776 = vpop.f32.mrb[0].mxu0
      %v777 = vadd.f32 %v290, %v776
      %v778 = vpop.f32.mrb[0].mxu0
      %779 = vmatprep.mubr.bf16.mxu0 %v425
      %780 = vmatmul.mubr.bf16.gmra.mrb[0].mxu0 %v424
      %v781 = vpop.f32.mrb[0].mxu0
      %v782 = vadd.f32 %v290, %v781
      %v783 = vpop.f32.mrb[0].mxu0
      %v784 = vpop.f32.mrb[0].mxu0
      %v785 = vadd.f32 %v290, %v784
      %v786 = vpop.f32.mrb[0].mxu0
      %787 = vmatprep.mubr.bf16.mxu0 %v430
      %788 = vmatmul.mubr.bf16.gmra.mrb[0].mxu0 %v429
      %v789 = vpop.f32.mrb[0].mxu0
      %v790 = vadd.f32 %v290, %v789
      %v791 = vpop.f32.mrb[0].mxu0
      %v792 = vpop.f32.mrb[0].mxu0
      %v793 = vadd.f32 %v290, %v792
      %v794 = vpop.f32.mrb[0].mxu0
      %795 = vmatprep.mubr.bf16.mxu0 %v435
      %796 = vmatmul.mubr.bf16.gmra.mrb[0].mxu0 %v434
      %v797 = vpop.f32.mrb[0].mxu0
      %v798 = vadd.f32 %v290, %v797
      %v799 = vpop.f32.mrb[0].mxu0
      %v800 = vpop.f32.mrb[0].mxu0
      %v801 = vadd.f32 %v290, %v800
      %v802 = vpop.f32.mrb[0].mxu0
      %803 = vmatprep.mubr.bf16.mxu0 %v440
      %804 = vmatmul.mubr.bf16.gmra.mrb[0].mxu0 %v439
      %v805 = vpop.f32.mrb[0].mxu0
      %v806 = vadd.f32 %v290, %v805
      %v807 = vpop.f32.mrb[0].mxu0
      %v808 = vpop.f32.mrb[0].mxu0
      %v809 = vadd.f32 %v290, %v808
      %v810 = vpop.f32.mrb[0].mxu0
      %811 = vmatprep.mubr.bf16.mxu0 %v445
      %812 = vmatmul.mubr.bf16.gmra.mrb[0].mxu0 %v444
      %v813 = vpop.f32.mrb[0].mxu0
      %v814 = vadd.f32 %v290, %v813
      %v815 = vpop.f32.mrb[0].mxu0
      %v816 = vpop.f32.mrb[0].mxu0
      %v817 = vadd.f32 %v290, %v816
      %v818 = vpop.f32.mrb[0].mxu0
      %819 = vmatprep.mubr.bf16.mxu0 %v450
      %820 = vmatmul.mubr.bf16.gmra.mrb[0].mxu0 %v449
      %v821 = vpop.f32.mrb[0].mxu0
      %v822 = vadd.f32 %v290, %v821
      %v823 = vpop.f32.mrb[0].mxu0
      %v824 = vpop.f32.mrb[0].mxu0
      %v825 = vadd.f32 %v290, %v824
      %v826 = vpop.f32.mrb[0].mxu0
      %827 = vmatprep.mubr.bf16.mxu0 %v455
      %828 = vmatmul.mubr.bf16.gmra.mrb[0].mxu0 %v454
      %v829 = vpop.f32.mrb[0].mxu0
      %v830 = vadd.f32 %v290, %v829
      %v831 = vpop.f32.mrb[0].mxu0
      %v832 = vpop.f32.mrb[0].mxu0
      %v833 = vadd.f32 %v290, %v832
      %v834 = vpop.f32.mrb[0].mxu0
      %835 = vdwg.mxu0
      %836 = vmatprep.subr.bf16.mxu0 0
      %837 = vmatpush1.bf16.msra.mxu0 %v675
      %838 = vmatprep.subr.bf16.mxu0 0
      %839 = vmatpush1.bf16.msra.mxu0 %v676
      %840 = vmatprep.subr.bf16.mxu0 0
      %841 = vmatpush1.bf16.msra.mxu0 %v677
      %842 = vmatprep.subr.bf16.mxu0 0
      %843 = vmatpush1.bf16.msra.mxu0 %v678
      %844 = vmatprep.subr.bf16.mxu0 0
      %845 = vmatpush1.bf16.msra.mxu0 %v679
      %846 = vmatprep.subr.bf16.mxu0 0
      %847 = vmatpush1.bf16.msra.mxu0 %v680
      %848 = vmatprep.subr.bf16.mxu0 0
      %849 = vmatpush1.bf16.msra.mxu0 %v681
      %850 = vmatprep.subr.bf16.mxu0 0
      %851 = vmatpush1.bf16.msra.mxu0 %v682
      %852 = vmatprep.subr.bf16.mxu0 0
      %853 = vmatpush1.bf16.msra.mxu0 %v683
      %854 = vmatprep.subr.bf16.mxu0 0
      %855 = vmatpush1.bf16.msra.mxu0 %v684
      %856 = vmatprep.subr.bf16.mxu0 0
      %857 = vmatpush1.bf16.msra.mxu0 %v685
      %858 = vmatprep.subr.bf16.mxu0 0
      %859 = vmatpush1.bf16.msra.mxu0 %v686
      %860 = vmatprep.subr.bf16.mxu0 0
      %861 = vmatpush1.bf16.msra.mxu0 %v687
      %862 = vmatprep.subr.bf16.mxu0 0
      %863 = vmatpush1.bf16.msra.mxu0 %v688
      %864 = vmatprep.subr.bf16.mxu0 0
      %865 = vmatpush1.bf16.msra.mxu0 %v689
      %866 = vmatprep.subr.bf16.mxu0 0
      %867 = vmatpush1.bf16.msra.mxu0 %v690
      %868 = vmatprep.mubr.bf16.mxu0 %v422
      %869 = vmatmul.mubr.bf16.gmra.mrb[0].mxu0 %v421
      %v870 = vpop.f32.mrb[0].mxu0
      %v871 = vadd.f32 %v774, %v870
      %v872 = vpop.f32.mrb[0].mxu0
      %v873 = vpop.f32.mrb[0].mxu0
      %v874 = vadd.f32 %v777, %v873
      %v875 = vpop.f32.mrb[0].mxu0
      %876 = vmatprep.mubr.bf16.mxu0 %v427
      %877 = vmatmul.mubr.bf16.gmra.mrb[0].mxu0 %v426
      %v878 = vpop.f32.mrb[0].mxu0
      %v879 = vadd.f32 %v782, %v878
      %v880 = vpop.f32.mrb[0].mxu0
      %v881 = vpop.f32.mrb[0].mxu0
      %v882 = vadd.f32 %v785, %v881
      %v883 = vpop.f32.mrb[0].mxu0
      %884 = vmatprep.mubr.bf16.mxu0 %v432
      %885 = vmatmul.mubr.bf16.gmra.mrb[0].mxu0 %v431
      %v886 = vpop.f32.mrb[0].mxu0
      %v887 = vadd.f32 %v790, %v886
      %v888 = vpop.f32.mrb[0].mxu0
      %v889 = vpop.f32.mrb[0].mxu0
      %v890 = vadd.f32 %v793, %v889
      %v891 = vpop.f32.mrb[0].mxu0
      %892 = vmatprep.mubr.bf16.mxu0 %v437
      %893 = vmatmul.mubr.bf16.gmra.mrb[0].mxu0 %v436
      %v894 = vpop.f32.mrb[0].mxu0
      %v895 = vadd.f32 %v798, %v894
      %v896 = vpop.f32.mrb[0].mxu0
      %v897 = vpop.f32.mrb[0].mxu0
      %v898 = vadd.f32 %v801, %v897
      %v899 = vpop.f32.mrb[0].mxu0
      %900 = vmatprep.mubr.bf16.mxu0 %v442
      %901 = vmatmul.mubr.bf16.gmra.mrb[0].mxu0 %v441
      %v902 = vpop.f32.mrb[0].mxu0
      %v903 = vadd.f32 %v806, %v902
      %v904 = vpop.f32.mrb[0].mxu0
      %v905 = vpop.f32.mrb[0].mxu0
      %v906 = vadd.f32 %v809, %v905
      %v907 = vpop.f32.mrb[0].mxu0
      %908 = vmatprep.mubr.bf16.mxu0 %v447
      %909 = vmatmul.mubr.bf16.gmra.mrb[0].mxu0 %v446
      %v910 = vpop.f32.mrb[0].mxu0
      %v911 = vadd.f32 %v814, %v910
      %v912 = vpop.f32.mrb[0].mxu0
      %v913 = vpop.f32.mrb[0].mxu0
      %v914 = vadd.f32 %v817, %v913
      %v915 = vpop.f32.mrb[0].mxu0
      %916 = vmatprep.mubr.bf16.mxu0 %v452
      %917 = vmatmul.mubr.bf16.gmra.mrb[0].mxu0 %v451
      %v918 = vpop.f32.mrb[0].mxu0
      %v919 = vadd.f32 %v822, %v918
      %v920 = vpop.f32.mrb[0].mxu0
      %v921 = vpop.f32.mrb[0].mxu0
      %v922 = vadd.f32 %v825, %v921
      %v923 = vpop.f32.mrb[0].mxu0
      %924 = vmatprep.mubr.bf16.mxu0 %v457
      %925 = vmatmul.mubr.bf16.gmra.mrb[0].mxu0 %v456
      %v926 = vpop.f32.mrb[0].mxu0
      %v927 = vadd.f32 %v830, %v926
      %v928 = vpop.f32.mrb[0].mxu0
      %v929 = vpop.f32.mrb[0].mxu0
      %v930 = vadd.f32 %v833, %v929
      %v931 = vpop.f32.mrb[0].mxu0
      %932 = vdwg.mxu0
      %933 = vmatprep.subr.bf16.mxu0 0
      %934 = vmatpush1.bf16.msra.mxu0 %v691
      %935 = vmatprep.subr.bf16.mxu0 0
      %936 = vmatpush1.bf16.msra.mxu0 %v692
      %937 = vmatprep.subr.bf16.mxu0 0
      %938 = vmatpush1.bf16.msra.mxu0 %v693
      %939 = vmatprep.subr.bf16.mxu0 0
      %940 = vmatpush1.bf16.msra.mxu0 %v694
      %941 = vmatprep.subr.bf16.mxu0 0
      %942 = vmatpush1.bf16.msra.mxu0 %v695
      %943 = vmatprep.subr.bf16.mxu0 0
      %944 = vmatpush1.bf16.msra.mxu0 %v696
      %945 = vmatprep.subr.bf16.mxu0 0
      %946 = vmatpush1.bf16.msra.mxu0 %v697
      %947 = vmatprep.subr.bf16.mxu0 0
      %948 = vmatpush1.bf16.msra.mxu0 %v698
      %949 = vmatprep.subr.bf16.mxu0 0
      %950 = vmatpush1.bf16.msra.mxu0 0
      %951 = vmatprep.subr.bf16.mxu0 0
      %952 = vmatpush1.bf16.msra.mxu0 0
      %953 = vmatprep.subr.bf16.mxu0 0
      %954 = vmatpush1.bf16.msra.mxu0 0
      %955 = vmatprep.subr.bf16.mxu0 0
      %956 = vmatpush1.bf16.msra.mxu0 0
      %957 = vmatprep.subr.bf16.mxu0 0
      %958 = vmatpush1.bf16.msra.mxu0 0
      %959 = vmatprep.subr.bf16.mxu0 0
      %960 = vmatpush1.bf16.msra.mxu0 0
      %961 = vmatprep.subr.bf16.mxu0 0
      %962 = vmatpush1.bf16.msra.mxu0 0
      %963 = vmatprep.subr.bf16.mxu0 0
      %964 = vmatpush1.bf16.msra.mxu0 0
      %965 = vmatprep.mubr.bf16.mxu0 0
      %966 = vmatmul.mubr.bf16.gmra.mrb[0].mxu0 %v423
      %v967 = vpop.f32.mrb[0].mxu0
      %v968 = vadd.f32 %v871, %v967
      %v969 = vpop.f32.mrb[0].mxu0
      %v970 = vpop.f32.mrb[0].mxu0
      %v971 = vadd.f32 %v874, %v970
      %v972 = vpop.f32.mrb[0].mxu0
      %973 = vmatprep.mubr.bf16.mxu0 0
      %974 = vmatmul.mubr.bf16.gmra.mrb[0].mxu0 %v428
      %v975 = vpop.f32.mrb[0].mxu0
      %v976 = vadd.f32 %v879, %v975
      %v977 = vpop.f32.mrb[0].mxu0
      %v978 = vpop.f32.mrb[0].mxu0
      %v979 = vadd.f32 %v882, %v978
      %v980 = vpop.f32.mrb[0].mxu0
      %981 = vmatprep.mubr.bf16.mxu0 0
      %982 = vmatmul.mubr.bf16.gmra.mrb[0].mxu0 %v433
      %v983 = vpop.f32.mrb[0].mxu0
      %v984 = vadd.f32 %v887, %v983
      %v985 = vpop.f32.mrb[0].mxu0
      %v986 = vpop.f32.mrb[0].mxu0
      %v987 = vadd.f32 %v890, %v986
      %v988 = vpop.f32.mrb[0].mxu0
      %989 = vmatprep.mubr.bf16.mxu0 0
      %990 = vmatmul.mubr.bf16.gmra.mrb[0].mxu0 %v438
      %v991 = vpop.f32.mrb[0].mxu0
      %v992 = vadd.f32 %v895, %v991
      %v993 = vpop.f32.mrb[0].mxu0
      %v994 = vpop.f32.mrb[0].mxu0
      %v995 = vadd.f32 %v898, %v994
      %v996 = vpop.f32.mrb[0].mxu0
      %997 = vmatprep.mubr.bf16.mxu0 0
      %998 = vmatmul.mubr.bf16.gmra.mrb[0].mxu0 %v443
      %v999 = vpop.f32.mrb[0].mxu0
      %v1000 = vadd.f32 %v903, %v999
      %v1001 = vpop.f32.mrb[0].mxu0
      %v1002 = vpop.f32.mrb[0].mxu0
      %v1003 = vadd.f32 %v906, %v1002
      %v1004 = vpop.f32.mrb[0].mxu0
      %1005 = vmatprep.mubr.bf16.mxu0 0
      %1006 = vmatmul.mubr.bf16.gmra.mrb[0].mxu0 %v448
      %v1007 = vpop.f32.mrb[0].mxu0
      %v1008 = vadd.f32 %v911, %v1007
      %v1009 = vpop.f32.mrb[0].mxu0
      %v1010 = vpop.f32.mrb[0].mxu0
      %v1011 = vadd.f32 %v914, %v1010
      %v1012 = vpop.f32.mrb[0].mxu0
      %1013 = vmatprep.mubr.bf16.mxu0 0
      %1014 = vmatmul.mubr.bf16.gmra.mrb[0].mxu0 %v453
      %v1015 = vpop.f32.mrb[0].mxu0
      %v1016 = vadd.f32 %v919, %v1015
      %v1017 = vpop.f32.mrb[0].mxu0
      %v1018 = vpop.f32.mrb[0].mxu0
      %v1019 = vadd.f32 %v922, %v1018
      %v1020 = vpop.f32.mrb[0].mxu0
      %1021 = vmatprep.mubr.bf16.mxu0 0
      %1022 = vmatmul.mubr.bf16.gmra.mrb[0].mxu0 %v458
      %v1023 = vpop.f32.mrb[0].mxu0
      %v1024 = vadd.f32 %v927, %v1023
      %v1025 = vpop.f32.mrb[0].mxu0
      %v1026 = vpop.f32.mrb[0].mxu0
      %v1027 = vadd.f32 %v930, %v1026
      %v1028 = vpop.f32.mrb[0].mxu0
      %1029 = vdwg.mxu0
      %v1030 = vtanh.pop %v968
      %v1031 = vtanh.pop %v971
      %v1032 = vtanh.pop %v976
      %v1033 = vtanh.pop %v979
      %v1034 = vtanh.pop %v984
      %v1035 = vtanh.pop %v987
      %v1036 = vtanh.pop %v992
      %v1037 = vtanh.pop %v995
      %v1038 = vtanh.pop %v1000
      %v1039 = vtanh.pop %v1003
      %v1040 = vtanh.pop %v1008
      %v1041 = vtanh.pop %v1011
      %v1042 = vtanh.pop %v1016
      %v1043 = vtanh.pop %v1019
      %v1044 = vtanh.pop %v1024
      %v1045 = vtanh.pop %v1027
      %s1046 = scalar_lea.vmem %s3, %s285
      %1047 = vst [vmem:[%s1046] sm:$0xff] %v1030
      %1048 = vst [vmem:[%s1046 + $0x8] sm:$0xff] %v1031
      %1049 = vst [vmem:[%s1046 + $0x10] sm:$0xff] %v1032
      %1050 = vst [vmem:[%s1046 + $0x18] sm:$0xff] %v1033
      %1051 = vst [vmem:[%s1046 + $0x20] sm:$0xff] %v1034
      %1052 = vst [vmem:[%s1046 + $0x28] sm:$0xff] %v1035
      %1053 = vst [vmem:[%s1046 + $0x30] sm:$0xff] %v1036
      %1054 = vst [vmem:[%s1046 + $0x38] sm:$0xff] %v1037
      %1055 = vst [vmem:[%s1046 + $0x40] sm:$0xff] %v1038
      %1056 = vst [vmem:[%s1046 + $0x48] sm:$0xff] %v1039
      %1057 = vst [vmem:[%s1046 + $0x50] sm:$0xff] %v1040
      %1058 = vst [vmem:[%s1046 + $0x58] sm:$0xff] %v1041
      %1059 = vst [vmem:[%s1046 + $0x60] sm:$0xff] %v1042
      %1060 = vst [vmem:[%s1046 + $0x68] sm:$0xff] %v1043
      %1061 = vst [vmem:[%s1046 + $0x70] sm:$0xff] %v1044
      %1062 = vst [vmem:[%s1046 + $0x78] sm:$0xff] %v1045
      // Predicated region
      $region33: #{generator_forward.11} parent=31 // pred_check
        %p1063 = pneg %p95
      $region34: #{generator_forward.11} parent=31 // pred_check_branch
        %1065 = sbr.rel (%p1063) target = $region36
      $region35: #{generator_forward.11} parent=31 // pred_region
        _
      $region36: #{generator_forward.11} parent=31 // pred_fallthru
        _
      // Predicated region
      $region37: #{generator_forward.11} parent=31 // pred_check
        %p1066 = pneg %p95
      $region38: #{generator_forward.11} parent=31 // pred_check_branch
        %1068 = sbr.rel (%p1066) target = $region40
      $region39: #{generator_forward.11} parent=31 // pred_region
        _
      $region40: #{generator_forward.11} parent=31 // pred_fallthru
        _
    $region32: #{generator_forward.11} parent=5 // pred_fallthru
      _
    %p1069 = scmp.le.s32.totalorder 2, %s9
    // Predicated region
    $region41: #{generator_forward.11} parent=5 // pred_check
      %p1070 = pneg %p1069
    $region42: #{generator_forward.11} parent=5 // pred_check_branch
      %1072 = sbr.rel (%p1070) target = $region44
    $region43: #{generator_forward.11} parent=5 // pred_region
      %s1073 = ssub.s32 %s9, 2
    $region44: #{generator_forward.11} parent=5 // pred_fallthru
      _
  $region6: #{generator_forward.11} parent=0 // loop_footer
    %s13 = sadd.s32 1, %s9
  $region7: #{generator_forward.11} parent=0 // loop_footer_branch
    %8 = sbr.rel target = $region3
  $region8: #{generator_forward.11} parent=0 // loop_exit
    _

</llo_original>
